<compile_context>
chip_gen: v7x
topology: tpu7x:2x2x1
jax: 0.10.0
libtpu: 0.0.40
codegen_flags: <defaults>
</compile_context>

<pallas_src>
import functools

import jax
import jax.numpy as jnp
from jax.experimental import pallas as pl
from jax.experimental.pallas import tpu as pltpu


def _pad_to(n, m):
    return ((n + m - 1) // m) * m


def _choose_tile(dim_padded, candidates):
    """Pick the largest candidate tile that evenly divides dim_padded."""
    for c in candidates:
        if dim_padded % c == 0:
            return c
    return dim_padded  # unreachable: dims are padded to multiples of 128


# ---------------------------------------------------------------------------
# Pallas kernel 1: tiled bf16 matmul fused with bias + LeakyReLU epilogue
# ---------------------------------------------------------------------------
def _conv_mm_kernel(p_ref, w_ref, b_ref, o_ref, acc_ref, *, alpha):
    k = pl.program_id(2)

    @pl.when(k == 0)
    def _():
        acc_ref[...] = jnp.zeros_like(acc_ref)

    acc_ref[...] += jnp.dot(p_ref[...], w_ref[...],
                            preferred_element_type=jnp.float32)

    @pl.when(k == pl.num_programs(2) - 1)
    def _():
        y = acc_ref[...] + b_ref[...]          # f32 epilogue
        y = jnp.where(y > 0, y, alpha * y)     # LeakyReLU (alpha=1 -> linear)
        o_ref[...] = y.astype(o_ref.dtype)


def conv_matmul(patches, w_pad, bias_pad, alpha, n_out):
    """patches: (M, K) bf16;  w_pad: (Kp, Np) bf16 (BN scale folded, padded);
    bias_pad: (1, Np) f32.  Returns (M, n_out) bf16."""
    M, K = patches.shape
    Kp, Np = w_pad.shape
    Mp = _pad_to(M, 128)

    TM = _choose_tile(Mp, (512, 256, 128))
    TN = _choose_tile(Np, (256, 128))
    TK = _choose_tile(Kp, (512, 256, 128))

    p = jnp.pad(patches.astype(jnp.bfloat16), ((0, Mp - M), (0, Kp - K)))

    out = pl.pallas_call(
        functools.partial(_conv_mm_kernel, alpha=alpha),
        out_shape=jax.ShapeDtypeStruct((Mp, Np), jnp.bfloat16),
        grid_spec=pltpu.PrefetchScalarGridSpec(
            num_scalar_prefetch=0,
            grid=(Mp // TM, Np // TN, Kp // TK),
            in_specs=[
                pl.BlockSpec((TM, TK), lambda i, j, k: (i, k)),
                pl.BlockSpec((TK, TN), lambda i, j, k: (k, j)),
                pl.BlockSpec((1, TN), lambda i, j, k: (0, j)),
            ],
            out_specs=pl.BlockSpec((TM, TN), lambda i, j, k: (i, j)),
            scratch_shapes=[pltpu.VMEM((TM, TN), jnp.float32)],
        ),
        compiler_params=pltpu.CompilerParams(
            dimension_semantics=("parallel", "parallel", "arbitrary"),
            vmem_limit_bytes=32 * 1024 * 1024,
        ),
    )(p, w_pad, bias_pad)
    return out[:M, :n_out]


# ---------------------------------------------------------------------------
# Pallas kernel 2: YOLO head decode (one grid step per (batch, anchor) plane)
# ---------------------------------------------------------------------------
def _yolo_kernel(pred_ref, o_ref, *, n_classes, stride, anchors, num_anchors):
    nb = 5 + n_classes
    a_idx = pl.program_id(0) % num_anchors          # scalar anchor index

    p = pred_ref[...].astype(jnp.float32)           # (1, G, G, Cp)
    col = jax.lax.broadcasted_iota(jnp.int32, p.shape, 3)
    gy = jax.lax.broadcasted_iota(jnp.int32, p.shape, 1).astype(jnp.float32)
    gx = jax.lax.broadcasted_iota(jnp.int32, p.shape, 2).astype(jnp.float32)

    # Single exp per element; sigmoid = e^p / (1 + e^p) via EUP reciprocal.
    ex = jnp.exp(p)
    sig = ex * pl.reciprocal(1.0 + ex, approx=True)
    sig = jnp.where(p > 15.0, 1.0, sig)             # guard overflow (p large)

    # Select per-anchor (already stride-scaled) width/height from constants.
    aw = jnp.float32(anchors[num_anchors - 1][0])
    ah = jnp.float32(anchors[num_anchors - 1][1])
    for m in range(num_anchors - 1):
        aw = jnp.where(a_idx == m, anchors[m][0], aw)
        ah = jnp.where(a_idx == m, anchors[m][1], ah)

    out = jnp.where(col == 0, (sig + gx) * stride,
          jnp.where(col == 1, (sig + gy) * stride,
          jnp.where(col == 2, ex * aw * stride,
          jnp.where(col == 3, ex * ah * stride,
          jnp.where(col < nb, sig, 0.0)))))
    o_ref[...] = out


def yolo_layer(x, anchors, n_classes, img_dim):
    """x: (B, G, G, A*(5+nc)) NHWC bf16 -> (B, A*G*G, 5+nc) f32."""
    B, G, _, _ = x.shape
    A = len(anchors)
    nb = 5 + n_classes
    stride = float(img_dim) / float(G)

    # NCHW .view(B, A, nb, G, G).permute(0,1,3,4,2) == NHWC reshape+transpose:
    pred = x.reshape(B, G, G, A, nb).transpose(0, 3, 1, 2, 4)     # (B,A,G,G,nb)
    pred = pred.reshape(B * A, G, G, nb)
    Cp = _pad_to(nb, 128)
    pred = jnp.pad(pred, ((0, 0), (0, 0), (0, 0), (0, Cp - nb)))

    scaled_anchors = tuple((float(aw) / stride, float(ah) / stride)
                           for aw, ah in anchors)

    out = pl.pallas_call(
        functools.partial(_yolo_kernel, n_classes=n_classes, stride=stride,
                          anchors=scaled_anchors, num_anchors=A),
        out_shape=jax.ShapeDtypeStruct((B * A, G, G, Cp), jnp.float32),
        grid_spec=pltpu.PrefetchScalarGridSpec(
            num_scalar_prefetch=0,
            grid=(B * A,),
            in_specs=[pl.BlockSpec((1, G, G, Cp), lambda i: (i, 0, 0, 0))],
            out_specs=pl.BlockSpec((1, G, G, Cp), lambda i: (i, 0, 0, 0)),
        ),
        compiler_params=pltpu.CompilerParams(
            dimension_semantics=("parallel",)),
    )(pred)
    return out[..., :nb].reshape(B, A * G * G, nb)


# ---------------------------------------------------------------------------
# Glue: im2col, upsample, model definition
# ---------------------------------------------------------------------------
def im2col(x, k, stride, pad):
    B, H, W, C = x.shape
    xp = jnp.pad(x, ((0, 0), (pad, pad), (pad, pad), (0, 0)))
    Ho = (H + 2 * pad - k) // stride + 1
    Wo = (W + 2 * pad - k) // stride + 1
    cols = []
    for dy in range(k):
        for dx in range(k):
            cols.append(xp[:, dy:dy + stride * Ho:stride,
                           dx:dx + stride * Wo:stride, :])
    patches = jnp.concatenate(cols, axis=-1)          # (B, Ho, Wo, k*k*C) bf16
    return patches.reshape(B * Ho * Wo, k * k * C), Ho, Wo


def conv_block(x, p):
    B = x.shape[0]
    if p['k'] == 1 and p['stride'] == 1:
        Ho, Wo, C = x.shape[1], x.shape[2], x.shape[3]
        patches = x.reshape(B * Ho * Wo, C)           # 1x1 conv: no im2col
    else:
        patches, Ho, Wo = im2col(x, p['k'], p['stride'], p['pad'])
    out = conv_matmul(patches, p['w'], p['bias'], p['alpha'], p['c_out'])
    return out.reshape(B, Ho, Wo, p['c_out'])


def upsample_nearest(x, s):
    return jnp.repeat(jnp.repeat(x, s, axis=1), s, axis=2)


# Reduced Darknet config (exercises all block types of the reference).
MINI_YOLO_CONFIG = [
    dict(type='convolutional', filters=8, size=3, stride=1, batch_normalize=1, activation='leaky'),
    dict(type='convolutional', filters=16, size=3, stride=2, batch_normalize=1, activation='leaky'),
    dict(type='convolutional', filters=8, size=1, stride=1, batch_normalize=1, activation='leaky'),
    dict(type='convolutional', filters=16, size=3, stride=1, batch_normalize=1, activation='leaky'),
    dict(type='shortcut', from_=-3, activation='linear'),
    dict(type='convolutional', filters=32, size=3, stride=2, batch_normalize=1, activation='leaky'),
    dict(type='convolutional', filters=16, size=1, stride=1, batch_normalize=1, activation='leaky'),
    dict(type='convolutional', filters=32, size=3, stride=1, batch_normalize=1, activation='leaky'),
    dict(type='shortcut', from_=-3, activation='linear'),
    dict(type='convolutional_before_yolo', size=1, stride=1, batch_normalize=0, activation='linear'),
    dict(type='yolo', mask=[3, 4, 5]),
    dict(type='route', layers=[-4]),
    dict(type='convolutional', filters=16, size=1, stride=1, batch_normalize=1, activation='leaky'),
    dict(type='upsample', stride=2),
    dict(type='route', layers=[-1, -10]),
    dict(type='convolutional', filters=32, size=3, stride=1, batch_normalize=1, activation='leaky'),
    dict(type='convolutional_before_yolo', size=1, stride=1, batch_normalize=0, activation='linear'),
    dict(type='yolo', mask=[0, 1, 2]),
]
ANCHORS = [(2, 3), (4, 5), (6, 8), (9, 12), (14, 18), (20, 26)]


def init_params(key, n_channels, n_classes, blocks):
    params = []
    channels = [n_channels]
    for blk in blocks:
        t = blk['type']
        if t in ('convolutional', 'convolutional_before_yolo'):
            c_in = channels[-1]
            c_out = (n_classes + 5) * 3 if t == 'convolutional_before_yolo' else blk['filters']
            k = blk['size']
            K = k * k * c_in
            key, k1, k2, k3, k4, k5 = jax.random.split(key, 6)
            # weight stored as (k*k*C_in, C_out), ordering matches im2col (dy, dx, c_in)
            w = 0.1 * jax.random.normal(k1, (K, c_out), jnp.float32)
            if blk.get('batch_normalize', 0):
                gamma = 1.0 + 0.1 * jax.random.normal(k2, (c_out,), jnp.float32)
                beta = 0.05 * jax.random.normal(k3, (c_out,), jnp.float32)
                rmean = 0.05 * jax.random.normal(k4, (c_out,), jnp.float32)
                rvar = 1.0 + 0.1 * jax.random.uniform(k5, (c_out,), jnp.float32)
                scale = gamma / jnp.sqrt(rvar + 1e-5)
                bias = beta - rmean * scale
                w = w * scale[None, :]                 # fold BN scale into weights
            else:
                bias = 0.05 * jax.random.normal(k2, (c_out,), jnp.float32)  # conv bias
            alpha = 0.1 if blk['activation'] == 'leaky' else 1.0
            # pre-pad weights/bias once (no per-forward zero+set copies)
            Kp = _pad_to(K, 128)
            Np = _pad_to(c_out, 128)
            w_pad = jnp.pad(w, ((0, Kp - K), (0, Np - c_out))).astype(jnp.bfloat16)
            bias_pad = jnp.pad(bias, (0, Np - c_out)).reshape(1, Np).astype(jnp.float32)
            params.append(dict(w=w_pad, bias=bias_pad, k=k, stride=blk['stride'],
                               pad=(k - 1) // 2, alpha=alpha, c_out=c_out))
            channels.append(c_out)
        elif t == 'shortcut':
            channels.append(channels[1:][blk['from_']])
            params.append(None)
        elif t == 'route':
            channels.append(sum(channels[1:][l] for l in blk['layers']))
            params.append(None)
        else:  # upsample, yolo
            channels.append(channels[-1])
            params.append(None)
    return params


def darknet_forward(x_nchw, params, blocks, n_classes, img_size, anchors_all):
    # NCHW -> NHWC, bf16 activations between layers
    x = jnp.transpose(x_nchw, (0, 2, 3, 1)).astype(jnp.bfloat16)
    layer_outputs = []
    yolo_outputs = []
    for blk, p in zip(blocks, params):
        t = blk['type']
        if t in ('convolutional', 'convolutional_before_yolo'):
            x = conv_block(x, p)
        elif t == 'upsample':
            x = upsample_nearest(x, blk['stride'])
        elif t == 'shortcut':
            x = layer_outputs[-1] + layer_outputs[blk['from_']]
        elif t == 'route':
            x = jnp.concatenate([layer_outputs[l] for l in blk['layers']], axis=-1)
        elif t == 'yolo':
            anchors = [anchors_all[i] for i in blk['mask']]
            x = yolo_layer(x, anchors, n_classes, img_size)
            yolo_outputs.append(x)
        layer_outputs.append(x)
    yolo_out_cat = jnp.concatenate(yolo_outputs, axis=1)
    return yolo_out_cat, yolo_outputs


if __name__ == "__main__":
    key = jax.random.PRNGKey(0)
    n_channels, n_classes, img_size = 3, 8, 32
    kx, kp = jax.random.split(key)
    x = jax.random.normal(kx, (2, n_channels, img_size, img_size), jnp.float32)
    params = init_params(kp, n_channels, n_classes, MINI_YOLO_CONFIG)

    fwd = jax.jit(lambda inp: darknet_forward(
        inp, params, MINI_YOLO_CONFIG, n_classes, img_size, ANCHORS))
    yolo_cat, yolo_outs = fwd(x)
    jax.block_until_ready(yolo_cat)

    assert yolo_cat.shape == (2, 3 * 8 * 8 + 3 * 16 * 16, 5 + n_classes), yolo_cat.shape
    assert yolo_outs[0].shape == (2, 3 * 8 * 8, 5 + n_classes)
    assert yolo_outs[1].shape == (2, 3 * 16 * 16, 5 + n_classes)
    assert bool(jnp.all(jnp.isfinite(yolo_cat)))
    print("KERNEL_OK")
</pallas_src>

<mosaic_0001>
module attributes {stable_mosaic.version = 11 : i64} {
  func.func @_conv_mm_kernel(%arg0: i32, %arg1: i32, %arg2: i32, %arg3: memref<512x128xbf16, #tpu.memory_space<vmem>>, %arg4: memref<128x128xbf16, #tpu.memory_space<vmem>>, %arg5: memref<1x128xf32, #tpu.memory_space<vmem>>, %arg6: memref<512x128xbf16, #tpu.memory_space<vmem>>, %arg7: memref<512x128xf32, #tpu.memory_space<vmem>>) attributes {dimension_semantics = [#tpu.dimension_semantics<parallel>, #tpu.dimension_semantics<parallel>, #tpu.dimension_semantics<arbitrary>], iteration_bounds = array<i64: 4, 1, 1>, scalar_prefetch = 0 : i64, scratch_operands = 1 : i64, tpu.core_type = #tpu.core_type<tc>, window_params = [{transform_indices = @transform_0, window_bounds = array<i64: 512, 128>}, {transform_indices = @transform_1, window_bounds = array<i64: 128, 128>}, {transform_indices = @transform_2, window_bounds = array<i64: 1, 128>}, {transform_indices = @transform_3, window_bounds = array<i64: 512, 128>}]} {
    %c0_i32 = arith.constant 0 : i32
    %0 = arith.cmpi eq, %arg2, %c0_i32 : i32
    %1 = arith.extui %0 : i1 to i32
    %c0_i32_0 = arith.constant 0 : i32
    %2 = arith.cmpi ne, %1, %c0_i32_0 : i32
    scf.if %2 {
      %cst_10 = arith.constant 0.000000e+00 : f32
      %12 = vector.broadcast %cst_10 : f32 to vector<512x128xf32>
      %c0_11 = arith.constant 0 : index
      %c0_12 = arith.constant 0 : index
      %13 = vector.load %arg7[%c0_11, %c0_12] : memref<512x128xf32, #tpu.memory_space<vmem>>, vector<512x128xf32>
      tpu.vector_store %arg7[%c0_11, %c0_12], %12 {strides = array<i32>} : memref<512x128xf32, #tpu.memory_space<vmem>>, vector<512x128xf32>,
    } else {
    }
    %c0 = arith.constant 0 : index
    %c0_1 = arith.constant 0 : index
    %3 = vector.load %arg7[%c0, %c0_1] : memref<512x128xf32, #tpu.memory_space<vmem>>, vector<512x128xf32>
    %c0_2 = arith.constant 0 : index
    %c0_3 = arith.constant 0 : index
    %4 = vector.load %arg3[%c0_2, %c0_3] : memref<512x128xbf16, #tpu.memory_space<vmem>>, vector<512x128xbf16>
    %c0_4 = arith.constant 0 : index
    %c0_5 = arith.constant 0 : index
    %5 = vector.load %arg4[%c0_4, %c0_5] : memref<128x128xbf16, #tpu.memory_space<vmem>>, vector<128x128xbf16>
    %cst = arith.constant dense<0.000000e+00> : vector<512x128xf32>
    %6 = tpu.matmul %4, %5, %cst {dimension_numbers = #tpu.dot_dimension_numbers<[1], [0], [0], [1], [0, 0, 1, 1], [], []>} : vector<512x128xbf16>, vector<128x128xbf16>, vector<512x128xf32> -> vector<512x128xf32>
    %7 = arith.addf %3, %6 : vector<512x128xf32>
    %c0_6 = arith.constant 0 : index
    %c0_7 = arith.constant 0 : index
    %8 = vector.load %arg7[%c0_6, %c0_7] : memref<512x128xf32, #tpu.memory_space<vmem>>, vector<512x128xf32>
    tpu.vector_store %arg7[%c0_6, %c0_7], %7 {strides = array<i32>} : memref<512x128xf32, #tpu.memory_space<vmem>>, vector<512x128xf32>,
    %c0_i32_8 = arith.constant 0 : i32
    %9 = arith.cmpi eq, %arg2, %c0_i32_8 : i32
    %10 = arith.extui %9 : i1 to i32
    %c0_i32_9 = arith.constant 0 : i32
    %11 = arith.cmpi ne, %10, %c0_i32_9 : i32
    scf.if %11 {
      %c0_10 = arith.constant 0 : index
      %c0_11 = arith.constant 0 : index
      %12 = vector.load %arg7[%c0_10, %c0_11] : memref<512x128xf32, #tpu.memory_space<vmem>>, vector<512x128xf32>
      %c0_12 = arith.constant 0 : index
      %c0_13 = arith.constant 0 : index
      %13 = vector.load %arg5[%c0_12, %c0_13] : memref<1x128xf32, #tpu.memory_space<vmem>>, vector<1x128xf32>
      %14 = vector.broadcast %13 : vector<1x128xf32> to vector<512x128xf32>
      %15 = arith.addf %12, %14 : vector<512x128xf32>
      %cst_14 = arith.constant 0.000000e+00 : f32
      %16 = vector.broadcast %cst_14 : f32 to vector<512x128xf32>
      %17 = arith.cmpf ogt, %15, %16 : vector<512x128xf32>
      %cst_15 = arith.constant 1.000000e-01 : f32
      %18 = vector.broadcast %cst_15 : f32 to vector<512x128xf32>
      %19 = arith.mulf %18, %15 : vector<512x128xf32>
      %20 = arith.select %17, %15, %19 : vector<512x128xi1>, vector<512x128xf32>
      %21 = arith.truncf %20 : vector<512x128xf32> to vector<512x128xbf16>
      %c0_16 = arith.constant 0 : index
      %c0_17 = arith.constant 0 : index
      %22 = vector.load %arg6[%c0_16, %c0_17] : memref<512x128xbf16, #tpu.memory_space<vmem>>, vector<512x128xbf16>
      tpu.vector_store %arg6[%c0_16, %c0_17], %21 {strides = array<i32>} : memref<512x128xbf16, #tpu.memory_space<vmem>>, vector<512x128xbf16>,
    } else {
    }
    return
  }
  func.func @transform_0(%arg0: i32, %arg1: i32, %arg2: i32) -> (i32, i32) {
    %c0_i32 = arith.constant 0 : i32
    return %arg0, %arg2 : i32, i32
  }
  func.func @transform_1(%arg0: i32, %arg1: i32, %arg2: i32) -> (i32, i32) {
    %c0_i32 = arith.constant 0 : i32
    return %arg2, %arg1 : i32, i32
  }
  func.func @transform_2(%arg0: i32, %arg1: i32, %arg2: i32) -> (i32, i32) {
    %c0_i32 = arith.constant 0 : i32
    %c0_i32_0 = arith.constant 0 : i32
    return %c0_i32, %arg1 : i32, i32
  }
  func.func @transform_3(%arg0: i32, %arg1: i32, %arg2: i32) -> (i32, i32) {
    %c0_i32 = arith.constant 0 : i32
    return %arg0, %arg1 : i32, i32
  }
}

module attributes {stable_mosaic.version = 11 : i64} {
  func.func @_conv_mm_kernel(%arg0: i32, %arg1: i32, %arg2: i32, %arg3: memref<512x128xbf16, #tpu.memory_space<vmem>>, %arg4: memref<128x128xbf16, #tpu.memory_space<vmem>>, %arg5: memref<1x128xf32, #tpu.memory_space<vmem>>, %arg6: memref<512x128xbf16, #tpu.memory_space<vmem>>, %arg7: memref<512x128xf32, #tpu.memory_space<vmem>>) attributes {dimension_semantics = [#tpu.dimension_semantics<parallel>, #tpu.dimension_semantics<parallel>, #tpu.dimension_semantics<arbitrary>], iteration_bounds = array<i64: 1, 1, 1>, scalar_prefetch = 0 : i64, scratch_operands = 1 : i64, tpu.core_type = #tpu.core_type<tc>, window_params = [{transform_indices = @transform_0, window_bounds = array<i64: 512, 128>}, {transform_indices = @transform_1, window_bounds = array<i64: 128, 128>}, {transform_indices = @transform_2, window_bounds = array<i64: 1, 128>}, {transform_indices = @transform_3, window_bounds = array<i64: 512, 128>}]} {
    %c0_i32 = arith.constant 0 : i32
    %0 = arith.cmpi eq, %arg2, %c0_i32 : i32
    %1 = arith.extui %0 : i1 to i32
    %c0_i32_0 = arith.constant 0 : i32
    %2 = arith.cmpi ne, %1, %c0_i32_0 : i32
    scf.if %2 {
      %cst_10 = arith.constant 0.000000e+00 : f32
      %12 = vector.broadcast %cst_10 : f32 to vector<512x128xf32>
      %c0_11 = arith.constant 0 : index
      %c0_12 = arith.constant 0 : index
      %13 = vector.load %arg7[%c0_11, %c0_12] : memref<512x128xf32, #tpu.memory_space<vmem>>, vector<512x128xf32>
      tpu.vector_store %arg7[%c0_11, %c0_12], %12 {strides = array<i32>} : memref<512x128xf32, #tpu.memory_space<vmem>>, vector<512x128xf32>,
    } else {
    }
    %c0 = arith.constant 0 : index
    %c0_1 = arith.constant 0 : index
    %3 = vector.load %arg7[%c0, %c0_1] : memref<512x128xf32, #tpu.memory_space<vmem>>, vector<512x128xf32>
    %c0_2 = arith.constant 0 : index
    %c0_3 = arith.constant 0 : index
    %4 = vector.load %arg3[%c0_2, %c0_3] : memref<512x128xbf16, #tpu.memory_space<vmem>>, vector<512x128xbf16>
    %c0_4 = arith.constant 0 : index
    %c0_5 = arith.constant 0 : index
    %5 = vector.load %arg4[%c0_4, %c0_5] : memref<128x128xbf16, #tpu.memory_space<vmem>>, vector<128x128xbf16>
    %cst = arith.constant dense<0.000000e+00> : vector<512x128xf32>
    %6 = tpu.matmul %4, %5, %cst {dimension_numbers = #tpu.dot_dimension_numbers<[1], [0], [0], [1], [0, 0, 1, 1], [], []>} : vector<512x128xbf16>, vector<128x128xbf16>, vector<512x128xf32> -> vector<512x128xf32>
    %7 = arith.addf %3, %6 : vector<512x128xf32>
    %c0_6 = arith.constant 0 : index
    %c0_7 = arith.constant 0 : index
    %8 = vector.load %arg7[%c0_6, %c0_7] : memref<512x128xf32, #tpu.memory_space<vmem>>, vector<512x128xf32>
    tpu.vector_store %arg7[%c0_6, %c0_7], %7 {strides = array<i32>} : memref<512x128xf32, #tpu.memory_space<vmem>>, vector<512x128xf32>,
    %c0_i32_8 = arith.constant 0 : i32
    %9 = arith.cmpi eq, %arg2, %c0_i32_8 : i32
    %10 = arith.extui %9 : i1 to i32
    %c0_i32_9 = arith.constant 0 : i32
    %11 = arith.cmpi ne, %10, %c0_i32_9 : i32
    scf.if %11 {
      %c0_10 = arith.constant 0 : index
      %c0_11 = arith.constant 0 : index
      %12 = vector.load %arg7[%c0_10, %c0_11] : memref<512x128xf32, #tpu.memory_space<vmem>>, vector<512x128xf32>
      %c0_12 = arith.constant 0 : index
      %c0_13 = arith.constant 0 : index
      %13 = vector.load %arg5[%c0_12, %c0_13] : memref<1x128xf32, #tpu.memory_space<vmem>>, vector<1x128xf32>
      %14 = vector.broadcast %13 : vector<1x128xf32> to vector<512x128xf32>
      %15 = arith.addf %12, %14 : vector<512x128xf32>
      %cst_14 = arith.constant 0.000000e+00 : f32
      %16 = vector.broadcast %cst_14 : f32 to vector<512x128xf32>
      %17 = arith.cmpf ogt, %15, %16 : vector<512x128xf32>
      %cst_15 = arith.constant 1.000000e-01 : f32
      %18 = vector.broadcast %cst_15 : f32 to vector<512x128xf32>
      %19 = arith.mulf %18, %15 : vector<512x128xf32>
      %20 = arith.select %17, %15, %19 : vector<512x128xi1>, vector<512x128xf32>
      %21 = arith.truncf %20 : vector<512x128xf32> to vector<512x128xbf16>
      %c0_16 = arith.constant 0 : index
      %c0_17 = arith.constant 0 : index
      %22 = vector.load %arg6[%c0_16, %c0_17] : memref<512x128xbf16, #tpu.memory_space<vmem>>, vector<512x128xbf16>
      tpu.vector_store %arg6[%c0_16, %c0_17], %21 {strides = array<i32>} : memref<512x128xbf16, #tpu.memory_space<vmem>>, vector<512x128xbf16>,
    } else {
    }
    return
  }
  func.func @transform_0(%arg0: i32, %arg1: i32, %arg2: i32) -> (i32, i32) {
    %c0_i32 = arith.constant 0 : i32
    return %arg0, %arg2 : i32, i32
  }
  func.func @transform_1(%arg0: i32, %arg1: i32, %arg2: i32) -> (i32, i32) {
    %c0_i32 = arith.constant 0 : i32
    return %arg2, %arg1 : i32, i32
  }
  func.func @transform_2(%arg0: i32, %arg1: i32, %arg2: i32) -> (i32, i32) {
    %c0_i32 = arith.constant 0 : i32
    %c0_i32_0 = arith.constant 0 : i32
    return %c0_i32, %arg1 : i32, i32
  }
  func.func @transform_3(%arg0: i32, %arg1: i32, %arg2: i32) -> (i32, i32) {
    %c0_i32 = arith.constant 0 : i32
    return %arg0, %arg1 : i32, i32
  }
}

module attributes {stable_mosaic.version = 11 : i64} {
  func.func @_conv_mm_kernel(%arg0: i32, %arg1: i32, %arg2: i32, %arg3: memref<128x256xbf16, #tpu.memory_space<vmem>>, %arg4: memref<256x128xbf16, #tpu.memory_space<vmem>>, %arg5: memref<1x128xf32, #tpu.memory_space<vmem>>, %arg6: memref<128x128xbf16, #tpu.memory_space<vmem>>, %arg7: memref<128x128xf32, #tpu.memory_space<vmem>>) attributes {dimension_semantics = [#tpu.dimension_semantics<parallel>, #tpu.dimension_semantics<parallel>, #tpu.dimension_semantics<arbitrary>], iteration_bounds = array<i64: 1, 1, 1>, scalar_prefetch = 0 : i64, scratch_operands = 1 : i64, tpu.core_type = #tpu.core_type<tc>, window_params = [{transform_indices = @transform_0, window_bounds = array<i64: 128, 256>}, {transform_indices = @transform_1, window_bounds = array<i64: 256, 128>}, {transform_indices = @transform_2, window_bounds = array<i64: 1, 128>}, {transform_indices = @transform_3, window_bounds = array<i64: 128, 128>}]} {
    %c0_i32 = arith.constant 0 : i32
    %0 = arith.cmpi eq, %arg2, %c0_i32 : i32
    %1 = arith.extui %0 : i1 to i32
    %c0_i32_0 = arith.constant 0 : i32
    %2 = arith.cmpi ne, %1, %c0_i32_0 : i32
    scf.if %2 {
      %cst_10 = arith.constant 0.000000e+00 : f32
      %12 = vector.broadcast %cst_10 : f32 to vector<128x128xf32>
      %c0_11 = arith.constant 0 : index
      %c0_12 = arith.constant 0 : index
      %13 = vector.load %arg7[%c0_11, %c0_12] : memref<128x128xf32, #tpu.memory_space<vmem>>, vector<128x128xf32>
      tpu.vector_store %arg7[%c0_11, %c0_12], %12 {strides = array<i32>} : memref<128x128xf32, #tpu.memory_space<vmem>>, vector<128x128xf32>,
    } else {
    }
    %c0 = arith.constant 0 : index
    %c0_1 = arith.constant 0 : index
    %3 = vector.load %arg7[%c0, %c0_1] : memref<128x128xf32, #tpu.memory_space<vmem>>, vector<128x128xf32>
    %c0_2 = arith.constant 0 : index
    %c0_3 = arith.constant 0 : index
    %4 = vector.load %arg3[%c0_2, %c0_3] : memref<128x256xbf16, #tpu.memory_space<vmem>>, vector<128x256xbf16>
    %c0_4 = arith.constant 0 : index
    %c0_5 = arith.constant 0 : index
    %5 = vector.load %arg4[%c0_4, %c0_5] : memref<256x128xbf16, #tpu.memory_space<vmem>>, vector<256x128xbf16>
    %cst = arith.constant dense<0.000000e+00> : vector<128x128xf32>
    %6 = tpu.matmul %4, %5, %cst {dimension_numbers = #tpu.dot_dimension_numbers<[1], [0], [0], [1], [0, 0, 1, 1], [], []>} : vector<128x256xbf16>, vector<256x128xbf16>, vector<128x128xf32> -> vector<128x128xf32>
    %7 = arith.addf %3, %6 : vector<128x128xf32>
    %c0_6 = arith.constant 0 : index
    %c0_7 = arith.constant 0 : index
    %8 = vector.load %arg7[%c0_6, %c0_7] : memref<128x128xf32, #tpu.memory_space<vmem>>, vector<128x128xf32>
    tpu.vector_store %arg7[%c0_6, %c0_7], %7 {strides = array<i32>} : memref<128x128xf32, #tpu.memory_space<vmem>>, vector<128x128xf32>,
    %c0_i32_8 = arith.constant 0 : i32
    %9 = arith.cmpi eq, %arg2, %c0_i32_8 : i32
    %10 = arith.extui %9 : i1 to i32
    %c0_i32_9 = arith.constant 0 : i32
    %11 = arith.cmpi ne, %10, %c0_i32_9 : i32
    scf.if %11 {
      %c0_10 = arith.constant 0 : index
      %c0_11 = arith.constant 0 : index
      %12 = vector.load %arg7[%c0_10, %c0_11] : memref<128x128xf32, #tpu.memory_space<vmem>>, vector<128x128xf32>
      %c0_12 = arith.constant 0 : index
      %c0_13 = arith.constant 0 : index
      %13 = vector.load %arg5[%c0_12, %c0_13] : memref<1x128xf32, #tpu.memory_space<vmem>>, vector<1x128xf32>
      %14 = vector.broadcast %13 : vector<1x128xf32> to vector<128x128xf32>
      %15 = arith.addf %12, %14 : vector<128x128xf32>
      %cst_14 = arith.constant 0.000000e+00 : f32
      %16 = vector.broadcast %cst_14 : f32 to vector<128x128xf32>
      %17 = arith.cmpf ogt, %15, %16 : vector<128x128xf32>
      %cst_15 = arith.constant 1.000000e-01 : f32
      %18 = vector.broadcast %cst_15 : f32 to vector<128x128xf32>
      %19 = arith.mulf %18, %15 : vector<128x128xf32>
      %20 = arith.select %17, %15, %19 : vector<128x128xi1>, vector<128x128xf32>
      %21 = arith.truncf %20 : vector<128x128xf32> to vector<128x128xbf16>
      %c0_16 = arith.constant 0 : index
      %c0_17 = arith.constant 0 : index
      %22 = vector.load %arg6[%c0_16, %c0_17] : memref<128x128xbf16, #tpu.memory_space<vmem>>, vector<128x128xbf16>
      tpu.vector_store %arg6[%c0_16, %c0_17], %21 {strides = array<i32>} : memref<128x128xbf16, #tpu.memory_space<vmem>>, vector<128x128xbf16>,
    } else {
    }
    return
  }
  func.func @transform_0(%arg0: i32, %arg1: i32, %arg2: i32) -> (i32, i32) {
    %c0_i32 = arith.constant 0 : i32
    return %arg0, %arg2 : i32, i32
  }
  func.func @transform_1(%arg0: i32, %arg1: i32, %arg2: i32) -> (i32, i32) {
    %c0_i32 = arith.constant 0 : i32
    return %arg2, %arg1 : i32, i32
  }
  func.func @transform_2(%arg0: i32, %arg1: i32, %arg2: i32) -> (i32, i32) {
    %c0_i32 = arith.constant 0 : i32
    %c0_i32_0 = arith.constant 0 : i32
    return %c0_i32, %arg1 : i32, i32
  }
  func.func @transform_3(%arg0: i32, %arg1: i32, %arg2: i32) -> (i32, i32) {
    %c0_i32 = arith.constant 0 : i32
    return %arg0, %arg1 : i32, i32
  }
}

module attributes {stable_mosaic.version = 11 : i64} {
  func.func @_conv_mm_kernel(%arg0: i32, %arg1: i32, %arg2: i32, %arg3: memref<128x128xbf16, #tpu.memory_space<vmem>>, %arg4: memref<128x128xbf16, #tpu.memory_space<vmem>>, %arg5: memref<1x128xf32, #tpu.memory_space<vmem>>, %arg6: memref<128x128xbf16, #tpu.memory_space<vmem>>, %arg7: memref<128x128xf32, #tpu.memory_space<vmem>>) attributes {dimension_semantics = [#tpu.dimension_semantics<parallel>, #tpu.dimension_semantics<parallel>, #tpu.dimension_semantics<arbitrary>], iteration_bounds = array<i64: 1, 1, 1>, scalar_prefetch = 0 : i64, scratch_operands = 1 : i64, tpu.core_type = #tpu.core_type<tc>, window_params = [{transform_indices = @transform_0, window_bounds = array<i64: 128, 128>}, {transform_indices = @transform_1, window_bounds = array<i64: 128, 128>}, {transform_indices = @transform_2, window_bounds = array<i64: 1, 128>}, {transform_indices = @transform_3, window_bounds = array<i64: 128, 128>}]} {
    %c0_i32 = arith.constant 0 : i32
    %0 = arith.cmpi eq, %arg2, %c0_i32 : i32
    %1 = arith.extui %0 : i1 to i32
    %c0_i32_0 = arith.constant 0 : i32
    %2 = arith.cmpi ne, %1, %c0_i32_0 : i32
    scf.if %2 {
      %cst_10 = arith.constant 0.000000e+00 : f32
      %12 = vector.broadcast %cst_10 : f32 to vector<128x128xf32>
      %c0_11 = arith.constant 0 : index
      %c0_12 = arith.constant 0 : index
      %13 = vector.load %arg7[%c0_11, %c0_12] : memref<128x128xf32, #tpu.memory_space<vmem>>, vector<128x128xf32>
      tpu.vector_store %arg7[%c0_11, %c0_12], %12 {strides = array<i32>} : memref<128x128xf32, #tpu.memory_space<vmem>>, vector<128x128xf32>,
    } else {
    }
    %c0 = arith.constant 0 : index
    %c0_1 = arith.constant 0 : index
    %3 = vector.load %arg7[%c0, %c0_1] : memref<128x128xf32, #tpu.memory_space<vmem>>, vector<128x128xf32>
    %c0_2 = arith.constant 0 : index
    %c0_3 = arith.constant 0 : index
    %4 = vector.load %arg3[%c0_2, %c0_3] : memref<128x128xbf16, #tpu.memory_space<vmem>>, vector<128x128xbf16>
    %c0_4 = arith.constant 0 : index
    %c0_5 = arith.constant 0 : index
    %5 = vector.load %arg4[%c0_4, %c0_5] : memref<128x128xbf16, #tpu.memory_space<vmem>>, vector<128x128xbf16>
    %cst = arith.constant dense<0.000000e+00> : vector<128x128xf32>
    %6 = tpu.matmul %4, %5, %cst {dimension_numbers = #tpu.dot_dimension_numbers<[1], [0], [0], [1], [0, 0, 1, 1], [], []>} : vector<128x128xbf16>, vector<128x128xbf16>, vector<128x128xf32> -> vector<128x128xf32>
    %7 = arith.addf %3, %6 : vector<128x128xf32>
    %c0_6 = arith.constant 0 : index
    %c0_7 = arith.constant 0 : index
    %8 = vector.load %arg7[%c0_6, %c0_7] : memref<128x128xf32, #tpu.memory_space<vmem>>, vector<128x128xf32>
    tpu.vector_store %arg7[%c0_6, %c0_7], %7 {strides = array<i32>} : memref<128x128xf32, #tpu.memory_space<vmem>>, vector<128x128xf32>,
    %c0_i32_8 = arith.constant 0 : i32
    %9 = arith.cmpi eq, %arg2, %c0_i32_8 : i32
    %10 = arith.extui %9 : i1 to i32
    %c0_i32_9 = arith.constant 0 : i32
    %11 = arith.cmpi ne, %10, %c0_i32_9 : i32
    scf.if %11 {
      %c0_10 = arith.constant 0 : index
      %c0_11 = arith.constant 0 : index
      %12 = vector.load %arg7[%c0_10, %c0_11] : memref<128x128xf32, #tpu.memory_space<vmem>>, vector<128x128xf32>
      %c0_12 = arith.constant 0 : index
      %c0_13 = arith.constant 0 : index
      %13 = vector.load %arg5[%c0_12, %c0_13] : memref<1x128xf32, #tpu.memory_space<vmem>>, vector<1x128xf32>
      %14 = vector.broadcast %13 : vector<1x128xf32> to vector<128x128xf32>
      %15 = arith.addf %12, %14 : vector<128x128xf32>
      %cst_14 = arith.constant 0.000000e+00 : f32
      %16 = vector.broadcast %cst_14 : f32 to vector<128x128xf32>
      %17 = arith.cmpf ogt, %15, %16 : vector<128x128xf32>
      %cst_15 = arith.constant 1.000000e+00 : f32
      %18 = vector.broadcast %cst_15 : f32 to vector<128x128xf32>
      %19 = arith.mulf %18, %15 : vector<128x128xf32>
      %20 = arith.select %17, %15, %19 : vector<128x128xi1>, vector<128x128xf32>
      %21 = arith.truncf %20 : vector<128x128xf32> to vector<128x128xbf16>
      %c0_16 = arith.constant 0 : index
      %c0_17 = arith.constant 0 : index
      %22 = vector.load %arg6[%c0_16, %c0_17] : memref<128x128xbf16, #tpu.memory_space<vmem>>, vector<128x128xbf16>
      tpu.vector_store %arg6[%c0_16, %c0_17], %21 {strides = array<i32>} : memref<128x128xbf16, #tpu.memory_space<vmem>>, vector<128x128xbf16>,
    } else {
    }
    return
  }
  func.func @transform_0(%arg0: i32, %arg1: i32, %arg2: i32) -> (i32, i32) {
    %c0_i32 = arith.constant 0 : i32
    return %arg0, %arg2 : i32, i32
  }
  func.func @transform_1(%arg0: i32, %arg1: i32, %arg2: i32) -> (i32, i32) {
    %c0_i32 = arith.constant 0 : i32
    return %arg2, %arg1 : i32, i32
  }
  func.func @transform_2(%arg0: i32, %arg1: i32, %arg2: i32) -> (i32, i32) {
    %c0_i32 = arith.constant 0 : i32
    %c0_i32_0 = arith.constant 0 : i32
    return %c0_i32, %arg1 : i32, i32
  }
  func.func @transform_3(%arg0: i32, %arg1: i32, %arg2: i32) -> (i32, i32) {
    %c0_i32 = arith.constant 0 : i32
    return %arg0, %arg1 : i32, i32
  }
}

module attributes {stable_mosaic.version = 11 : i64} {
  func.func @_conv_mm_kernel(%arg0: i32, %arg1: i32, %arg2: i32, %arg3: memref<128x128xbf16, #tpu.memory_space<vmem>>, %arg4: memref<128x128xbf16, #tpu.memory_space<vmem>>, %arg5: memref<1x128xf32, #tpu.memory_space<vmem>>, %arg6: memref<128x128xbf16, #tpu.memory_space<vmem>>, %arg7: memref<128x128xf32, #tpu.memory_space<vmem>>) attributes {dimension_semantics = [#tpu.dimension_semantics<parallel>, #tpu.dimension_semantics<parallel>, #tpu.dimension_semantics<arbitrary>], iteration_bounds = array<i64: 1, 1, 1>, scalar_prefetch = 0 : i64, scratch_operands = 1 : i64, tpu.core_type = #tpu.core_type<tc>, window_params = [{transform_indices = @transform_0, window_bounds = array<i64: 128, 128>}, {transform_indices = @transform_1, window_bounds = array<i64: 128, 128>}, {transform_indices = @transform_2, window_bounds = array<i64: 1, 128>}, {transform_indices = @transform_3, window_bounds = array<i64: 128, 128>}]} {
    %c0_i32 = arith.constant 0 : i32
    %0 = arith.cmpi eq, %arg2, %c0_i32 : i32
    %1 = arith.extui %0 : i1 to i32
    %c0_i32_0 = arith.constant 0 : i32
    %2 = arith.cmpi ne, %1, %c0_i32_0 : i32
    scf.if %2 {
      %cst_10 = arith.constant 0.000000e+00 : f32
      %12 = vector.broadcast %cst_10 : f32 to vector<128x128xf32>
      %c0_11 = arith.constant 0 : index
      %c0_12 = arith.constant 0 : index
      %13 = vector.load %arg7[%c0_11, %c0_12] : memref<128x128xf32, #tpu.memory_space<vmem>>, vector<128x128xf32>
      tpu.vector_store %arg7[%c0_11, %c0_12], %12 {strides = array<i32>} : memref<128x128xf32, #tpu.memory_space<vmem>>, vector<128x128xf32>,
    } else {
    }
    %c0 = arith.constant 0 : index
    %c0_1 = arith.constant 0 : index
    %3 = vector.load %arg7[%c0, %c0_1] : memref<128x128xf32, #tpu.memory_space<vmem>>, vector<128x128xf32>
    %c0_2 = arith.constant 0 : index
    %c0_3 = arith.constant 0 : index
    %4 = vector.load %arg3[%c0_2, %c0_3] : memref<128x128xbf16, #tpu.memory_space<vmem>>, vector<128x128xbf16>
    %c0_4 = arith.constant 0 : index
    %c0_5 = arith.constant 0 : index
    %5 = vector.load %arg4[%c0_4, %c0_5] : memref<128x128xbf16, #tpu.memory_space<vmem>>, vector<128x128xbf16>
    %cst = arith.constant dense<0.000000e+00> : vector<128x128xf32>
    %6 = tpu.matmul %4, %5, %cst {dimension_numbers = #tpu.dot_dimension_numbers<[1], [0], [0], [1], [0, 0, 1, 1], [], []>} : vector<128x128xbf16>, vector<128x128xbf16>, vector<128x128xf32> -> vector<128x128xf32>
    %7 = arith.addf %3, %6 : vector<128x128xf32>
    %c0_6 = arith.constant 0 : index
    %c0_7 = arith.constant 0 : index
    %8 = vector.load %arg7[%c0_6, %c0_7] : memref<128x128xf32, #tpu.memory_space<vmem>>, vector<128x128xf32>
    tpu.vector_store %arg7[%c0_6, %c0_7], %7 {strides = array<i32>} : memref<128x128xf32, #tpu.memory_space<vmem>>, vector<128x128xf32>,
    %c0_i32_8 = arith.constant 0 : i32
    %9 = arith.cmpi eq, %arg2, %c0_i32_8 : i32
    %10 = arith.extui %9 : i1 to i32
    %c0_i32_9 = arith.constant 0 : i32
    %11 = arith.cmpi ne, %10, %c0_i32_9 : i32
    scf.if %11 {
      %c0_10 = arith.constant 0 : index
      %c0_11 = arith.constant 0 : index
      %12 = vector.load %arg7[%c0_10, %c0_11] : memref<128x128xf32, #tpu.memory_space<vmem>>, vector<128x128xf32>
      %c0_12 = arith.constant 0 : index
      %c0_13 = arith.constant 0 : index
      %13 = vector.load %arg5[%c0_12, %c0_13] : memref<1x128xf32, #tpu.memory_space<vmem>>, vector<1x128xf32>
      %14 = vector.broadcast %13 : vector<1x128xf32> to vector<128x128xf32>
      %15 = arith.addf %12, %14 : vector<128x128xf32>
      %cst_14 = arith.constant 0.000000e+00 : f32
      %16 = vector.broadcast %cst_14 : f32 to vector<128x128xf32>
      %17 = arith.cmpf ogt, %15, %16 : vector<128x128xf32>
      %cst_15 = arith.constant 1.000000e-01 : f32
      %18 = vector.broadcast %cst_15 : f32 to vector<128x128xf32>
      %19 = arith.mulf %18, %15 : vector<128x128xf32>
      %20 = arith.select %17, %15, %19 : vector<128x128xi1>, vector<128x128xf32>
      %21 = arith.truncf %20 : vector<128x128xf32> to vector<128x128xbf16>
      %c0_16 = arith.constant 0 : index
      %c0_17 = arith.constant 0 : index
      %22 = vector.load %arg6[%c0_16, %c0_17] : memref<128x128xbf16, #tpu.memory_space<vmem>>, vector<128x128xbf16>
      tpu.vector_store %arg6[%c0_16, %c0_17], %21 {strides = array<i32>} : memref<128x128xbf16, #tpu.memory_space<vmem>>, vector<128x128xbf16>,
    } else {
    }
    return
  }
  func.func @transform_0(%arg0: i32, %arg1: i32, %arg2: i32) -> (i32, i32) {
    %c0_i32 = arith.constant 0 : i32
    return %arg0, %arg2 : i32, i32
  }
  func.func @transform_1(%arg0: i32, %arg1: i32, %arg2: i32) -> (i32, i32) {
    %c0_i32 = arith.constant 0 : i32
    return %arg2, %arg1 : i32, i32
  }
  func.func @transform_2(%arg0: i32, %arg1: i32, %arg2: i32) -> (i32, i32) {
    %c0_i32 = arith.constant 0 : i32
    %c0_i32_0 = arith.constant 0 : i32
    return %c0_i32, %arg1 : i32, i32
  }
  func.func @transform_3(%arg0: i32, %arg1: i32, %arg2: i32) -> (i32, i32) {
    %c0_i32 = arith.constant 0 : i32
    return %arg0, %arg1 : i32, i32
  }
}

module attributes {stable_mosaic.version = 11 : i64} {
  func.func @_yolo_kernel(%arg0: i32, %arg1: memref<1x8x8x128xbf16, #tpu.memory_space<vmem>>, %arg2: memref<1x8x8x128xf32, #tpu.memory_space<vmem>>) attributes {dimension_semantics = [#tpu.dimension_semantics<parallel>], iteration_bounds = array<i64: 6>, scalar_prefetch = 0 : i64, scratch_operands = 0 : i64, tpu.core_type = #tpu.core_type<tc>, window_params = [{transform_indices = @transform_0, window_bounds = array<i64: 1, 8, 8, 128>}, {transform_indices = @transform_1, window_bounds = array<i64: 1, 8, 8, 128>}]} {
    %c3_i32 = arith.constant 3 : i32
    %c0_i32 = arith.constant 0 : i32
    %0 = arith.cmpi eq, %c3_i32, %c0_i32 : i32
    %c1_i32 = arith.constant 1 : i32
    %1 = arith.select %0, %c1_i32, %c3_i32 : i32
    %2 = arith.remsi %arg0, %1 : i32
    %c0_i32_0 = arith.constant 0 : i32
    %3 = arith.cmpi ne, %2, %c0_i32_0 : i32
    %c0_i32_1 = arith.constant 0 : i32
    %4 = arith.cmpi slt, %2, %c0_i32_1 : i32
    %c0_i32_2 = arith.constant 0 : i32
    %5 = arith.cmpi slt, %1, %c0_i32_2 : i32
    %6 = arith.xori %4, %5 : i1
    %7 = arith.andi %6, %3 : i1
    %8 = arith.addi %2, %1 : i32
    %9 = arith.select %7, %8, %2 : i32
    %c0 = arith.constant 0 : index
    %c0_3 = arith.constant 0 : index
    %c0_4 = arith.constant 0 : index
    %c0_5 = arith.constant 0 : index
    %10 = vector.load %arg1[%c0, %c0_3, %c0_4, %c0_5] : memref<1x8x8x128xbf16, #tpu.memory_space<vmem>>, vector<1x8x8x128xbf16>
    %11 = arith.extf %10 : vector<1x8x8x128xbf16> to vector<1x8x8x128xf32>
    %12 = tpu.iota {dimensions = array<i32: 3>} : vector<1x8x8x128xi32>
    %13 = tpu.iota {dimensions = array<i32: 1>} : vector<1x8x8x128xi32>
    %14 = arith.sitofp %13 : vector<1x8x8x128xi32> to vector<1x8x8x128xf32>
    %15 = tpu.iota {dimensions = array<i32: 2>} : vector<1x8x8x128xi32>
    %16 = arith.sitofp %15 : vector<1x8x8x128xi32> to vector<1x8x8x128xf32>
    %17 = math.exp %11 : vector<1x8x8x128xf32>
    %cst = arith.constant 1.000000e+00 : f32
    %18 = vector.broadcast %cst : f32 to vector<1x8x8x128xf32>
    %19 = arith.addf %18, %17 : vector<1x8x8x128xf32>
    %20 = tpu.reciprocal %19 {approx = true} : vector<1x8x8x128xf32> -> vector<1x8x8x128xf32>
    %21 = arith.mulf %17, %20 : vector<1x8x8x128xf32>
    %cst_6 = arith.constant 1.500000e+01 : f32
    %22 = vector.broadcast %cst_6 : f32 to vector<1x8x8x128xf32>
    %23 = arith.cmpf ogt, %11, %22 : vector<1x8x8x128xf32>
    %cst_7 = arith.constant 1.000000e+00 : f32
    %24 = vector.broadcast %cst_7 : f32 to vector<1x8x8x128xf32>
    %25 = arith.select %23, %24, %21 : vector<1x8x8x128xi1>, vector<1x8x8x128xf32>
    %c0_i32_8 = arith.constant 0 : i32
    %26 = arith.cmpi eq, %9, %c0_i32_8 : i32
    %cst_9 = arith.constant 2.250000e+00 : f32
    %cst_10 = arith.constant 5.000000e+00 : f32
    %27 = arith.select %26, %cst_9, %cst_10 : f32
    %c0_i32_11 = arith.constant 0 : i32
    %28 = arith.cmpi eq, %9, %c0_i32_11 : i32
    %cst_12 = arith.constant 3.000000e+00 : f32
    %cst_13 = arith.constant 6.500000e+00 : f32
    %29 = arith.select %28, %cst_12, %cst_13 : f32
    %c1_i32_14 = arith.constant 1 : i32
    %30 = arith.cmpi eq, %9, %c1_i32_14 : i32
    %cst_15 = arith.constant 3.500000e+00 : f32
    %31 = arith.select %30, %cst_15, %27 : f32
    %c1_i32_16 = arith.constant 1 : i32
    %32 = arith.cmpi eq, %9, %c1_i32_16 : i32
    %cst_17 = arith.constant 4.500000e+00 : f32
    %33 = arith.select %32, %cst_17, %29 : f32
    %c0_i32_18 = arith.constant 0 : i32
    %34 = vector.broadcast %c0_i32_18 : i32 to vector<1x8x8x128xi32>
    %35 = arith.cmpi eq, %12, %34 : vector<1x8x8x128xi32>
    %36 = arith.addf %25, %16 : vector<1x8x8x128xf32>
    %cst_19 = arith.constant 4.000000e+00 : f32
    %37 = vector.broadcast %cst_19 : f32 to vector<1x8x8x128xf32>
    %38 = arith.mulf %36, %37 : vector<1x8x8x128xf32>
    %c1_i32_20 = arith.constant 1 : i32
    %39 = vector.broadcast %c1_i32_20 : i32 to vector<1x8x8x128xi32>
    %40 = arith.cmpi eq, %12, %39 : vector<1x8x8x128xi32>
    %41 = arith.addf %25, %14 : vector<1x8x8x128xf32>
    %cst_21 = arith.constant 4.000000e+00 : f32
    %42 = vector.broadcast %cst_21 : f32 to vector<1x8x8x128xf32>
    %43 = arith.mulf %41, %42 : vector<1x8x8x128xf32>
    %c2_i32 = arith.constant 2 : i32
    %44 = vector.broadcast %c2_i32 : i32 to vector<1x8x8x128xi32>
    %45 = arith.cmpi eq, %12, %44 : vector<1x8x8x128xi32>
    %46 = vector.broadcast %31 : f32 to vector<1x8x8x128xf32>
    %47 = arith.mulf %17, %46 : vector<1x8x8x128xf32>
    %cst_22 = arith.constant 4.000000e+00 : f32
    %48 = vector.broadcast %cst_22 : f32 to vector<1x8x8x128xf32>
    %49 = arith.mulf %47, %48 : vector<1x8x8x128xf32>
    %c3_i32_23 = arith.constant 3 : i32
    %50 = vector.broadcast %c3_i32_23 : i32 to vector<1x8x8x128xi32>
    %51 = arith.cmpi eq, %12, %50 : vector<1x8x8x128xi32>
    %52 = vector.broadcast %33 : f32 to vector<1x8x8x128xf32>
    %53 = arith.mulf %17, %52 : vector<1x8x8x128xf32>
    %cst_24 = arith.constant 4.000000e+00 : f32
    %54 = vector.broadcast %cst_24 : f32 to vector<1x8x8x128xf32>
    %55 = arith.mulf %53, %54 : vector<1x8x8x128xf32>
    %c13_i32 = arith.constant 13 : i32
    %56 = vector.broadcast %c13_i32 : i32 to vector<1x8x8x128xi32>
    %57 = arith.cmpi slt, %12, %56 : vector<1x8x8x128xi32>
    %cst_25 = arith.constant 0.000000e+00 : f32
    %58 = vector.broadcast %cst_25 : f32 to vector<1x8x8x128xf32>
    %59 = arith.select %57, %25, %58 : vector<1x8x8x128xi1>, vector<1x8x8x128xf32>
    %60 = arith.select %51, %55, %59 : vector<1x8x8x128xi1>, vector<1x8x8x128xf32>
    %61 = arith.select %45, %49, %60 : vector<1x8x8x128xi1>, vector<1x8x8x128xf32>
    %62 = arith.select %40, %43, %61 : vector<1x8x8x128xi1>, vector<1x8x8x128xf32>
    %63 = arith.select %35, %38, %62 : vector<1x8x8x128xi1>, vector<1x8x8x128xf32>
    %c0_26 = arith.constant 0 : index
    %c0_27 = arith.constant 0 : index
    %c0_28 = arith.constant 0 : index
    %c0_29 = arith.constant 0 : index
    %64 = vector.load %arg2[%c0_26, %c0_27, %c0_28, %c0_29] : memref<1x8x8x128xf32, #tpu.memory_space<vmem>>, vector<1x8x8x128xf32>
    tpu.vector_store %arg2[%c0_26, %c0_27, %c0_28, %c0_29], %63 {strides = array<i32>} : memref<1x8x8x128xf32, #tpu.memory_space<vmem>>, vector<1x8x8x128xf32>,
    return
  }
  func.func @transform_0(%arg0: i32) -> (i32, i32, i32, i32) {
    %c0_i32 = arith.constant 0 : i32
    %c0_i32_0 = arith.constant 0 : i32
    %c0_i32_1 = arith.constant 0 : i32
    %c0_i32_2 = arith.constant 0 : i32
    return %arg0, %c0_i32, %c0_i32_0, %c0_i32_1 : i32, i32, i32, i32
  }
  func.func @transform_1(%arg0: i32) -> (i32, i32, i32, i32) {
    %c0_i32 = arith.constant 0 : i32
    %c0_i32_0 = arith.constant 0 : i32
    %c0_i32_1 = arith.constant 0 : i32
    %c0_i32_2 = arith.constant 0 : i32
    return %arg0, %c0_i32, %c0_i32_0, %c0_i32_1 : i32, i32, i32, i32
  }
}

module attributes {stable_mosaic.version = 11 : i64} {
  func.func @_conv_mm_kernel(%arg0: i32, %arg1: i32, %arg2: i32, %arg3: memref<512x128xbf16, #tpu.memory_space<vmem>>, %arg4: memref<128x128xbf16, #tpu.memory_space<vmem>>, %arg5: memref<1x128xf32, #tpu.memory_space<vmem>>, %arg6: memref<512x128xbf16, #tpu.memory_space<vmem>>, %arg7: memref<512x128xf32, #tpu.memory_space<vmem>>) attributes {dimension_semantics = [#tpu.dimension_semantics<parallel>, #tpu.dimension_semantics<parallel>, #tpu.dimension_semantics<arbitrary>], iteration_bounds = array<i64: 1, 1, 3>, scalar_prefetch = 0 : i64, scratch_operands = 1 : i64, tpu.core_type = #tpu.core_type<tc>, window_params = [{transform_indices = @transform_0, window_bounds = array<i64: 512, 128>}, {transform_indices = @transform_1, window_bounds = array<i64: 128, 128>}, {transform_indices = @transform_2, window_bounds = array<i64: 1, 128>}, {transform_indices = @transform_3, window_bounds = array<i64: 512, 128>}]} {
    %c0_i32 = arith.constant 0 : i32
    %0 = arith.cmpi eq, %arg2, %c0_i32 : i32
    %1 = arith.extui %0 : i1 to i32
    %c0_i32_0 = arith.constant 0 : i32
    %2 = arith.cmpi ne, %1, %c0_i32_0 : i32
    scf.if %2 {
      %cst_9 = arith.constant 0.000000e+00 : f32
      %12 = vector.broadcast %cst_9 : f32 to vector<512x128xf32>
      %c0_10 = arith.constant 0 : index
      %c0_11 = arith.constant 0 : index
      %13 = vector.load %arg7[%c0_10, %c0_11] : memref<512x128xf32, #tpu.memory_space<vmem>>, vector<512x128xf32>
      tpu.vector_store %arg7[%c0_10, %c0_11], %12 {strides = array<i32>} : memref<512x128xf32, #tpu.memory_space<vmem>>, vector<512x128xf32>,
    } else {
    }
    %c0 = arith.constant 0 : index
    %c0_1 = arith.constant 0 : index
    %3 = vector.load %arg7[%c0, %c0_1] : memref<512x128xf32, #tpu.memory_space<vmem>>, vector<512x128xf32>
    %c0_2 = arith.constant 0 : index
    %c0_3 = arith.constant 0 : index
    %4 = vector.load %arg3[%c0_2, %c0_3] : memref<512x128xbf16, #tpu.memory_space<vmem>>, vector<512x128xbf16>
    %c0_4 = arith.constant 0 : index
    %c0_5 = arith.constant 0 : index
    %5 = vector.load %arg4[%c0_4, %c0_5] : memref<128x128xbf16, #tpu.memory_space<vmem>>, vector<128x128xbf16>
    %cst = arith.constant dense<0.000000e+00> : vector<512x128xf32>
    %6 = tpu.matmul %4, %5, %cst {dimension_numbers = #tpu.dot_dimension_numbers<[1], [0], [0], [1], [0, 0, 1, 1], [], []>} : vector<512x128xbf16>, vector<128x128xbf16>, vector<512x128xf32> -> vector<512x128xf32>
    %7 = arith.addf %3, %6 : vector<512x128xf32>
    %c0_6 = arith.constant 0 : index
    %c0_7 = arith.constant 0 : index
    %8 = vector.load %arg7[%c0_6, %c0_7] : memref<512x128xf32, #tpu.memory_space<vmem>>, vector<512x128xf32>
    tpu.vector_store %arg7[%c0_6, %c0_7], %7 {strides = array<i32>} : memref<512x128xf32, #tpu.memory_space<vmem>>, vector<512x128xf32>,
    %c2_i32 = arith.constant 2 : i32
    %9 = arith.cmpi eq, %arg2, %c2_i32 : i32
    %10 = arith.extui %9 : i1 to i32
    %c0_i32_8 = arith.constant 0 : i32
    %11 = arith.cmpi ne, %10, %c0_i32_8 : i32
    scf.if %11 {
      %c0_9 = arith.constant 0 : index
      %c0_10 = arith.constant 0 : index
      %12 = vector.load %arg7[%c0_9, %c0_10] : memref<512x128xf32, #tpu.memory_space<vmem>>, vector<512x128xf32>
      %c0_11 = arith.constant 0 : index
      %c0_12 = arith.constant 0 : index
      %13 = vector.load %arg5[%c0_11, %c0_12] : memref<1x128xf32, #tpu.memory_space<vmem>>, vector<1x128xf32>
      %14 = vector.broadcast %13 : vector<1x128xf32> to vector<512x128xf32>
      %15 = arith.addf %12, %14 : vector<512x128xf32>
      %cst_13 = arith.constant 0.000000e+00 : f32
      %16 = vector.broadcast %cst_13 : f32 to vector<512x128xf32>
      %17 = arith.cmpf ogt, %15, %16 : vector<512x128xf32>
      %cst_14 = arith.constant 1.000000e-01 : f32
      %18 = vector.broadcast %cst_14 : f32 to vector<512x128xf32>
      %19 = arith.mulf %18, %15 : vector<512x128xf32>
      %20 = arith.select %17, %15, %19 : vector<512x128xi1>, vector<512x128xf32>
      %21 = arith.truncf %20 : vector<512x128xf32> to vector<512x128xbf16>
      %c0_15 = arith.constant 0 : index
      %c0_16 = arith.constant 0 : index
      %22 = vector.load %arg6[%c0_15, %c0_16] : memref<512x128xbf16, #tpu.memory_space<vmem>>, vector<512x128xbf16>
      tpu.vector_store %arg6[%c0_15, %c0_16], %21 {strides = array<i32>} : memref<512x128xbf16, #tpu.memory_space<vmem>>, vector<512x128xbf16>,
    } else {
    }
    return
  }
  func.func @transform_0(%arg0: i32, %arg1: i32, %arg2: i32) -> (i32, i32) {
    %c0_i32 = arith.constant 0 : i32
    return %arg0, %arg2 : i32, i32
  }
  func.func @transform_1(%arg0: i32, %arg1: i32, %arg2: i32) -> (i32, i32) {
    %c0_i32 = arith.constant 0 : i32
    return %arg2, %arg1 : i32, i32
  }
  func.func @transform_2(%arg0: i32, %arg1: i32, %arg2: i32) -> (i32, i32) {
    %c0_i32 = arith.constant 0 : i32
    %c0_i32_0 = arith.constant 0 : i32
    return %c0_i32, %arg1 : i32, i32
  }
  func.func @transform_3(%arg0: i32, %arg1: i32, %arg2: i32) -> (i32, i32) {
    %c0_i32 = arith.constant 0 : i32
    return %arg0, %arg1 : i32, i32
  }
}

module attributes {stable_mosaic.version = 11 : i64} {
  func.func @_conv_mm_kernel(%arg0: i32, %arg1: i32, %arg2: i32, %arg3: memref<512x128xbf16, #tpu.memory_space<vmem>>, %arg4: memref<128x128xbf16, #tpu.memory_space<vmem>>, %arg5: memref<1x128xf32, #tpu.memory_space<vmem>>, %arg6: memref<512x128xbf16, #tpu.memory_space<vmem>>, %arg7: memref<512x128xf32, #tpu.memory_space<vmem>>) attributes {dimension_semantics = [#tpu.dimension_semantics<parallel>, #tpu.dimension_semantics<parallel>, #tpu.dimension_semantics<arbitrary>], iteration_bounds = array<i64: 1, 1, 1>, scalar_prefetch = 0 : i64, scratch_operands = 1 : i64, tpu.core_type = #tpu.core_type<tc>, window_params = [{transform_indices = @transform_0, window_bounds = array<i64: 512, 128>}, {transform_indices = @transform_1, window_bounds = array<i64: 128, 128>}, {transform_indices = @transform_2, window_bounds = array<i64: 1, 128>}, {transform_indices = @transform_3, window_bounds = array<i64: 512, 128>}]} {
    %c0_i32 = arith.constant 0 : i32
    %0 = arith.cmpi eq, %arg2, %c0_i32 : i32
    %1 = arith.extui %0 : i1 to i32
    %c0_i32_0 = arith.constant 0 : i32
    %2 = arith.cmpi ne, %1, %c0_i32_0 : i32
    scf.if %2 {
      %cst_10 = arith.constant 0.000000e+00 : f32
      %12 = vector.broadcast %cst_10 : f32 to vector<512x128xf32>
      %c0_11 = arith.constant 0 : index
      %c0_12 = arith.constant 0 : index
      %13 = vector.load %arg7[%c0_11, %c0_12] : memref<512x128xf32, #tpu.memory_space<vmem>>, vector<512x128xf32>
      tpu.vector_store %arg7[%c0_11, %c0_12], %12 {strides = array<i32>} : memref<512x128xf32, #tpu.memory_space<vmem>>, vector<512x128xf32>,
    } else {
    }
    %c0 = arith.constant 0 : index
    %c0_1 = arith.constant 0 : index
    %3 = vector.load %arg7[%c0, %c0_1] : memref<512x128xf32, #tpu.memory_space<vmem>>, vector<512x128xf32>
    %c0_2 = arith.constant 0 : index
    %c0_3 = arith.constant 0 : index
    %4 = vector.load %arg3[%c0_2, %c0_3] : memref<512x128xbf16, #tpu.memory_space<vmem>>, vector<512x128xbf16>
    %c0_4 = arith.constant 0 : index
    %c0_5 = arith.constant 0 : index
    %5 = vector.load %arg4[%c0_4, %c0_5] : memref<128x128xbf16, #tpu.memory_space<vmem>>, vector<128x128xbf16>
    %cst = arith.constant dense<0.000000e+00> : vector<512x128xf32>
    %6 = tpu.matmul %4, %5, %cst {dimension_numbers = #tpu.dot_dimension_numbers<[1], [0], [0], [1], [0, 0, 1, 1], [], []>} : vector<512x128xbf16>, vector<128x128xbf16>, vector<512x128xf32> -> vector<512x128xf32>
    %7 = arith.addf %3, %6 : vector<512x128xf32>
    %c0_6 = arith.constant 0 : index
    %c0_7 = arith.constant 0 : index
    %8 = vector.load %arg7[%c0_6, %c0_7] : memref<512x128xf32, #tpu.memory_space<vmem>>, vector<512x128xf32>
    tpu.vector_store %arg7[%c0_6, %c0_7], %7 {strides = array<i32>} : memref<512x128xf32, #tpu.memory_space<vmem>>, vector<512x128xf32>,
    %c0_i32_8 = arith.constant 0 : i32
    %9 = arith.cmpi eq, %arg2, %c0_i32_8 : i32
    %10 = arith.extui %9 : i1 to i32
    %c0_i32_9 = arith.constant 0 : i32
    %11 = arith.cmpi ne, %10, %c0_i32_9 : i32
    scf.if %11 {
      %c0_10 = arith.constant 0 : index
      %c0_11 = arith.constant 0 : index
      %12 = vector.load %arg7[%c0_10, %c0_11] : memref<512x128xf32, #tpu.memory_space<vmem>>, vector<512x128xf32>
      %c0_12 = arith.constant 0 : index
      %c0_13 = arith.constant 0 : index
      %13 = vector.load %arg5[%c0_12, %c0_13] : memref<1x128xf32, #tpu.memory_space<vmem>>, vector<1x128xf32>
      %14 = vector.broadcast %13 : vector<1x128xf32> to vector<512x128xf32>
      %15 = arith.addf %12, %14 : vector<512x128xf32>
      %cst_14 = arith.constant 0.000000e+00 : f32
      %16 = vector.broadcast %cst_14 : f32 to vector<512x128xf32>
      %17 = arith.cmpf ogt, %15, %16 : vector<512x128xf32>
      %cst_15 = arith.constant 1.000000e+00 : f32
      %18 = vector.broadcast %cst_15 : f32 to vector<512x128xf32>
      %19 = arith.mulf %18, %15 : vector<512x128xf32>
      %20 = arith.select %17, %15, %19 : vector<512x128xi1>, vector<512x128xf32>
      %21 = arith.truncf %20 : vector<512x128xf32> to vector<512x128xbf16>
      %c0_16 = arith.constant 0 : index
      %c0_17 = arith.constant 0 : index
      %22 = vector.load %arg6[%c0_16, %c0_17] : memref<512x128xbf16, #tpu.memory_space<vmem>>, vector<512x128xbf16>
      tpu.vector_store %arg6[%c0_16, %c0_17], %21 {strides = array<i32>} : memref<512x128xbf16, #tpu.memory_space<vmem>>, vector<512x128xbf16>,
    } else {
    }
    return
  }
  func.func @transform_0(%arg0: i32, %arg1: i32, %arg2: i32) -> (i32, i32) {
    %c0_i32 = arith.constant 0 : i32
    return %arg0, %arg2 : i32, i32
  }
  func.func @transform_1(%arg0: i32, %arg1: i32, %arg2: i32) -> (i32, i32) {
    %c0_i32 = arith.constant 0 : i32
    return %arg2, %arg1 : i32, i32
  }
  func.func @transform_2(%arg0: i32, %arg1: i32, %arg2: i32) -> (i32, i32) {
    %c0_i32 = arith.constant 0 : i32
    %c0_i32_0 = arith.constant 0 : i32
    return %c0_i32, %arg1 : i32, i32
  }
  func.func @transform_3(%arg0: i32, %arg1: i32, %arg2: i32) -> (i32, i32) {
    %c0_i32 = arith.constant 0 : i32
    return %arg0, %arg1 : i32, i32
  }
}

module attributes {stable_mosaic.version = 11 : i64} {
  func.func @_yolo_kernel(%arg0: i32, %arg1: memref<1x16x16x128xbf16, #tpu.memory_space<vmem>>, %arg2: memref<1x16x16x128xf32, #tpu.memory_space<vmem>>) attributes {dimension_semantics = [#tpu.dimension_semantics<parallel>], iteration_bounds = array<i64: 6>, scalar_prefetch = 0 : i64, scratch_operands = 0 : i64, tpu.core_type = #tpu.core_type<tc>, window_params = [{transform_indices = @transform_0, window_bounds = array<i64: 1, 16, 16, 128>}, {transform_indices = @transform_1, window_bounds = array<i64: 1, 16, 16, 128>}]} {
    %c3_i32 = arith.constant 3 : i32
    %c0_i32 = arith.constant 0 : i32
    %0 = arith.cmpi eq, %c3_i32, %c0_i32 : i32
    %c1_i32 = arith.constant 1 : i32
    %1 = arith.select %0, %c1_i32, %c3_i32 : i32
    %2 = arith.remsi %arg0, %1 : i32
    %c0_i32_0 = arith.constant 0 : i32
    %3 = arith.cmpi ne, %2, %c0_i32_0 : i32
    %c0_i32_1 = arith.constant 0 : i32
    %4 = arith.cmpi slt, %2, %c0_i32_1 : i32
    %c0_i32_2 = arith.constant 0 : i32
    %5 = arith.cmpi slt, %1, %c0_i32_2 : i32
    %6 = arith.xori %4, %5 : i1
    %7 = arith.andi %6, %3 : i1
    %8 = arith.addi %2, %1 : i32
    %9 = arith.select %7, %8, %2 : i32
    %c0 = arith.constant 0 : index
    %c0_3 = arith.constant 0 : index
    %c0_4 = arith.constant 0 : index
    %c0_5 = arith.constant 0 : index
    %10 = vector.load %arg1[%c0, %c0_3, %c0_4, %c0_5] : memref<1x16x16x128xbf16, #tpu.memory_space<vmem>>, vector<1x16x16x128xbf16>
    %11 = arith.extf %10 : vector<1x16x16x128xbf16> to vector<1x16x16x128xf32>
    %12 = tpu.iota {dimensions = array<i32: 3>} : vector<1x16x16x128xi32>
    %13 = tpu.iota {dimensions = array<i32: 1>} : vector<1x16x16x128xi32>
    %14 = arith.sitofp %13 : vector<1x16x16x128xi32> to vector<1x16x16x128xf32>
    %15 = tpu.iota {dimensions = array<i32: 2>} : vector<1x16x16x128xi32>
    %16 = arith.sitofp %15 : vector<1x16x16x128xi32> to vector<1x16x16x128xf32>
    %17 = math.exp %11 : vector<1x16x16x128xf32>
    %cst = arith.constant 1.000000e+00 : f32
    %18 = vector.broadcast %cst : f32 to vector<1x16x16x128xf32>
    %19 = arith.addf %18, %17 : vector<1x16x16x128xf32>
    %20 = tpu.reciprocal %19 {approx = true} : vector<1x16x16x128xf32> -> vector<1x16x16x128xf32>
    %21 = arith.mulf %17, %20 : vector<1x16x16x128xf32>
    %cst_6 = arith.constant 1.500000e+01 : f32
    %22 = vector.broadcast %cst_6 : f32 to vector<1x16x16x128xf32>
    %23 = arith.cmpf ogt, %11, %22 : vector<1x16x16x128xf32>
    %cst_7 = arith.constant 1.000000e+00 : f32
    %24 = vector.broadcast %cst_7 : f32 to vector<1x16x16x128xf32>
    %25 = arith.select %23, %24, %21 : vector<1x16x16x128xi1>, vector<1x16x16x128xf32>
    %c0_i32_8 = arith.constant 0 : i32
    %26 = arith.cmpi eq, %9, %c0_i32_8 : i32
    %cst_9 = arith.constant 1.000000e+00 : f32
    %cst_10 = arith.constant 3.000000e+00 : f32
    %27 = arith.select %26, %cst_9, %cst_10 : f32
    %c0_i32_11 = arith.constant 0 : i32
    %28 = arith.cmpi eq, %9, %c0_i32_11 : i32
    %cst_12 = arith.constant 1.500000e+00 : f32
    %cst_13 = arith.constant 4.000000e+00 : f32
    %29 = arith.select %28, %cst_12, %cst_13 : f32
    %c1_i32_14 = arith.constant 1 : i32
    %30 = arith.cmpi eq, %9, %c1_i32_14 : i32
    %cst_15 = arith.constant 2.000000e+00 : f32
    %31 = arith.select %30, %cst_15, %27 : f32
    %c1_i32_16 = arith.constant 1 : i32
    %32 = arith.cmpi eq, %9, %c1_i32_16 : i32
    %cst_17 = arith.constant 2.500000e+00 : f32
    %33 = arith.select %32, %cst_17, %29 : f32
    %c0_i32_18 = arith.constant 0 : i32
    %34 = vector.broadcast %c0_i32_18 : i32 to vector<1x16x16x128xi32>
    %35 = arith.cmpi eq, %12, %34 : vector<1x16x16x128xi32>
    %36 = arith.addf %25, %16 : vector<1x16x16x128xf32>
    %cst_19 = arith.constant 2.000000e+00 : f32
    %37 = vector.broadcast %cst_19 : f32 to vector<1x16x16x128xf32>
    %38 = arith.mulf %36, %37 : vector<1x16x16x128xf32>
    %c1_i32_20 = arith.constant 1 : i32
    %39 = vector.broadcast %c1_i32_20 : i32 to vector<1x16x16x128xi32>
    %40 = arith.cmpi eq, %12, %39 : vector<1x16x16x128xi32>
    %41 = arith.addf %25, %14 : vector<1x16x16x128xf32>
    %cst_21 = arith.constant 2.000000e+00 : f32
    %42 = vector.broadcast %cst_21 : f32 to vector<1x16x16x128xf32>
    %43 = arith.mulf %41, %42 : vector<1x16x16x128xf32>
    %c2_i32 = arith.constant 2 : i32
    %44 = vector.broadcast %c2_i32 : i32 to vector<1x16x16x128xi32>
    %45 = arith.cmpi eq, %12, %44 : vector<1x16x16x128xi32>
    %46 = vector.broadcast %31 : f32 to vector<1x16x16x128xf32>
    %47 = arith.mulf %17, %46 : vector<1x16x16x128xf32>
    %cst_22 = arith.constant 2.000000e+00 : f32
    %48 = vector.broadcast %cst_22 : f32 to vector<1x16x16x128xf32>
    %49 = arith.mulf %47, %48 : vector<1x16x16x128xf32>
    %c3_i32_23 = arith.constant 3 : i32
    %50 = vector.broadcast %c3_i32_23 : i32 to vector<1x16x16x128xi32>
    %51 = arith.cmpi eq, %12, %50 : vector<1x16x16x128xi32>
    %52 = vector.broadcast %33 : f32 to vector<1x16x16x128xf32>
    %53 = arith.mulf %17, %52 : vector<1x16x16x128xf32>
    %cst_24 = arith.constant 2.000000e+00 : f32
    %54 = vector.broadcast %cst_24 : f32 to vector<1x16x16x128xf32>
    %55 = arith.mulf %53, %54 : vector<1x16x16x128xf32>
    %c13_i32 = arith.constant 13 : i32
    %56 = vector.broadcast %c13_i32 : i32 to vector<1x16x16x128xi32>
    %57 = arith.cmpi slt, %12, %56 : vector<1x16x16x128xi32>
    %cst_25 = arith.constant 0.000000e+00 : f32
    %58 = vector.broadcast %cst_25 : f32 to vector<1x16x16x128xf32>
    %59 = arith.select %57, %25, %58 : vector<1x16x16x128xi1>, vector<1x16x16x128xf32>
    %60 = arith.select %51, %55, %59 : vector<1x16x16x128xi1>, vector<1x16x16x128xf32>
    %61 = arith.select %45, %49, %60 : vector<1x16x16x128xi1>, vector<1x16x16x128xf32>
    %62 = arith.select %40, %43, %61 : vector<1x16x16x128xi1>, vector<1x16x16x128xf32>
    %63 = arith.select %35, %38, %62 : vector<1x16x16x128xi1>, vector<1x16x16x128xf32>
    %c0_26 = arith.constant 0 : index
    %c0_27 = arith.constant 0 : index
    %c0_28 = arith.constant 0 : index
    %c0_29 = arith.constant 0 : index
    %64 = vector.load %arg2[%c0_26, %c0_27, %c0_28, %c0_29] : memref<1x16x16x128xf32, #tpu.memory_space<vmem>>, vector<1x16x16x128xf32>
    tpu.vector_store %arg2[%c0_26, %c0_27, %c0_28, %c0_29], %63 {strides = array<i32>} : memref<1x16x16x128xf32, #tpu.memory_space<vmem>>, vector<1x16x16x128xf32>,
    return
  }
  func.func @transform_0(%arg0: i32) -> (i32, i32, i32, i32) {
    %c0_i32 = arith.constant 0 : i32
    %c0_i32_0 = arith.constant 0 : i32
    %c0_i32_1 = arith.constant 0 : i32
    %c0_i32_2 = arith.constant 0 : i32
    return %arg0, %c0_i32, %c0_i32_0, %c0_i32_1 : i32, i32, i32, i32
  }
  func.func @transform_1(%arg0: i32) -> (i32, i32, i32, i32) {
    %c0_i32 = arith.constant 0 : i32
    %c0_i32_0 = arith.constant 0 : i32
    %c0_i32_1 = arith.constant 0 : i32
    %c0_i32_2 = arith.constant 0 : i32
    return %arg0, %c0_i32, %c0_i32_0, %c0_i32_1 : i32, i32, i32, i32
  }
}

</mosaic_0001>

<llo_original>
// kernel: _lambda_.13
$region0: #{_lambda_.13}
  #allocation0 [shape = 'u32[]', space=smem, size = 0x4, offset = 0x4, fixed_abs, tag = 'smem constant byte address 0x4 - core index']
  #allocation1 [shape = 'u32[144,128]{1,0:T(1,128)}', space=vmem, size = 0x12000, scoped, tag = 'internal scratch']
  #allocation2 [shape = 'f32[512,128]{1,0:T(8,128)}', space=vmem, size = 0x40000, scoped, tag = 'scratch operand']
  %s0 = inlined_call_operand.vmem [shape: bf16[2048,128], index: 0, kind: input, shape index: {}]
  %s1 = inlined_call_operand.vmem [shape: bf16[128,128], index: 1, kind: input, shape index: {}]
  %s2 = inlined_call_operand.vmem [shape: f32[1,128], index: 2, kind: input, shape index: {}]
  %s3 = inlined_call_operand.vmem [shape: bf16[2048,128], index: 3, kind: output, shape index: {}]
  %s4 = sld [smem:[#allocation0]]
  $region53: #{_lambda_.13} parent=0
    _
  %s6 = ssub.s32 1, %s4
  %s7 = scalar_select 0, %s6, %s4
  loop: start=0, step=1, limit=6
  $region2: #{_lambda_.13} parent=0 // loop_pre_header
    _
  $region3: #{_lambda_.13} parent=0 // loop_header
    %s9 = sphi 0, %s13
    %p10 = scmp.ge.s32.totalorder %s9, 6
    %s16 = sphi 0, %s35
    %s17 = sphi 0, %s31
    %s18 = sphi 0, %s27
    %s19 = sphi 0, %s16
    %s20 = sphi 0, %s17
    %s21 = sphi 0, %s18
    %s22 = sphi 0, %s19
    %s23 = sphi 0, %s20
    %s24 = sphi 0, %s21
    %s40 = sphi 0, %s42
    %s43 = sphi 0, %s40
    %s44 = sphi 0, %s43
    %s60 = sphi 0, %s44
    %s68 = sphi 0, %s70
    %s71 = sphi 0, %s68
    %s72 = sphi 0, %s71
    %s88 = sphi 0, %s72
    %s94 = sphi 0, %s96
    %s97 = sphi 0, %s94
    %s98 = sphi 0, %s97
    %s114 = sphi 0, %s98
    %s122 = sphi 0, %s124
    %s125 = sphi 0, %s122
    %s126 = sphi 0, %s125
    %s142 = sphi 0, %s126
  $region4: #{_lambda_.13} parent=0 // loop_header_branch
    %12 = sbr.rel (%p10) target = $region8
  $region5: #{_lambda_.13} parent=0 // loop_body
    %s14 = ssub.s32 %s9, 1
    %s15 = ssub.s32 %s9, 2
    %s25 = sadd.s32 1, %s18
    %p26 = scmp.ge.s32.totalorder %s25, 1
    %s27 = scalar_select %p26, 0, %s25
    %s28 = sadd.s32 1, %s17
    %s29 = scalar_select %p26, %s28, %s17
    %p30 = scmp.ge.s32.totalorder %s29, 1
    %s31 = scalar_select %p30, 0, %s29
    %s32 = sadd.s32 1, %s16
    %s33 = scalar_select %p30, %s32, %s16
    %p34 = scmp.ge.s32.totalorder %s33, 4
    %s35 = scalar_select %p34, 0, %s33
    %s36 = ssub.s32 %s16, %s35
    %s37 = ssub.s32 %s18, %s27
    %s38 = sor.u32 %s36, %s37
    %p39 = scmp.eq.s32.totalorder %s38, 0
    %s41 = sadd.s32 %s40, 1
    %s42 = scalar_select %p39, %s40, %s41
    %p45 = pneg %p39
    %p46 = scmp.eq.s32.totalorder %s9, 3
    %p47 = por %p45, %p46
    %p48 = scmp.ne.s32.totalorder %s40, %s43
    %p49 = scmp.eq.s32.totalorder %s9, 0
    %p50 = por %p48, %p49
    %p51 = scmp.ne.s32.totalorder %s40, %s43
    %p52 = scmp.eq.s32.totalorder %s14, 3
    %p53 = por %p51, %p52
    %p54 = scmp.ne.s32.totalorder %s43, %s44
    %p55 = scmp.eq.s32.totalorder %s14, 0
    %p56 = por %p54, %p55
    %p57 = scmp.ne.s32.totalorder %s43, %s44
    %p58 = scmp.eq.s32.totalorder %s15, 3
    %p59 = por %p57, %p58
    %p61 = scmp.ne.s32.totalorder %s44, %s60
    %p62 = scmp.eq.s32.totalorder %s15, 0
    %p63 = por %p61, %p62
    %s64 = ssub.s32 %s18, %s27
    %s65 = ssub.s32 %s17, %s31
    %s66 = sor.u32 %s64, %s65
    %p67 = scmp.eq.s32.totalorder %s66, 0
    %s69 = sadd.s32 %s68, 1
    %s70 = scalar_select %p67, %s68, %s69
    %p73 = pneg %p67
    %p74 = scmp.eq.s32.totalorder %s9, 3
    %p75 = por %p73, %p74
    %p76 = scmp.ne.s32.totalorder %s68, %s71
    %p77 = scmp.eq.s32.totalorder %s9, 0
    %p78 = por %p76, %p77
    %p79 = scmp.ne.s32.totalorder %s68, %s71
    %p80 = scmp.eq.s32.totalorder %s14, 3
    %p81 = por %p79, %p80
    %p82 = scmp.ne.s32.totalorder %s71, %s72
    %p83 = scmp.eq.s32.totalorder %s14, 0
    %p84 = por %p82, %p83
    %p85 = scmp.ne.s32.totalorder %s71, %s72
    %p86 = scmp.eq.s32.totalorder %s15, 3
    %p87 = por %p85, %p86
    %p89 = scmp.ne.s32.totalorder %s72, %s88
    %p90 = scmp.eq.s32.totalorder %s15, 0
    %p91 = por %p89, %p90
    %s92 = ssub.s32 %s17, %s31
    %p93 = scmp.eq.s32.totalorder %s92, 0
    %s95 = sadd.s32 %s94, 1
    %s96 = scalar_select %p93, %s94, %s95
    %p99 = pneg %p93
    %p100 = scmp.eq.s32.totalorder %s9, 3
    %p101 = por %p99, %p100
    %p102 = scmp.ne.s32.totalorder %s94, %s97
    %p103 = scmp.eq.s32.totalorder %s9, 0
    %p104 = por %p102, %p103
    %p105 = scmp.ne.s32.totalorder %s94, %s97
    %p106 = scmp.eq.s32.totalorder %s14, 3
    %p107 = por %p105, %p106
    %p108 = scmp.ne.s32.totalorder %s97, %s98
    %p109 = scmp.eq.s32.totalorder %s14, 0
    %p110 = por %p108, %p109
    %p111 = scmp.ne.s32.totalorder %s97, %s98
    %p112 = scmp.eq.s32.totalorder %s15, 3
    %p113 = por %p111, %p112
    %p115 = scmp.ne.s32.totalorder %s98, %s114
    %p116 = scmp.eq.s32.totalorder %s15, 0
    %p117 = por %p115, %p116
    %s118 = ssub.s32 %s16, %s35
    %s119 = ssub.s32 %s17, %s31
    %s120 = sor.u32 %s118, %s119
    %p121 = scmp.eq.s32.totalorder %s120, 0
    %s123 = sadd.s32 %s122, 1
    %s124 = scalar_select %p121, %s122, %s123
    %p127 = pneg %p121
    %p128 = scmp.eq.s32.totalorder %s9, 3
    %p129 = por %p127, %p128
    %p130 = scmp.ne.s32.totalorder %s122, %s125
    %p131 = scmp.eq.s32.totalorder %s9, 0
    %p132 = por %p130, %p131
    %p133 = scmp.ne.s32.totalorder %s122, %s125
    %p134 = scmp.eq.s32.totalorder %s14, 3
    %p135 = por %p133, %p134
    %p136 = scmp.ne.s32.totalorder %s125, %s126
    %p137 = scmp.eq.s32.totalorder %s14, 0
    %p138 = por %p136, %p137
    %p139 = scmp.ne.s32.totalorder %s125, %s126
    %p140 = scmp.eq.s32.totalorder %s15, 3
    %p141 = por %p139, %p140
    %p143 = scmp.ne.s32.totalorder %s126, %s142
    %p144 = scmp.eq.s32.totalorder %s15, 0
    %p145 = por %p143, %p144
    %p146 = scmp.le.s32.totalorder 1, %s9
    %p147 = scmp.lt.s32.totalorder %s9, 5
    %p148 = pnand %p146, %p147
    %p149 = pneg %p148
    // Predicated region
    $region9: #{_lambda_.13} parent=5 // pred_check
      _
    $region10: #{_lambda_.13} parent=5 // pred_check_branch
      %151 = sbr.rel (%p148) target = $region12
    $region11: #{_lambda_.13} parent=5 // pred_region
      %s152 = ssub.s32 %s9, 1
      // Predicated region
      $region13: #{_lambda_.13} parent=11 // pred_check
        %p153 = pneg %p84
      $region14: #{_lambda_.13} parent=11 // pred_check_branch
        %155 = sbr.rel (%p153) target = $region16
      $region15: #{_lambda_.13} parent=11 // pred_region
        %s156 = smul.u32 16, %s21
        %p157 = scmp.lt.s32.totalorder %s156, 15
        %s158 = scalar_select %p157, %s156, 15
        %p159 = scmp.lt.s32.totalorder %s20, 0
        %s160 = scalar_select %p159, %s20, 0
        %s161 = sadd.s32 %s160, %s158
        %s162 = smul.addr %s161, 4
        %s163 = scalar_lea.vmem %s1, %s162
        %s164 = smul.u32 16, %s21
      $region16: #{_lambda_.13} parent=11 // pred_fallthru
        _
      // Predicated region
      $region17: #{_lambda_.13} parent=11 // pred_check
        %p165 = pneg %p110
      $region18: #{_lambda_.13} parent=11 // pred_check_branch
        %167 = sbr.rel (%p165) target = $region20
      $region19: #{_lambda_.13} parent=11 // pred_region
        %p168 = scmp.lt.s32.totalorder %s20, 0
        %s169 = scalar_select %p168, %s20, 0
        %s170 = scalar_lea.vmem %s2, %s169
      $region20: #{_lambda_.13} parent=11 // pred_fallthru
        _
    $region12: #{_lambda_.13} parent=5 // pred_fallthru
      _
    %p171 = scmp.lt.s32.totalorder %s9, 4
    // Predicated region
    $region21: #{_lambda_.13} parent=5 // pred_check
      %p172 = pneg %p171
    $region22: #{_lambda_.13} parent=5 // pred_check_branch
      %174 = sbr.rel (%p172) target = $region24
    $region23: #{_lambda_.13} parent=5 // pred_region
      // Predicated region
      $region25: #{_lambda_.13} parent=23 // pred_check
        %p175 = pneg %p50
      $region26: #{_lambda_.13} parent=23 // pred_check_branch
        %177 = sbr.rel (%p175) target = $region28
      $region27: #{_lambda_.13} parent=23 // pred_region
        %s178 = smul.u32 64, %s16
        %p179 = scmp.lt.s32.totalorder %s178, 255
        %s180 = scalar_select %p179, %s178, 255
        %p181 = scmp.lt.s32.totalorder %s18, 0
        %s182 = scalar_select %p181, %s18, 0
        %s183 = sadd.s32 %s182, %s180
        %s184 = smul.addr %s183, 4
        %s185 = scalar_lea.vmem %s0, %s184
        %s186 = smul.u32 64, %s16
      $region28: #{_lambda_.13} parent=23 // pred_fallthru
        _
    $region24: #{_lambda_.13} parent=5 // pred_fallthru
      _
    %p187 = scmp.le.s32.totalorder 1, %s9
    %p188 = scmp.lt.s32.totalorder %s9, 5
    %p189 = pnand %p187, %p188
    %p190 = pneg %p189
    // Predicated region
    $region29: #{_lambda_.13} parent=5 // pred_check
      _
    $region30: #{_lambda_.13} parent=5 // pred_check_branch
      %192 = sbr.rel (%p189) target = $region32
    $region31: #{_lambda_.13} parent=5 // pred_region
      %s193 = ssub.s32 %s9, 1
      %s194 = smul.u32 64, %s19
      %p195 = scmp.lt.s32.totalorder %s194, 255
      %s196 = scalar_select %p195, %s194, 255
      %p197 = scmp.lt.s32.totalorder %s21, 0
      %s198 = scalar_select %p197, %s21, 0
      %s199 = sadd.s32 %s198, %s196
      %s200 = smul.addr %s199, 4
      %s201 = scalar_lea.vmem %s0, %s200
      %p202 = pneg %p56
      %p203 = pneg %p53
      %s204 = smul.u32 16, %s21
      %p205 = scmp.lt.s32.totalorder %s204, 15
      %s206 = scalar_select %p205, %s204, 15
      %p207 = scmp.lt.s32.totalorder %s20, 0
      %s208 = scalar_select %p207, %s20, 0
      %s209 = sadd.s32 %s208, %s206
      %s210 = smul.addr %s209, 4
      %s211 = scalar_lea.vmem %s1, %s210
      %p212 = pneg %p84
      %p213 = pneg %p81
      %p214 = scmp.lt.s32.totalorder %s20, 0
      %s215 = scalar_select %p214, %s20, 0
      %s216 = scalar_lea.vmem %s2, %s215
      %p217 = pneg %p110
      %p218 = pneg %p107
      %p219 = pneg %p138
      %p220 = pneg %p135
      %s221 = smul.u32 64, %s19
      %p222 = scmp.lt.s32.totalorder %s221, 255
      %s223 = scalar_select %p222, %s221, 255
      %p224 = scmp.lt.s32.totalorder %s20, 0
      %s225 = scalar_select %p224, %s20, 0
      %s226 = sadd.s32 %s225, %s223
      %s227 = smul.addr %s226, 4
      %s228 = scalar_lea.vmem %s3, %s227
      %s229 = smul.u32 64, %s19
      %p230 = scmp.lt.s32.totalorder %s229, 255
      %s231 = scalar_select %p230, %s229, 255
      %p232 = scmp.lt.s32.totalorder %s21, 0
      %s233 = scalar_select %p232, %s21, 0
      %s234 = sadd.s32 %s233, %s231
      %s235 = smul.addr %s234, 4
      %s236 = scalar_lea.vmem %s0, %s235
      %s237 = smul.u32 64, %s19
      %s238 = smul.u32 16, %s21
      %p239 = scmp.lt.s32.totalorder %s238, 15
      %s240 = scalar_select %p239, %s238, 15
      %p241 = scmp.lt.s32.totalorder %s20, 0
      %s242 = scalar_select %p241, %s20, 0
      %s243 = sadd.s32 %s242, %s240
      %s244 = smul.addr %s243, 4
      %s245 = scalar_lea.vmem %s1, %s244
      %s246 = smul.u32 16, %s21
      %p247 = scmp.lt.s32.totalorder %s20, 0
      %s248 = scalar_select %p247, %s20, 0
      %s249 = scalar_lea.vmem %s2, %s248
      %s250 = smul.u32 64, %s19
      %p251 = scmp.lt.s32.totalorder %s250, 255
      %s252 = scalar_select %p251, %s250, 255
      %p253 = scmp.lt.s32.totalorder %s20, 0
      %s254 = scalar_select %p253, %s20, 0
      %s255 = sadd.s32 %s254, %s252
      %s256 = smul.addr %s255, 4
      %s257 = scalar_lea.vmem %s3, %s256
      %s258 = smul.u32 64, %s19
      %p260 = scmp.eq.s32.totalorder %s21, 0
      // Predicated region
      $region33: #{_lambda_.13} parent=31 // pred_check
        %p261 = pneg %p260
      $region34: #{_lambda_.13} parent=31 // pred_check_branch
        %263 = sbr.rel (%p261) target = $region36
      $region35: #{_lambda_.13} parent=31 // pred_region
        %264 = vst [vmem:[#allocation2] sm:$0xff] 0.0
        %265 = vst [vmem:[#allocation2 + $0x8] sm:$0xff] 0.0
        %266 = vst [vmem:[#allocation2 + $0x10] sm:$0xff] 0.0
        %267 = vst [vmem:[#allocation2 + $0x18] sm:$0xff] 0.0
        %268 = vst [vmem:[#allocation2 + $0x20] sm:$0xff] 0.0
        %269 = vst [vmem:[#allocation2 + $0x28] sm:$0xff] 0.0
        %270 = vst [vmem:[#allocation2 + $0x30] sm:$0xff] 0.0
        %271 = vst [vmem:[#allocation2 + $0x38] sm:$0xff] 0.0
        %272 = vst [vmem:[#allocation2 + $0x40] sm:$0xff] 0.0
        %273 = vst [vmem:[#allocation2 + $0x48] sm:$0xff] 0.0
        %274 = vst [vmem:[#allocation2 + $0x50] sm:$0xff] 0.0
        %275 = vst [vmem:[#allocation2 + $0x58] sm:$0xff] 0.0
        %276 = vst [vmem:[#allocation2 + $0x60] sm:$0xff] 0.0
        %277 = vst [vmem:[#allocation2 + $0x68] sm:$0xff] 0.0
        %278 = vst [vmem:[#allocation2 + $0x70] sm:$0xff] 0.0
        %279 = vst [vmem:[#allocation2 + $0x78] sm:$0xff] 0.0
        %280 = vst [vmem:[#allocation2 + $0x80] sm:$0xff] 0.0
        %281 = vst [vmem:[#allocation2 + $0x88] sm:$0xff] 0.0
        %282 = vst [vmem:[#allocation2 + $0x90] sm:$0xff] 0.0
        %283 = vst [vmem:[#allocation2 + $0x98] sm:$0xff] 0.0
        %284 = vst [vmem:[#allocation2 + $0xa0] sm:$0xff] 0.0
        %285 = vst [vmem:[#allocation2 + $0xa8] sm:$0xff] 0.0
        %286 = vst [vmem:[#allocation2 + $0xb0] sm:$0xff] 0.0
        %287 = vst [vmem:[#allocation2 + $0xb8] sm:$0xff] 0.0
        %288 = vst [vmem:[#allocation2 + $0xc0] sm:$0xff] 0.0
        %289 = vst [vmem:[#allocation2 + $0xc8] sm:$0xff] 0.0
        %290 = vst [vmem:[#allocation2 + $0xd0] sm:$0xff] 0.0
        %291 = vst [vmem:[#allocation2 + $0xd8] sm:$0xff] 0.0
        %292 = vst [vmem:[#allocation2 + $0xe0] sm:$0xff] 0.0
        %293 = vst [vmem:[#allocation2 + $0xe8] sm:$0xff] 0.0
        %294 = vst [vmem:[#allocation2 + $0xf0] sm:$0xff] 0.0
        %295 = vst [vmem:[#allocation2 + $0xf8] sm:$0xff] 0.0
        %296 = vst [vmem:[#allocation2 + $0x100] sm:$0xff] 0.0
        %297 = vst [vmem:[#allocation2 + $0x108] sm:$0xff] 0.0
        %298 = vst [vmem:[#allocation2 + $0x110] sm:$0xff] 0.0
        %299 = vst [vmem:[#allocation2 + $0x118] sm:$0xff] 0.0
        %300 = vst [vmem:[#allocation2 + $0x120] sm:$0xff] 0.0
        %301 = vst [vmem:[#allocation2 + $0x128] sm:$0xff] 0.0
        %302 = vst [vmem:[#allocation2 + $0x130] sm:$0xff] 0.0
        %303 = vst [vmem:[#allocation2 + $0x138] sm:$0xff] 0.0
        %304 = vst [vmem:[#allocation2 + $0x140] sm:$0xff] 0.0
        %305 = vst [vmem:[#allocation2 + $0x148] sm:$0xff] 0.0
        %306 = vst [vmem:[#allocation2 + $0x150] sm:$0xff] 0.0
        %307 = vst [vmem:[#allocation2 + $0x158] sm:$0xff] 0.0
        %308 = vst [vmem:[#allocation2 + $0x160] sm:$0xff] 0.0
        %309 = vst [vmem:[#allocation2 + $0x168] sm:$0xff] 0.0
        %310 = vst [vmem:[#allocation2 + $0x170] sm:$0xff] 0.0
        %311 = vst [vmem:[#allocation2 + $0x178] sm:$0xff] 0.0
        %312 = vst [vmem:[#allocation2 + $0x180] sm:$0xff] 0.0
        %313 = vst [vmem:[#allocation2 + $0x188] sm:$0xff] 0.0
        %314 = vst [vmem:[#allocation2 + $0x190] sm:$0xff] 0.0
        %315 = vst [vmem:[#allocation2 + $0x198] sm:$0xff] 0.0
        %316 = vst [vmem:[#allocation2 + $0x1a0] sm:$0xff] 0.0
        %317 = vst [vmem:[#allocation2 + $0x1a8] sm:$0xff] 0.0
        %318 = vst [vmem:[#allocation2 + $0x1b0] sm:$0xff] 0.0
        %319 = vst [vmem:[#allocation2 + $0x1b8] sm:$0xff] 0.0
        %320 = vst [vmem:[#allocation2 + $0x1c0] sm:$0xff] 0.0
        %321 = vst [vmem:[#allocation2 + $0x1c8] sm:$0xff] 0.0
        %322 = vst [vmem:[#allocation2 + $0x1d0] sm:$0xff] 0.0
        %323 = vst [vmem:[#allocation2 + $0x1d8] sm:$0xff] 0.0
        %324 = vst [vmem:[#allocation2 + $0x1e0] sm:$0xff] 0.0
        %325 = vst [vmem:[#allocation2 + $0x1e8] sm:$0xff] 0.0
        %326 = vst [vmem:[#allocation2 + $0x1f0] sm:$0xff] 0.0
        %327 = vst [vmem:[#allocation2 + $0x1f8] sm:$0xff] 0.0
      $region36: #{_lambda_.13} parent=31 // pred_fallthru
        _
      %v328 = vld [vmem:[#allocation2] sm:$0xff]
      %v329 = vld [vmem:[#allocation2 + $0x8] sm:$0xff]
      %v330 = vld [vmem:[#allocation2 + $0x10] sm:$0xff]
      %v331 = vld [vmem:[#allocation2 + $0x18] sm:$0xff]
      %v332 = vld [vmem:[#allocation2 + $0x20] sm:$0xff]
      %v333 = vld [vmem:[#allocation2 + $0x28] sm:$0xff]
      %v334 = vld [vmem:[#allocation2 + $0x30] sm:$0xff]
      %v335 = vld [vmem:[#allocation2 + $0x38] sm:$0xff]
      %v336 = vld [vmem:[#allocation2 + $0x40] sm:$0xff]
      %v337 = vld [vmem:[#allocation2 + $0x48] sm:$0xff]
      %v338 = vld [vmem:[#allocation2 + $0x50] sm:$0xff]
      %v339 = vld [vmem:[#allocation2 + $0x58] sm:$0xff]
      %v340 = vld [vmem:[#allocation2 + $0x60] sm:$0xff]
      %v341 = vld [vmem:[#allocation2 + $0x68] sm:$0xff]
      %v342 = vld [vmem:[#allocation2 + $0x70] sm:$0xff]
      %v343 = vld [vmem:[#allocation2 + $0x78] sm:$0xff]
      %v344 = vld [vmem:[#allocation2 + $0x80] sm:$0xff]
      %v345 = vld [vmem:[#allocation2 + $0x88] sm:$0xff]
      %v346 = vld [vmem:[#allocation2 + $0x90] sm:$0xff]
      %v347 = vld [vmem:[#allocation2 + $0x98] sm:$0xff]
      %v348 = vld [vmem:[#allocation2 + $0xa0] sm:$0xff]
      %v349 = vld [vmem:[#allocation2 + $0xa8] sm:$0xff]
      %v350 = vld [vmem:[#allocation2 + $0xb0] sm:$0xff]
      %v351 = vld [vmem:[#allocation2 + $0xb8] sm:$0xff]
      %v352 = vld [vmem:[#allocation2 + $0xc0] sm:$0xff]
      %v353 = vld [vmem:[#allocation2 + $0xc8] sm:$0xff]
      %v354 = vld [vmem:[#allocation2 + $0xd0] sm:$0xff]
      %v355 = vld [vmem:[#allocation2 + $0xd8] sm:$0xff]
      %v356 = vld [vmem:[#allocation2 + $0xe0] sm:$0xff]
      %v357 = vld [vmem:[#allocation2 + $0xe8] sm:$0xff]
      %v358 = vld [vmem:[#allocation2 + $0xf0] sm:$0xff]
      %v359 = vld [vmem:[#allocation2 + $0xf8] sm:$0xff]
      %v360 = vld [vmem:[#allocation2 + $0x100] sm:$0xff]
      %v361 = vld [vmem:[#allocation2 + $0x108] sm:$0xff]
      %v362 = vld [vmem:[#allocation2 + $0x110] sm:$0xff]
      %v363 = vld [vmem:[#allocation2 + $0x118] sm:$0xff]
      %v364 = vld [vmem:[#allocation2 + $0x120] sm:$0xff]
      %v365 = vld [vmem:[#allocation2 + $0x128] sm:$0xff]
      %v366 = vld [vmem:[#allocation2 + $0x130] sm:$0xff]
      %v367 = vld [vmem:[#allocation2 + $0x138] sm:$0xff]
      %v368 = vld [vmem:[#allocation2 + $0x140] sm:$0xff]
      %v369 = vld [vmem:[#allocation2 + $0x148] sm:$0xff]
      %v370 = vld [vmem:[#allocation2 + $0x150] sm:$0xff]
      %v371 = vld [vmem:[#allocation2 + $0x158] sm:$0xff]
      %v372 = vld [vmem:[#allocation2 + $0x160] sm:$0xff]
      %v373 = vld [vmem:[#allocation2 + $0x168] sm:$0xff]
      %v374 = vld [vmem:[#allocation2 + $0x170] sm:$0xff]
      %v375 = vld [vmem:[#allocation2 + $0x178] sm:$0xff]
      %v376 = vld [vmem:[#allocation2 + $0x180] sm:$0xff]
      %v377 = vld [vmem:[#allocation2 + $0x188] sm:$0xff]
      %v378 = vld [vmem:[#allocation2 + $0x190] sm:$0xff]
      %v379 = vld [vmem:[#allocation2 + $0x198] sm:$0xff]
      %v380 = vld [vmem:[#allocation2 + $0x1a0] sm:$0xff]
      %v381 = vld [vmem:[#allocation2 + $0x1a8] sm:$0xff]
      %v382 = vld [vmem:[#allocation2 + $0x1b0] sm:$0xff]
      %v383 = vld [vmem:[#allocation2 + $0x1b8] sm:$0xff]
      %v384 = vld [vmem:[#allocation2 + $0x1c0] sm:$0xff]
      %v385 = vld [vmem:[#allocation2 + $0x1c8] sm:$0xff]
      %v386 = vld [vmem:[#allocation2 + $0x1d0] sm:$0xff]
      %v387 = vld [vmem:[#allocation2 + $0x1d8] sm:$0xff]
      %v388 = vld [vmem:[#allocation2 + $0x1e0] sm:$0xff]
      %v389 = vld [vmem:[#allocation2 + $0x1e8] sm:$0xff]
      %v390 = vld [vmem:[#allocation2 + $0x1f0] sm:$0xff]
      %v391 = vld [vmem:[#allocation2 + $0x1f8] sm:$0xff]
      %v392 = vld [vmem:[%s236] sm:$0xf]
      %v393 = vld [vmem:[%s236 + $0x4] sm:$0xf]
      %v394 = vld [vmem:[%s236 + $0x8] sm:$0xf]
      %v395 = vld [vmem:[%s236 + $0xc] sm:$0xf]
      %v396 = vld [vmem:[%s236 + $0x10] sm:$0xf]
      %v397 = vld [vmem:[%s236 + $0x14] sm:$0xf]
      %v398 = vld [vmem:[%s236 + $0x18] sm:$0xf]
      %v399 = vld [vmem:[%s236 + $0x1c] sm:$0xf]
      %v400 = vld [vmem:[%s236 + $0x20] sm:$0xf]
      %v401 = vld [vmem:[%s236 + $0x24] sm:$0xf]
      %v402 = vld [vmem:[%s236 + $0x28] sm:$0xf]
      %v403 = vld [vmem:[%s236 + $0x2c] sm:$0xf]
      %v404 = vld [vmem:[%s236 + $0x30] sm:$0xf]
      %v405 = vld [vmem:[%s236 + $0x34] sm:$0xf]
      %v406 = vld [vmem:[%s236 + $0x38] sm:$0xf]
      %v407 = vld [vmem:[%s236 + $0x3c] sm:$0xf]
      %v408 = vld [vmem:[%s236 + $0x40] sm:$0xf]
      %v409 = vld [vmem:[%s236 + $0x44] sm:$0xf]
      %v410 = vld [vmem:[%s236 + $0x48] sm:$0xf]
      %v411 = vld [vmem:[%s236 + $0x4c] sm:$0xf]
      %v412 = vld [vmem:[%s236 + $0x50] sm:$0xf]
      %v413 = vld [vmem:[%s236 + $0x54] sm:$0xf]
      %v414 = vld [vmem:[%s236 + $0x58] sm:$0xf]
      %v415 = vld [vmem:[%s236 + $0x5c] sm:$0xf]
      %v416 = vld [vmem:[%s236 + $0x60] sm:$0xf]
      %v417 = vld [vmem:[%s236 + $0x64] sm:$0xf]
      %v418 = vld [vmem:[%s236 + $0x68] sm:$0xf]
      %v419 = vld [vmem:[%s236 + $0x6c] sm:$0xf]
      %v420 = vld [vmem:[%s236 + $0x70] sm:$0xf]
      %v421 = vld [vmem:[%s236 + $0x74] sm:$0xf]
      %v422 = vld [vmem:[%s236 + $0x78] sm:$0xf]
      %v423 = vld [vmem:[%s236 + $0x7c] sm:$0xf]
      %v424 = vld [vmem:[%s236 + $0x80] sm:$0xf]
      %v425 = vld [vmem:[%s236 + $0x84] sm:$0xf]
      %v426 = vld [vmem:[%s236 + $0x88] sm:$0xf]
      %v427 = vld [vmem:[%s236 + $0x8c] sm:$0xf]
      %v428 = vld [vmem:[%s236 + $0x90] sm:$0xf]
      %v429 = vld [vmem:[%s236 + $0x94] sm:$0xf]
      %v430 = vld [vmem:[%s236 + $0x98] sm:$0xf]
      %v431 = vld [vmem:[%s236 + $0x9c] sm:$0xf]
      %v432 = vld [vmem:[%s236 + $0xa0] sm:$0xf]
      %v433 = vld [vmem:[%s236 + $0xa4] sm:$0xf]
      %v434 = vld [vmem:[%s236 + $0xa8] sm:$0xf]
      %v435 = vld [vmem:[%s236 + $0xac] sm:$0xf]
      %v436 = vld [vmem:[%s236 + $0xb0] sm:$0xf]
      %v437 = vld [vmem:[%s236 + $0xb4] sm:$0xf]
      %v438 = vld [vmem:[%s236 + $0xb8] sm:$0xf]
      %v439 = vld [vmem:[%s236 + $0xbc] sm:$0xf]
      %v440 = vld [vmem:[%s236 + $0xc0] sm:$0xf]
      %v441 = vld [vmem:[%s236 + $0xc4] sm:$0xf]
      %v442 = vld [vmem:[%s236 + $0xc8] sm:$0xf]
      %v443 = vld [vmem:[%s236 + $0xcc] sm:$0xf]
      %v444 = vld [vmem:[%s236 + $0xd0] sm:$0xf]
      %v445 = vld [vmem:[%s236 + $0xd4] sm:$0xf]
      %v446 = vld [vmem:[%s236 + $0xd8] sm:$0xf]
      %v447 = vld [vmem:[%s236 + $0xdc] sm:$0xf]
      %v448 = vld [vmem:[%s236 + $0xe0] sm:$0xf]
      %v449 = vld [vmem:[%s236 + $0xe4] sm:$0xf]
      %v450 = vld [vmem:[%s236 + $0xe8] sm:$0xf]
      %v451 = vld [vmem:[%s236 + $0xec] sm:$0xf]
      %v452 = vld [vmem:[%s236 + $0xf0] sm:$0xf]
      %v453 = vld [vmem:[%s236 + $0xf4] sm:$0xf]
      %v454 = vld [vmem:[%s236 + $0xf8] sm:$0xf]
      %v455 = vld [vmem:[%s236 + $0xfc] sm:$0xf]
      %v456 = vld [vmem:[%s245] sm:$0xf]
      %v457 = vld [vmem:[%s245 + $0x4] sm:$0xf]
      %v458 = vld [vmem:[%s245 + $0x8] sm:$0xf]
      %v459 = vld [vmem:[%s245 + $0xc] sm:$0xf]
      %v460 = vld [vmem:[%s245 + $0x10] sm:$0xf]
      %v461 = vld [vmem:[%s245 + $0x14] sm:$0xf]
      %v462 = vld [vmem:[%s245 + $0x18] sm:$0xf]
      %v463 = vld [vmem:[%s245 + $0x1c] sm:$0xf]
      %v464 = vld [vmem:[%s245 + $0x20] sm:$0xf]
      %v465 = vld [vmem:[%s245 + $0x24] sm:$0xf]
      %v466 = vld [vmem:[%s245 + $0x28] sm:$0xf]
      %v467 = vld [vmem:[%s245 + $0x2c] sm:$0xf]
      %v468 = vld [vmem:[%s245 + $0x30] sm:$0xf]
      %v469 = vld [vmem:[%s245 + $0x34] sm:$0xf]
      %v470 = vld [vmem:[%s245 + $0x38] sm:$0xf]
      %v471 = vld [vmem:[%s245 + $0x3c] sm:$0xf]
      %v536 = vunpack.c.l.b16 %v392
      %v537 = vunpack.c.l.b16 %v393
      %v538 = vunpack.c.l.b16 %v394
      %v539 = vunpack.c.l.b16 %v395
      %v540 = vunpack.c.l.b16 %v396
      %v541 = vunpack.c.l.b16 %v397
      %v542 = vunpack.c.l.b16 %v398
      %v543 = vunpack.c.l.b16 %v399
      %v544 = vunpack.c.l.b16 %v400
      %v545 = vunpack.c.l.b16 %v401
      %v546 = vunpack.c.l.b16 %v402
      %v547 = vunpack.c.l.b16 %v403
      %v548 = vunpack.c.l.b16 %v404
      %v549 = vunpack.c.l.b16 %v405
      %v550 = vunpack.c.l.b16 %v406
      %v551 = vunpack.c.l.b16 %v407
      %v552 = vunpack.c.l.b16 %v408
      %v553 = vunpack.c.l.b16 %v409
      %v554 = vunpack.c.l.b16 %v410
      %v555 = vunpack.c.l.b16 %v411
      %v556 = vunpack.c.l.b16 %v412
      %v557 = vunpack.c.l.b16 %v413
      %v558 = vunpack.c.l.b16 %v414
      %v559 = vunpack.c.l.b16 %v415
      %v560 = vunpack.c.l.b16 %v416
      %v561 = vunpack.c.l.b16 %v417
      %v562 = vunpack.c.l.b16 %v418
      %v563 = vunpack.c.l.b16 %v419
      %v564 = vunpack.c.l.b16 %v420
      %v565 = vunpack.c.l.b16 %v421
      %v566 = vunpack.c.l.b16 %v422
      %v567 = vunpack.c.l.b16 %v423
      %v568 = vunpack.c.l.b16 %v424
      %v569 = vunpack.c.l.b16 %v425
      %v570 = vunpack.c.l.b16 %v426
      %v571 = vunpack.c.l.b16 %v427
      %v572 = vunpack.c.l.b16 %v428
      %v573 = vunpack.c.l.b16 %v429
      %v574 = vunpack.c.l.b16 %v430
      %v575 = vunpack.c.l.b16 %v431
      %v576 = vunpack.c.l.b16 %v432
      %v577 = vunpack.c.l.b16 %v433
      %v578 = vunpack.c.l.b16 %v434
      %v579 = vunpack.c.l.b16 %v435
      %v580 = vunpack.c.l.b16 %v436
      %v581 = vunpack.c.l.b16 %v437
      %v582 = vunpack.c.l.b16 %v438
      %v583 = vunpack.c.l.b16 %v439
      %v584 = vunpack.c.l.b16 %v440
      %v585 = vunpack.c.l.b16 %v441
      %v586 = vunpack.c.l.b16 %v442
      %v587 = vunpack.c.l.b16 %v443
      %v588 = vunpack.c.l.b16 %v444
      %v589 = vunpack.c.l.b16 %v445
      %v590 = vunpack.c.l.b16 %v446
      %v591 = vunpack.c.l.b16 %v447
      %v592 = vunpack.c.l.b16 %v448
      %v593 = vunpack.c.l.b16 %v449
      %v594 = vunpack.c.l.b16 %v450
      %v595 = vunpack.c.l.b16 %v451
      %v596 = vunpack.c.l.b16 %v452
      %v597 = vunpack.c.l.b16 %v453
      %v598 = vunpack.c.l.b16 %v454
      %v599 = vunpack.c.l.b16 %v455
      %v600 = vpack.c.b16 %v537, %v536
      %v601 = vpack.c.b16 %v539, %v538
      %v602 = vpack.c.b16 %v541, %v540
      %v603 = vpack.c.b16 %v543, %v542
      %v604 = vpack.c.b16 %v545, %v544
      %v605 = vpack.c.b16 %v547, %v546
      %v606 = vpack.c.b16 %v549, %v548
      %v607 = vpack.c.b16 %v551, %v550
      %v608 = vpack.c.b16 %v553, %v552
      %v609 = vpack.c.b16 %v555, %v554
      %v610 = vpack.c.b16 %v557, %v556
      %v611 = vpack.c.b16 %v559, %v558
      %v612 = vpack.c.b16 %v561, %v560
      %v613 = vpack.c.b16 %v563, %v562
      %v614 = vpack.c.b16 %v565, %v564
      %v615 = vpack.c.b16 %v567, %v566
      %v616 = vpack.c.b16 %v569, %v568
      %v617 = vpack.c.b16 %v571, %v570
      %v618 = vpack.c.b16 %v573, %v572
      %v619 = vpack.c.b16 %v575, %v574
      %v620 = vpack.c.b16 %v577, %v576
      %v621 = vpack.c.b16 %v579, %v578
      %v622 = vpack.c.b16 %v581, %v580
      %v623 = vpack.c.b16 %v583, %v582
      %v624 = vpack.c.b16 %v585, %v584
      %v625 = vpack.c.b16 %v587, %v586
      %v626 = vpack.c.b16 %v589, %v588
      %v627 = vpack.c.b16 %v591, %v590
      %v628 = vpack.c.b16 %v593, %v592
      %v629 = vpack.c.b16 %v595, %v594
      %v630 = vpack.c.b16 %v597, %v596
      %v631 = vpack.c.b16 %v599, %v598
      %v680 = vunpack.c.l.b16 %v456
      %v681 = vunpack.c.l.b16 %v457
      %v682 = vunpack.c.l.b16 %v458
      %v683 = vunpack.c.l.b16 %v459
      %v684 = vunpack.c.l.b16 %v460
      %v685 = vunpack.c.l.b16 %v461
      %v686 = vunpack.c.l.b16 %v462
      %v687 = vunpack.c.l.b16 %v463
      %v688 = vunpack.c.l.b16 %v464
      %v689 = vunpack.c.l.b16 %v465
      %v690 = vunpack.c.l.b16 %v466
      %v691 = vunpack.c.l.b16 %v467
      %v692 = vunpack.c.l.b16 %v468
      %v693 = vunpack.c.l.b16 %v469
      %v694 = vunpack.c.l.b16 %v470
      %v695 = vunpack.c.l.b16 %v471
      %v696 = vpack.c.b16 %v681, %v680
      %v697 = vpack.c.b16 %v683, %v682
      %v698 = vpack.c.b16 %v685, %v684
      %v699 = vpack.c.b16 %v687, %v686
      %v700 = vpack.c.b16 %v689, %v688
      %v701 = vpack.c.b16 %v691, %v690
      %v702 = vpack.c.b16 %v693, %v692
      %v703 = vpack.c.b16 %v695, %v694
      %712 = vmatprep.subr.bf16.mxu0 0
      %713 = vmatpush1.bf16.msra.mxu0 %v696
      %714 = vmatprep.subr.bf16.mxu0 0
      %715 = vmatpush1.bf16.msra.mxu0 %v697
      %716 = vmatprep.subr.bf16.mxu0 0
      %717 = vmatpush1.bf16.msra.mxu0 %v698
      %718 = vmatprep.subr.bf16.mxu0 0
      %719 = vmatpush1.bf16.msra.mxu0 %v699
      %720 = vmatprep.subr.bf16.mxu0 0
      %721 = vmatpush1.bf16.msra.mxu0 %v700
      %722 = vmatprep.subr.bf16.mxu0 0
      %723 = vmatpush1.bf16.msra.mxu0 %v701
      %724 = vmatprep.subr.bf16.mxu0 0
      %725 = vmatpush1.bf16.msra.mxu0 %v702
      %726 = vmatprep.subr.bf16.mxu0 0
      %727 = vmatpush1.bf16.msra.mxu0 %v703
      %728 = vmatprep.subr.bf16.mxu0 0
      %729 = vmatpush1.bf16.msra.mxu0 0
      %730 = vmatprep.subr.bf16.mxu0 0
      %731 = vmatpush1.bf16.msra.mxu0 0
      %732 = vmatprep.subr.bf16.mxu0 0
      %733 = vmatpush1.bf16.msra.mxu0 0
      %734 = vmatprep.subr.bf16.mxu0 0
      %735 = vmatpush1.bf16.msra.mxu0 0
      %736 = vmatprep.subr.bf16.mxu0 0
      %737 = vmatpush1.bf16.msra.mxu0 0
      %738 = vmatprep.subr.bf16.mxu0 0
      %739 = vmatpush1.bf16.msra.mxu0 0
      %740 = vmatprep.subr.bf16.mxu0 0
      %741 = vmatpush1.bf16.msra.mxu0 0
      %742 = vmatprep.subr.bf16.mxu0 0
      %743 = vmatpush1.bf16.msra.mxu0 0
      %744 = vmatprep.mubr.bf16.mxu0 0
      %745 = vmatmul.mubr.bf16.gmra.mrb[0].mxu0 %v600
      %v746 = vpop.f32.mrb[0].mxu0
      %v747 = vadd.f32 0.0, %v746
      %v748 = vpop.f32.mrb[0].mxu0
      %v749 = vpop.f32.mrb[0].mxu0
      %v750 = vadd.f32 0.0, %v749
      %v751 = vpop.f32.mrb[0].mxu0
      %752 = vmatprep.mubr.bf16.mxu0 0
      %753 = vmatmul.mubr.bf16.gmra.mrb[0].mxu0 %v601
      %v754 = vpop.f32.mrb[0].mxu0
      %v755 = vadd.f32 0.0, %v754
      %v756 = vpop.f32.mrb[0].mxu0
      %v757 = vpop.f32.mrb[0].mxu0
      %v758 = vadd.f32 0.0, %v757
      %v759 = vpop.f32.mrb[0].mxu0
      %760 = vmatprep.mubr.bf16.mxu0 0
      %761 = vmatmul.mubr.bf16.gmra.mrb[0].mxu0 %v602
      %v762 = vpop.f32.mrb[0].mxu0
      %v763 = vadd.f32 0.0, %v762
      %v764 = vpop.f32.mrb[0].mxu0
      %v765 = vpop.f32.mrb[0].mxu0
      %v766 = vadd.f32 0.0, %v765
      %v767 = vpop.f32.mrb[0].mxu0
      %768 = vmatprep.mubr.bf16.mxu0 0
      %769 = vmatmul.mubr.bf16.gmra.mrb[0].mxu0 %v603
      %v770 = vpop.f32.mrb[0].mxu0
      %v771 = vadd.f32 0.0, %v770
      %v772 = vpop.f32.mrb[0].mxu0
      %v773 = vpop.f32.mrb[0].mxu0
      %v774 = vadd.f32 0.0, %v773
      %v775 = vpop.f32.mrb[0].mxu0
      %776 = vmatprep.mubr.bf16.mxu0 0
      %777 = vmatmul.mubr.bf16.gmra.mrb[0].mxu0 %v604
      %v778 = vpop.f32.mrb[0].mxu0
      %v779 = vadd.f32 0.0, %v778
      %v780 = vpop.f32.mrb[0].mxu0
      %v781 = vpop.f32.mrb[0].mxu0
      %v782 = vadd.f32 0.0, %v781
      %v783 = vpop.f32.mrb[0].mxu0
      %784 = vmatprep.mubr.bf16.mxu0 0
      %785 = vmatmul.mubr.bf16.gmra.mrb[0].mxu0 %v605
      %v786 = vpop.f32.mrb[0].mxu0
      %v787 = vadd.f32 0.0, %v786
      %v788 = vpop.f32.mrb[0].mxu0
      %v789 = vpop.f32.mrb[0].mxu0
      %v790 = vadd.f32 0.0, %v789
      %v791 = vpop.f32.mrb[0].mxu0
      %792 = vmatprep.mubr.bf16.mxu0 0
      %793 = vmatmul.mubr.bf16.gmra.mrb[0].mxu0 %v606
      %v794 = vpop.f32.mrb[0].mxu0
      %v795 = vadd.f32 0.0, %v794
      %v796 = vpop.f32.mrb[0].mxu0
      %v797 = vpop.f32.mrb[0].mxu0
      %v798 = vadd.f32 0.0, %v797
      %v799 = vpop.f32.mrb[0].mxu0
      %800 = vmatprep.mubr.bf16.mxu0 0
      %801 = vmatmul.mubr.bf16.gmra.mrb[0].mxu0 %v607
      %v802 = vpop.f32.mrb[0].mxu0
      %v803 = vadd.f32 0.0, %v802
      %v804 = vpop.f32.mrb[0].mxu0
      %v805 = vpop.f32.mrb[0].mxu0
      %v806 = vadd.f32 0.0, %v805
      %v807 = vpop.f32.mrb[0].mxu0
      %808 = vmatprep.mubr.bf16.mxu0 0
      %809 = vmatmul.mubr.bf16.gmra.mrb[0].mxu0 %v608
      %v810 = vpop.f32.mrb[0].mxu0
      %v811 = vadd.f32 0.0, %v810
      %v812 = vpop.f32.mrb[0].mxu0
      %v813 = vpop.f32.mrb[0].mxu0
      %v814 = vadd.f32 0.0, %v813
      %v815 = vpop.f32.mrb[0].mxu0
      %816 = vmatprep.mubr.bf16.mxu0 0
      %817 = vmatmul.mubr.bf16.gmra.mrb[0].mxu0 %v609
      %v818 = vpop.f32.mrb[0].mxu0
      %v819 = vadd.f32 0.0, %v818
      %v820 = vpop.f32.mrb[0].mxu0
      %v821 = vpop.f32.mrb[0].mxu0
      %v822 = vadd.f32 0.0, %v821
      %v823 = vpop.f32.mrb[0].mxu0
      %824 = vmatprep.mubr.bf16.mxu0 0
      %825 = vmatmul.mubr.bf16.gmra.mrb[0].mxu0 %v610
      %v826 = vpop.f32.mrb[0].mxu0
      %v827 = vadd.f32 0.0, %v826
      %v828 = vpop.f32.mrb[0].mxu0
      %v829 = vpop.f32.mrb[0].mxu0
      %v830 = vadd.f32 0.0, %v829
      %v831 = vpop.f32.mrb[0].mxu0
      %832 = vmatprep.mubr.bf16.mxu0 0
      %833 = vmatmul.mubr.bf16.gmra.mrb[0].mxu0 %v611
      %v834 = vpop.f32.mrb[0].mxu0
      %v835 = vadd.f32 0.0, %v834
      %v836 = vpop.f32.mrb[0].mxu0
      %v837 = vpop.f32.mrb[0].mxu0
      %v838 = vadd.f32 0.0, %v837
      %v839 = vpop.f32.mrb[0].mxu0
      %840 = vmatprep.mubr.bf16.mxu0 0
      %841 = vmatmul.mubr.bf16.gmra.mrb[0].mxu0 %v612
      %v842 = vpop.f32.mrb[0].mxu0
      %v843 = vadd.f32 0.0, %v842
      %v844 = vpop.f32.mrb[0].mxu0
      %v845 = vpop.f32.mrb[0].mxu0
      %v846 = vadd.f32 0.0, %v845
      %v847 = vpop.f32.mrb[0].mxu0
      %848 = vmatprep.mubr.bf16.mxu0 0
      %849 = vmatmul.mubr.bf16.gmra.mrb[0].mxu0 %v613
      %v850 = vpop.f32.mrb[0].mxu0
      %v851 = vadd.f32 0.0, %v850
      %v852 = vpop.f32.mrb[0].mxu0
      %v853 = vpop.f32.mrb[0].mxu0
      %v854 = vadd.f32 0.0, %v853
      %v855 = vpop.f32.mrb[0].mxu0
      %856 = vmatprep.mubr.bf16.mxu0 0
      %857 = vmatmul.mubr.bf16.gmra.mrb[0].mxu0 %v614
      %v858 = vpop.f32.mrb[0].mxu0
      %v859 = vadd.f32 0.0, %v858
      %v860 = vpop.f32.mrb[0].mxu0
      %v861 = vpop.f32.mrb[0].mxu0
      %v862 = vadd.f32 0.0, %v861
      %v863 = vpop.f32.mrb[0].mxu0
      %864 = vmatprep.mubr.bf16.mxu0 0
      %865 = vmatmul.mubr.bf16.gmra.mrb[0].mxu0 %v615
      %v866 = vpop.f32.mrb[0].mxu0
      %v867 = vadd.f32 0.0, %v866
      %v868 = vpop.f32.mrb[0].mxu0
      %v869 = vpop.f32.mrb[0].mxu0
      %v870 = vadd.f32 0.0, %v869
      %v871 = vpop.f32.mrb[0].mxu0
      %872 = vmatprep.mubr.bf16.mxu0 0
      %873 = vmatmul.mubr.bf16.gmra.mrb[0].mxu0 %v616
      %v874 = vpop.f32.mrb[0].mxu0
      %v875 = vadd.f32 0.0, %v874
      %v876 = vpop.f32.mrb[0].mxu0
      %v877 = vpop.f32.mrb[0].mxu0
      %v878 = vadd.f32 0.0, %v877
      %v879 = vpop.f32.mrb[0].mxu0
      %880 = vmatprep.mubr.bf16.mxu0 0
      %881 = vmatmul.mubr.bf16.gmra.mrb[0].mxu0 %v617
      %v882 = vpop.f32.mrb[0].mxu0
      %v883 = vadd.f32 0.0, %v882
      %v884 = vpop.f32.mrb[0].mxu0
      %v885 = vpop.f32.mrb[0].mxu0
      %v886 = vadd.f32 0.0, %v885
      %v887 = vpop.f32.mrb[0].mxu0
      %888 = vmatprep.mubr.bf16.mxu0 0
      %889 = vmatmul.mubr.bf16.gmra.mrb[0].mxu0 %v618
      %v890 = vpop.f32.mrb[0].mxu0
      %v891 = vadd.f32 0.0, %v890
      %v892 = vpop.f32.mrb[0].mxu0
      %v893 = vpop.f32.mrb[0].mxu0
      %v894 = vadd.f32 0.0, %v893
      %v895 = vpop.f32.mrb[0].mxu0
      %896 = vmatprep.mubr.bf16.mxu0 0
      %897 = vmatmul.mubr.bf16.gmra.mrb[0].mxu0 %v619
      %v898 = vpop.f32.mrb[0].mxu0
      %v899 = vadd.f32 0.0, %v898
      %v900 = vpop.f32.mrb[0].mxu0
      %v901 = vpop.f32.mrb[0].mxu0
      %v902 = vadd.f32 0.0, %v901
      %v903 = vpop.f32.mrb[0].mxu0
      %904 = vmatprep.mubr.bf16.mxu0 0
      %905 = vmatmul.mubr.bf16.gmra.mrb[0].mxu0 %v620
      %v906 = vpop.f32.mrb[0].mxu0
      %v907 = vadd.f32 0.0, %v906
      %v908 = vpop.f32.mrb[0].mxu0
      %v909 = vpop.f32.mrb[0].mxu0
      %v910 = vadd.f32 0.0, %v909
      %v911 = vpop.f32.mrb[0].mxu0
      %912 = vmatprep.mubr.bf16.mxu0 0
      %913 = vmatmul.mubr.bf16.gmra.mrb[0].mxu0 %v621
      %v914 = vpop.f32.mrb[0].mxu0
      %v915 = vadd.f32 0.0, %v914
      %v916 = vpop.f32.mrb[0].mxu0
      %v917 = vpop.f32.mrb[0].mxu0
      %v918 = vadd.f32 0.0, %v917
      %v919 = vpop.f32.mrb[0].mxu0
      %920 = vmatprep.mubr.bf16.mxu0 0
      %921 = vmatmul.mubr.bf16.gmra.mrb[0].mxu0 %v622
      %v922 = vpop.f32.mrb[0].mxu0
      %v923 = vadd.f32 0.0, %v922
      %v924 = vpop.f32.mrb[0].mxu0
      %v925 = vpop.f32.mrb[0].mxu0
      %v926 = vadd.f32 0.0, %v925
      %v927 = vpop.f32.mrb[0].mxu0
      %928 = vmatprep.mubr.bf16.mxu0 0
      %929 = vmatmul.mubr.bf16.gmra.mrb[0].mxu0 %v623
      %v930 = vpop.f32.mrb[0].mxu0
      %v931 = vadd.f32 0.0, %v930
      %v932 = vpop.f32.mrb[0].mxu0
      %v933 = vpop.f32.mrb[0].mxu0
      %v934 = vadd.f32 0.0, %v933
      %v935 = vpop.f32.mrb[0].mxu0
      %936 = vmatprep.mubr.bf16.mxu0 0
      %937 = vmatmul.mubr.bf16.gmra.mrb[0].mxu0 %v624
      %v938 = vpop.f32.mrb[0].mxu0
      %v939 = vadd.f32 0.0, %v938
      %v940 = vpop.f32.mrb[0].mxu0
      %v941 = vpop.f32.mrb[0].mxu0
      %v942 = vadd.f32 0.0, %v941
      %v943 = vpop.f32.mrb[0].mxu0
      %944 = vmatprep.mubr.bf16.mxu0 0
      %945 = vmatmul.mubr.bf16.gmra.mrb[0].mxu0 %v625
      %v946 = vpop.f32.mrb[0].mxu0
      %v947 = vadd.f32 0.0, %v946
      %v948 = vpop.f32.mrb[0].mxu0
      %v949 = vpop.f32.mrb[0].mxu0
      %v950 = vadd.f32 0.0, %v949
      %v951 = vpop.f32.mrb[0].mxu0
      %952 = vmatprep.mubr.bf16.mxu0 0
      %953 = vmatmul.mubr.bf16.gmra.mrb[0].mxu0 %v626
      %v954 = vpop.f32.mrb[0].mxu0
      %v955 = vadd.f32 0.0, %v954
      %v956 = vpop.f32.mrb[0].mxu0
      %v957 = vpop.f32.mrb[0].mxu0
      %v958 = vadd.f32 0.0, %v957
      %v959 = vpop.f32.mrb[0].mxu0
      %960 = vmatprep.mubr.bf16.mxu0 0
      %961 = vmatmul.mubr.bf16.gmra.mrb[0].mxu0 %v627
      %v962 = vpop.f32.mrb[0].mxu0
      %v963 = vadd.f32 0.0, %v962
      %v964 = vpop.f32.mrb[0].mxu0
      %v965 = vpop.f32.mrb[0].mxu0
      %v966 = vadd.f32 0.0, %v965
      %v967 = vpop.f32.mrb[0].mxu0
      %968 = vmatprep.mubr.bf16.mxu0 0
      %969 = vmatmul.mubr.bf16.gmra.mrb[0].mxu0 %v628
      %v970 = vpop.f32.mrb[0].mxu0
      %v971 = vadd.f32 0.0, %v970
      %v972 = vpop.f32.mrb[0].mxu0
      %v973 = vpop.f32.mrb[0].mxu0
      %v974 = vadd.f32 0.0, %v973
      %v975 = vpop.f32.mrb[0].mxu0
      %976 = vmatprep.mubr.bf16.mxu0 0
      %977 = vmatmul.mubr.bf16.gmra.mrb[0].mxu0 %v629
      %v978 = vpop.f32.mrb[0].mxu0
      %v979 = vadd.f32 0.0, %v978
      %v980 = vpop.f32.mrb[0].mxu0
      %v981 = vpop.f32.mrb[0].mxu0
      %v982 = vadd.f32 0.0, %v981
      %v983 = vpop.f32.mrb[0].mxu0
      %984 = vmatprep.mubr.bf16.mxu0 0
      %985 = vmatmul.mubr.bf16.gmra.mrb[0].mxu0 %v630
      %v986 = vpop.f32.mrb[0].mxu0
      %v987 = vadd.f32 0.0, %v986
      %v988 = vpop.f32.mrb[0].mxu0
      %v989 = vpop.f32.mrb[0].mxu0
      %v990 = vadd.f32 0.0, %v989
      %v991 = vpop.f32.mrb[0].mxu0
      %992 = vmatprep.mubr.bf16.mxu0 0
      %993 = vmatmul.mubr.bf16.gmra.mrb[0].mxu0 %v631
      %v994 = vpop.f32.mrb[0].mxu0
      %v995 = vadd.f32 0.0, %v994
      %v996 = vpop.f32.mrb[0].mxu0
      %v997 = vpop.f32.mrb[0].mxu0
      %v998 = vadd.f32 0.0, %v997
      %v999 = vpop.f32.mrb[0].mxu0
      %1000 = vdwg.mxu0
      %v1001 = vadd.f32 %v328, %v747
      %v1002 = vadd.f32 %v329, %v750
      %v1003 = vadd.f32 %v330, %v755
      %v1004 = vadd.f32 %v331, %v758
      %v1005 = vadd.f32 %v332, %v763
      %v1006 = vadd.f32 %v333, %v766
      %v1007 = vadd.f32 %v334, %v771
      %v1008 = vadd.f32 %v335, %v774
      %v1009 = vadd.f32 %v336, %v779
      %v1010 = vadd.f32 %v337, %v782
      %v1011 = vadd.f32 %v338, %v787
      %v1012 = vadd.f32 %v339, %v790
      %v1013 = vadd.f32 %v340, %v795
      %v1014 = vadd.f32 %v341, %v798
      %v1015 = vadd.f32 %v342, %v803
      %v1016 = vadd.f32 %v343, %v806
      %v1017 = vadd.f32 %v344, %v811
      %v1018 = vadd.f32 %v345, %v814
      %v1019 = vadd.f32 %v346, %v819
      %v1020 = vadd.f32 %v347, %v822
      %v1021 = vadd.f32 %v348, %v827
      %v1022 = vadd.f32 %v349, %v830
      %v1023 = vadd.f32 %v350, %v835
      %v1024 = vadd.f32 %v351, %v838
      %v1025 = vadd.f32 %v352, %v843
      %v1026 = vadd.f32 %v353, %v846
      %v1027 = vadd.f32 %v354, %v851
      %v1028 = vadd.f32 %v355, %v854
      %v1029 = vadd.f32 %v356, %v859
      %v1030 = vadd.f32 %v357, %v862
      %v1031 = vadd.f32 %v358, %v867
      %v1032 = vadd.f32 %v359, %v870
      %v1033 = vadd.f32 %v360, %v875
      %v1034 = vadd.f32 %v361, %v878
      %v1035 = vadd.f32 %v362, %v883
      %v1036 = vadd.f32 %v363, %v886
      %v1037 = vadd.f32 %v364, %v891
      %v1038 = vadd.f32 %v365, %v894
      %v1039 = vadd.f32 %v366, %v899
      %v1040 = vadd.f32 %v367, %v902
      %v1041 = vadd.f32 %v368, %v907
      %v1042 = vadd.f32 %v369, %v910
      %v1043 = vadd.f32 %v370, %v915
      %v1044 = vadd.f32 %v371, %v918
      %v1045 = vadd.f32 %v372, %v923
      %v1046 = vadd.f32 %v373, %v926
      %v1047 = vadd.f32 %v374, %v931
      %v1048 = vadd.f32 %v375, %v934
      %v1049 = vadd.f32 %v376, %v939
      %v1050 = vadd.f32 %v377, %v942
      %v1051 = vadd.f32 %v378, %v947
      %v1052 = vadd.f32 %v379, %v950
      %v1053 = vadd.f32 %v380, %v955
      %v1054 = vadd.f32 %v381, %v958
      %v1055 = vadd.f32 %v382, %v963
      %v1056 = vadd.f32 %v383, %v966
      %v1057 = vadd.f32 %v384, %v971
      %v1058 = vadd.f32 %v385, %v974
      %v1059 = vadd.f32 %v386, %v979
      %v1060 = vadd.f32 %v387, %v982
      %v1061 = vadd.f32 %v388, %v987
      %v1062 = vadd.f32 %v389, %v990
      %v1063 = vadd.f32 %v390, %v995
      %v1064 = vadd.f32 %v391, %v998
      %1065 = vst [vmem:[#allocation2] sm:$0xff] %v1001
      %1066 = vst [vmem:[#allocation2 + $0x8] sm:$0xff] %v1002
      %1067 = vst [vmem:[#allocation2 + $0x10] sm:$0xff] %v1003
      %1068 = vst [vmem:[#allocation2 + $0x18] sm:$0xff] %v1004
      %1069 = vst [vmem:[#allocation2 + $0x20] sm:$0xff] %v1005
      %1070 = vst [vmem:[#allocation2 + $0x28] sm:$0xff] %v1006
      %1071 = vst [vmem:[#allocation2 + $0x30] sm:$0xff] %v1007
      %1072 = vst [vmem:[#allocation2 + $0x38] sm:$0xff] %v1008
      %1073 = vst [vmem:[#allocation2 + $0x40] sm:$0xff] %v1009
      %1074 = vst [vmem:[#allocation2 + $0x48] sm:$0xff] %v1010
      %1075 = vst [vmem:[#allocation2 + $0x50] sm:$0xff] %v1011
      %1076 = vst [vmem:[#allocation2 + $0x58] sm:$0xff] %v1012
      %1077 = vst [vmem:[#allocation2 + $0x60] sm:$0xff] %v1013
      %1078 = vst [vmem:[#allocation2 + $0x68] sm:$0xff] %v1014
      %1079 = vst [vmem:[#allocation2 + $0x70] sm:$0xff] %v1015
      %1080 = vst [vmem:[#allocation2 + $0x78] sm:$0xff] %v1016
      %1081 = vst [vmem:[#allocation2 + $0x80] sm:$0xff] %v1017
      %1082 = vst [vmem:[#allocation2 + $0x88] sm:$0xff] %v1018
      %1083 = vst [vmem:[#allocation2 + $0x90] sm:$0xff] %v1019
      %1084 = vst [vmem:[#allocation2 + $0x98] sm:$0xff] %v1020
      %1085 = vst [vmem:[#allocation2 + $0xa0] sm:$0xff] %v1021
      %1086 = vst [vmem:[#allocation2 + $0xa8] sm:$0xff] %v1022
      %1087 = vst [vmem:[#allocation2 + $0xb0] sm:$0xff] %v1023
      %1088 = vst [vmem:[#allocation2 + $0xb8] sm:$0xff] %v1024
      %1089 = vst [vmem:[#allocation2 + $0xc0] sm:$0xff] %v1025
      %1090 = vst [vmem:[#allocation2 + $0xc8] sm:$0xff] %v1026
      %1091 = vst [vmem:[#allocation2 + $0xd0] sm:$0xff] %v1027
      %1092 = vst [vmem:[#allocation2 + $0xd8] sm:$0xff] %v1028
      %1093 = vst [vmem:[#allocation2 + $0xe0] sm:$0xff] %v1029
      %1094 = vst [vmem:[#allocation2 + $0xe8] sm:$0xff] %v1030
      %1095 = vst [vmem:[#allocation2 + $0xf0] sm:$0xff] %v1031
      %1096 = vst [vmem:[#allocation2 + $0xf8] sm:$0xff] %v1032
      %1097 = vst [vmem:[#allocation2 + $0x100] sm:$0xff] %v1033
      %1098 = vst [vmem:[#allocation2 + $0x108] sm:$0xff] %v1034
      %1099 = vst [vmem:[#allocation2 + $0x110] sm:$0xff] %v1035
      %1100 = vst [vmem:[#allocation2 + $0x118] sm:$0xff] %v1036
      %1101 = vst [vmem:[#allocation2 + $0x120] sm:$0xff] %v1037
      %1102 = vst [vmem:[#allocation2 + $0x128] sm:$0xff] %v1038
      %1103 = vst [vmem:[#allocation2 + $0x130] sm:$0xff] %v1039
      %1104 = vst [vmem:[#allocation2 + $0x138] sm:$0xff] %v1040
      %1105 = vst [vmem:[#allocation2 + $0x140] sm:$0xff] %v1041
      %1106 = vst [vmem:[#allocation2 + $0x148] sm:$0xff] %v1042
      %1107 = vst [vmem:[#allocation2 + $0x150] sm:$0xff] %v1043
      %1108 = vst [vmem:[#allocation2 + $0x158] sm:$0xff] %v1044
      %1109 = vst [vmem:[#allocation2 + $0x160] sm:$0xff] %v1045
      %1110 = vst [vmem:[#allocation2 + $0x168] sm:$0xff] %v1046
      %1111 = vst [vmem:[#allocation2 + $0x170] sm:$0xff] %v1047
      %1112 = vst [vmem:[#allocation2 + $0x178] sm:$0xff] %v1048
      %1113 = vst [vmem:[#allocation2 + $0x180] sm:$0xff] %v1049
      %1114 = vst [vmem:[#allocation2 + $0x188] sm:$0xff] %v1050
      %1115 = vst [vmem:[#allocation2 + $0x190] sm:$0xff] %v1051
      %1116 = vst [vmem:[#allocation2 + $0x198] sm:$0xff] %v1052
      %1117 = vst [vmem:[#allocation2 + $0x1a0] sm:$0xff] %v1053
      %1118 = vst [vmem:[#allocation2 + $0x1a8] sm:$0xff] %v1054
      %1119 = vst [vmem:[#allocation2 + $0x1b0] sm:$0xff] %v1055
      %1120 = vst [vmem:[#allocation2 + $0x1b8] sm:$0xff] %v1056
      %1121 = vst [vmem:[#allocation2 + $0x1c0] sm:$0xff] %v1057
      %1122 = vst [vmem:[#allocation2 + $0x1c8] sm:$0xff] %v1058
      %1123 = vst [vmem:[#allocation2 + $0x1d0] sm:$0xff] %v1059
      %1124 = vst [vmem:[#allocation2 + $0x1d8] sm:$0xff] %v1060
      %1125 = vst [vmem:[#allocation2 + $0x1e0] sm:$0xff] %v1061
      %1126 = vst [vmem:[#allocation2 + $0x1e8] sm:$0xff] %v1062
      %1127 = vst [vmem:[#allocation2 + $0x1f0] sm:$0xff] %v1063
      %1128 = vst [vmem:[#allocation2 + $0x1f8] sm:$0xff] %v1064
      // Predicated region
      $region37: #{_lambda_.13} parent=31 // pred_check
        %p1129 = pneg %p260
      $region38: #{_lambda_.13} parent=31 // pred_check_branch
        %1131 = sbr.rel (%p1129) target = $region40
      $region39: #{_lambda_.13} parent=31 // pred_region
        %v1132 = vld [vmem:[#allocation2] sm:$0xff]
        %v1133 = vld [vmem:[#allocation2 + $0x8] sm:$0xff]
        %v1134 = vld [vmem:[#allocation2 + $0x10] sm:$0xff]
        %v1135 = vld [vmem:[#allocation2 + $0x18] sm:$0xff]
        %v1136 = vld [vmem:[#allocation2 + $0x20] sm:$0xff]
        %v1137 = vld [vmem:[#allocation2 + $0x28] sm:$0xff]
        %v1138 = vld [vmem:[#allocation2 + $0x30] sm:$0xff]
        %v1139 = vld [vmem:[#allocation2 + $0x38] sm:$0xff]
        %v1140 = vld [vmem:[#allocation2 + $0x40] sm:$0xff]
        %v1141 = vld [vmem:[#allocation2 + $0x48] sm:$0xff]
        %v1142 = vld [vmem:[#allocation2 + $0x50] sm:$0xff]
        %v1143 = vld [vmem:[#allocation2 + $0x58] sm:$0xff]
        %v1144 = vld [vmem:[#allocation2 + $0x60] sm:$0xff]
        %v1145 = vld [vmem:[#allocation2 + $0x68] sm:$0xff]
        %v1146 = vld [vmem:[#allocation2 + $0x70] sm:$0xff]
        %v1147 = vld [vmem:[#allocation2 + $0x78] sm:$0xff]
        %v1148 = vld [vmem:[#allocation2 + $0x80] sm:$0xff]
        %v1149 = vld [vmem:[#allocation2 + $0x88] sm:$0xff]
        %v1150 = vld [vmem:[#allocation2 + $0x90] sm:$0xff]
        %v1151 = vld [vmem:[#allocation2 + $0x98] sm:$0xff]
        %v1152 = vld [vmem:[#allocation2 + $0xa0] sm:$0xff]
        %v1153 = vld [vmem:[#allocation2 + $0xa8] sm:$0xff]
        %v1154 = vld [vmem:[#allocation2 + $0xb0] sm:$0xff]
        %v1155 = vld [vmem:[#allocation2 + $0xb8] sm:$0xff]
        %v1156 = vld [vmem:[#allocation2 + $0xc0] sm:$0xff]
        %v1157 = vld [vmem:[#allocation2 + $0xc8] sm:$0xff]
        %v1158 = vld [vmem:[#allocation2 + $0xd0] sm:$0xff]
        %v1159 = vld [vmem:[#allocation2 + $0xd8] sm:$0xff]
        %v1160 = vld [vmem:[#allocation2 + $0xe0] sm:$0xff]
        %v1161 = vld [vmem:[#allocation2 + $0xe8] sm:$0xff]
        %v1162 = vld [vmem:[#allocation2 + $0xf0] sm:$0xff]
        %v1163 = vld [vmem:[#allocation2 + $0xf8] sm:$0xff]
        %v1164 = vld [vmem:[#allocation2 + $0x100] sm:$0xff]
        %v1165 = vld [vmem:[#allocation2 + $0x108] sm:$0xff]
        %v1166 = vld [vmem:[#allocation2 + $0x110] sm:$0xff]
        %v1167 = vld [vmem:[#allocation2 + $0x118] sm:$0xff]
        %v1168 = vld [vmem:[#allocation2 + $0x120] sm:$0xff]
        %v1169 = vld [vmem:[#allocation2 + $0x128] sm:$0xff]
        %v1170 = vld [vmem:[#allocation2 + $0x130] sm:$0xff]
        %v1171 = vld [vmem:[#allocation2 + $0x138] sm:$0xff]
        %v1172 = vld [vmem:[#allocation2 + $0x140] sm:$0xff]
        %v1173 = vld [vmem:[#allocation2 + $0x148] sm:$0xff]
        %v1174 = vld [vmem:[#allocation2 + $0x150] sm:$0xff]
        %v1175 = vld [vmem:[#allocation2 + $0x158] sm:$0xff]
        %v1176 = vld [vmem:[#allocation2 + $0x160] sm:$0xff]
        %v1177 = vld [vmem:[#allocation2 + $0x168] sm:$0xff]
        %v1178 = vld [vmem:[#allocation2 + $0x170] sm:$0xff]
        %v1179 = vld [vmem:[#allocation2 + $0x178] sm:$0xff]
        %v1180 = vld [vmem:[#allocation2 + $0x180] sm:$0xff]
        %v1181 = vld [vmem:[#allocation2 + $0x188] sm:$0xff]
        %v1182 = vld [vmem:[#allocation2 + $0x190] sm:$0xff]
        %v1183 = vld [vmem:[#allocation2 + $0x198] sm:$0xff]
        %v1184 = vld [vmem:[#allocation2 + $0x1a0] sm:$0xff]
        %v1185 = vld [vmem:[#allocation2 + $0x1a8] sm:$0xff]
        %v1186 = vld [vmem:[#allocation2 + $0x1b0] sm:$0xff]
        %v1187 = vld [vmem:[#allocation2 + $0x1b8] sm:$0xff]
        %v1188 = vld [vmem:[#allocation2 + $0x1c0] sm:$0xff]
        %v1189 = vld [vmem:[#allocation2 + $0x1c8] sm:$0xff]
        %v1190 = vld [vmem:[#allocation2 + $0x1d0] sm:$0xff]
        %v1191 = vld [vmem:[#allocation2 + $0x1d8] sm:$0xff]
        %v1192 = vld [vmem:[#allocation2 + $0x1e0] sm:$0xff]
        %v1193 = vld [vmem:[#allocation2 + $0x1e8] sm:$0xff]
        %v1194 = vld [vmem:[#allocation2 + $0x1f0] sm:$0xff]
        %v1195 = vld [vmem:[#allocation2 + $0x1f8] sm:$0xff]
        %v1196 = vld [vmem:[%s249] sm:$0x1]
        %v1198 = vlaneseq
        %v1199 = vshrl.u32 %v1198, 7
        %v1200 = vsub.s32 0, %v1199
        %v1201 = vrot.slane %v1196, %v1200
        %v1203 = vadd.f32 %v1132, %v1201
        %v1204 = vadd.f32 %v1133, %v1201
        %v1205 = vadd.f32 %v1134, %v1201
        %v1206 = vadd.f32 %v1135, %v1201
        %v1207 = vadd.f32 %v1136, %v1201
        %v1208 = vadd.f32 %v1137, %v1201
        %v1209 = vadd.f32 %v1138, %v1201
        %v1210 = vadd.f32 %v1139, %v1201
        %v1211 = vadd.f32 %v1140, %v1201
        %v1212 = vadd.f32 %v1141, %v1201
        %v1213 = vadd.f32 %v1142, %v1201
        %v1214 = vadd.f32 %v1143, %v1201
        %v1215 = vadd.f32 %v1144, %v1201
        %v1216 = vadd.f32 %v1145, %v1201
        %v1217 = vadd.f32 %v1146, %v1201
        %v1218 = vadd.f32 %v1147, %v1201
        %v1219 = vadd.f32 %v1148, %v1201
        %v1220 = vadd.f32 %v1149, %v1201
        %v1221 = vadd.f32 %v1150, %v1201
        %v1222 = vadd.f32 %v1151, %v1201
        %v1223 = vadd.f32 %v1152, %v1201
        %v1224 = vadd.f32 %v1153, %v1201
        %v1225 = vadd.f32 %v1154, %v1201
        %v1226 = vadd.f32 %v1155, %v1201
        %v1227 = vadd.f32 %v1156, %v1201
        %v1228 = vadd.f32 %v1157, %v1201
        %v1229 = vadd.f32 %v1158, %v1201
        %v1230 = vadd.f32 %v1159, %v1201
        %v1231 = vadd.f32 %v1160, %v1201
        %v1232 = vadd.f32 %v1161, %v1201
        %v1233 = vadd.f32 %v1162, %v1201
        %v1234 = vadd.f32 %v1163, %v1201
        %v1235 = vadd.f32 %v1164, %v1201
        %v1236 = vadd.f32 %v1165, %v1201
        %v1237 = vadd.f32 %v1166, %v1201
        %v1238 = vadd.f32 %v1167, %v1201
        %v1239 = vadd.f32 %v1168, %v1201
        %v1240 = vadd.f32 %v1169, %v1201
        %v1241 = vadd.f32 %v1170, %v1201
        %v1242 = vadd.f32 %v1171, %v1201
        %v1243 = vadd.f32 %v1172, %v1201
        %v1244 = vadd.f32 %v1173, %v1201
        %v1245 = vadd.f32 %v1174, %v1201
        %v1246 = vadd.f32 %v1175, %v1201
        %v1247 = vadd.f32 %v1176, %v1201
        %v1248 = vadd.f32 %v1177, %v1201
        %v1249 = vadd.f32 %v1178, %v1201
        %v1250 = vadd.f32 %v1179, %v1201
        %v1251 = vadd.f32 %v1180, %v1201
        %v1252 = vadd.f32 %v1181, %v1201
        %v1253 = vadd.f32 %v1182, %v1201
        %v1254 = vadd.f32 %v1183, %v1201
        %v1255 = vadd.f32 %v1184, %v1201
        %v1256 = vadd.f32 %v1185, %v1201
        %v1257 = vadd.f32 %v1186, %v1201
        %v1258 = vadd.f32 %v1187, %v1201
        %v1259 = vadd.f32 %v1188, %v1201
        %v1260 = vadd.f32 %v1189, %v1201
        %v1261 = vadd.f32 %v1190, %v1201
        %v1262 = vadd.f32 %v1191, %v1201
        %v1263 = vadd.f32 %v1192, %v1201
        %v1264 = vadd.f32 %v1193, %v1201
        %v1265 = vadd.f32 %v1194, %v1201
        %v1266 = vadd.f32 %v1195, %v1201
        %vm1267 = vcmp.gt.f32.partialorder %v1203, 0.0
        %vm1268 = vcmp.gt.f32.partialorder %v1204, 0.0
        %vm1269 = vcmp.gt.f32.partialorder %v1205, 0.0
        %vm1270 = vcmp.gt.f32.partialorder %v1206, 0.0
        %vm1271 = vcmp.gt.f32.partialorder %v1207, 0.0
        %vm1272 = vcmp.gt.f32.partialorder %v1208, 0.0
        %vm1273 = vcmp.gt.f32.partialorder %v1209, 0.0
        %vm1274 = vcmp.gt.f32.partialorder %v1210, 0.0
        %vm1275 = vcmp.gt.f32.partialorder %v1211, 0.0
        %vm1276 = vcmp.gt.f32.partialorder %v1212, 0.0
        %vm1277 = vcmp.gt.f32.partialorder %v1213, 0.0
        %vm1278 = vcmp.gt.f32.partialorder %v1214, 0.0
        %vm1279 = vcmp.gt.f32.partialorder %v1215, 0.0
        %vm1280 = vcmp.gt.f32.partialorder %v1216, 0.0
        %vm1281 = vcmp.gt.f32.partialorder %v1217, 0.0
        %vm1282 = vcmp.gt.f32.partialorder %v1218, 0.0
        %vm1283 = vcmp.gt.f32.partialorder %v1219, 0.0
        %vm1284 = vcmp.gt.f32.partialorder %v1220, 0.0
        %vm1285 = vcmp.gt.f32.partialorder %v1221, 0.0
        %vm1286 = vcmp.gt.f32.partialorder %v1222, 0.0
        %vm1287 = vcmp.gt.f32.partialorder %v1223, 0.0
        %vm1288 = vcmp.gt.f32.partialorder %v1224, 0.0
        %vm1289 = vcmp.gt.f32.partialorder %v1225, 0.0
        %vm1290 = vcmp.gt.f32.partialorder %v1226, 0.0
        %vm1291 = vcmp.gt.f32.partialorder %v1227, 0.0
        %vm1292 = vcmp.gt.f32.partialorder %v1228, 0.0
        %vm1293 = vcmp.gt.f32.partialorder %v1229, 0.0
        %vm1294 = vcmp.gt.f32.partialorder %v1230, 0.0
        %vm1295 = vcmp.gt.f32.partialorder %v1231, 0.0
        %vm1296 = vcmp.gt.f32.partialorder %v1232, 0.0
        %vm1297 = vcmp.gt.f32.partialorder %v1233, 0.0
        %vm1298 = vcmp.gt.f32.partialorder %v1234, 0.0
        %vm1299 = vcmp.gt.f32.partialorder %v1235, 0.0
        %vm1300 = vcmp.gt.f32.partialorder %v1236, 0.0
        %vm1301 = vcmp.gt.f32.partialorder %v1237, 0.0
        %vm1302 = vcmp.gt.f32.partialorder %v1238, 0.0
        %vm1303 = vcmp.gt.f32.partialorder %v1239, 0.0
        %vm1304 = vcmp.gt.f32.partialorder %v1240, 0.0
        %vm1305 = vcmp.gt.f32.partialorder %v1241, 0.0
        %vm1306 = vcmp.gt.f32.partialorder %v1242, 0.0
        %vm1307 = vcmp.gt.f32.partialorder %v1243, 0.0
        %vm1308 = vcmp.gt.f32.partialorder %v1244, 0.0
        %vm1309 = vcmp.gt.f32.partialorder %v1245, 0.0
        %vm1310 = vcmp.gt.f32.partialorder %v1246, 0.0
        %vm1311 = vcmp.gt.f32.partialorder %v1247, 0.0
        %vm1312 = vcmp.gt.f32.partialorder %v1248, 0.0
        %vm1313 = vcmp.gt.f32.partialorder %v1249, 0.0
        %vm1314 = vcmp.gt.f32.partialorder %v1250, 0.0
        %vm1315 = vcmp.gt.f32.partialorder %v1251, 0.0
        %vm1316 = vcmp.gt.f32.partialorder %v1252, 0.0
        %vm1317 = vcmp.gt.f32.partialorder %v1253, 0.0
        %vm1318 = vcmp.gt.f32.partialorder %v1254, 0.0
        %vm1319 = vcmp.gt.f32.partialorder %v1255, 0.0
        %vm1320 = vcmp.gt.f32.partialorder %v1256, 0.0
        %vm1321 = vcmp.gt.f32.partialorder %v1257, 0.0
        %vm1322 = vcmp.gt.f32.partialorder %v1258, 0.0
        %vm1323 = vcmp.gt.f32.partialorder %v1259, 0.0
        %vm1324 = vcmp.gt.f32.partialorder %v1260, 0.0
        %vm1325 = vcmp.gt.f32.partialorder %v1261, 0.0
        %vm1326 = vcmp.gt.f32.partialorder %v1262, 0.0
        %vm1327 = vcmp.gt.f32.partialorder %v1263, 0.0
        %vm1328 = vcmp.gt.f32.partialorder %v1264, 0.0
        %vm1329 = vcmp.gt.f32.partialorder %v1265, 0.0
        %vm1330 = vcmp.gt.f32.partialorder %v1266, 0.0
        %v1331 = vmul.f32 %v1203, 0.1
        %v1332 = vmul.f32 %v1204, 0.1
        %v1333 = vmul.f32 %v1205, 0.1
        %v1334 = vmul.f32 %v1206, 0.1
        %v1335 = vmul.f32 %v1207, 0.1
        %v1336 = vmul.f32 %v1208, 0.1
        %v1337 = vmul.f32 %v1209, 0.1
        %v1338 = vmul.f32 %v1210, 0.1
        %v1339 = vmul.f32 %v1211, 0.1
        %v1340 = vmul.f32 %v1212, 0.1
        %v1341 = vmul.f32 %v1213, 0.1
        %v1342 = vmul.f32 %v1214, 0.1
        %v1343 = vmul.f32 %v1215, 0.1
        %v1344 = vmul.f32 %v1216, 0.1
        %v1345 = vmul.f32 %v1217, 0.1
        %v1346 = vmul.f32 %v1218, 0.1
        %v1347 = vmul.f32 %v1219, 0.1
        %v1348 = vmul.f32 %v1220, 0.1
        %v1349 = vmul.f32 %v1221, 0.1
        %v1350 = vmul.f32 %v1222, 0.1
        %v1351 = vmul.f32 %v1223, 0.1
        %v1352 = vmul.f32 %v1224, 0.1
        %v1353 = vmul.f32 %v1225, 0.1
        %v1354 = vmul.f32 %v1226, 0.1
        %v1355 = vmul.f32 %v1227, 0.1
        %v1356 = vmul.f32 %v1228, 0.1
        %v1357 = vmul.f32 %v1229, 0.1
        %v1358 = vmul.f32 %v1230, 0.1
        %v1359 = vmul.f32 %v1231, 0.1
        %v1360 = vmul.f32 %v1232, 0.1
        %v1361 = vmul.f32 %v1233, 0.1
        %v1362 = vmul.f32 %v1234, 0.1
        %v1363 = vmul.f32 %v1235, 0.1
        %v1364 = vmul.f32 %v1236, 0.1
        %v1365 = vmul.f32 %v1237, 0.1
        %v1366 = vmul.f32 %v1238, 0.1
        %v1367 = vmul.f32 %v1239, 0.1
        %v1368 = vmul.f32 %v1240, 0.1
        %v1369 = vmul.f32 %v1241, 0.1
        %v1370 = vmul.f32 %v1242, 0.1
        %v1371 = vmul.f32 %v1243, 0.1
        %v1372 = vmul.f32 %v1244, 0.1
        %v1373 = vmul.f32 %v1245, 0.1
        %v1374 = vmul.f32 %v1246, 0.1
        %v1375 = vmul.f32 %v1247, 0.1
        %v1376 = vmul.f32 %v1248, 0.1
        %v1377 = vmul.f32 %v1249, 0.1
        %v1378 = vmul.f32 %v1250, 0.1
        %v1379 = vmul.f32 %v1251, 0.1
        %v1380 = vmul.f32 %v1252, 0.1
        %v1381 = vmul.f32 %v1253, 0.1
        %v1382 = vmul.f32 %v1254, 0.1
        %v1383 = vmul.f32 %v1255, 0.1
        %v1384 = vmul.f32 %v1256, 0.1
        %v1385 = vmul.f32 %v1257, 0.1
        %v1386 = vmul.f32 %v1258, 0.1
        %v1387 = vmul.f32 %v1259, 0.1
        %v1388 = vmul.f32 %v1260, 0.1
        %v1389 = vmul.f32 %v1261, 0.1
        %v1390 = vmul.f32 %v1262, 0.1
        %v1391 = vmul.f32 %v1263, 0.1
        %v1392 = vmul.f32 %v1264, 0.1
        %v1393 = vmul.f32 %v1265, 0.1
        %v1394 = vmul.f32 %v1266, 0.1
        %v1395 = vsel %vm1267, %v1203, %v1331
        %v1396 = vsel %vm1268, %v1204, %v1332
        %v1397 = vsel %vm1269, %v1205, %v1333
        %v1398 = vsel %vm1270, %v1206, %v1334
        %v1399 = vsel %vm1271, %v1207, %v1335
        %v1400 = vsel %vm1272, %v1208, %v1336
        %v1401 = vsel %vm1273, %v1209, %v1337
        %v1402 = vsel %vm1274, %v1210, %v1338
        %v1403 = vsel %vm1275, %v1211, %v1339
        %v1404 = vsel %vm1276, %v1212, %v1340
        %v1405 = vsel %vm1277, %v1213, %v1341
        %v1406 = vsel %vm1278, %v1214, %v1342
        %v1407 = vsel %vm1279, %v1215, %v1343
        %v1408 = vsel %vm1280, %v1216, %v1344
        %v1409 = vsel %vm1281, %v1217, %v1345
        %v1410 = vsel %vm1282, %v1218, %v1346
        %v1411 = vsel %vm1283, %v1219, %v1347
        %v1412 = vsel %vm1284, %v1220, %v1348
        %v1413 = vsel %vm1285, %v1221, %v1349
        %v1414 = vsel %vm1286, %v1222, %v1350
        %v1415 = vsel %vm1287, %v1223, %v1351
        %v1416 = vsel %vm1288, %v1224, %v1352
        %v1417 = vsel %vm1289, %v1225, %v1353
        %v1418 = vsel %vm1290, %v1226, %v1354
        %v1419 = vsel %vm1291, %v1227, %v1355
        %v1420 = vsel %vm1292, %v1228, %v1356
        %v1421 = vsel %vm1293, %v1229, %v1357
        %v1422 = vsel %vm1294, %v1230, %v1358
        %v1423 = vsel %vm1295, %v1231, %v1359
        %v1424 = vsel %vm1296, %v1232, %v1360
        %v1425 = vsel %vm1297, %v1233, %v1361
        %v1426 = vsel %vm1298, %v1234, %v1362
        %v1427 = vsel %vm1299, %v1235, %v1363
        %v1428 = vsel %vm1300, %v1236, %v1364
        %v1429 = vsel %vm1301, %v1237, %v1365
        %v1430 = vsel %vm1302, %v1238, %v1366
        %v1431 = vsel %vm1303, %v1239, %v1367
        %v1432 = vsel %vm1304, %v1240, %v1368
        %v1433 = vsel %vm1305, %v1241, %v1369
        %v1434 = vsel %vm1306, %v1242, %v1370
        %v1435 = vsel %vm1307, %v1243, %v1371
        %v1436 = vsel %vm1308, %v1244, %v1372
        %v1437 = vsel %vm1309, %v1245, %v1373
        %v1438 = vsel %vm1310, %v1246, %v1374
        %v1439 = vsel %vm1311, %v1247, %v1375
        %v1440 = vsel %vm1312, %v1248, %v1376
        %v1441 = vsel %vm1313, %v1249, %v1377
        %v1442 = vsel %vm1314, %v1250, %v1378
        %v1443 = vsel %vm1315, %v1251, %v1379
        %v1444 = vsel %vm1316, %v1252, %v1380
        %v1445 = vsel %vm1317, %v1253, %v1381
        %v1446 = vsel %vm1318, %v1254, %v1382
        %v1447 = vsel %vm1319, %v1255, %v1383
        %v1448 = vsel %vm1320, %v1256, %v1384
        %v1449 = vsel %vm1321, %v1257, %v1385
        %v1450 = vsel %vm1322, %v1258, %v1386
        %v1451 = vsel %vm1323, %v1259, %v1387
        %v1452 = vsel %vm1324, %v1260, %v1388
        %v1453 = vsel %vm1325, %v1261, %v1389
        %v1454 = vsel %vm1326, %v1262, %v1390
        %v1455 = vsel %vm1327, %v1263, %v1391
        %v1456 = vsel %vm1328, %v1264, %v1392
        %v1457 = vsel %vm1329, %v1265, %v1393
        %v1458 = vsel %vm1330, %v1266, %v1394
        %v1459 = vpack.c.bf16 %v1396, %v1395
        %v1460 = vpack.c.bf16 %v1398, %v1397
        %v1461 = vpack.c.bf16 %v1400, %v1399
        %v1462 = vpack.c.bf16 %v1402, %v1401
        %v1463 = vpack.c.bf16 %v1404, %v1403
        %v1464 = vpack.c.bf16 %v1406, %v1405
        %v1465 = vpack.c.bf16 %v1408, %v1407
        %v1466 = vpack.c.bf16 %v1410, %v1409
        %v1467 = vpack.c.bf16 %v1412, %v1411
        %v1468 = vpack.c.bf16 %v1414, %v1413
        %v1469 = vpack.c.bf16 %v1416, %v1415
        %v1470 = vpack.c.bf16 %v1418, %v1417
        %v1471 = vpack.c.bf16 %v1420, %v1419
        %v1472 = vpack.c.bf16 %v1422, %v1421
        %v1473 = vpack.c.bf16 %v1424, %v1423
        %v1474 = vpack.c.bf16 %v1426, %v1425
        %v1475 = vpack.c.bf16 %v1428, %v1427
        %v1476 = vpack.c.bf16 %v1430, %v1429
        %v1477 = vpack.c.bf16 %v1432, %v1431
        %v1478 = vpack.c.bf16 %v1434, %v1433
        %v1479 = vpack.c.bf16 %v1436, %v1435
        %v1480 = vpack.c.bf16 %v1438, %v1437
        %v1481 = vpack.c.bf16 %v1440, %v1439
        %v1482 = vpack.c.bf16 %v1442, %v1441
        %v1483 = vpack.c.bf16 %v1444, %v1443
        %v1484 = vpack.c.bf16 %v1446, %v1445
        %v1485 = vpack.c.bf16 %v1448, %v1447
        %v1486 = vpack.c.bf16 %v1450, %v1449
        %v1487 = vpack.c.bf16 %v1452, %v1451
        %v1488 = vpack.c.bf16 %v1454, %v1453
        %v1489 = vpack.c.bf16 %v1456, %v1455
        %v1490 = vpack.c.bf16 %v1458, %v1457
        %v1523 = vunpack.c.l.b16 %v1459
        %v1524 = vunpack.c.h.b16 %v1459
        %v1525 = vunpack.c.l.b16 %v1460
        %v1526 = vunpack.c.h.b16 %v1460
        %v1527 = vunpack.c.l.b16 %v1461
        %v1528 = vunpack.c.h.b16 %v1461
        %v1529 = vunpack.c.l.b16 %v1462
        %v1530 = vunpack.c.h.b16 %v1462
        %v1531 = vunpack.c.l.b16 %v1463
        %v1532 = vunpack.c.h.b16 %v1463
        %v1533 = vunpack.c.l.b16 %v1464
        %v1534 = vunpack.c.h.b16 %v1464
        %v1535 = vunpack.c.l.b16 %v1465
        %v1536 = vunpack.c.h.b16 %v1465
        %v1537 = vunpack.c.l.b16 %v1466
        %v1538 = vunpack.c.h.b16 %v1466
        %v1539 = vunpack.c.l.b16 %v1467
        %v1540 = vunpack.c.h.b16 %v1467
        %v1541 = vunpack.c.l.b16 %v1468
        %v1542 = vunpack.c.h.b16 %v1468
        %v1543 = vunpack.c.l.b16 %v1469
        %v1544 = vunpack.c.h.b16 %v1469
        %v1545 = vunpack.c.l.b16 %v1470
        %v1546 = vunpack.c.h.b16 %v1470
        %v1547 = vunpack.c.l.b16 %v1471
        %v1548 = vunpack.c.h.b16 %v1471
        %v1549 = vunpack.c.l.b16 %v1472
        %v1550 = vunpack.c.h.b16 %v1472
        %v1551 = vunpack.c.l.b16 %v1473
        %v1552 = vunpack.c.h.b16 %v1473
        %v1553 = vunpack.c.l.b16 %v1474
        %v1554 = vunpack.c.h.b16 %v1474
        %v1555 = vunpack.c.l.b16 %v1475
        %v1556 = vunpack.c.h.b16 %v1475
        %v1557 = vunpack.c.l.b16 %v1476
        %v1558 = vunpack.c.h.b16 %v1476
        %v1559 = vunpack.c.l.b16 %v1477
        %v1560 = vunpack.c.h.b16 %v1477
        %v1561 = vunpack.c.l.b16 %v1478
        %v1562 = vunpack.c.h.b16 %v1478
        %v1563 = vunpack.c.l.b16 %v1479
        %v1564 = vunpack.c.h.b16 %v1479
        %v1565 = vunpack.c.l.b16 %v1480
        %v1566 = vunpack.c.h.b16 %v1480
        %v1567 = vunpack.c.l.b16 %v1481
        %v1568 = vunpack.c.h.b16 %v1481
        %v1569 = vunpack.c.l.b16 %v1482
        %v1570 = vunpack.c.h.b16 %v1482
        %v1571 = vunpack.c.l.b16 %v1483
        %v1572 = vunpack.c.h.b16 %v1483
        %v1573 = vunpack.c.l.b16 %v1484
        %v1574 = vunpack.c.h.b16 %v1484
        %v1575 = vunpack.c.l.b16 %v1485
        %v1576 = vunpack.c.h.b16 %v1485
        %v1577 = vunpack.c.l.b16 %v1486
        %v1578 = vunpack.c.h.b16 %v1486
        %v1579 = vunpack.c.l.b16 %v1487
        %v1580 = vunpack.c.h.b16 %v1487
        %v1581 = vunpack.c.l.b16 %v1488
        %v1582 = vunpack.c.h.b16 %v1488
        %v1583 = vunpack.c.l.b16 %v1489
        %v1584 = vunpack.c.h.b16 %v1489
        %v1585 = vunpack.c.l.b16 %v1490
        %v1586 = vunpack.c.h.b16 %v1490
        %v1587 = vpack.c.b16 %v1523, %v1523
        %v1588 = vpack.c.b16 %v1524, %v1524
        %v1589 = vpack.c.b16 %v1525, %v1525
        %v1590 = vpack.c.b16 %v1526, %v1526
        %v1591 = vpack.c.b16 %v1527, %v1527
        %v1592 = vpack.c.b16 %v1528, %v1528
        %v1593 = vpack.c.b16 %v1529, %v1529
        %v1594 = vpack.c.b16 %v1530, %v1530
        %v1595 = vpack.c.b16 %v1531, %v1531
        %v1596 = vpack.c.b16 %v1532, %v1532
        %v1597 = vpack.c.b16 %v1533, %v1533
        %v1598 = vpack.c.b16 %v1534, %v1534
        %v1599 = vpack.c.b16 %v1535, %v1535
        %v1600 = vpack.c.b16 %v1536, %v1536
        %v1601 = vpack.c.b16 %v1537, %v1537
        %v1602 = vpack.c.b16 %v1538, %v1538
        %v1603 = vpack.c.b16 %v1539, %v1539
        %v1604 = vpack.c.b16 %v1540, %v1540
        %v1605 = vpack.c.b16 %v1541, %v1541
        %v1606 = vpack.c.b16 %v1542, %v1542
        %v1607 = vpack.c.b16 %v1543, %v1543
        %v1608 = vpack.c.b16 %v1544, %v1544
        %v1609 = vpack.c.b16 %v1545, %v1545
        %v1610 = vpack.c.b16 %v1546, %v1546
        %v1611 = vpack.c.b16 %v1547, %v1547
        %v1612 = vpack.c.b16 %v1548, %v1548
        %v1613 = vpack.c.b16 %v1549, %v1549
        %v1614 = vpack.c.b16 %v1550, %v1550
        %v1615 = vpack.c.b16 %v1551, %v1551
        %v1616 = vpack.c.b16 %v1552, %v1552
        %v1617 = vpack.c.b16 %v1553, %v1553
        %v1618 = vpack.c.b16 %v1554, %v1554
        %v1619 = vpack.c.b16 %v1555, %v1555
        %v1620 = vpack.c.b16 %v1556, %v1556
        %v1621 = vpack.c.b16 %v1557, %v1557
        %v1622 = vpack.c.b16 %v1558, %v1558
        %v1623 = vpack.c.b16 %v1559, %v1559
        %v1624 = vpack.c.b16 %v1560, %v1560
        %v1625 = vpack.c.b16 %v1561, %v1561
        %v1626 = vpack.c.b16 %v1562, %v1562
        %v1627 = vpack.c.b16 %v1563, %v1563
        %v1628 = vpack.c.b16 %v1564, %v1564
        %v1629 = vpack.c.b16 %v1565, %v1565
        %v1630 = vpack.c.b16 %v1566, %v1566
        %v1631 = vpack.c.b16 %v1567, %v1567
        %v1632 = vpack.c.b16 %v1568, %v1568
        %v1633 = vpack.c.b16 %v1569, %v1569
        %v1634 = vpack.c.b16 %v1570, %v1570
        %v1635 = vpack.c.b16 %v1571, %v1571
        %v1636 = vpack.c.b16 %v1572, %v1572
        %v1637 = vpack.c.b16 %v1573, %v1573
        %v1638 = vpack.c.b16 %v1574, %v1574
        %v1639 = vpack.c.b16 %v1575, %v1575
        %v1640 = vpack.c.b16 %v1576, %v1576
        %v1641 = vpack.c.b16 %v1577, %v1577
        %v1642 = vpack.c.b16 %v1578, %v1578
        %v1643 = vpack.c.b16 %v1579, %v1579
        %v1644 = vpack.c.b16 %v1580, %v1580
        %v1645 = vpack.c.b16 %v1581, %v1581
        %v1646 = vpack.c.b16 %v1582, %v1582
        %v1647 = vpack.c.b16 %v1583, %v1583
        %v1648 = vpack.c.b16 %v1584, %v1584
        %v1649 = vpack.c.b16 %v1585, %v1585
        %v1650 = vpack.c.b16 %v1586, %v1586
        %1715 = vst [vmem:[%s257] sm:$0xf] %v1587
        %1716 = vst [vmem:[%s257 + $0x4] sm:$0xf] %v1588
        %1717 = vst [vmem:[%s257 + $0x8] sm:$0xf] %v1589
        %1718 = vst [vmem:[%s257 + $0xc] sm:$0xf] %v1590
        %1719 = vst [vmem:[%s257 + $0x10] sm:$0xf] %v1591
        %1720 = vst [vmem:[%s257 + $0x14] sm:$0xf] %v1592
        %1721 = vst [vmem:[%s257 + $0x18] sm:$0xf] %v1593
        %1722 = vst [vmem:[%s257 + $0x1c] sm:$0xf] %v1594
        %1723 = vst [vmem:[%s257 + $0x20] sm:$0xf] %v1595
        %1724 = vst [vmem:[%s257 + $0x24] sm:$0xf] %v1596
        %1725 = vst [vmem:[%s257 + $0x28] sm:$0xf] %v1597
        %1726 = vst [vmem:[%s257 + $0x2c] sm:$0xf] %v1598
        %1727 = vst [vmem:[%s257 + $0x30] sm:$0xf] %v1599
        %1728 = vst [vmem:[%s257 + $0x34] sm:$0xf] %v1600
        %1729 = vst [vmem:[%s257 + $0x38] sm:$0xf] %v1601
        %1730 = vst [vmem:[%s257 + $0x3c] sm:$0xf] %v1602
        %1731 = vst [vmem:[%s257 + $0x40] sm:$0xf] %v1603
        %1732 = vst [vmem:[%s257 + $0x44] sm:$0xf] %v1604
        %1733 = vst [vmem:[%s257 + $0x48] sm:$0xf] %v1605
        %1734 = vst [vmem:[%s257 + $0x4c] sm:$0xf] %v1606
        %1735 = vst [vmem:[%s257 + $0x50] sm:$0xf] %v1607
        %1736 = vst [vmem:[%s257 + $0x54] sm:$0xf] %v1608
        %1737 = vst [vmem:[%s257 + $0x58] sm:$0xf] %v1609
        %1738 = vst [vmem:[%s257 + $0x5c] sm:$0xf] %v1610
        %1739 = vst [vmem:[%s257 + $0x60] sm:$0xf] %v1611
        %1740 = vst [vmem:[%s257 + $0x64] sm:$0xf] %v1612
        %1741 = vst [vmem:[%s257 + $0x68] sm:$0xf] %v1613
        %1742 = vst [vmem:[%s257 + $0x6c] sm:$0xf] %v1614
        %1743 = vst [vmem:[%s257 + $0x70] sm:$0xf] %v1615
        %1744 = vst [vmem:[%s257 + $0x74] sm:$0xf] %v1616
        %1745 = vst [vmem:[%s257 + $0x78] sm:$0xf] %v1617
        %1746 = vst [vmem:[%s257 + $0x7c] sm:$0xf] %v1618
        %1747 = vst [vmem:[%s257 + $0x80] sm:$0xf] %v1619
        %1748 = vst [vmem:[%s257 + $0x84] sm:$0xf] %v1620
        %1749 = vst [vmem:[%s257 + $0x88] sm:$0xf] %v1621
        %1750 = vst [vmem:[%s257 + $0x8c] sm:$0xf] %v1622
        %1751 = vst [vmem:[%s257 + $0x90] sm:$0xf] %v1623
        %1752 = vst [vmem:[%s257 + $0x94] sm:$0xf] %v1624
        %1753 = vst [vmem:[%s257 + $0x98] sm:$0xf] %v1625
        %1754 = vst [vmem:[%s257 + $0x9c] sm:$0xf] %v1626
        %1755 = vst [vmem:[%s257 + $0xa0] sm:$0xf] %v1627
        %1756 = vst [vmem:[%s257 + $0xa4] sm:$0xf] %v1628
        %1757 = vst [vmem:[%s257 + $0xa8] sm:$0xf] %v1629
        %1758 = vst [vmem:[%s257 + $0xac] sm:$0xf] %v1630
        %1759 = vst [vmem:[%s257 + $0xb0] sm:$0xf] %v1631
        %1760 = vst [vmem:[%s257 + $0xb4] sm:$0xf] %v1632
        %1761 = vst [vmem:[%s257 + $0xb8] sm:$0xf] %v1633
        %1762 = vst [vmem:[%s257 + $0xbc] sm:$0xf] %v1634
        %1763 = vst [vmem:[%s257 + $0xc0] sm:$0xf] %v1635
        %1764 = vst [vmem:[%s257 + $0xc4] sm:$0xf] %v1636
        %1765 = vst [vmem:[%s257 + $0xc8] sm:$0xf] %v1637
        %1766 = vst [vmem:[%s257 + $0xcc] sm:$0xf] %v1638
        %1767 = vst [vmem:[%s257 + $0xd0] sm:$0xf] %v1639
        %1768 = vst [vmem:[%s257 + $0xd4] sm:$0xf] %v1640
        %1769 = vst [vmem:[%s257 + $0xd8] sm:$0xf] %v1641
        %1770 = vst [vmem:[%s257 + $0xdc] sm:$0xf] %v1642
        %1771 = vst [vmem:[%s257 + $0xe0] sm:$0xf] %v1643
        %1772 = vst [vmem:[%s257 + $0xe4] sm:$0xf] %v1644
        %1773 = vst [vmem:[%s257 + $0xe8] sm:$0xf] %v1645
        %1774 = vst [vmem:[%s257 + $0xec] sm:$0xf] %v1646
        %1775 = vst [vmem:[%s257 + $0xf0] sm:$0xf] %v1647
        %1776 = vst [vmem:[%s257 + $0xf4] sm:$0xf] %v1648
        %1777 = vst [vmem:[%s257 + $0xf8] sm:$0xf] %v1649
        %1778 = vst [vmem:[%s257 + $0xfc] sm:$0xf] %v1650
      $region40: #{_lambda_.13} parent=31 // pred_fallthru
        _
      %s1779 = smul.u32 64, %s19
      %p1780 = scmp.lt.s32.totalorder %s1779, 255
      %s1781 = scalar_select %p1780, %s1779, 255
      %p1782 = scmp.lt.s32.totalorder %s20, 0
      %s1783 = scalar_select %p1782, %s20, 0
      %s1784 = sadd.s32 %s1783, %s1781
      %s1785 = smul.addr %s1784, 4
      %s1786 = scalar_lea.vmem %s3, %s1785
      // Predicated region
      $region41: #{_lambda_.13} parent=31 // pred_check
        %p1787 = pneg %p135
      $region42: #{_lambda_.13} parent=31 // pred_check_branch
        %1789 = sbr.rel (%p1787) target = $region44
      $region43: #{_lambda_.13} parent=31 // pred_region
        %s1790 = smul.u32 64, %s19
      $region44: #{_lambda_.13} parent=31 // pred_fallthru
        _
    $region32: #{_lambda_.13} parent=5 // pred_fallthru
      _
    %p1791 = scmp.le.s32.totalorder 2, %s9
    // Predicated region
    $region45: #{_lambda_.13} parent=5 // pred_check
      %p1792 = pneg %p1791
    $region46: #{_lambda_.13} parent=5 // pred_check_branch
      %1794 = sbr.rel (%p1792) target = $region48
    $region47: #{_lambda_.13} parent=5 // pred_region
      %s1795 = ssub.s32 %s9, 2
      // Predicated region
      $region49: #{_lambda_.13} parent=47 // pred_check
        %p1796 = pneg %p141
      $region50: #{_lambda_.13} parent=47 // pred_check_branch
        %1798 = sbr.rel (%p1796) target = $region52
      $region51: #{_lambda_.13} parent=47 // pred_region
        %s1799 = smul.u32 64, %s22
        %p1800 = scmp.lt.s32.totalorder %s1799, 255
        %s1801 = scalar_select %p1800, %s1799, 255
        %p1802 = scmp.lt.s32.totalorder %s23, 0
        %s1803 = scalar_select %p1802, %s23, 0
        %s1804 = sadd.s32 %s1803, %s1801
        %s1805 = smul.addr %s1804, 4
        %s1806 = scalar_lea.vmem %s3, %s1805
      $region52: #{_lambda_.13} parent=47 // pred_fallthru
        _
    $region48: #{_lambda_.13} parent=5 // pred_fallthru
      _
  $region6: #{_lambda_.13} parent=0 // loop_footer
    %s13 = sadd.s32 1, %s9
  $region7: #{_lambda_.13} parent=0 // loop_footer_branch
    %8 = sbr.rel target = $region3
  $region8: #{_lambda_.13} parent=0 // loop_exit
    _

// kernel: _lambda_.14
$region0: #{_lambda_.14}
  #allocation0 [shape = 'u32[]', space=smem, size = 0x4, offset = 0x4, fixed_abs, tag = 'smem constant byte address 0x4 - core index']
  #allocation1 [shape = 'u32[144,128]{1,0:T(1,128)}', space=vmem, size = 0x12000, scoped, tag = 'internal scratch']
  #allocation2 [shape = 'f32[512,128]{1,0:T(8,128)}', space=vmem, size = 0x40000, scoped, tag = 'scratch operand']
  %s0 = inlined_call_operand.vmem [shape: bf16[512,128], index: 0, kind: input, shape index: {}]
  %s1 = inlined_call_operand.vmem [shape: bf16[128,128], index: 1, kind: input, shape index: {}]
  %s2 = inlined_call_operand.vmem [shape: f32[1,128], index: 2, kind: input, shape index: {}]
  %s3 = inlined_call_operand.vmem [shape: bf16[512,128], index: 3, kind: output, shape index: {}]
  %s4 = sld [smem:[#allocation0]]
  $region30: #{_lambda_.14} parent=0
    _
  %s6 = ssub.s32 1, %s4
  %s7 = scalar_select 0, %s6, %s4
  // Predicated region
  $region2: #{_lambda_.14} parent=0 // pred_check
    _
  $region3: #{_lambda_.14} parent=0 // pred_check_branch
    %9 = sbr.rel (0) target = $region5
  $region4: #{_lambda_.14} parent=0 // pred_region
    _
  $region5: #{_lambda_.14} parent=0 // pred_fallthru
    _
  // Predicated region
  $region6: #{_lambda_.14} parent=0 // pred_check
    _
  $region7: #{_lambda_.14} parent=0 // pred_check_branch
    %11 = sbr.rel (0) target = $region9
  $region8: #{_lambda_.14} parent=0 // pred_region
    _
  $region9: #{_lambda_.14} parent=0 // pred_fallthru
    _
  // Predicated region
  $region10: #{_lambda_.14} parent=0 // pred_check
    _
  $region11: #{_lambda_.14} parent=0 // pred_check_branch
    %13 = sbr.rel (0) target = $region13
  $region12: #{_lambda_.14} parent=0 // pred_region
    _
  $region13: #{_lambda_.14} parent=0 // pred_fallthru
    _
  %p15 = scmp.eq.s32.totalorder 0, 0
  // Predicated region
  $region14: #{_lambda_.14} parent=0 // pred_check
    %p16 = pneg %p15
  $region15: #{_lambda_.14} parent=0 // pred_check_branch
    %18 = sbr.rel (%p16) target = $region17
  $region16: #{_lambda_.14} parent=0 // pred_region
    %19 = vst [vmem:[#allocation2] sm:$0xff] 0.0
    %20 = vst [vmem:[#allocation2 + $0x8] sm:$0xff] 0.0
    %21 = vst [vmem:[#allocation2 + $0x10] sm:$0xff] 0.0
    %22 = vst [vmem:[#allocation2 + $0x18] sm:$0xff] 0.0
    %23 = vst [vmem:[#allocation2 + $0x20] sm:$0xff] 0.0
    %24 = vst [vmem:[#allocation2 + $0x28] sm:$0xff] 0.0
    %25 = vst [vmem:[#allocation2 + $0x30] sm:$0xff] 0.0
    %26 = vst [vmem:[#allocation2 + $0x38] sm:$0xff] 0.0
    %27 = vst [vmem:[#allocation2 + $0x40] sm:$0xff] 0.0
    %28 = vst [vmem:[#allocation2 + $0x48] sm:$0xff] 0.0
    %29 = vst [vmem:[#allocation2 + $0x50] sm:$0xff] 0.0
    %30 = vst [vmem:[#allocation2 + $0x58] sm:$0xff] 0.0
    %31 = vst [vmem:[#allocation2 + $0x60] sm:$0xff] 0.0
    %32 = vst [vmem:[#allocation2 + $0x68] sm:$0xff] 0.0
    %33 = vst [vmem:[#allocation2 + $0x70] sm:$0xff] 0.0
    %34 = vst [vmem:[#allocation2 + $0x78] sm:$0xff] 0.0
    %35 = vst [vmem:[#allocation2 + $0x80] sm:$0xff] 0.0
    %36 = vst [vmem:[#allocation2 + $0x88] sm:$0xff] 0.0
    %37 = vst [vmem:[#allocation2 + $0x90] sm:$0xff] 0.0
    %38 = vst [vmem:[#allocation2 + $0x98] sm:$0xff] 0.0
    %39 = vst [vmem:[#allocation2 + $0xa0] sm:$0xff] 0.0
    %40 = vst [vmem:[#allocation2 + $0xa8] sm:$0xff] 0.0
    %41 = vst [vmem:[#allocation2 + $0xb0] sm:$0xff] 0.0
    %42 = vst [vmem:[#allocation2 + $0xb8] sm:$0xff] 0.0
    %43 = vst [vmem:[#allocation2 + $0xc0] sm:$0xff] 0.0
    %44 = vst [vmem:[#allocation2 + $0xc8] sm:$0xff] 0.0
    %45 = vst [vmem:[#allocation2 + $0xd0] sm:$0xff] 0.0
    %46 = vst [vmem:[#allocation2 + $0xd8] sm:$0xff] 0.0
    %47 = vst [vmem:[#allocation2 + $0xe0] sm:$0xff] 0.0
    %48 = vst [vmem:[#allocation2 + $0xe8] sm:$0xff] 0.0
    %49 = vst [vmem:[#allocation2 + $0xf0] sm:$0xff] 0.0
    %50 = vst [vmem:[#allocation2 + $0xf8] sm:$0xff] 0.0
    %51 = vst [vmem:[#allocation2 + $0x100] sm:$0xff] 0.0
    %52 = vst [vmem:[#allocation2 + $0x108] sm:$0xff] 0.0
    %53 = vst [vmem:[#allocation2 + $0x110] sm:$0xff] 0.0
    %54 = vst [vmem:[#allocation2 + $0x118] sm:$0xff] 0.0
    %55 = vst [vmem:[#allocation2 + $0x120] sm:$0xff] 0.0
    %56 = vst [vmem:[#allocation2 + $0x128] sm:$0xff] 0.0
    %57 = vst [vmem:[#allocation2 + $0x130] sm:$0xff] 0.0
    %58 = vst [vmem:[#allocation2 + $0x138] sm:$0xff] 0.0
    %59 = vst [vmem:[#allocation2 + $0x140] sm:$0xff] 0.0
    %60 = vst [vmem:[#allocation2 + $0x148] sm:$0xff] 0.0
    %61 = vst [vmem:[#allocation2 + $0x150] sm:$0xff] 0.0
    %62 = vst [vmem:[#allocation2 + $0x158] sm:$0xff] 0.0
    %63 = vst [vmem:[#allocation2 + $0x160] sm:$0xff] 0.0
    %64 = vst [vmem:[#allocation2 + $0x168] sm:$0xff] 0.0
    %65 = vst [vmem:[#allocation2 + $0x170] sm:$0xff] 0.0
    %66 = vst [vmem:[#allocation2 + $0x178] sm:$0xff] 0.0
    %67 = vst [vmem:[#allocation2 + $0x180] sm:$0xff] 0.0
    %68 = vst [vmem:[#allocation2 + $0x188] sm:$0xff] 0.0
    %69 = vst [vmem:[#allocation2 + $0x190] sm:$0xff] 0.0
    %70 = vst [vmem:[#allocation2 + $0x198] sm:$0xff] 0.0
    %71 = vst [vmem:[#allocation2 + $0x1a0] sm:$0xff] 0.0
    %72 = vst [vmem:[#allocation2 + $0x1a8] sm:$0xff] 0.0
    %73 = vst [vmem:[#allocation2 + $0x1b0] sm:$0xff] 0.0
    %74 = vst [vmem:[#allocation2 + $0x1b8] sm:$0xff] 0.0
    %75 = vst [vmem:[#allocation2 + $0x1c0] sm:$0xff] 0.0
    %76 = vst [vmem:[#allocation2 + $0x1c8] sm:$0xff] 0.0
    %77 = vst [vmem:[#allocation2 + $0x1d0] sm:$0xff] 0.0
    %78 = vst [vmem:[#allocation2 + $0x1d8] sm:$0xff] 0.0
    %79 = vst [vmem:[#allocation2 + $0x1e0] sm:$0xff] 0.0
    %80 = vst [vmem:[#allocation2 + $0x1e8] sm:$0xff] 0.0
    %81 = vst [vmem:[#allocation2 + $0x1f0] sm:$0xff] 0.0
    %82 = vst [vmem:[#allocation2 + $0x1f8] sm:$0xff] 0.0
  $region17: #{_lambda_.14} parent=0 // pred_fallthru
    _
  %v83 = vld [vmem:[#allocation2] sm:$0xff]
  %v84 = vld [vmem:[#allocation2 + $0x8] sm:$0xff]
  %v85 = vld [vmem:[#allocation2 + $0x10] sm:$0xff]
  %v86 = vld [vmem:[#allocation2 + $0x18] sm:$0xff]
  %v87 = vld [vmem:[#allocation2 + $0x20] sm:$0xff]
  %v88 = vld [vmem:[#allocation2 + $0x28] sm:$0xff]
  %v89 = vld [vmem:[#allocation2 + $0x30] sm:$0xff]
  %v90 = vld [vmem:[#allocation2 + $0x38] sm:$0xff]
  %v91 = vld [vmem:[#allocation2 + $0x40] sm:$0xff]
  %v92 = vld [vmem:[#allocation2 + $0x48] sm:$0xff]
  %v93 = vld [vmem:[#allocation2 + $0x50] sm:$0xff]
  %v94 = vld [vmem:[#allocation2 + $0x58] sm:$0xff]
  %v95 = vld [vmem:[#allocation2 + $0x60] sm:$0xff]
  %v96 = vld [vmem:[#allocation2 + $0x68] sm:$0xff]
  %v97 = vld [vmem:[#allocation2 + $0x70] sm:$0xff]
  %v98 = vld [vmem:[#allocation2 + $0x78] sm:$0xff]
  %v99 = vld [vmem:[#allocation2 + $0x80] sm:$0xff]
  %v100 = vld [vmem:[#allocation2 + $0x88] sm:$0xff]
  %v101 = vld [vmem:[#allocation2 + $0x90] sm:$0xff]
  %v102 = vld [vmem:[#allocation2 + $0x98] sm:$0xff]
  %v103 = vld [vmem:[#allocation2 + $0xa0] sm:$0xff]
  %v104 = vld [vmem:[#allocation2 + $0xa8] sm:$0xff]
  %v105 = vld [vmem:[#allocation2 + $0xb0] sm:$0xff]
  %v106 = vld [vmem:[#allocation2 + $0xb8] sm:$0xff]
  %v107 = vld [vmem:[#allocation2 + $0xc0] sm:$0xff]
  %v108 = vld [vmem:[#allocation2 + $0xc8] sm:$0xff]
  %v109 = vld [vmem:[#allocation2 + $0xd0] sm:$0xff]
  %v110 = vld [vmem:[#allocation2 + $0xd8] sm:$0xff]
  %v111 = vld [vmem:[#allocation2 + $0xe0] sm:$0xff]
  %v112 = vld [vmem:[#allocation2 + $0xe8] sm:$0xff]
  %v113 = vld [vmem:[#allocation2 + $0xf0] sm:$0xff]
  %v114 = vld [vmem:[#allocation2 + $0xf8] sm:$0xff]
  %v115 = vld [vmem:[#allocation2 + $0x100] sm:$0xff]
  %v116 = vld [vmem:[#allocation2 + $0x108] sm:$0xff]
  %v117 = vld [vmem:[#allocation2 + $0x110] sm:$0xff]
  %v118 = vld [vmem:[#allocation2 + $0x118] sm:$0xff]
  %v119 = vld [vmem:[#allocation2 + $0x120] sm:$0xff]
  %v120 = vld [vmem:[#allocation2 + $0x128] sm:$0xff]
  %v121 = vld [vmem:[#allocation2 + $0x130] sm:$0xff]
  %v122 = vld [vmem:[#allocation2 + $0x138] sm:$0xff]
  %v123 = vld [vmem:[#allocation2 + $0x140] sm:$0xff]
  %v124 = vld [vmem:[#allocation2 + $0x148] sm:$0xff]
  %v125 = vld [vmem:[#allocation2 + $0x150] sm:$0xff]
  %v126 = vld [vmem:[#allocation2 + $0x158] sm:$0xff]
  %v127 = vld [vmem:[#allocation2 + $0x160] sm:$0xff]
  %v128 = vld [vmem:[#allocation2 + $0x168] sm:$0xff]
  %v129 = vld [vmem:[#allocation2 + $0x170] sm:$0xff]
  %v130 = vld [vmem:[#allocation2 + $0x178] sm:$0xff]
  %v131 = vld [vmem:[#allocation2 + $0x180] sm:$0xff]
  %v132 = vld [vmem:[#allocation2 + $0x188] sm:$0xff]
  %v133 = vld [vmem:[#allocation2 + $0x190] sm:$0xff]
  %v134 = vld [vmem:[#allocation2 + $0x198] sm:$0xff]
  %v135 = vld [vmem:[#allocation2 + $0x1a0] sm:$0xff]
  %v136 = vld [vmem:[#allocation2 + $0x1a8] sm:$0xff]
  %v137 = vld [vmem:[#allocation2 + $0x1b0] sm:$0xff]
  %v138 = vld [vmem:[#allocation2 + $0x1b8] sm:$0xff]
  %v139 = vld [vmem:[#allocation2 + $0x1c0] sm:$0xff]
  %v140 = vld [vmem:[#allocation2 + $0x1c8] sm:$0xff]
  %v141 = vld [vmem:[#allocation2 + $0x1d0] sm:$0xff]
  %v142 = vld [vmem:[#allocation2 + $0x1d8] sm:$0xff]
  %v143 = vld [vmem:[#allocation2 + $0x1e0] sm:$0xff]
  %v144 = vld [vmem:[#allocation2 + $0x1e8] sm:$0xff]
  %v145 = vld [vmem:[#allocation2 + $0x1f0] sm:$0xff]
  %v146 = vld [vmem:[#allocation2 + $0x1f8] sm:$0xff]
  %v147 = vld [vmem:[%s0] sm:$0xf]
  %v148 = vld [vmem:[%s0 + $0x4] sm:$0xf]
  %v149 = vld [vmem:[%s0 + $0x8] sm:$0xf]
  %v150 = vld [vmem:[%s0 + $0xc] sm:$0xf]
  %v151 = vld [vmem:[%s0 + $0x10] sm:$0xf]
  %v152 = vld [vmem:[%s0 + $0x14] sm:$0xf]
  %v153 = vld [vmem:[%s0 + $0x18] sm:$0xf]
  %v154 = vld [vmem:[%s0 + $0x1c] sm:$0xf]
  %v155 = vld [vmem:[%s0 + $0x20] sm:$0xf]
  %v156 = vld [vmem:[%s0 + $0x24] sm:$0xf]
  %v157 = vld [vmem:[%s0 + $0x28] sm:$0xf]
  %v158 = vld [vmem:[%s0 + $0x2c] sm:$0xf]
  %v159 = vld [vmem:[%s0 + $0x30] sm:$0xf]
  %v160 = vld [vmem:[%s0 + $0x34] sm:$0xf]
  %v161 = vld [vmem:[%s0 + $0x38] sm:$0xf]
  %v162 = vld [vmem:[%s0 + $0x3c] sm:$0xf]
  %v163 = vld [vmem:[%s0 + $0x40] sm:$0xf]
  %v164 = vld [vmem:[%s0 + $0x44] sm:$0xf]
  %v165 = vld [vmem:[%s0 + $0x48] sm:$0xf]
  %v166 = vld [vmem:[%s0 + $0x4c] sm:$0xf]
  %v167 = vld [vmem:[%s0 + $0x50] sm:$0xf]
  %v168 = vld [vmem:[%s0 + $0x54] sm:$0xf]
  %v169 = vld [vmem:[%s0 + $0x58] sm:$0xf]
  %v170 = vld [vmem:[%s0 + $0x5c] sm:$0xf]
  %v171 = vld [vmem:[%s0 + $0x60] sm:$0xf]
  %v172 = vld [vmem:[%s0 + $0x64] sm:$0xf]
  %v173 = vld [vmem:[%s0 + $0x68] sm:$0xf]
  %v174 = vld [vmem:[%s0 + $0x6c] sm:$0xf]
  %v175 = vld [vmem:[%s0 + $0x70] sm:$0xf]
  %v176 = vld [vmem:[%s0 + $0x74] sm:$0xf]
  %v177 = vld [vmem:[%s0 + $0x78] sm:$0xf]
  %v178 = vld [vmem:[%s0 + $0x7c] sm:$0xf]
  %v179 = vld [vmem:[%s0 + $0x80] sm:$0xf]
  %v180 = vld [vmem:[%s0 + $0x84] sm:$0xf]
  %v181 = vld [vmem:[%s0 + $0x88] sm:$0xf]
  %v182 = vld [vmem:[%s0 + $0x8c] sm:$0xf]
  %v183 = vld [vmem:[%s0 + $0x90] sm:$0xf]
  %v184 = vld [vmem:[%s0 + $0x94] sm:$0xf]
  %v185 = vld [vmem:[%s0 + $0x98] sm:$0xf]
  %v186 = vld [vmem:[%s0 + $0x9c] sm:$0xf]
  %v187 = vld [vmem:[%s0 + $0xa0] sm:$0xf]
  %v188 = vld [vmem:[%s0 + $0xa4] sm:$0xf]
  %v189 = vld [vmem:[%s0 + $0xa8] sm:$0xf]
  %v190 = vld [vmem:[%s0 + $0xac] sm:$0xf]
  %v191 = vld [vmem:[%s0 + $0xb0] sm:$0xf]
  %v192 = vld [vmem:[%s0 + $0xb4] sm:$0xf]
  %v193 = vld [vmem:[%s0 + $0xb8] sm:$0xf]
  %v194 = vld [vmem:[%s0 + $0xbc] sm:$0xf]
  %v195 = vld [vmem:[%s0 + $0xc0] sm:$0xf]
  %v196 = vld [vmem:[%s0 + $0xc4] sm:$0xf]
  %v197 = vld [vmem:[%s0 + $0xc8] sm:$0xf]
  %v198 = vld [vmem:[%s0 + $0xcc] sm:$0xf]
  %v199 = vld [vmem:[%s0 + $0xd0] sm:$0xf]
  %v200 = vld [vmem:[%s0 + $0xd4] sm:$0xf]
  %v201 = vld [vmem:[%s0 + $0xd8] sm:$0xf]
  %v202 = vld [vmem:[%s0 + $0xdc] sm:$0xf]
  %v203 = vld [vmem:[%s0 + $0xe0] sm:$0xf]
  %v204 = vld [vmem:[%s0 + $0xe4] sm:$0xf]
  %v205 = vld [vmem:[%s0 + $0xe8] sm:$0xf]
  %v206 = vld [vmem:[%s0 + $0xec] sm:$0xf]
  %v207 = vld [vmem:[%s0 + $0xf0] sm:$0xf]
  %v208 = vld [vmem:[%s0 + $0xf4] sm:$0xf]
  %v209 = vld [vmem:[%s0 + $0xf8] sm:$0xf]
  %v210 = vld [vmem:[%s0 + $0xfc] sm:$0xf]
  %v211 = vld [vmem:[%s1] sm:$0xf]
  %v212 = vld [vmem:[%s1 + $0x4] sm:$0xf]
  %v213 = vld [vmem:[%s1 + $0x8] sm:$0xf]
  %v214 = vld [vmem:[%s1 + $0xc] sm:$0xf]
  %v215 = vld [vmem:[%s1 + $0x10] sm:$0xf]
  %v216 = vld [vmem:[%s1 + $0x14] sm:$0xf]
  %v217 = vld [vmem:[%s1 + $0x18] sm:$0xf]
  %v218 = vld [vmem:[%s1 + $0x1c] sm:$0xf]
  %v219 = vld [vmem:[%s1 + $0x20] sm:$0xf]
  %v220 = vld [vmem:[%s1 + $0x24] sm:$0xf]
  %v221 = vld [vmem:[%s1 + $0x28] sm:$0xf]
  %v222 = vld [vmem:[%s1 + $0x2c] sm:$0xf]
  %v223 = vld [vmem:[%s1 + $0x30] sm:$0xf]
  %v224 = vld [vmem:[%s1 + $0x34] sm:$0xf]
  %v225 = vld [vmem:[%s1 + $0x38] sm:$0xf]
  %v226 = vld [vmem:[%s1 + $0x3c] sm:$0xf]
  %v291 = vunpack.c.l.b16 %v147
  %v292 = vunpack.c.l.b16 %v148
  %v293 = vunpack.c.l.b16 %v149
  %v294 = vunpack.c.l.b16 %v150
  %v295 = vunpack.c.l.b16 %v151
  %v296 = vunpack.c.l.b16 %v152
  %v297 = vunpack.c.l.b16 %v153
  %v298 = vunpack.c.l.b16 %v154
  %v299 = vunpack.c.l.b16 %v155
  %v300 = vunpack.c.l.b16 %v156
  %v301 = vunpack.c.l.b16 %v157
  %v302 = vunpack.c.l.b16 %v158
  %v303 = vunpack.c.l.b16 %v159
  %v304 = vunpack.c.l.b16 %v160
  %v305 = vunpack.c.l.b16 %v161
  %v306 = vunpack.c.l.b16 %v162
  %v307 = vunpack.c.l.b16 %v163
  %v308 = vunpack.c.l.b16 %v164
  %v309 = vunpack.c.l.b16 %v165
  %v310 = vunpack.c.l.b16 %v166
  %v311 = vunpack.c.l.b16 %v167
  %v312 = vunpack.c.l.b16 %v168
  %v313 = vunpack.c.l.b16 %v169
  %v314 = vunpack.c.l.b16 %v170
  %v315 = vunpack.c.l.b16 %v171
  %v316 = vunpack.c.l.b16 %v172
  %v317 = vunpack.c.l.b16 %v173
  %v318 = vunpack.c.l.b16 %v174
  %v319 = vunpack.c.l.b16 %v175
  %v320 = vunpack.c.l.b16 %v176
  %v321 = vunpack.c.l.b16 %v177
  %v322 = vunpack.c.l.b16 %v178
  %v323 = vunpack.c.l.b16 %v179
  %v324 = vunpack.c.l.b16 %v180
  %v325 = vunpack.c.l.b16 %v181
  %v326 = vunpack.c.l.b16 %v182
  %v327 = vunpack.c.l.b16 %v183
  %v328 = vunpack.c.l.b16 %v184
  %v329 = vunpack.c.l.b16 %v185
  %v330 = vunpack.c.l.b16 %v186
  %v331 = vunpack.c.l.b16 %v187
  %v332 = vunpack.c.l.b16 %v188
  %v333 = vunpack.c.l.b16 %v189
  %v334 = vunpack.c.l.b16 %v190
  %v335 = vunpack.c.l.b16 %v191
  %v336 = vunpack.c.l.b16 %v192
  %v337 = vunpack.c.l.b16 %v193
  %v338 = vunpack.c.l.b16 %v194
  %v339 = vunpack.c.l.b16 %v195
  %v340 = vunpack.c.l.b16 %v196
  %v341 = vunpack.c.l.b16 %v197
  %v342 = vunpack.c.l.b16 %v198
  %v343 = vunpack.c.l.b16 %v199
  %v344 = vunpack.c.l.b16 %v200
  %v345 = vunpack.c.l.b16 %v201
  %v346 = vunpack.c.l.b16 %v202
  %v347 = vunpack.c.l.b16 %v203
  %v348 = vunpack.c.l.b16 %v204
  %v349 = vunpack.c.l.b16 %v205
  %v350 = vunpack.c.l.b16 %v206
  %v351 = vunpack.c.l.b16 %v207
  %v352 = vunpack.c.l.b16 %v208
  %v353 = vunpack.c.l.b16 %v209
  %v354 = vunpack.c.l.b16 %v210
  %v355 = vpack.c.b16 %v292, %v291
  %v356 = vpack.c.b16 %v294, %v293
  %v357 = vpack.c.b16 %v296, %v295
  %v358 = vpack.c.b16 %v298, %v297
  %v359 = vpack.c.b16 %v300, %v299
  %v360 = vpack.c.b16 %v302, %v301
  %v361 = vpack.c.b16 %v304, %v303
  %v362 = vpack.c.b16 %v306, %v305
  %v363 = vpack.c.b16 %v308, %v307
  %v364 = vpack.c.b16 %v310, %v309
  %v365 = vpack.c.b16 %v312, %v311
  %v366 = vpack.c.b16 %v314, %v313
  %v367 = vpack.c.b16 %v316, %v315
  %v368 = vpack.c.b16 %v318, %v317
  %v369 = vpack.c.b16 %v320, %v319
  %v370 = vpack.c.b16 %v322, %v321
  %v371 = vpack.c.b16 %v324, %v323
  %v372 = vpack.c.b16 %v326, %v325
  %v373 = vpack.c.b16 %v328, %v327
  %v374 = vpack.c.b16 %v330, %v329
  %v375 = vpack.c.b16 %v332, %v331
  %v376 = vpack.c.b16 %v334, %v333
  %v377 = vpack.c.b16 %v336, %v335
  %v378 = vpack.c.b16 %v338, %v337
  %v379 = vpack.c.b16 %v340, %v339
  %v380 = vpack.c.b16 %v342, %v341
  %v381 = vpack.c.b16 %v344, %v343
  %v382 = vpack.c.b16 %v346, %v345
  %v383 = vpack.c.b16 %v348, %v347
  %v384 = vpack.c.b16 %v350, %v349
  %v385 = vpack.c.b16 %v352, %v351
  %v386 = vpack.c.b16 %v354, %v353
  %v435 = vunpack.c.l.b16 %v211
  %v436 = vunpack.c.l.b16 %v212
  %v437 = vunpack.c.l.b16 %v213
  %v438 = vunpack.c.l.b16 %v214
  %v439 = vunpack.c.l.b16 %v215
  %v440 = vunpack.c.l.b16 %v216
  %v441 = vunpack.c.l.b16 %v217
  %v442 = vunpack.c.l.b16 %v218
  %v443 = vunpack.c.l.b16 %v219
  %v444 = vunpack.c.l.b16 %v220
  %v445 = vunpack.c.l.b16 %v221
  %v446 = vunpack.c.l.b16 %v222
  %v447 = vunpack.c.l.b16 %v223
  %v448 = vunpack.c.l.b16 %v224
  %v449 = vunpack.c.l.b16 %v225
  %v450 = vunpack.c.l.b16 %v226
  %v451 = vpack.c.b16 %v436, %v435
  %v452 = vpack.c.b16 %v438, %v437
  %v453 = vpack.c.b16 %v440, %v439
  %v454 = vpack.c.b16 %v442, %v441
  %v455 = vpack.c.b16 %v444, %v443
  %v456 = vpack.c.b16 %v446, %v445
  %v457 = vpack.c.b16 %v448, %v447
  %v458 = vpack.c.b16 %v450, %v449
  %467 = vmatprep.subr.bf16.mxu0 0
  %468 = vmatpush1.bf16.msra.mxu0 %v451
  %469 = vmatprep.subr.bf16.mxu0 0
  %470 = vmatpush1.bf16.msra.mxu0 %v452
  %471 = vmatprep.subr.bf16.mxu0 0
  %472 = vmatpush1.bf16.msra.mxu0 %v453
  %473 = vmatprep.subr.bf16.mxu0 0
  %474 = vmatpush1.bf16.msra.mxu0 %v454
  %475 = vmatprep.subr.bf16.mxu0 0
  %476 = vmatpush1.bf16.msra.mxu0 %v455
  %477 = vmatprep.subr.bf16.mxu0 0
  %478 = vmatpush1.bf16.msra.mxu0 %v456
  %479 = vmatprep.subr.bf16.mxu0 0
  %480 = vmatpush1.bf16.msra.mxu0 %v457
  %481 = vmatprep.subr.bf16.mxu0 0
  %482 = vmatpush1.bf16.msra.mxu0 %v458
  %483 = vmatprep.subr.bf16.mxu0 0
  %484 = vmatpush1.bf16.msra.mxu0 0
  %485 = vmatprep.subr.bf16.mxu0 0
  %486 = vmatpush1.bf16.msra.mxu0 0
  %487 = vmatprep.subr.bf16.mxu0 0
  %488 = vmatpush1.bf16.msra.mxu0 0
  %489 = vmatprep.subr.bf16.mxu0 0
  %490 = vmatpush1.bf16.msra.mxu0 0
  %491 = vmatprep.subr.bf16.mxu0 0
  %492 = vmatpush1.bf16.msra.mxu0 0
  %493 = vmatprep.subr.bf16.mxu0 0
  %494 = vmatpush1.bf16.msra.mxu0 0
  %495 = vmatprep.subr.bf16.mxu0 0
  %496 = vmatpush1.bf16.msra.mxu0 0
  %497 = vmatprep.subr.bf16.mxu0 0
  %498 = vmatpush1.bf16.msra.mxu0 0
  %499 = vmatprep.mubr.bf16.mxu0 0
  %500 = vmatmul.mubr.bf16.gmra.mrb[0].mxu0 %v355
  %v501 = vpop.f32.mrb[0].mxu0
  %v502 = vadd.f32 0.0, %v501
  %v503 = vpop.f32.mrb[0].mxu0
  %v504 = vpop.f32.mrb[0].mxu0
  %v505 = vadd.f32 0.0, %v504
  %v506 = vpop.f32.mrb[0].mxu0
  %507 = vmatprep.mubr.bf16.mxu0 0
  %508 = vmatmul.mubr.bf16.gmra.mrb[0].mxu0 %v356
  %v509 = vpop.f32.mrb[0].mxu0
  %v510 = vadd.f32 0.0, %v509
  %v511 = vpop.f32.mrb[0].mxu0
  %v512 = vpop.f32.mrb[0].mxu0
  %v513 = vadd.f32 0.0, %v512
  %v514 = vpop.f32.mrb[0].mxu0
  %515 = vmatprep.mubr.bf16.mxu0 0
  %516 = vmatmul.mubr.bf16.gmra.mrb[0].mxu0 %v357
  %v517 = vpop.f32.mrb[0].mxu0
  %v518 = vadd.f32 0.0, %v517
  %v519 = vpop.f32.mrb[0].mxu0
  %v520 = vpop.f32.mrb[0].mxu0
  %v521 = vadd.f32 0.0, %v520
  %v522 = vpop.f32.mrb[0].mxu0
  %523 = vmatprep.mubr.bf16.mxu0 0
  %524 = vmatmul.mubr.bf16.gmra.mrb[0].mxu0 %v358
  %v525 = vpop.f32.mrb[0].mxu0
  %v526 = vadd.f32 0.0, %v525
  %v527 = vpop.f32.mrb[0].mxu0
  %v528 = vpop.f32.mrb[0].mxu0
  %v529 = vadd.f32 0.0, %v528
  %v530 = vpop.f32.mrb[0].mxu0
  %531 = vmatprep.mubr.bf16.mxu0 0
  %532 = vmatmul.mubr.bf16.gmra.mrb[0].mxu0 %v359
  %v533 = vpop.f32.mrb[0].mxu0
  %v534 = vadd.f32 0.0, %v533
  %v535 = vpop.f32.mrb[0].mxu0
  %v536 = vpop.f32.mrb[0].mxu0
  %v537 = vadd.f32 0.0, %v536
  %v538 = vpop.f32.mrb[0].mxu0
  %539 = vmatprep.mubr.bf16.mxu0 0
  %540 = vmatmul.mubr.bf16.gmra.mrb[0].mxu0 %v360
  %v541 = vpop.f32.mrb[0].mxu0
  %v542 = vadd.f32 0.0, %v541
  %v543 = vpop.f32.mrb[0].mxu0
  %v544 = vpop.f32.mrb[0].mxu0
  %v545 = vadd.f32 0.0, %v544
  %v546 = vpop.f32.mrb[0].mxu0
  %547 = vmatprep.mubr.bf16.mxu0 0
  %548 = vmatmul.mubr.bf16.gmra.mrb[0].mxu0 %v361
  %v549 = vpop.f32.mrb[0].mxu0
  %v550 = vadd.f32 0.0, %v549
  %v551 = vpop.f32.mrb[0].mxu0
  %v552 = vpop.f32.mrb[0].mxu0
  %v553 = vadd.f32 0.0, %v552
  %v554 = vpop.f32.mrb[0].mxu0
  %555 = vmatprep.mubr.bf16.mxu0 0
  %556 = vmatmul.mubr.bf16.gmra.mrb[0].mxu0 %v362
  %v557 = vpop.f32.mrb[0].mxu0
  %v558 = vadd.f32 0.0, %v557
  %v559 = vpop.f32.mrb[0].mxu0
  %v560 = vpop.f32.mrb[0].mxu0
  %v561 = vadd.f32 0.0, %v560
  %v562 = vpop.f32.mrb[0].mxu0
  %563 = vmatprep.mubr.bf16.mxu0 0
  %564 = vmatmul.mubr.bf16.gmra.mrb[0].mxu0 %v363
  %v565 = vpop.f32.mrb[0].mxu0
  %v566 = vadd.f32 0.0, %v565
  %v567 = vpop.f32.mrb[0].mxu0
  %v568 = vpop.f32.mrb[0].mxu0
  %v569 = vadd.f32 0.0, %v568
  %v570 = vpop.f32.mrb[0].mxu0
  %571 = vmatprep.mubr.bf16.mxu0 0
  %572 = vmatmul.mubr.bf16.gmra.mrb[0].mxu0 %v364
  %v573 = vpop.f32.mrb[0].mxu0
  %v574 = vadd.f32 0.0, %v573
  %v575 = vpop.f32.mrb[0].mxu0
  %v576 = vpop.f32.mrb[0].mxu0
  %v577 = vadd.f32 0.0, %v576
  %v578 = vpop.f32.mrb[0].mxu0
  %579 = vmatprep.mubr.bf16.mxu0 0
  %580 = vmatmul.mubr.bf16.gmra.mrb[0].mxu0 %v365
  %v581 = vpop.f32.mrb[0].mxu0
  %v582 = vadd.f32 0.0, %v581
  %v583 = vpop.f32.mrb[0].mxu0
  %v584 = vpop.f32.mrb[0].mxu0
  %v585 = vadd.f32 0.0, %v584
  %v586 = vpop.f32.mrb[0].mxu0
  %587 = vmatprep.mubr.bf16.mxu0 0
  %588 = vmatmul.mubr.bf16.gmra.mrb[0].mxu0 %v366
  %v589 = vpop.f32.mrb[0].mxu0
  %v590 = vadd.f32 0.0, %v589
  %v591 = vpop.f32.mrb[0].mxu0
  %v592 = vpop.f32.mrb[0].mxu0
  %v593 = vadd.f32 0.0, %v592
  %v594 = vpop.f32.mrb[0].mxu0
  %595 = vmatprep.mubr.bf16.mxu0 0
  %596 = vmatmul.mubr.bf16.gmra.mrb[0].mxu0 %v367
  %v597 = vpop.f32.mrb[0].mxu0
  %v598 = vadd.f32 0.0, %v597
  %v599 = vpop.f32.mrb[0].mxu0
  %v600 = vpop.f32.mrb[0].mxu0
  %v601 = vadd.f32 0.0, %v600
  %v602 = vpop.f32.mrb[0].mxu0
  %603 = vmatprep.mubr.bf16.mxu0 0
  %604 = vmatmul.mubr.bf16.gmra.mrb[0].mxu0 %v368
  %v605 = vpop.f32.mrb[0].mxu0
  %v606 = vadd.f32 0.0, %v605
  %v607 = vpop.f32.mrb[0].mxu0
  %v608 = vpop.f32.mrb[0].mxu0
  %v609 = vadd.f32 0.0, %v608
  %v610 = vpop.f32.mrb[0].mxu0
  %611 = vmatprep.mubr.bf16.mxu0 0
  %612 = vmatmul.mubr.bf16.gmra.mrb[0].mxu0 %v369
  %v613 = vpop.f32.mrb[0].mxu0
  %v614 = vadd.f32 0.0, %v613
  %v615 = vpop.f32.mrb[0].mxu0
  %v616 = vpop.f32.mrb[0].mxu0
  %v617 = vadd.f32 0.0, %v616
  %v618 = vpop.f32.mrb[0].mxu0
  %619 = vmatprep.mubr.bf16.mxu0 0
  %620 = vmatmul.mubr.bf16.gmra.mrb[0].mxu0 %v370
  %v621 = vpop.f32.mrb[0].mxu0
  %v622 = vadd.f32 0.0, %v621
  %v623 = vpop.f32.mrb[0].mxu0
  %v624 = vpop.f32.mrb[0].mxu0
  %v625 = vadd.f32 0.0, %v624
  %v626 = vpop.f32.mrb[0].mxu0
  %627 = vmatprep.mubr.bf16.mxu0 0
  %628 = vmatmul.mubr.bf16.gmra.mrb[0].mxu0 %v371
  %v629 = vpop.f32.mrb[0].mxu0
  %v630 = vadd.f32 0.0, %v629
  %v631 = vpop.f32.mrb[0].mxu0
  %v632 = vpop.f32.mrb[0].mxu0
  %v633 = vadd.f32 0.0, %v632
  %v634 = vpop.f32.mrb[0].mxu0
  %635 = vmatprep.mubr.bf16.mxu0 0
  %636 = vmatmul.mubr.bf16.gmra.mrb[0].mxu0 %v372
  %v637 = vpop.f32.mrb[0].mxu0
  %v638 = vadd.f32 0.0, %v637
  %v639 = vpop.f32.mrb[0].mxu0
  %v640 = vpop.f32.mrb[0].mxu0
  %v641 = vadd.f32 0.0, %v640
  %v642 = vpop.f32.mrb[0].mxu0
  %643 = vmatprep.mubr.bf16.mxu0 0
  %644 = vmatmul.mubr.bf16.gmra.mrb[0].mxu0 %v373
  %v645 = vpop.f32.mrb[0].mxu0
  %v646 = vadd.f32 0.0, %v645
  %v647 = vpop.f32.mrb[0].mxu0
  %v648 = vpop.f32.mrb[0].mxu0
  %v649 = vadd.f32 0.0, %v648
  %v650 = vpop.f32.mrb[0].mxu0
  %651 = vmatprep.mubr.bf16.mxu0 0
  %652 = vmatmul.mubr.bf16.gmra.mrb[0].mxu0 %v374
  %v653 = vpop.f32.mrb[0].mxu0
  %v654 = vadd.f32 0.0, %v653
  %v655 = vpop.f32.mrb[0].mxu0
  %v656 = vpop.f32.mrb[0].mxu0
  %v657 = vadd.f32 0.0, %v656
  %v658 = vpop.f32.mrb[0].mxu0
  %659 = vmatprep.mubr.bf16.mxu0 0
  %660 = vmatmul.mubr.bf16.gmra.mrb[0].mxu0 %v375
  %v661 = vpop.f32.mrb[0].mxu0
  %v662 = vadd.f32 0.0, %v661
  %v663 = vpop.f32.mrb[0].mxu0
  %v664 = vpop.f32.mrb[0].mxu0
  %v665 = vadd.f32 0.0, %v664
  %v666 = vpop.f32.mrb[0].mxu0
  %667 = vmatprep.mubr.bf16.mxu0 0
  %668 = vmatmul.mubr.bf16.gmra.mrb[0].mxu0 %v376
  %v669 = vpop.f32.mrb[0].mxu0
  %v670 = vadd.f32 0.0, %v669
  %v671 = vpop.f32.mrb[0].mxu0
  %v672 = vpop.f32.mrb[0].mxu0
  %v673 = vadd.f32 0.0, %v672
  %v674 = vpop.f32.mrb[0].mxu0
  %675 = vmatprep.mubr.bf16.mxu0 0
  %676 = vmatmul.mubr.bf16.gmra.mrb[0].mxu0 %v377
  %v677 = vpop.f32.mrb[0].mxu0
  %v678 = vadd.f32 0.0, %v677
  %v679 = vpop.f32.mrb[0].mxu0
  %v680 = vpop.f32.mrb[0].mxu0
  %v681 = vadd.f32 0.0, %v680
  %v682 = vpop.f32.mrb[0].mxu0
  %683 = vmatprep.mubr.bf16.mxu0 0
  %684 = vmatmul.mubr.bf16.gmra.mrb[0].mxu0 %v378
  %v685 = vpop.f32.mrb[0].mxu0
  %v686 = vadd.f32 0.0, %v685
  %v687 = vpop.f32.mrb[0].mxu0
  %v688 = vpop.f32.mrb[0].mxu0
  %v689 = vadd.f32 0.0, %v688
  %v690 = vpop.f32.mrb[0].mxu0
  %691 = vmatprep.mubr.bf16.mxu0 0
  %692 = vmatmul.mubr.bf16.gmra.mrb[0].mxu0 %v379
  %v693 = vpop.f32.mrb[0].mxu0
  %v694 = vadd.f32 0.0, %v693
  %v695 = vpop.f32.mrb[0].mxu0
  %v696 = vpop.f32.mrb[0].mxu0
  %v697 = vadd.f32 0.0, %v696
  %v698 = vpop.f32.mrb[0].mxu0
  %699 = vmatprep.mubr.bf16.mxu0 0
  %700 = vmatmul.mubr.bf16.gmra.mrb[0].mxu0 %v380
  %v701 = vpop.f32.mrb[0].mxu0
  %v702 = vadd.f32 0.0, %v701
  %v703 = vpop.f32.mrb[0].mxu0
  %v704 = vpop.f32.mrb[0].mxu0
  %v705 = vadd.f32 0.0, %v704
  %v706 = vpop.f32.mrb[0].mxu0
  %707 = vmatprep.mubr.bf16.mxu0 0
  %708 = vmatmul.mubr.bf16.gmra.mrb[0].mxu0 %v381
  %v709 = vpop.f32.mrb[0].mxu0
  %v710 = vadd.f32 0.0, %v709
  %v711 = vpop.f32.mrb[0].mxu0
  %v712 = vpop.f32.mrb[0].mxu0
  %v713 = vadd.f32 0.0, %v712
  %v714 = vpop.f32.mrb[0].mxu0
  %715 = vmatprep.mubr.bf16.mxu0 0
  %716 = vmatmul.mubr.bf16.gmra.mrb[0].mxu0 %v382
  %v717 = vpop.f32.mrb[0].mxu0
  %v718 = vadd.f32 0.0, %v717
  %v719 = vpop.f32.mrb[0].mxu0
  %v720 = vpop.f32.mrb[0].mxu0
  %v721 = vadd.f32 0.0, %v720
  %v722 = vpop.f32.mrb[0].mxu0
  %723 = vmatprep.mubr.bf16.mxu0 0
  %724 = vmatmul.mubr.bf16.gmra.mrb[0].mxu0 %v383
  %v725 = vpop.f32.mrb[0].mxu0
  %v726 = vadd.f32 0.0, %v725
  %v727 = vpop.f32.mrb[0].mxu0
  %v728 = vpop.f32.mrb[0].mxu0
  %v729 = vadd.f32 0.0, %v728
  %v730 = vpop.f32.mrb[0].mxu0
  %731 = vmatprep.mubr.bf16.mxu0 0
  %732 = vmatmul.mubr.bf16.gmra.mrb[0].mxu0 %v384
  %v733 = vpop.f32.mrb[0].mxu0
  %v734 = vadd.f32 0.0, %v733
  %v735 = vpop.f32.mrb[0].mxu0
  %v736 = vpop.f32.mrb[0].mxu0
  %v737 = vadd.f32 0.0, %v736
  %v738 = vpop.f32.mrb[0].mxu0
  %739 = vmatprep.mubr.bf16.mxu0 0
  %740 = vmatmul.mubr.bf16.gmra.mrb[0].mxu0 %v385
  %v741 = vpop.f32.mrb[0].mxu0
  %v742 = vadd.f32 0.0, %v741
  %v743 = vpop.f32.mrb[0].mxu0
  %v744 = vpop.f32.mrb[0].mxu0
  %v745 = vadd.f32 0.0, %v744
  %v746 = vpop.f32.mrb[0].mxu0
  %747 = vmatprep.mubr.bf16.mxu0 0
  %748 = vmatmul.mubr.bf16.gmra.mrb[0].mxu0 %v386
  %v749 = vpop.f32.mrb[0].mxu0
  %v750 = vadd.f32 0.0, %v749
  %v751 = vpop.f32.mrb[0].mxu0
  %v752 = vpop.f32.mrb[0].mxu0
  %v753 = vadd.f32 0.0, %v752
  %v754 = vpop.f32.mrb[0].mxu0
  %755 = vdwg.mxu0
  %v756 = vadd.f32 %v83, %v502
  %v757 = vadd.f32 %v84, %v505
  %v758 = vadd.f32 %v85, %v510
  %v759 = vadd.f32 %v86, %v513
  %v760 = vadd.f32 %v87, %v518
  %v761 = vadd.f32 %v88, %v521
  %v762 = vadd.f32 %v89, %v526
  %v763 = vadd.f32 %v90, %v529
  %v764 = vadd.f32 %v91, %v534
  %v765 = vadd.f32 %v92, %v537
  %v766 = vadd.f32 %v93, %v542
  %v767 = vadd.f32 %v94, %v545
  %v768 = vadd.f32 %v95, %v550
  %v769 = vadd.f32 %v96, %v553
  %v770 = vadd.f32 %v97, %v558
  %v771 = vadd.f32 %v98, %v561
  %v772 = vadd.f32 %v99, %v566
  %v773 = vadd.f32 %v100, %v569
  %v774 = vadd.f32 %v101, %v574
  %v775 = vadd.f32 %v102, %v577
  %v776 = vadd.f32 %v103, %v582
  %v777 = vadd.f32 %v104, %v585
  %v778 = vadd.f32 %v105, %v590
  %v779 = vadd.f32 %v106, %v593
  %v780 = vadd.f32 %v107, %v598
  %v781 = vadd.f32 %v108, %v601
  %v782 = vadd.f32 %v109, %v606
  %v783 = vadd.f32 %v110, %v609
  %v784 = vadd.f32 %v111, %v614
  %v785 = vadd.f32 %v112, %v617
  %v786 = vadd.f32 %v113, %v622
  %v787 = vadd.f32 %v114, %v625
  %v788 = vadd.f32 %v115, %v630
  %v789 = vadd.f32 %v116, %v633
  %v790 = vadd.f32 %v117, %v638
  %v791 = vadd.f32 %v118, %v641
  %v792 = vadd.f32 %v119, %v646
  %v793 = vadd.f32 %v120, %v649
  %v794 = vadd.f32 %v121, %v654
  %v795 = vadd.f32 %v122, %v657
  %v796 = vadd.f32 %v123, %v662
  %v797 = vadd.f32 %v124, %v665
  %v798 = vadd.f32 %v125, %v670
  %v799 = vadd.f32 %v126, %v673
  %v800 = vadd.f32 %v127, %v678
  %v801 = vadd.f32 %v128, %v681
  %v802 = vadd.f32 %v129, %v686
  %v803 = vadd.f32 %v130, %v689
  %v804 = vadd.f32 %v131, %v694
  %v805 = vadd.f32 %v132, %v697
  %v806 = vadd.f32 %v133, %v702
  %v807 = vadd.f32 %v134, %v705
  %v808 = vadd.f32 %v135, %v710
  %v809 = vadd.f32 %v136, %v713
  %v810 = vadd.f32 %v137, %v718
  %v811 = vadd.f32 %v138, %v721
  %v812 = vadd.f32 %v139, %v726
  %v813 = vadd.f32 %v140, %v729
  %v814 = vadd.f32 %v141, %v734
  %v815 = vadd.f32 %v142, %v737
  %v816 = vadd.f32 %v143, %v742
  %v817 = vadd.f32 %v144, %v745
  %v818 = vadd.f32 %v145, %v750
  %v819 = vadd.f32 %v146, %v753
  %820 = vst [vmem:[#allocation2] sm:$0xff] %v756
  %821 = vst [vmem:[#allocation2 + $0x8] sm:$0xff] %v757
  %822 = vst [vmem:[#allocation2 + $0x10] sm:$0xff] %v758
  %823 = vst [vmem:[#allocation2 + $0x18] sm:$0xff] %v759
  %824 = vst [vmem:[#allocation2 + $0x20] sm:$0xff] %v760
  %825 = vst [vmem:[#allocation2 + $0x28] sm:$0xff] %v761
  %826 = vst [vmem:[#allocation2 + $0x30] sm:$0xff] %v762
  %827 = vst [vmem:[#allocation2 + $0x38] sm:$0xff] %v763
  %828 = vst [vmem:[#allocation2 + $0x40] sm:$0xff] %v764
  %829 = vst [vmem:[#allocation2 + $0x48] sm:$0xff] %v765
  %830 = vst [vmem:[#allocation2 + $0x50] sm:$0xff] %v766
  %831 = vst [vmem:[#allocation2 + $0x58] sm:$0xff] %v767
  %832 = vst [vmem:[#allocation2 + $0x60] sm:$0xff] %v768
  %833 = vst [vmem:[#allocation2 + $0x68] sm:$0xff] %v769
  %834 = vst [vmem:[#allocation2 + $0x70] sm:$0xff] %v770
  %835 = vst [vmem:[#allocation2 + $0x78] sm:$0xff] %v771
  %836 = vst [vmem:[#allocation2 + $0x80] sm:$0xff] %v772
  %837 = vst [vmem:[#allocation2 + $0x88] sm:$0xff] %v773
  %838 = vst [vmem:[#allocation2 + $0x90] sm:$0xff] %v774
  %839 = vst [vmem:[#allocation2 + $0x98] sm:$0xff] %v775
  %840 = vst [vmem:[#allocation2 + $0xa0] sm:$0xff] %v776
  %841 = vst [vmem:[#allocation2 + $0xa8] sm:$0xff] %v777
  %842 = vst [vmem:[#allocation2 + $0xb0] sm:$0xff] %v778
  %843 = vst [vmem:[#allocation2 + $0xb8] sm:$0xff] %v779
  %844 = vst [vmem:[#allocation2 + $0xc0] sm:$0xff] %v780
  %845 = vst [vmem:[#allocation2 + $0xc8] sm:$0xff] %v781
  %846 = vst [vmem:[#allocation2 + $0xd0] sm:$0xff] %v782
  %847 = vst [vmem:[#allocation2 + $0xd8] sm:$0xff] %v783
  %848 = vst [vmem:[#allocation2 + $0xe0] sm:$0xff] %v784
  %849 = vst [vmem:[#allocation2 + $0xe8] sm:$0xff] %v785
  %850 = vst [vmem:[#allocation2 + $0xf0] sm:$0xff] %v786
  %851 = vst [vmem:[#allocation2 + $0xf8] sm:$0xff] %v787
  %852 = vst [vmem:[#allocation2 + $0x100] sm:$0xff] %v788
  %853 = vst [vmem:[#allocation2 + $0x108] sm:$0xff] %v789
  %854 = vst [vmem:[#allocation2 + $0x110] sm:$0xff] %v790
  %855 = vst [vmem:[#allocation2 + $0x118] sm:$0xff] %v791
  %856 = vst [vmem:[#allocation2 + $0x120] sm:$0xff] %v792
  %857 = vst [vmem:[#allocation2 + $0x128] sm:$0xff] %v793
  %858 = vst [vmem:[#allocation2 + $0x130] sm:$0xff] %v794
  %859 = vst [vmem:[#allocation2 + $0x138] sm:$0xff] %v795
  %860 = vst [vmem:[#allocation2 + $0x140] sm:$0xff] %v796
  %861 = vst [vmem:[#allocation2 + $0x148] sm:$0xff] %v797
  %862 = vst [vmem:[#allocation2 + $0x150] sm:$0xff] %v798
  %863 = vst [vmem:[#allocation2 + $0x158] sm:$0xff] %v799
  %864 = vst [vmem:[#allocation2 + $0x160] sm:$0xff] %v800
  %865 = vst [vmem:[#allocation2 + $0x168] sm:$0xff] %v801
  %866 = vst [vmem:[#allocation2 + $0x170] sm:$0xff] %v802
  %867 = vst [vmem:[#allocation2 + $0x178] sm:$0xff] %v803
  %868 = vst [vmem:[#allocation2 + $0x180] sm:$0xff] %v804
  %869 = vst [vmem:[#allocation2 + $0x188] sm:$0xff] %v805
  %870 = vst [vmem:[#allocation2 + $0x190] sm:$0xff] %v806
  %871 = vst [vmem:[#allocation2 + $0x198] sm:$0xff] %v807
  %872 = vst [vmem:[#allocation2 + $0x1a0] sm:$0xff] %v808
  %873 = vst [vmem:[#allocation2 + $0x1a8] sm:$0xff] %v809
  %874 = vst [vmem:[#allocation2 + $0x1b0] sm:$0xff] %v810
  %875 = vst [vmem:[#allocation2 + $0x1b8] sm:$0xff] %v811
  %876 = vst [vmem:[#allocation2 + $0x1c0] sm:$0xff] %v812
  %877 = vst [vmem:[#allocation2 + $0x1c8] sm:$0xff] %v813
  %878 = vst [vmem:[#allocation2 + $0x1d0] sm:$0xff] %v814
  %879 = vst [vmem:[#allocation2 + $0x1d8] sm:$0xff] %v815
  %880 = vst [vmem:[#allocation2 + $0x1e0] sm:$0xff] %v816
  %881 = vst [vmem:[#allocation2 + $0x1e8] sm:$0xff] %v817
  %882 = vst [vmem:[#allocation2 + $0x1f0] sm:$0xff] %v818
  %883 = vst [vmem:[#allocation2 + $0x1f8] sm:$0xff] %v819
  // Predicated region
  $region18: #{_lambda_.14} parent=0 // pred_check
    %p884 = pneg %p15
  $region19: #{_lambda_.14} parent=0 // pred_check_branch
    %886 = sbr.rel (%p884) target = $region21
  $region20: #{_lambda_.14} parent=0 // pred_region
    %v887 = vld [vmem:[#allocation2] sm:$0xff]
    %v888 = vld [vmem:[#allocation2 + $0x8] sm:$0xff]
    %v889 = vld [vmem:[#allocation2 + $0x10] sm:$0xff]
    %v890 = vld [vmem:[#allocation2 + $0x18] sm:$0xff]
    %v891 = vld [vmem:[#allocation2 + $0x20] sm:$0xff]
    %v892 = vld [vmem:[#allocation2 + $0x28] sm:$0xff]
    %v893 = vld [vmem:[#allocation2 + $0x30] sm:$0xff]
    %v894 = vld [vmem:[#allocation2 + $0x38] sm:$0xff]
    %v895 = vld [vmem:[#allocation2 + $0x40] sm:$0xff]
    %v896 = vld [vmem:[#allocation2 + $0x48] sm:$0xff]
    %v897 = vld [vmem:[#allocation2 + $0x50] sm:$0xff]
    %v898 = vld [vmem:[#allocation2 + $0x58] sm:$0xff]
    %v899 = vld [vmem:[#allocation2 + $0x60] sm:$0xff]
    %v900 = vld [vmem:[#allocation2 + $0x68] sm:$0xff]
    %v901 = vld [vmem:[#allocation2 + $0x70] sm:$0xff]
    %v902 = vld [vmem:[#allocation2 + $0x78] sm:$0xff]
    %v903 = vld [vmem:[#allocation2 + $0x80] sm:$0xff]
    %v904 = vld [vmem:[#allocation2 + $0x88] sm:$0xff]
    %v905 = vld [vmem:[#allocation2 + $0x90] sm:$0xff]
    %v906 = vld [vmem:[#allocation2 + $0x98] sm:$0xff]
    %v907 = vld [vmem:[#allocation2 + $0xa0] sm:$0xff]
    %v908 = vld [vmem:[#allocation2 + $0xa8] sm:$0xff]
    %v909 = vld [vmem:[#allocation2 + $0xb0] sm:$0xff]
    %v910 = vld [vmem:[#allocation2 + $0xb8] sm:$0xff]
    %v911 = vld [vmem:[#allocation2 + $0xc0] sm:$0xff]
    %v912 = vld [vmem:[#allocation2 + $0xc8] sm:$0xff]
    %v913 = vld [vmem:[#allocation2 + $0xd0] sm:$0xff]
    %v914 = vld [vmem:[#allocation2 + $0xd8] sm:$0xff]
    %v915 = vld [vmem:[#allocation2 + $0xe0] sm:$0xff]
    %v916 = vld [vmem:[#allocation2 + $0xe8] sm:$0xff]
    %v917 = vld [vmem:[#allocation2 + $0xf0] sm:$0xff]
    %v918 = vld [vmem:[#allocation2 + $0xf8] sm:$0xff]
    %v919 = vld [vmem:[#allocation2 + $0x100] sm:$0xff]
    %v920 = vld [vmem:[#allocation2 + $0x108] sm:$0xff]
    %v921 = vld [vmem:[#allocation2 + $0x110] sm:$0xff]
    %v922 = vld [vmem:[#allocation2 + $0x118] sm:$0xff]
    %v923 = vld [vmem:[#allocation2 + $0x120] sm:$0xff]
    %v924 = vld [vmem:[#allocation2 + $0x128] sm:$0xff]
    %v925 = vld [vmem:[#allocation2 + $0x130] sm:$0xff]
    %v926 = vld [vmem:[#allocation2 + $0x138] sm:$0xff]
    %v927 = vld [vmem:[#allocation2 + $0x140] sm:$0xff]
    %v928 = vld [vmem:[#allocation2 + $0x148] sm:$0xff]
    %v929 = vld [vmem:[#allocation2 + $0x150] sm:$0xff]
    %v930 = vld [vmem:[#allocation2 + $0x158] sm:$0xff]
    %v931 = vld [vmem:[#allocation2 + $0x160] sm:$0xff]
    %v932 = vld [vmem:[#allocation2 + $0x168] sm:$0xff]
    %v933 = vld [vmem:[#allocation2 + $0x170] sm:$0xff]
    %v934 = vld [vmem:[#allocation2 + $0x178] sm:$0xff]
    %v935 = vld [vmem:[#allocation2 + $0x180] sm:$0xff]
    %v936 = vld [vmem:[#allocation2 + $0x188] sm:$0xff]
    %v937 = vld [vmem:[#allocation2 + $0x190] sm:$0xff]
    %v938 = vld [vmem:[#allocation2 + $0x198] sm:$0xff]
    %v939 = vld [vmem:[#allocation2 + $0x1a0] sm:$0xff]
    %v940 = vld [vmem:[#allocation2 + $0x1a8] sm:$0xff]
    %v941 = vld [vmem:[#allocation2 + $0x1b0] sm:$0xff]
    %v942 = vld [vmem:[#allocation2 + $0x1b8] sm:$0xff]
    %v943 = vld [vmem:[#allocation2 + $0x1c0] sm:$0xff]
    %v944 = vld [vmem:[#allocation2 + $0x1c8] sm:$0xff]
    %v945 = vld [vmem:[#allocation2 + $0x1d0] sm:$0xff]
    %v946 = vld [vmem:[#allocation2 + $0x1d8] sm:$0xff]
    %v947 = vld [vmem:[#allocation2 + $0x1e0] sm:$0xff]
    %v948 = vld [vmem:[#allocation2 + $0x1e8] sm:$0xff]
    %v949 = vld [vmem:[#allocation2 + $0x1f0] sm:$0xff]
    %v950 = vld [vmem:[#allocation2 + $0x1f8] sm:$0xff]
    %v951 = vld [vmem:[%s2] sm:$0x1]
    %v953 = vlaneseq
    %v954 = vshrl.u32 %v953, 7
    %v955 = vsub.s32 0, %v954
    %v956 = vrot.slane %v951, %v955
    %v958 = vadd.f32 %v887, %v956
    %v959 = vadd.f32 %v888, %v956
    %v960 = vadd.f32 %v889, %v956
    %v961 = vadd.f32 %v890, %v956
    %v962 = vadd.f32 %v891, %v956
    %v963 = vadd.f32 %v892, %v956
    %v964 = vadd.f32 %v893, %v956
    %v965 = vadd.f32 %v894, %v956
    %v966 = vadd.f32 %v895, %v956
    %v967 = vadd.f32 %v896, %v956
    %v968 = vadd.f32 %v897, %v956
    %v969 = vadd.f32 %v898, %v956
    %v970 = vadd.f32 %v899, %v956
    %v971 = vadd.f32 %v900, %v956
    %v972 = vadd.f32 %v901, %v956
    %v973 = vadd.f32 %v902, %v956
    %v974 = vadd.f32 %v903, %v956
    %v975 = vadd.f32 %v904, %v956
    %v976 = vadd.f32 %v905, %v956
    %v977 = vadd.f32 %v906, %v956
    %v978 = vadd.f32 %v907, %v956
    %v979 = vadd.f32 %v908, %v956
    %v980 = vadd.f32 %v909, %v956
    %v981 = vadd.f32 %v910, %v956
    %v982 = vadd.f32 %v911, %v956
    %v983 = vadd.f32 %v912, %v956
    %v984 = vadd.f32 %v913, %v956
    %v985 = vadd.f32 %v914, %v956
    %v986 = vadd.f32 %v915, %v956
    %v987 = vadd.f32 %v916, %v956
    %v988 = vadd.f32 %v917, %v956
    %v989 = vadd.f32 %v918, %v956
    %v990 = vadd.f32 %v919, %v956
    %v991 = vadd.f32 %v920, %v956
    %v992 = vadd.f32 %v921, %v956
    %v993 = vadd.f32 %v922, %v956
    %v994 = vadd.f32 %v923, %v956
    %v995 = vadd.f32 %v924, %v956
    %v996 = vadd.f32 %v925, %v956
    %v997 = vadd.f32 %v926, %v956
    %v998 = vadd.f32 %v927, %v956
    %v999 = vadd.f32 %v928, %v956
    %v1000 = vadd.f32 %v929, %v956
    %v1001 = vadd.f32 %v930, %v956
    %v1002 = vadd.f32 %v931, %v956
    %v1003 = vadd.f32 %v932, %v956
    %v1004 = vadd.f32 %v933, %v956
    %v1005 = vadd.f32 %v934, %v956
    %v1006 = vadd.f32 %v935, %v956
    %v1007 = vadd.f32 %v936, %v956
    %v1008 = vadd.f32 %v937, %v956
    %v1009 = vadd.f32 %v938, %v956
    %v1010 = vadd.f32 %v939, %v956
    %v1011 = vadd.f32 %v940, %v956
    %v1012 = vadd.f32 %v941, %v956
    %v1013 = vadd.f32 %v942, %v956
    %v1014 = vadd.f32 %v943, %v956
    %v1015 = vadd.f32 %v944, %v956
    %v1016 = vadd.f32 %v945, %v956
    %v1017 = vadd.f32 %v946, %v956
    %v1018 = vadd.f32 %v947, %v956
    %v1019 = vadd.f32 %v948, %v956
    %v1020 = vadd.f32 %v949, %v956
    %v1021 = vadd.f32 %v950, %v956
    %vm1022 = vcmp.gt.f32.partialorder %v958, 0.0
    %vm1023 = vcmp.gt.f32.partialorder %v959, 0.0
    %vm1024 = vcmp.gt.f32.partialorder %v960, 0.0
    %vm1025 = vcmp.gt.f32.partialorder %v961, 0.0
    %vm1026 = vcmp.gt.f32.partialorder %v962, 0.0
    %vm1027 = vcmp.gt.f32.partialorder %v963, 0.0
    %vm1028 = vcmp.gt.f32.partialorder %v964, 0.0
    %vm1029 = vcmp.gt.f32.partialorder %v965, 0.0
    %vm1030 = vcmp.gt.f32.partialorder %v966, 0.0
    %vm1031 = vcmp.gt.f32.partialorder %v967, 0.0
    %vm1032 = vcmp.gt.f32.partialorder %v968, 0.0
    %vm1033 = vcmp.gt.f32.partialorder %v969, 0.0
    %vm1034 = vcmp.gt.f32.partialorder %v970, 0.0
    %vm1035 = vcmp.gt.f32.partialorder %v971, 0.0
    %vm1036 = vcmp.gt.f32.partialorder %v972, 0.0
    %vm1037 = vcmp.gt.f32.partialorder %v973, 0.0
    %vm1038 = vcmp.gt.f32.partialorder %v974, 0.0
    %vm1039 = vcmp.gt.f32.partialorder %v975, 0.0
    %vm1040 = vcmp.gt.f32.partialorder %v976, 0.0
    %vm1041 = vcmp.gt.f32.partialorder %v977, 0.0
    %vm1042 = vcmp.gt.f32.partialorder %v978, 0.0
    %vm1043 = vcmp.gt.f32.partialorder %v979, 0.0
    %vm1044 = vcmp.gt.f32.partialorder %v980, 0.0
    %vm1045 = vcmp.gt.f32.partialorder %v981, 0.0
    %vm1046 = vcmp.gt.f32.partialorder %v982, 0.0
    %vm1047 = vcmp.gt.f32.partialorder %v983, 0.0
    %vm1048 = vcmp.gt.f32.partialorder %v984, 0.0
    %vm1049 = vcmp.gt.f32.partialorder %v985, 0.0
    %vm1050 = vcmp.gt.f32.partialorder %v986, 0.0
    %vm1051 = vcmp.gt.f32.partialorder %v987, 0.0
    %vm1052 = vcmp.gt.f32.partialorder %v988, 0.0
    %vm1053 = vcmp.gt.f32.partialorder %v989, 0.0
    %vm1054 = vcmp.gt.f32.partialorder %v990, 0.0
    %vm1055 = vcmp.gt.f32.partialorder %v991, 0.0
    %vm1056 = vcmp.gt.f32.partialorder %v992, 0.0
    %vm1057 = vcmp.gt.f32.partialorder %v993, 0.0
    %vm1058 = vcmp.gt.f32.partialorder %v994, 0.0
    %vm1059 = vcmp.gt.f32.partialorder %v995, 0.0
    %vm1060 = vcmp.gt.f32.partialorder %v996, 0.0
    %vm1061 = vcmp.gt.f32.partialorder %v997, 0.0
    %vm1062 = vcmp.gt.f32.partialorder %v998, 0.0
    %vm1063 = vcmp.gt.f32.partialorder %v999, 0.0
    %vm1064 = vcmp.gt.f32.partialorder %v1000, 0.0
    %vm1065 = vcmp.gt.f32.partialorder %v1001, 0.0
    %vm1066 = vcmp.gt.f32.partialorder %v1002, 0.0
    %vm1067 = vcmp.gt.f32.partialorder %v1003, 0.0
    %vm1068 = vcmp.gt.f32.partialorder %v1004, 0.0
    %vm1069 = vcmp.gt.f32.partialorder %v1005, 0.0
    %vm1070 = vcmp.gt.f32.partialorder %v1006, 0.0
    %vm1071 = vcmp.gt.f32.partialorder %v1007, 0.0
    %vm1072 = vcmp.gt.f32.partialorder %v1008, 0.0
    %vm1073 = vcmp.gt.f32.partialorder %v1009, 0.0
    %vm1074 = vcmp.gt.f32.partialorder %v1010, 0.0
    %vm1075 = vcmp.gt.f32.partialorder %v1011, 0.0
    %vm1076 = vcmp.gt.f32.partialorder %v1012, 0.0
    %vm1077 = vcmp.gt.f32.partialorder %v1013, 0.0
    %vm1078 = vcmp.gt.f32.partialorder %v1014, 0.0
    %vm1079 = vcmp.gt.f32.partialorder %v1015, 0.0
    %vm1080 = vcmp.gt.f32.partialorder %v1016, 0.0
    %vm1081 = vcmp.gt.f32.partialorder %v1017, 0.0
    %vm1082 = vcmp.gt.f32.partialorder %v1018, 0.0
    %vm1083 = vcmp.gt.f32.partialorder %v1019, 0.0
    %vm1084 = vcmp.gt.f32.partialorder %v1020, 0.0
    %vm1085 = vcmp.gt.f32.partialorder %v1021, 0.0
    %v1086 = vmul.f32 %v958, 0.1
    %v1087 = vmul.f32 %v959, 0.1
    %v1088 = vmul.f32 %v960, 0.1
    %v1089 = vmul.f32 %v961, 0.1
    %v1090 = vmul.f32 %v962, 0.1
    %v1091 = vmul.f32 %v963, 0.1
    %v1092 = vmul.f32 %v964, 0.1
    %v1093 = vmul.f32 %v965, 0.1
    %v1094 = vmul.f32 %v966, 0.1
    %v1095 = vmul.f32 %v967, 0.1
    %v1096 = vmul.f32 %v968, 0.1
    %v1097 = vmul.f32 %v969, 0.1
    %v1098 = vmul.f32 %v970, 0.1
    %v1099 = vmul.f32 %v971, 0.1
    %v1100 = vmul.f32 %v972, 0.1
    %v1101 = vmul.f32 %v973, 0.1
    %v1102 = vmul.f32 %v974, 0.1
    %v1103 = vmul.f32 %v975, 0.1
    %v1104 = vmul.f32 %v976, 0.1
    %v1105 = vmul.f32 %v977, 0.1
    %v1106 = vmul.f32 %v978, 0.1
    %v1107 = vmul.f32 %v979, 0.1
    %v1108 = vmul.f32 %v980, 0.1
    %v1109 = vmul.f32 %v981, 0.1
    %v1110 = vmul.f32 %v982, 0.1
    %v1111 = vmul.f32 %v983, 0.1
    %v1112 = vmul.f32 %v984, 0.1
    %v1113 = vmul.f32 %v985, 0.1
    %v1114 = vmul.f32 %v986, 0.1
    %v1115 = vmul.f32 %v987, 0.1
    %v1116 = vmul.f32 %v988, 0.1
    %v1117 = vmul.f32 %v989, 0.1
    %v1118 = vmul.f32 %v990, 0.1
    %v1119 = vmul.f32 %v991, 0.1
    %v1120 = vmul.f32 %v992, 0.1
    %v1121 = vmul.f32 %v993, 0.1
    %v1122 = vmul.f32 %v994, 0.1
    %v1123 = vmul.f32 %v995, 0.1
    %v1124 = vmul.f32 %v996, 0.1
    %v1125 = vmul.f32 %v997, 0.1
    %v1126 = vmul.f32 %v998, 0.1
    %v1127 = vmul.f32 %v999, 0.1
    %v1128 = vmul.f32 %v1000, 0.1
    %v1129 = vmul.f32 %v1001, 0.1
    %v1130 = vmul.f32 %v1002, 0.1
    %v1131 = vmul.f32 %v1003, 0.1
    %v1132 = vmul.f32 %v1004, 0.1
    %v1133 = vmul.f32 %v1005, 0.1
    %v1134 = vmul.f32 %v1006, 0.1
    %v1135 = vmul.f32 %v1007, 0.1
    %v1136 = vmul.f32 %v1008, 0.1
    %v1137 = vmul.f32 %v1009, 0.1
    %v1138 = vmul.f32 %v1010, 0.1
    %v1139 = vmul.f32 %v1011, 0.1
    %v1140 = vmul.f32 %v1012, 0.1
    %v1141 = vmul.f32 %v1013, 0.1
    %v1142 = vmul.f32 %v1014, 0.1
    %v1143 = vmul.f32 %v1015, 0.1
    %v1144 = vmul.f32 %v1016, 0.1
    %v1145 = vmul.f32 %v1017, 0.1
    %v1146 = vmul.f32 %v1018, 0.1
    %v1147 = vmul.f32 %v1019, 0.1
    %v1148 = vmul.f32 %v1020, 0.1
    %v1149 = vmul.f32 %v1021, 0.1
    %v1150 = vsel %vm1022, %v958, %v1086
    %v1151 = vsel %vm1023, %v959, %v1087
    %v1152 = vsel %vm1024, %v960, %v1088
    %v1153 = vsel %vm1025, %v961, %v1089
    %v1154 = vsel %vm1026, %v962, %v1090
    %v1155 = vsel %vm1027, %v963, %v1091
    %v1156 = vsel %vm1028, %v964, %v1092
    %v1157 = vsel %vm1029, %v965, %v1093
    %v1158 = vsel %vm1030, %v966, %v1094
    %v1159 = vsel %vm1031, %v967, %v1095
    %v1160 = vsel %vm1032, %v968, %v1096
    %v1161 = vsel %vm1033, %v969, %v1097
    %v1162 = vsel %vm1034, %v970, %v1098
    %v1163 = vsel %vm1035, %v971, %v1099
    %v1164 = vsel %vm1036, %v972, %v1100
    %v1165 = vsel %vm1037, %v973, %v1101
    %v1166 = vsel %vm1038, %v974, %v1102
    %v1167 = vsel %vm1039, %v975, %v1103
    %v1168 = vsel %vm1040, %v976, %v1104
    %v1169 = vsel %vm1041, %v977, %v1105
    %v1170 = vsel %vm1042, %v978, %v1106
    %v1171 = vsel %vm1043, %v979, %v1107
    %v1172 = vsel %vm1044, %v980, %v1108
    %v1173 = vsel %vm1045, %v981, %v1109
    %v1174 = vsel %vm1046, %v982, %v1110
    %v1175 = vsel %vm1047, %v983, %v1111
    %v1176 = vsel %vm1048, %v984, %v1112
    %v1177 = vsel %vm1049, %v985, %v1113
    %v1178 = vsel %vm1050, %v986, %v1114
    %v1179 = vsel %vm1051, %v987, %v1115
    %v1180 = vsel %vm1052, %v988, %v1116
    %v1181 = vsel %vm1053, %v989, %v1117
    %v1182 = vsel %vm1054, %v990, %v1118
    %v1183 = vsel %vm1055, %v991, %v1119
    %v1184 = vsel %vm1056, %v992, %v1120
    %v1185 = vsel %vm1057, %v993, %v1121
    %v1186 = vsel %vm1058, %v994, %v1122
    %v1187 = vsel %vm1059, %v995, %v1123
    %v1188 = vsel %vm1060, %v996, %v1124
    %v1189 = vsel %vm1061, %v997, %v1125
    %v1190 = vsel %vm1062, %v998, %v1126
    %v1191 = vsel %vm1063, %v999, %v1127
    %v1192 = vsel %vm1064, %v1000, %v1128
    %v1193 = vsel %vm1065, %v1001, %v1129
    %v1194 = vsel %vm1066, %v1002, %v1130
    %v1195 = vsel %vm1067, %v1003, %v1131
    %v1196 = vsel %vm1068, %v1004, %v1132
    %v1197 = vsel %vm1069, %v1005, %v1133
    %v1198 = vsel %vm1070, %v1006, %v1134
    %v1199 = vsel %vm1071, %v1007, %v1135
    %v1200 = vsel %vm1072, %v1008, %v1136
    %v1201 = vsel %vm1073, %v1009, %v1137
    %v1202 = vsel %vm1074, %v1010, %v1138
    %v1203 = vsel %vm1075, %v1011, %v1139
    %v1204 = vsel %vm1076, %v1012, %v1140
    %v1205 = vsel %vm1077, %v1013, %v1141
    %v1206 = vsel %vm1078, %v1014, %v1142
    %v1207 = vsel %vm1079, %v1015, %v1143
    %v1208 = vsel %vm1080, %v1016, %v1144
    %v1209 = vsel %vm1081, %v1017, %v1145
    %v1210 = vsel %vm1082, %v1018, %v1146
    %v1211 = vsel %vm1083, %v1019, %v1147
    %v1212 = vsel %vm1084, %v1020, %v1148
    %v1213 = vsel %vm1085, %v1021, %v1149
    %v1214 = vpack.c.bf16 %v1151, %v1150
    %v1215 = vpack.c.bf16 %v1153, %v1152
    %v1216 = vpack.c.bf16 %v1155, %v1154
    %v1217 = vpack.c.bf16 %v1157, %v1156
    %v1218 = vpack.c.bf16 %v1159, %v1158
    %v1219 = vpack.c.bf16 %v1161, %v1160
    %v1220 = vpack.c.bf16 %v1163, %v1162
    %v1221 = vpack.c.bf16 %v1165, %v1164
    %v1222 = vpack.c.bf16 %v1167, %v1166
    %v1223 = vpack.c.bf16 %v1169, %v1168
    %v1224 = vpack.c.bf16 %v1171, %v1170
    %v1225 = vpack.c.bf16 %v1173, %v1172
    %v1226 = vpack.c.bf16 %v1175, %v1174
    %v1227 = vpack.c.bf16 %v1177, %v1176
    %v1228 = vpack.c.bf16 %v1179, %v1178
    %v1229 = vpack.c.bf16 %v1181, %v1180
    %v1230 = vpack.c.bf16 %v1183, %v1182
    %v1231 = vpack.c.bf16 %v1185, %v1184
    %v1232 = vpack.c.bf16 %v1187, %v1186
    %v1233 = vpack.c.bf16 %v1189, %v1188
    %v1234 = vpack.c.bf16 %v1191, %v1190
    %v1235 = vpack.c.bf16 %v1193, %v1192
    %v1236 = vpack.c.bf16 %v1195, %v1194
    %v1237 = vpack.c.bf16 %v1197, %v1196
    %v1238 = vpack.c.bf16 %v1199, %v1198
    %v1239 = vpack.c.bf16 %v1201, %v1200
    %v1240 = vpack.c.bf16 %v1203, %v1202
    %v1241 = vpack.c.bf16 %v1205, %v1204
    %v1242 = vpack.c.bf16 %v1207, %v1206
    %v1243 = vpack.c.bf16 %v1209, %v1208
    %v1244 = vpack.c.bf16 %v1211, %v1210
    %v1245 = vpack.c.bf16 %v1213, %v1212
    %v1278 = vunpack.c.l.b16 %v1214
    %v1279 = vunpack.c.h.b16 %v1214
    %v1280 = vunpack.c.l.b16 %v1215
    %v1281 = vunpack.c.h.b16 %v1215
    %v1282 = vunpack.c.l.b16 %v1216
    %v1283 = vunpack.c.h.b16 %v1216
    %v1284 = vunpack.c.l.b16 %v1217
    %v1285 = vunpack.c.h.b16 %v1217
    %v1286 = vunpack.c.l.b16 %v1218
    %v1287 = vunpack.c.h.b16 %v1218
    %v1288 = vunpack.c.l.b16 %v1219
    %v1289 = vunpack.c.h.b16 %v1219
    %v1290 = vunpack.c.l.b16 %v1220
    %v1291 = vunpack.c.h.b16 %v1220
    %v1292 = vunpack.c.l.b16 %v1221
    %v1293 = vunpack.c.h.b16 %v1221
    %v1294 = vunpack.c.l.b16 %v1222
    %v1295 = vunpack.c.h.b16 %v1222
    %v1296 = vunpack.c.l.b16 %v1223
    %v1297 = vunpack.c.h.b16 %v1223
    %v1298 = vunpack.c.l.b16 %v1224
    %v1299 = vunpack.c.h.b16 %v1224
    %v1300 = vunpack.c.l.b16 %v1225
    %v1301 = vunpack.c.h.b16 %v1225
    %v1302 = vunpack.c.l.b16 %v1226
    %v1303 = vunpack.c.h.b16 %v1226
    %v1304 = vunpack.c.l.b16 %v1227
    %v1305 = vunpack.c.h.b16 %v1227
    %v1306 = vunpack.c.l.b16 %v1228
    %v1307 = vunpack.c.h.b16 %v1228
    %v1308 = vunpack.c.l.b16 %v1229
    %v1309 = vunpack.c.h.b16 %v1229
    %v1310 = vunpack.c.l.b16 %v1230
    %v1311 = vunpack.c.h.b16 %v1230
    %v1312 = vunpack.c.l.b16 %v1231
    %v1313 = vunpack.c.h.b16 %v1231
    %v1314 = vunpack.c.l.b16 %v1232
    %v1315 = vunpack.c.h.b16 %v1232
    %v1316 = vunpack.c.l.b16 %v1233
    %v1317 = vunpack.c.h.b16 %v1233
    %v1318 = vunpack.c.l.b16 %v1234
    %v1319 = vunpack.c.h.b16 %v1234
    %v1320 = vunpack.c.l.b16 %v1235
    %v1321 = vunpack.c.h.b16 %v1235
    %v1322 = vunpack.c.l.b16 %v1236
    %v1323 = vunpack.c.h.b16 %v1236
    %v1324 = vunpack.c.l.b16 %v1237
    %v1325 = vunpack.c.h.b16 %v1237
    %v1326 = vunpack.c.l.b16 %v1238
    %v1327 = vunpack.c.h.b16 %v1238
    %v1328 = vunpack.c.l.b16 %v1239
    %v1329 = vunpack.c.h.b16 %v1239
    %v1330 = vunpack.c.l.b16 %v1240
    %v1331 = vunpack.c.h.b16 %v1240
    %v1332 = vunpack.c.l.b16 %v1241
    %v1333 = vunpack.c.h.b16 %v1241
    %v1334 = vunpack.c.l.b16 %v1242
    %v1335 = vunpack.c.h.b16 %v1242
    %v1336 = vunpack.c.l.b16 %v1243
    %v1337 = vunpack.c.h.b16 %v1243
    %v1338 = vunpack.c.l.b16 %v1244
    %v1339 = vunpack.c.h.b16 %v1244
    %v1340 = vunpack.c.l.b16 %v1245
    %v1341 = vunpack.c.h.b16 %v1245
    %v1342 = vpack.c.b16 %v1278, %v1278
    %v1343 = vpack.c.b16 %v1279, %v1279
    %v1344 = vpack.c.b16 %v1280, %v1280
    %v1345 = vpack.c.b16 %v1281, %v1281
    %v1346 = vpack.c.b16 %v1282, %v1282
    %v1347 = vpack.c.b16 %v1283, %v1283
    %v1348 = vpack.c.b16 %v1284, %v1284
    %v1349 = vpack.c.b16 %v1285, %v1285
    %v1350 = vpack.c.b16 %v1286, %v1286
    %v1351 = vpack.c.b16 %v1287, %v1287
    %v1352 = vpack.c.b16 %v1288, %v1288
    %v1353 = vpack.c.b16 %v1289, %v1289
    %v1354 = vpack.c.b16 %v1290, %v1290
    %v1355 = vpack.c.b16 %v1291, %v1291
    %v1356 = vpack.c.b16 %v1292, %v1292
    %v1357 = vpack.c.b16 %v1293, %v1293
    %v1358 = vpack.c.b16 %v1294, %v1294
    %v1359 = vpack.c.b16 %v1295, %v1295
    %v1360 = vpack.c.b16 %v1296, %v1296
    %v1361 = vpack.c.b16 %v1297, %v1297
    %v1362 = vpack.c.b16 %v1298, %v1298
    %v1363 = vpack.c.b16 %v1299, %v1299
    %v1364 = vpack.c.b16 %v1300, %v1300
    %v1365 = vpack.c.b16 %v1301, %v1301
    %v1366 = vpack.c.b16 %v1302, %v1302
    %v1367 = vpack.c.b16 %v1303, %v1303
    %v1368 = vpack.c.b16 %v1304, %v1304
    %v1369 = vpack.c.b16 %v1305, %v1305
    %v1370 = vpack.c.b16 %v1306, %v1306
    %v1371 = vpack.c.b16 %v1307, %v1307
    %v1372 = vpack.c.b16 %v1308, %v1308
    %v1373 = vpack.c.b16 %v1309, %v1309
    %v1374 = vpack.c.b16 %v1310, %v1310
    %v1375 = vpack.c.b16 %v1311, %v1311
    %v1376 = vpack.c.b16 %v1312, %v1312
    %v1377 = vpack.c.b16 %v1313, %v1313
    %v1378 = vpack.c.b16 %v1314, %v1314
    %v1379 = vpack.c.b16 %v1315, %v1315
    %v1380 = vpack.c.b16 %v1316, %v1316
    %v1381 = vpack.c.b16 %v1317, %v1317
    %v1382 = vpack.c.b16 %v1318, %v1318
    %v1383 = vpack.c.b16 %v1319, %v1319
    %v1384 = vpack.c.b16 %v1320, %v1320
    %v1385 = vpack.c.b16 %v1321, %v1321
    %v1386 = vpack.c.b16 %v1322, %v1322
    %v1387 = vpack.c.b16 %v1323, %v1323
    %v1388 = vpack.c.b16 %v1324, %v1324
    %v1389 = vpack.c.b16 %v1325, %v1325
    %v1390 = vpack.c.b16 %v1326, %v1326
    %v1391 = vpack.c.b16 %v1327, %v1327
    %v1392 = vpack.c.b16 %v1328, %v1328
    %v1393 = vpack.c.b16 %v1329, %v1329
    %v1394 = vpack.c.b16 %v1330, %v1330
    %v1395 = vpack.c.b16 %v1331, %v1331
    %v1396 = vpack.c.b16 %v1332, %v1332
    %v1397 = vpack.c.b16 %v1333, %v1333
    %v1398 = vpack.c.b16 %v1334, %v1334
    %v1399 = vpack.c.b16 %v1335, %v1335
    %v1400 = vpack.c.b16 %v1336, %v1336
    %v1401 = vpack.c.b16 %v1337, %v1337
    %v1402 = vpack.c.b16 %v1338, %v1338
    %v1403 = vpack.c.b16 %v1339, %v1339
    %v1404 = vpack.c.b16 %v1340, %v1340
    %v1405 = vpack.c.b16 %v1341, %v1341
    %1470 = vst [vmem:[%s3] sm:$0xf] %v1342
    %1471 = vst [vmem:[%s3 + $0x4] sm:$0xf] %v1343
    %1472 = vst [vmem:[%s3 + $0x8] sm:$0xf] %v1344
    %1473 = vst [vmem:[%s3 + $0xc] sm:$0xf] %v1345
    %1474 = vst [vmem:[%s3 + $0x10] sm:$0xf] %v1346
    %1475 = vst [vmem:[%s3 + $0x14] sm:$0xf] %v1347
    %1476 = vst [vmem:[%s3 + $0x18] sm:$0xf] %v1348
    %1477 = vst [vmem:[%s3 + $0x1c] sm:$0xf] %v1349
    %1478 = vst [vmem:[%s3 + $0x20] sm:$0xf] %v1350
    %1479 = vst [vmem:[%s3 + $0x24] sm:$0xf] %v1351
    %1480 = vst [vmem:[%s3 + $0x28] sm:$0xf] %v1352
    %1481 = vst [vmem:[%s3 + $0x2c] sm:$0xf] %v1353
    %1482 = vst [vmem:[%s3 + $0x30] sm:$0xf] %v1354
    %1483 = vst [vmem:[%s3 + $0x34] sm:$0xf] %v1355
    %1484 = vst [vmem:[%s3 + $0x38] sm:$0xf] %v1356
    %1485 = vst [vmem:[%s3 + $0x3c] sm:$0xf] %v1357
    %1486 = vst [vmem:[%s3 + $0x40] sm:$0xf] %v1358
    %1487 = vst [vmem:[%s3 + $0x44] sm:$0xf] %v1359
    %1488 = vst [vmem:[%s3 + $0x48] sm:$0xf] %v1360
    %1489 = vst [vmem:[%s3 + $0x4c] sm:$0xf] %v1361
    %1490 = vst [vmem:[%s3 + $0x50] sm:$0xf] %v1362
    %1491 = vst [vmem:[%s3 + $0x54] sm:$0xf] %v1363
    %1492 = vst [vmem:[%s3 + $0x58] sm:$0xf] %v1364
    %1493 = vst [vmem:[%s3 + $0x5c] sm:$0xf] %v1365
    %1494 = vst [vmem:[%s3 + $0x60] sm:$0xf] %v1366
    %1495 = vst [vmem:[%s3 + $0x64] sm:$0xf] %v1367
    %1496 = vst [vmem:[%s3 + $0x68] sm:$0xf] %v1368
    %1497 = vst [vmem:[%s3 + $0x6c] sm:$0xf] %v1369
    %1498 = vst [vmem:[%s3 + $0x70] sm:$0xf] %v1370
    %1499 = vst [vmem:[%s3 + $0x74] sm:$0xf] %v1371
    %1500 = vst [vmem:[%s3 + $0x78] sm:$0xf] %v1372
    %1501 = vst [vmem:[%s3 + $0x7c] sm:$0xf] %v1373
    %1502 = vst [vmem:[%s3 + $0x80] sm:$0xf] %v1374
    %1503 = vst [vmem:[%s3 + $0x84] sm:$0xf] %v1375
    %1504 = vst [vmem:[%s3 + $0x88] sm:$0xf] %v1376
    %1505 = vst [vmem:[%s3 + $0x8c] sm:$0xf] %v1377
    %1506 = vst [vmem:[%s3 + $0x90] sm:$0xf] %v1378
    %1507 = vst [vmem:[%s3 + $0x94] sm:$0xf] %v1379
    %1508 = vst [vmem:[%s3 + $0x98] sm:$0xf] %v1380
    %1509 = vst [vmem:[%s3 + $0x9c] sm:$0xf] %v1381
    %1510 = vst [vmem:[%s3 + $0xa0] sm:$0xf] %v1382
    %1511 = vst [vmem:[%s3 + $0xa4] sm:$0xf] %v1383
    %1512 = vst [vmem:[%s3 + $0xa8] sm:$0xf] %v1384
    %1513 = vst [vmem:[%s3 + $0xac] sm:$0xf] %v1385
    %1514 = vst [vmem:[%s3 + $0xb0] sm:$0xf] %v1386
    %1515 = vst [vmem:[%s3 + $0xb4] sm:$0xf] %v1387
    %1516 = vst [vmem:[%s3 + $0xb8] sm:$0xf] %v1388
    %1517 = vst [vmem:[%s3 + $0xbc] sm:$0xf] %v1389
    %1518 = vst [vmem:[%s3 + $0xc0] sm:$0xf] %v1390
    %1519 = vst [vmem:[%s3 + $0xc4] sm:$0xf] %v1391
    %1520 = vst [vmem:[%s3 + $0xc8] sm:$0xf] %v1392
    %1521 = vst [vmem:[%s3 + $0xcc] sm:$0xf] %v1393
    %1522 = vst [vmem:[%s3 + $0xd0] sm:$0xf] %v1394
    %1523 = vst [vmem:[%s3 + $0xd4] sm:$0xf] %v1395
    %1524 = vst [vmem:[%s3 + $0xd8] sm:$0xf] %v1396
    %1525 = vst [vmem:[%s3 + $0xdc] sm:$0xf] %v1397
    %1526 = vst [vmem:[%s3 + $0xe0] sm:$0xf] %v1398
    %1527 = vst [vmem:[%s3 + $0xe4] sm:$0xf] %v1399
    %1528 = vst [vmem:[%s3 + $0xe8] sm:$0xf] %v1400
    %1529 = vst [vmem:[%s3 + $0xec] sm:$0xf] %v1401
    %1530 = vst [vmem:[%s3 + $0xf0] sm:$0xf] %v1402
    %1531 = vst [vmem:[%s3 + $0xf4] sm:$0xf] %v1403
    %1532 = vst [vmem:[%s3 + $0xf8] sm:$0xf] %v1404
    %1533 = vst [vmem:[%s3 + $0xfc] sm:$0xf] %v1405
  $region21: #{_lambda_.14} parent=0 // pred_fallthru
    _
  // Predicated region
  $region22: #{_lambda_.14} parent=0 // pred_check
    _
  $region23: #{_lambda_.14} parent=0 // pred_check_branch
    %1535 = sbr.rel (0) target = $region25
  $region24: #{_lambda_.14} parent=0 // pred_region
    _
  $region25: #{_lambda_.14} parent=0 // pred_fallthru
    _
  // Predicated region
  $region26: #{_lambda_.14} parent=0 // pred_check
    _
  $region27: #{_lambda_.14} parent=0 // pred_check_branch
    %1537 = sbr.rel (0) target = $region29
  $region28: #{_lambda_.14} parent=0 // pred_region
    _
  $region29: #{_lambda_.14} parent=0 // pred_fallthru
    _

// kernel: _lambda_.20
$region0: #{_lambda_.20}
  #allocation0 [shape = 'u32[]', space=smem, size = 0x4, offset = 0x4, fixed_abs, tag = 'smem constant byte address 0x4 - core index']
  #allocation1 [shape = 'u32[144,128]{1,0:T(1,128)}', space=vmem, size = 0x12000, scoped, tag = 'internal scratch']
  #allocation2 [shape = 'f32[128,128]{1,0:T(8,128)}', space=vmem, size = 0x10000, scoped, tag = 'scratch operand']
  %s0 = inlined_call_operand.vmem [shape: bf16[128,128], index: 0, kind: input, shape index: {}]
  %s1 = inlined_call_operand.vmem [shape: bf16[128,128], index: 1, kind: input, shape index: {}]
  %s2 = inlined_call_operand.vmem [shape: f32[1,128], index: 2, kind: input, shape index: {}]
  %s3 = inlined_call_operand.vmem [shape: bf16[128,128], index: 3, kind: output, shape index: {}]
  %s4 = sld [smem:[#allocation0]]
  $region30: #{_lambda_.20} parent=0
    _
  %s6 = ssub.s32 1, %s4
  %s7 = scalar_select 0, %s6, %s4
  // Predicated region
  $region2: #{_lambda_.20} parent=0 // pred_check
    _
  $region3: #{_lambda_.20} parent=0 // pred_check_branch
    %9 = sbr.rel (0) target = $region5
  $region4: #{_lambda_.20} parent=0 // pred_region
    _
  $region5: #{_lambda_.20} parent=0 // pred_fallthru
    _
  // Predicated region
  $region6: #{_lambda_.20} parent=0 // pred_check
    _
  $region7: #{_lambda_.20} parent=0 // pred_check_branch
    %11 = sbr.rel (0) target = $region9
  $region8: #{_lambda_.20} parent=0 // pred_region
    _
  $region9: #{_lambda_.20} parent=0 // pred_fallthru
    _
  // Predicated region
  $region10: #{_lambda_.20} parent=0 // pred_check
    _
  $region11: #{_lambda_.20} parent=0 // pred_check_branch
    %13 = sbr.rel (0) target = $region13
  $region12: #{_lambda_.20} parent=0 // pred_region
    _
  $region13: #{_lambda_.20} parent=0 // pred_fallthru
    _
  %p15 = scmp.eq.s32.totalorder 0, 0
  // Predicated region
  $region14: #{_lambda_.20} parent=0 // pred_check
    %p16 = pneg %p15
  $region15: #{_lambda_.20} parent=0 // pred_check_branch
    %18 = sbr.rel (%p16) target = $region17
  $region16: #{_lambda_.20} parent=0 // pred_region
    %19 = vst [vmem:[#allocation2] sm:$0xff] 0.0
    %20 = vst [vmem:[#allocation2 + $0x8] sm:$0xff] 0.0
    %21 = vst [vmem:[#allocation2 + $0x10] sm:$0xff] 0.0
    %22 = vst [vmem:[#allocation2 + $0x18] sm:$0xff] 0.0
    %23 = vst [vmem:[#allocation2 + $0x20] sm:$0xff] 0.0
    %24 = vst [vmem:[#allocation2 + $0x28] sm:$0xff] 0.0
    %25 = vst [vmem:[#allocation2 + $0x30] sm:$0xff] 0.0
    %26 = vst [vmem:[#allocation2 + $0x38] sm:$0xff] 0.0
    %27 = vst [vmem:[#allocation2 + $0x40] sm:$0xff] 0.0
    %28 = vst [vmem:[#allocation2 + $0x48] sm:$0xff] 0.0
    %29 = vst [vmem:[#allocation2 + $0x50] sm:$0xff] 0.0
    %30 = vst [vmem:[#allocation2 + $0x58] sm:$0xff] 0.0
    %31 = vst [vmem:[#allocation2 + $0x60] sm:$0xff] 0.0
    %32 = vst [vmem:[#allocation2 + $0x68] sm:$0xff] 0.0
    %33 = vst [vmem:[#allocation2 + $0x70] sm:$0xff] 0.0
    %34 = vst [vmem:[#allocation2 + $0x78] sm:$0xff] 0.0
  $region17: #{_lambda_.20} parent=0 // pred_fallthru
    _
  %v35 = vld [vmem:[#allocation2] sm:$0xff]
  %v36 = vld [vmem:[#allocation2 + $0x8] sm:$0xff]
  %v37 = vld [vmem:[#allocation2 + $0x10] sm:$0xff]
  %v38 = vld [vmem:[#allocation2 + $0x18] sm:$0xff]
  %v39 = vld [vmem:[#allocation2 + $0x20] sm:$0xff]
  %v40 = vld [vmem:[#allocation2 + $0x28] sm:$0xff]
  %v41 = vld [vmem:[#allocation2 + $0x30] sm:$0xff]
  %v42 = vld [vmem:[#allocation2 + $0x38] sm:$0xff]
  %v43 = vld [vmem:[#allocation2 + $0x40] sm:$0xff]
  %v44 = vld [vmem:[#allocation2 + $0x48] sm:$0xff]
  %v45 = vld [vmem:[#allocation2 + $0x50] sm:$0xff]
  %v46 = vld [vmem:[#allocation2 + $0x58] sm:$0xff]
  %v47 = vld [vmem:[#allocation2 + $0x60] sm:$0xff]
  %v48 = vld [vmem:[#allocation2 + $0x68] sm:$0xff]
  %v49 = vld [vmem:[#allocation2 + $0x70] sm:$0xff]
  %v50 = vld [vmem:[#allocation2 + $0x78] sm:$0xff]
  %v51 = vld [vmem:[%s0] sm:$0xf]
  %v52 = vld [vmem:[%s0 + $0x4] sm:$0xf]
  %v53 = vld [vmem:[%s0 + $0x8] sm:$0xf]
  %v54 = vld [vmem:[%s0 + $0xc] sm:$0xf]
  %v55 = vld [vmem:[%s0 + $0x10] sm:$0xf]
  %v56 = vld [vmem:[%s0 + $0x14] sm:$0xf]
  %v57 = vld [vmem:[%s0 + $0x18] sm:$0xf]
  %v58 = vld [vmem:[%s0 + $0x1c] sm:$0xf]
  %v59 = vld [vmem:[%s0 + $0x20] sm:$0xf]
  %v60 = vld [vmem:[%s0 + $0x24] sm:$0xf]
  %v61 = vld [vmem:[%s0 + $0x28] sm:$0xf]
  %v62 = vld [vmem:[%s0 + $0x2c] sm:$0xf]
  %v63 = vld [vmem:[%s0 + $0x30] sm:$0xf]
  %v64 = vld [vmem:[%s0 + $0x34] sm:$0xf]
  %v65 = vld [vmem:[%s0 + $0x38] sm:$0xf]
  %v66 = vld [vmem:[%s0 + $0x3c] sm:$0xf]
  %v67 = vld [vmem:[%s1] sm:$0xf]
  %v68 = vld [vmem:[%s1 + $0x4] sm:$0xf]
  %v69 = vld [vmem:[%s1 + $0x8] sm:$0xf]
  %v70 = vld [vmem:[%s1 + $0xc] sm:$0xf]
  %v71 = vld [vmem:[%s1 + $0x10] sm:$0xf]
  %v72 = vld [vmem:[%s1 + $0x14] sm:$0xf]
  %v73 = vld [vmem:[%s1 + $0x18] sm:$0xf]
  %v74 = vld [vmem:[%s1 + $0x1c] sm:$0xf]
  %v75 = vld [vmem:[%s1 + $0x20] sm:$0xf]
  %v76 = vld [vmem:[%s1 + $0x24] sm:$0xf]
  %v77 = vld [vmem:[%s1 + $0x28] sm:$0xf]
  %v78 = vld [vmem:[%s1 + $0x2c] sm:$0xf]
  %v79 = vld [vmem:[%s1 + $0x30] sm:$0xf]
  %v80 = vld [vmem:[%s1 + $0x34] sm:$0xf]
  %v81 = vld [vmem:[%s1 + $0x38] sm:$0xf]
  %v82 = vld [vmem:[%s1 + $0x3c] sm:$0xf]
  %v99 = vunpack.c.l.b16 %v51
  %v100 = vunpack.c.l.b16 %v52
  %v101 = vunpack.c.l.b16 %v53
  %v102 = vunpack.c.l.b16 %v54
  %v103 = vunpack.c.l.b16 %v55
  %v104 = vunpack.c.l.b16 %v56
  %v105 = vunpack.c.l.b16 %v57
  %v106 = vunpack.c.l.b16 %v58
  %v107 = vunpack.c.l.b16 %v59
  %v108 = vunpack.c.l.b16 %v60
  %v109 = vunpack.c.l.b16 %v61
  %v110 = vunpack.c.l.b16 %v62
  %v111 = vunpack.c.l.b16 %v63
  %v112 = vunpack.c.l.b16 %v64
  %v113 = vunpack.c.l.b16 %v65
  %v114 = vunpack.c.l.b16 %v66
  %v115 = vpack.c.b16 %v100, %v99
  %v116 = vpack.c.b16 %v102, %v101
  %v117 = vpack.c.b16 %v104, %v103
  %v118 = vpack.c.b16 %v106, %v105
  %v119 = vpack.c.b16 %v108, %v107
  %v120 = vpack.c.b16 %v110, %v109
  %v121 = vpack.c.b16 %v112, %v111
  %v122 = vpack.c.b16 %v114, %v113
  %v147 = vunpack.c.l.b16 %v67
  %v148 = vunpack.c.l.b16 %v68
  %v149 = vunpack.c.l.b16 %v69
  %v150 = vunpack.c.l.b16 %v70
  %v151 = vunpack.c.l.b16 %v71
  %v152 = vunpack.c.l.b16 %v72
  %v153 = vunpack.c.l.b16 %v73
  %v154 = vunpack.c.l.b16 %v74
  %v155 = vunpack.c.l.b16 %v75
  %v156 = vunpack.c.l.b16 %v76
  %v157 = vunpack.c.l.b16 %v77
  %v158 = vunpack.c.l.b16 %v78
  %v159 = vunpack.c.l.b16 %v79
  %v160 = vunpack.c.l.b16 %v80
  %v161 = vunpack.c.l.b16 %v81
  %v162 = vunpack.c.l.b16 %v82
  %v163 = vpack.c.b16 %v148, %v147
  %v164 = vpack.c.b16 %v150, %v149
  %v165 = vpack.c.b16 %v152, %v151
  %v166 = vpack.c.b16 %v154, %v153
  %v167 = vpack.c.b16 %v156, %v155
  %v168 = vpack.c.b16 %v158, %v157
  %v169 = vpack.c.b16 %v160, %v159
  %v170 = vpack.c.b16 %v162, %v161
  %179 = vmatprep.subr.bf16.mxu0 0
  %180 = vmatpush1.bf16.msra.mxu0 %v163
  %181 = vmatprep.subr.bf16.mxu0 0
  %182 = vmatpush1.bf16.msra.mxu0 %v164
  %183 = vmatprep.subr.bf16.mxu0 0
  %184 = vmatpush1.bf16.msra.mxu0 %v165
  %185 = vmatprep.subr.bf16.mxu0 0
  %186 = vmatpush1.bf16.msra.mxu0 %v166
  %187 = vmatprep.subr.bf16.mxu0 0
  %188 = vmatpush1.bf16.msra.mxu0 %v167
  %189 = vmatprep.subr.bf16.mxu0 0
  %190 = vmatpush1.bf16.msra.mxu0 %v168
  %191 = vmatprep.subr.bf16.mxu0 0
  %192 = vmatpush1.bf16.msra.mxu0 %v169
  %193 = vmatprep.subr.bf16.mxu0 0
  %194 = vmatpush1.bf16.msra.mxu0 %v170
  %195 = vmatprep.subr.bf16.mxu0 0
  %196 = vmatpush1.bf16.msra.mxu0 0
  %197 = vmatprep.subr.bf16.mxu0 0
  %198 = vmatpush1.bf16.msra.mxu0 0
  %199 = vmatprep.subr.bf16.mxu0 0
  %200 = vmatpush1.bf16.msra.mxu0 0
  %201 = vmatprep.subr.bf16.mxu0 0
  %202 = vmatpush1.bf16.msra.mxu0 0
  %203 = vmatprep.subr.bf16.mxu0 0
  %204 = vmatpush1.bf16.msra.mxu0 0
  %205 = vmatprep.subr.bf16.mxu0 0
  %206 = vmatpush1.bf16.msra.mxu0 0
  %207 = vmatprep.subr.bf16.mxu0 0
  %208 = vmatpush1.bf16.msra.mxu0 0
  %209 = vmatprep.subr.bf16.mxu0 0
  %210 = vmatpush1.bf16.msra.mxu0 0
  %211 = vmatprep.mubr.bf16.mxu0 0
  %212 = vmatmul.mubr.bf16.gmra.mrb[0].mxu0 %v115
  %v213 = vpop.f32.mrb[0].mxu0
  %v214 = vadd.f32 0.0, %v213
  %v215 = vpop.f32.mrb[0].mxu0
  %v216 = vpop.f32.mrb[0].mxu0
  %v217 = vadd.f32 0.0, %v216
  %v218 = vpop.f32.mrb[0].mxu0
  %219 = vmatprep.mubr.bf16.mxu0 0
  %220 = vmatmul.mubr.bf16.gmra.mrb[0].mxu0 %v116
  %v221 = vpop.f32.mrb[0].mxu0
  %v222 = vadd.f32 0.0, %v221
  %v223 = vpop.f32.mrb[0].mxu0
  %v224 = vpop.f32.mrb[0].mxu0
  %v225 = vadd.f32 0.0, %v224
  %v226 = vpop.f32.mrb[0].mxu0
  %227 = vmatprep.mubr.bf16.mxu0 0
  %228 = vmatmul.mubr.bf16.gmra.mrb[0].mxu0 %v117
  %v229 = vpop.f32.mrb[0].mxu0
  %v230 = vadd.f32 0.0, %v229
  %v231 = vpop.f32.mrb[0].mxu0
  %v232 = vpop.f32.mrb[0].mxu0
  %v233 = vadd.f32 0.0, %v232
  %v234 = vpop.f32.mrb[0].mxu0
  %235 = vmatprep.mubr.bf16.mxu0 0
  %236 = vmatmul.mubr.bf16.gmra.mrb[0].mxu0 %v118
  %v237 = vpop.f32.mrb[0].mxu0
  %v238 = vadd.f32 0.0, %v237
  %v239 = vpop.f32.mrb[0].mxu0
  %v240 = vpop.f32.mrb[0].mxu0
  %v241 = vadd.f32 0.0, %v240
  %v242 = vpop.f32.mrb[0].mxu0
  %243 = vmatprep.mubr.bf16.mxu0 0
  %244 = vmatmul.mubr.bf16.gmra.mrb[0].mxu0 %v119
  %v245 = vpop.f32.mrb[0].mxu0
  %v246 = vadd.f32 0.0, %v245
  %v247 = vpop.f32.mrb[0].mxu0
  %v248 = vpop.f32.mrb[0].mxu0
  %v249 = vadd.f32 0.0, %v248
  %v250 = vpop.f32.mrb[0].mxu0
  %251 = vmatprep.mubr.bf16.mxu0 0
  %252 = vmatmul.mubr.bf16.gmra.mrb[0].mxu0 %v120
  %v253 = vpop.f32.mrb[0].mxu0
  %v254 = vadd.f32 0.0, %v253
  %v255 = vpop.f32.mrb[0].mxu0
  %v256 = vpop.f32.mrb[0].mxu0
  %v257 = vadd.f32 0.0, %v256
  %v258 = vpop.f32.mrb[0].mxu0
  %259 = vmatprep.mubr.bf16.mxu0 0
  %260 = vmatmul.mubr.bf16.gmra.mrb[0].mxu0 %v121
  %v261 = vpop.f32.mrb[0].mxu0
  %v262 = vadd.f32 0.0, %v261
  %v263 = vpop.f32.mrb[0].mxu0
  %v264 = vpop.f32.mrb[0].mxu0
  %v265 = vadd.f32 0.0, %v264
  %v266 = vpop.f32.mrb[0].mxu0
  %267 = vmatprep.mubr.bf16.mxu0 0
  %268 = vmatmul.mubr.bf16.gmra.mrb[0].mxu0 %v122
  %v269 = vpop.f32.mrb[0].mxu0
  %v270 = vadd.f32 0.0, %v269
  %v271 = vpop.f32.mrb[0].mxu0
  %v272 = vpop.f32.mrb[0].mxu0
  %v273 = vadd.f32 0.0, %v272
  %v274 = vpop.f32.mrb[0].mxu0
  %275 = vdwg.mxu0
  %v276 = vadd.f32 %v35, %v214
  %v277 = vadd.f32 %v36, %v217
  %v278 = vadd.f32 %v37, %v222
  %v279 = vadd.f32 %v38, %v225
  %v280 = vadd.f32 %v39, %v230
  %v281 = vadd.f32 %v40, %v233
  %v282 = vadd.f32 %v41, %v238
  %v283 = vadd.f32 %v42, %v241
  %v284 = vadd.f32 %v43, %v246
  %v285 = vadd.f32 %v44, %v249
  %v286 = vadd.f32 %v45, %v254
  %v287 = vadd.f32 %v46, %v257
  %v288 = vadd.f32 %v47, %v262
  %v289 = vadd.f32 %v48, %v265
  %v290 = vadd.f32 %v49, %v270
  %v291 = vadd.f32 %v50, %v273
  %292 = vst [vmem:[#allocation2] sm:$0xff] %v276
  %293 = vst [vmem:[#allocation2 + $0x8] sm:$0xff] %v277
  %294 = vst [vmem:[#allocation2 + $0x10] sm:$0xff] %v278
  %295 = vst [vmem:[#allocation2 + $0x18] sm:$0xff] %v279
  %296 = vst [vmem:[#allocation2 + $0x20] sm:$0xff] %v280
  %297 = vst [vmem:[#allocation2 + $0x28] sm:$0xff] %v281
  %298 = vst [vmem:[#allocation2 + $0x30] sm:$0xff] %v282
  %299 = vst [vmem:[#allocation2 + $0x38] sm:$0xff] %v283
  %300 = vst [vmem:[#allocation2 + $0x40] sm:$0xff] %v284
  %301 = vst [vmem:[#allocation2 + $0x48] sm:$0xff] %v285
  %302 = vst [vmem:[#allocation2 + $0x50] sm:$0xff] %v286
  %303 = vst [vmem:[#allocation2 + $0x58] sm:$0xff] %v287
  %304 = vst [vmem:[#allocation2 + $0x60] sm:$0xff] %v288
  %305 = vst [vmem:[#allocation2 + $0x68] sm:$0xff] %v289
  %306 = vst [vmem:[#allocation2 + $0x70] sm:$0xff] %v290
  %307 = vst [vmem:[#allocation2 + $0x78] sm:$0xff] %v291
  // Predicated region
  $region18: #{_lambda_.20} parent=0 // pred_check
    %p308 = pneg %p15
  $region19: #{_lambda_.20} parent=0 // pred_check_branch
    %310 = sbr.rel (%p308) target = $region21
  $region20: #{_lambda_.20} parent=0 // pred_region
    %v311 = vld [vmem:[#allocation2] sm:$0xff]
    %v312 = vld [vmem:[#allocation2 + $0x8] sm:$0xff]
    %v313 = vld [vmem:[#allocation2 + $0x10] sm:$0xff]
    %v314 = vld [vmem:[#allocation2 + $0x18] sm:$0xff]
    %v315 = vld [vmem:[#allocation2 + $0x20] sm:$0xff]
    %v316 = vld [vmem:[#allocation2 + $0x28] sm:$0xff]
    %v317 = vld [vmem:[#allocation2 + $0x30] sm:$0xff]
    %v318 = vld [vmem:[#allocation2 + $0x38] sm:$0xff]
    %v319 = vld [vmem:[#allocation2 + $0x40] sm:$0xff]
    %v320 = vld [vmem:[#allocation2 + $0x48] sm:$0xff]
    %v321 = vld [vmem:[#allocation2 + $0x50] sm:$0xff]
    %v322 = vld [vmem:[#allocation2 + $0x58] sm:$0xff]
    %v323 = vld [vmem:[#allocation2 + $0x60] sm:$0xff]
    %v324 = vld [vmem:[#allocation2 + $0x68] sm:$0xff]
    %v325 = vld [vmem:[#allocation2 + $0x70] sm:$0xff]
    %v326 = vld [vmem:[#allocation2 + $0x78] sm:$0xff]
    %v327 = vld [vmem:[%s2] sm:$0x1]
    %v329 = vlaneseq
    %v330 = vshrl.u32 %v329, 7
    %v331 = vsub.s32 0, %v330
    %v332 = vrot.slane %v327, %v331
    %v334 = vadd.f32 %v311, %v332
    %v335 = vadd.f32 %v312, %v332
    %v336 = vadd.f32 %v313, %v332
    %v337 = vadd.f32 %v314, %v332
    %v338 = vadd.f32 %v315, %v332
    %v339 = vadd.f32 %v316, %v332
    %v340 = vadd.f32 %v317, %v332
    %v341 = vadd.f32 %v318, %v332
    %v342 = vadd.f32 %v319, %v332
    %v343 = vadd.f32 %v320, %v332
    %v344 = vadd.f32 %v321, %v332
    %v345 = vadd.f32 %v322, %v332
    %v346 = vadd.f32 %v323, %v332
    %v347 = vadd.f32 %v324, %v332
    %v348 = vadd.f32 %v325, %v332
    %v349 = vadd.f32 %v326, %v332
    %v350 = vpack.c.bf16 %v335, %v334
    %v351 = vpack.c.bf16 %v337, %v336
    %v352 = vpack.c.bf16 %v339, %v338
    %v353 = vpack.c.bf16 %v341, %v340
    %v354 = vpack.c.bf16 %v343, %v342
    %v355 = vpack.c.bf16 %v345, %v344
    %v356 = vpack.c.bf16 %v347, %v346
    %v357 = vpack.c.bf16 %v349, %v348
    %v366 = vunpack.c.l.b16 %v350
    %v367 = vunpack.c.h.b16 %v350
    %v368 = vunpack.c.l.b16 %v351
    %v369 = vunpack.c.h.b16 %v351
    %v370 = vunpack.c.l.b16 %v352
    %v371 = vunpack.c.h.b16 %v352
    %v372 = vunpack.c.l.b16 %v353
    %v373 = vunpack.c.h.b16 %v353
    %v374 = vunpack.c.l.b16 %v354
    %v375 = vunpack.c.h.b16 %v354
    %v376 = vunpack.c.l.b16 %v355
    %v377 = vunpack.c.h.b16 %v355
    %v378 = vunpack.c.l.b16 %v356
    %v379 = vunpack.c.h.b16 %v356
    %v380 = vunpack.c.l.b16 %v357
    %v381 = vunpack.c.h.b16 %v357
    %v382 = vpack.c.b16 %v366, %v366
    %v383 = vpack.c.b16 %v367, %v367
    %v384 = vpack.c.b16 %v368, %v368
    %v385 = vpack.c.b16 %v369, %v369
    %v386 = vpack.c.b16 %v370, %v370
    %v387 = vpack.c.b16 %v371, %v371
    %v388 = vpack.c.b16 %v372, %v372
    %v389 = vpack.c.b16 %v373, %v373
    %v390 = vpack.c.b16 %v374, %v374
    %v391 = vpack.c.b16 %v375, %v375
    %v392 = vpack.c.b16 %v376, %v376
    %v393 = vpack.c.b16 %v377, %v377
    %v394 = vpack.c.b16 %v378, %v378
    %v395 = vpack.c.b16 %v379, %v379
    %v396 = vpack.c.b16 %v380, %v380
    %v397 = vpack.c.b16 %v381, %v381
    %414 = vst [vmem:[%s3] sm:$0xf] %v382
    %415 = vst [vmem:[%s3 + $0x4] sm:$0xf] %v383
    %416 = vst [vmem:[%s3 + $0x8] sm:$0xf] %v384
    %417 = vst [vmem:[%s3 + $0xc] sm:$0xf] %v385
    %418 = vst [vmem:[%s3 + $0x10] sm:$0xf] %v386
    %419 = vst [vmem:[%s3 + $0x14] sm:$0xf] %v387
    %420 = vst [vmem:[%s3 + $0x18] sm:$0xf] %v388
    %421 = vst [vmem:[%s3 + $0x1c] sm:$0xf] %v389
    %422 = vst [vmem:[%s3 + $0x20] sm:$0xf] %v390
    %423 = vst [vmem:[%s3 + $0x24] sm:$0xf] %v391
    %424 = vst [vmem:[%s3 + $0x28] sm:$0xf] %v392
    %425 = vst [vmem:[%s3 + $0x2c] sm:$0xf] %v393
    %426 = vst [vmem:[%s3 + $0x30] sm:$0xf] %v394
    %427 = vst [vmem:[%s3 + $0x34] sm:$0xf] %v395
    %428 = vst [vmem:[%s3 + $0x38] sm:$0xf] %v396
    %429 = vst [vmem:[%s3 + $0x3c] sm:$0xf] %v397
  $region21: #{_lambda_.20} parent=0 // pred_fallthru
    _
  // Predicated region
  $region22: #{_lambda_.20} parent=0 // pred_check
    _
  $region23: #{_lambda_.20} parent=0 // pred_check_branch
    %431 = sbr.rel (0) target = $region25
  $region24: #{_lambda_.20} parent=0 // pred_region
    _
  $region25: #{_lambda_.20} parent=0 // pred_fallthru
    _
  // Predicated region
  $region26: #{_lambda_.20} parent=0 // pred_check
    _
  $region27: #{_lambda_.20} parent=0 // pred_check_branch
    %433 = sbr.rel (0) target = $region29
  $region28: #{_lambda_.20} parent=0 // pred_region
    _
  $region29: #{_lambda_.20} parent=0 // pred_fallthru
    _

// kernel: _lambda_.17
$region0: #{_lambda_.17}
  #allocation0 [shape = 'u32[]', space=smem, size = 0x4, offset = 0x4, fixed_abs, tag = 'smem constant byte address 0x4 - core index']
  #allocation1 [shape = 'u32[144,128]{1,0:T(1,128)}', space=vmem, size = 0x12000, scoped, tag = 'internal scratch']
  #allocation2 [shape = 'f32[128,128]{1,0:T(8,128)}', space=vmem, size = 0x10000, scoped, tag = 'scratch operand']
  %s0 = inlined_call_operand.vmem [shape: bf16[128,256], index: 0, kind: input, shape index: {}]
  %s1 = inlined_call_operand.vmem [shape: bf16[256,128], index: 1, kind: input, shape index: {}]
  %s2 = inlined_call_operand.vmem [shape: f32[1,128], index: 2, kind: input, shape index: {}]
  %s3 = inlined_call_operand.vmem [shape: bf16[128,128], index: 3, kind: output, shape index: {}]
  %s4 = sld [smem:[#allocation0]]
  $region30: #{_lambda_.17} parent=0
    _
  %s6 = ssub.s32 1, %s4
  %s7 = scalar_select 0, %s6, %s4
  // Predicated region
  $region2: #{_lambda_.17} parent=0 // pred_check
    _
  $region3: #{_lambda_.17} parent=0 // pred_check_branch
    %9 = sbr.rel (0) target = $region5
  $region4: #{_lambda_.17} parent=0 // pred_region
    _
  $region5: #{_lambda_.17} parent=0 // pred_fallthru
    _
  // Predicated region
  $region6: #{_lambda_.17} parent=0 // pred_check
    _
  $region7: #{_lambda_.17} parent=0 // pred_check_branch
    %11 = sbr.rel (0) target = $region9
  $region8: #{_lambda_.17} parent=0 // pred_region
    _
  $region9: #{_lambda_.17} parent=0 // pred_fallthru
    _
  // Predicated region
  $region10: #{_lambda_.17} parent=0 // pred_check
    _
  $region11: #{_lambda_.17} parent=0 // pred_check_branch
    %13 = sbr.rel (0) target = $region13
  $region12: #{_lambda_.17} parent=0 // pred_region
    _
  $region13: #{_lambda_.17} parent=0 // pred_fallthru
    _
  %p15 = scmp.eq.s32.totalorder 0, 0
  // Predicated region
  $region14: #{_lambda_.17} parent=0 // pred_check
    %p16 = pneg %p15
  $region15: #{_lambda_.17} parent=0 // pred_check_branch
    %18 = sbr.rel (%p16) target = $region17
  $region16: #{_lambda_.17} parent=0 // pred_region
    %19 = vst [vmem:[#allocation2] sm:$0xff] 0.0
    %20 = vst [vmem:[#allocation2 + $0x8] sm:$0xff] 0.0
    %21 = vst [vmem:[#allocation2 + $0x10] sm:$0xff] 0.0
    %22 = vst [vmem:[#allocation2 + $0x18] sm:$0xff] 0.0
    %23 = vst [vmem:[#allocation2 + $0x20] sm:$0xff] 0.0
    %24 = vst [vmem:[#allocation2 + $0x28] sm:$0xff] 0.0
    %25 = vst [vmem:[#allocation2 + $0x30] sm:$0xff] 0.0
    %26 = vst [vmem:[#allocation2 + $0x38] sm:$0xff] 0.0
    %27 = vst [vmem:[#allocation2 + $0x40] sm:$0xff] 0.0
    %28 = vst [vmem:[#allocation2 + $0x48] sm:$0xff] 0.0
    %29 = vst [vmem:[#allocation2 + $0x50] sm:$0xff] 0.0
    %30 = vst [vmem:[#allocation2 + $0x58] sm:$0xff] 0.0
    %31 = vst [vmem:[#allocation2 + $0x60] sm:$0xff] 0.0
    %32 = vst [vmem:[#allocation2 + $0x68] sm:$0xff] 0.0
    %33 = vst [vmem:[#allocation2 + $0x70] sm:$0xff] 0.0
    %34 = vst [vmem:[#allocation2 + $0x78] sm:$0xff] 0.0
  $region17: #{_lambda_.17} parent=0 // pred_fallthru
    _
  %v35 = vld [vmem:[#allocation2] sm:$0xff]
  %v36 = vld [vmem:[#allocation2 + $0x8] sm:$0xff]
  %v37 = vld [vmem:[#allocation2 + $0x10] sm:$0xff]
  %v38 = vld [vmem:[#allocation2 + $0x18] sm:$0xff]
  %v39 = vld [vmem:[#allocation2 + $0x20] sm:$0xff]
  %v40 = vld [vmem:[#allocation2 + $0x28] sm:$0xff]
  %v41 = vld [vmem:[#allocation2 + $0x30] sm:$0xff]
  %v42 = vld [vmem:[#allocation2 + $0x38] sm:$0xff]
  %v43 = vld [vmem:[#allocation2 + $0x40] sm:$0xff]
  %v44 = vld [vmem:[#allocation2 + $0x48] sm:$0xff]
  %v45 = vld [vmem:[#allocation2 + $0x50] sm:$0xff]
  %v46 = vld [vmem:[#allocation2 + $0x58] sm:$0xff]
  %v47 = vld [vmem:[#allocation2 + $0x60] sm:$0xff]
  %v48 = vld [vmem:[#allocation2 + $0x68] sm:$0xff]
  %v49 = vld [vmem:[#allocation2 + $0x70] sm:$0xff]
  %v50 = vld [vmem:[#allocation2 + $0x78] sm:$0xff]
  %v51 = vld [vmem:[%s0] sm:$0xff]
  %v52 = vld [vmem:[%s0 + $0x8] sm:$0xff]
  %v53 = vld [vmem:[%s0 + $0x10] sm:$0xff]
  %v54 = vld [vmem:[%s0 + $0x18] sm:$0xff]
  %v55 = vld [vmem:[%s0 + $0x20] sm:$0xff]
  %v56 = vld [vmem:[%s0 + $0x28] sm:$0xff]
  %v57 = vld [vmem:[%s0 + $0x30] sm:$0xff]
  %v58 = vld [vmem:[%s0 + $0x38] sm:$0xff]
  %v59 = vld [vmem:[%s0 + $0x40] sm:$0xff]
  %v60 = vld [vmem:[%s0 + $0x48] sm:$0xff]
  %v61 = vld [vmem:[%s0 + $0x50] sm:$0xff]
  %v62 = vld [vmem:[%s0 + $0x58] sm:$0xff]
  %v63 = vld [vmem:[%s0 + $0x60] sm:$0xff]
  %v64 = vld [vmem:[%s0 + $0x68] sm:$0xff]
  %v65 = vld [vmem:[%s0 + $0x70] sm:$0xff]
  %v66 = vld [vmem:[%s0 + $0x78] sm:$0xff]
  %v67 = vld [vmem:[%s1] sm:$0xf]
  %v68 = vld [vmem:[%s1 + $0x4] sm:$0xf]
  %v69 = vld [vmem:[%s1 + $0x8] sm:$0xf]
  %v70 = vld [vmem:[%s1 + $0xc] sm:$0xf]
  %v71 = vld [vmem:[%s1 + $0x10] sm:$0xf]
  %v72 = vld [vmem:[%s1 + $0x14] sm:$0xf]
  %v73 = vld [vmem:[%s1 + $0x18] sm:$0xf]
  %v74 = vld [vmem:[%s1 + $0x1c] sm:$0xf]
  %v75 = vld [vmem:[%s1 + $0x20] sm:$0xf]
  %v76 = vld [vmem:[%s1 + $0x24] sm:$0xf]
  %v77 = vld [vmem:[%s1 + $0x28] sm:$0xf]
  %v78 = vld [vmem:[%s1 + $0x2c] sm:$0xf]
  %v79 = vld [vmem:[%s1 + $0x30] sm:$0xf]
  %v80 = vld [vmem:[%s1 + $0x34] sm:$0xf]
  %v81 = vld [vmem:[%s1 + $0x38] sm:$0xf]
  %v82 = vld [vmem:[%s1 + $0x3c] sm:$0xf]
  %v83 = vld [vmem:[%s1 + $0x40] sm:$0xf]
  %v84 = vld [vmem:[%s1 + $0x44] sm:$0xf]
  %v85 = vld [vmem:[%s1 + $0x48] sm:$0xf]
  %v86 = vld [vmem:[%s1 + $0x4c] sm:$0xf]
  %v87 = vld [vmem:[%s1 + $0x50] sm:$0xf]
  %v88 = vld [vmem:[%s1 + $0x54] sm:$0xf]
  %v89 = vld [vmem:[%s1 + $0x58] sm:$0xf]
  %v90 = vld [vmem:[%s1 + $0x5c] sm:$0xf]
  %v91 = vld [vmem:[%s1 + $0x60] sm:$0xf]
  %v92 = vld [vmem:[%s1 + $0x64] sm:$0xf]
  %v93 = vld [vmem:[%s1 + $0x68] sm:$0xf]
  %v94 = vld [vmem:[%s1 + $0x6c] sm:$0xf]
  %v95 = vld [vmem:[%s1 + $0x70] sm:$0xf]
  %v96 = vld [vmem:[%s1 + $0x74] sm:$0xf]
  %v97 = vld [vmem:[%s1 + $0x78] sm:$0xf]
  %v98 = vld [vmem:[%s1 + $0x7c] sm:$0xf]
  %v115 = vunpack.c.l.b16 %v51
  %v116 = vunpack.c.h.b16 %v51
  %v117 = vunpack.c.l.b16 %v52
  %v118 = vunpack.c.h.b16 %v52
  %v119 = vunpack.c.l.b16 %v53
  %v120 = vunpack.c.h.b16 %v53
  %v121 = vunpack.c.l.b16 %v54
  %v122 = vunpack.c.h.b16 %v54
  %v123 = vunpack.c.l.b16 %v55
  %v124 = vunpack.c.h.b16 %v55
  %v125 = vunpack.c.l.b16 %v56
  %v126 = vunpack.c.h.b16 %v56
  %v127 = vunpack.c.l.b16 %v57
  %v128 = vunpack.c.h.b16 %v57
  %v129 = vunpack.c.l.b16 %v58
  %v130 = vunpack.c.h.b16 %v58
  %v131 = vunpack.c.l.b16 %v59
  %v132 = vunpack.c.h.b16 %v59
  %v133 = vunpack.c.l.b16 %v60
  %v134 = vunpack.c.h.b16 %v60
  %v135 = vunpack.c.l.b16 %v61
  %v136 = vunpack.c.h.b16 %v61
  %v137 = vunpack.c.l.b16 %v62
  %v138 = vunpack.c.h.b16 %v62
  %v139 = vunpack.c.l.b16 %v63
  %v140 = vunpack.c.h.b16 %v63
  %v141 = vunpack.c.l.b16 %v64
  %v142 = vunpack.c.h.b16 %v64
  %v143 = vunpack.c.l.b16 %v65
  %v144 = vunpack.c.h.b16 %v65
  %v145 = vunpack.c.l.b16 %v66
  %v146 = vunpack.c.h.b16 %v66
  %v147 = vpack.c.b16 %v117, %v115
  %v148 = vpack.c.b16 %v118, %v116
  %v149 = vpack.c.b16 %v121, %v119
  %v150 = vpack.c.b16 %v122, %v120
  %v151 = vpack.c.b16 %v125, %v123
  %v152 = vpack.c.b16 %v126, %v124
  %v153 = vpack.c.b16 %v129, %v127
  %v154 = vpack.c.b16 %v130, %v128
  %v155 = vpack.c.b16 %v133, %v131
  %v156 = vpack.c.b16 %v134, %v132
  %v157 = vpack.c.b16 %v137, %v135
  %v158 = vpack.c.b16 %v138, %v136
  %v159 = vpack.c.b16 %v141, %v139
  %v160 = vpack.c.b16 %v142, %v140
  %v161 = vpack.c.b16 %v145, %v143
  %v162 = vpack.c.b16 %v146, %v144
  %v211 = vunpack.c.l.b16 %v67
  %v212 = vunpack.c.l.b16 %v68
  %v213 = vunpack.c.l.b16 %v69
  %v214 = vunpack.c.l.b16 %v70
  %v215 = vunpack.c.l.b16 %v71
  %v216 = vunpack.c.l.b16 %v72
  %v217 = vunpack.c.l.b16 %v73
  %v218 = vunpack.c.l.b16 %v74
  %v219 = vunpack.c.l.b16 %v75
  %v220 = vunpack.c.l.b16 %v76
  %v221 = vunpack.c.l.b16 %v77
  %v222 = vunpack.c.l.b16 %v78
  %v223 = vunpack.c.l.b16 %v79
  %v224 = vunpack.c.l.b16 %v80
  %v225 = vunpack.c.l.b16 %v81
  %v226 = vunpack.c.l.b16 %v82
  %v227 = vunpack.c.l.b16 %v83
  %v228 = vunpack.c.l.b16 %v84
  %v229 = vunpack.c.l.b16 %v85
  %v230 = vunpack.c.l.b16 %v86
  %v231 = vunpack.c.l.b16 %v87
  %v232 = vunpack.c.l.b16 %v88
  %v233 = vunpack.c.l.b16 %v89
  %v234 = vunpack.c.l.b16 %v90
  %v235 = vunpack.c.l.b16 %v91
  %v236 = vunpack.c.l.b16 %v92
  %v237 = vunpack.c.l.b16 %v93
  %v238 = vunpack.c.l.b16 %v94
  %v239 = vunpack.c.l.b16 %v95
  %v240 = vunpack.c.l.b16 %v96
  %v241 = vunpack.c.l.b16 %v97
  %v242 = vunpack.c.l.b16 %v98
  %v243 = vpack.c.b16 %v212, %v211
  %v244 = vpack.c.b16 %v214, %v213
  %v245 = vpack.c.b16 %v216, %v215
  %v246 = vpack.c.b16 %v218, %v217
  %v247 = vpack.c.b16 %v220, %v219
  %v248 = vpack.c.b16 %v222, %v221
  %v249 = vpack.c.b16 %v224, %v223
  %v250 = vpack.c.b16 %v226, %v225
  %v251 = vpack.c.b16 %v228, %v227
  %v252 = vpack.c.b16 %v230, %v229
  %v253 = vpack.c.b16 %v232, %v231
  %v254 = vpack.c.b16 %v234, %v233
  %v255 = vpack.c.b16 %v236, %v235
  %v256 = vpack.c.b16 %v238, %v237
  %v257 = vpack.c.b16 %v240, %v239
  %v258 = vpack.c.b16 %v242, %v241
  %275 = vmatprep.subr.bf16.mxu0 0
  %276 = vmatpush1.bf16.msra.mxu0 %v243
  %277 = vmatprep.subr.bf16.mxu0 0
  %278 = vmatpush1.bf16.msra.mxu0 %v244
  %279 = vmatprep.subr.bf16.mxu0 0
  %280 = vmatpush1.bf16.msra.mxu0 %v245
  %281 = vmatprep.subr.bf16.mxu0 0
  %282 = vmatpush1.bf16.msra.mxu0 %v246
  %283 = vmatprep.subr.bf16.mxu0 0
  %284 = vmatpush1.bf16.msra.mxu0 %v247
  %285 = vmatprep.subr.bf16.mxu0 0
  %286 = vmatpush1.bf16.msra.mxu0 %v248
  %287 = vmatprep.subr.bf16.mxu0 0
  %288 = vmatpush1.bf16.msra.mxu0 %v249
  %289 = vmatprep.subr.bf16.mxu0 0
  %290 = vmatpush1.bf16.msra.mxu0 %v250
  %291 = vmatprep.subr.bf16.mxu0 0
  %292 = vmatpush1.bf16.msra.mxu0 %v251
  %293 = vmatprep.subr.bf16.mxu0 0
  %294 = vmatpush1.bf16.msra.mxu0 %v252
  %295 = vmatprep.subr.bf16.mxu0 0
  %296 = vmatpush1.bf16.msra.mxu0 %v253
  %297 = vmatprep.subr.bf16.mxu0 0
  %298 = vmatpush1.bf16.msra.mxu0 %v254
  %299 = vmatprep.subr.bf16.mxu0 0
  %300 = vmatpush1.bf16.msra.mxu0 %v255
  %301 = vmatprep.subr.bf16.mxu0 0
  %302 = vmatpush1.bf16.msra.mxu0 %v256
  %303 = vmatprep.subr.bf16.mxu0 0
  %304 = vmatpush1.bf16.msra.mxu0 %v257
  %305 = vmatprep.subr.bf16.mxu0 0
  %306 = vmatpush1.bf16.msra.mxu0 %v258
  %307 = vmatprep.mubr.bf16.mxu0 %v148
  %308 = vmatmul.mubr.bf16.gmra.mrb[0].mxu0 %v147
  %v309 = vpop.f32.mrb[0].mxu0
  %v310 = vadd.f32 0.0, %v309
  %v311 = vpop.f32.mrb[0].mxu0
  %v312 = vpop.f32.mrb[0].mxu0
  %v313 = vadd.f32 0.0, %v312
  %v314 = vpop.f32.mrb[0].mxu0
  %315 = vmatprep.mubr.bf16.mxu0 %v150
  %316 = vmatmul.mubr.bf16.gmra.mrb[0].mxu0 %v149
  %v317 = vpop.f32.mrb[0].mxu0
  %v318 = vadd.f32 0.0, %v317
  %v319 = vpop.f32.mrb[0].mxu0
  %v320 = vpop.f32.mrb[0].mxu0
  %v321 = vadd.f32 0.0, %v320
  %v322 = vpop.f32.mrb[0].mxu0
  %323 = vmatprep.mubr.bf16.mxu0 %v152
  %324 = vmatmul.mubr.bf16.gmra.mrb[0].mxu0 %v151
  %v325 = vpop.f32.mrb[0].mxu0
  %v326 = vadd.f32 0.0, %v325
  %v327 = vpop.f32.mrb[0].mxu0
  %v328 = vpop.f32.mrb[0].mxu0
  %v329 = vadd.f32 0.0, %v328
  %v330 = vpop.f32.mrb[0].mxu0
  %331 = vmatprep.mubr.bf16.mxu0 %v154
  %332 = vmatmul.mubr.bf16.gmra.mrb[0].mxu0 %v153
  %v333 = vpop.f32.mrb[0].mxu0
  %v334 = vadd.f32 0.0, %v333
  %v335 = vpop.f32.mrb[0].mxu0
  %v336 = vpop.f32.mrb[0].mxu0
  %v337 = vadd.f32 0.0, %v336
  %v338 = vpop.f32.mrb[0].mxu0
  %339 = vmatprep.mubr.bf16.mxu0 %v156
  %340 = vmatmul.mubr.bf16.gmra.mrb[0].mxu0 %v155
  %v341 = vpop.f32.mrb[0].mxu0
  %v342 = vadd.f32 0.0, %v341
  %v343 = vpop.f32.mrb[0].mxu0
  %v344 = vpop.f32.mrb[0].mxu0
  %v345 = vadd.f32 0.0, %v344
  %v346 = vpop.f32.mrb[0].mxu0
  %347 = vmatprep.mubr.bf16.mxu0 %v158
  %348 = vmatmul.mubr.bf16.gmra.mrb[0].mxu0 %v157
  %v349 = vpop.f32.mrb[0].mxu0
  %v350 = vadd.f32 0.0, %v349
  %v351 = vpop.f32.mrb[0].mxu0
  %v352 = vpop.f32.mrb[0].mxu0
  %v353 = vadd.f32 0.0, %v352
  %v354 = vpop.f32.mrb[0].mxu0
  %355 = vmatprep.mubr.bf16.mxu0 %v160
  %356 = vmatmul.mubr.bf16.gmra.mrb[0].mxu0 %v159
  %v357 = vpop.f32.mrb[0].mxu0
  %v358 = vadd.f32 0.0, %v357
  %v359 = vpop.f32.mrb[0].mxu0
  %v360 = vpop.f32.mrb[0].mxu0
  %v361 = vadd.f32 0.0, %v360
  %v362 = vpop.f32.mrb[0].mxu0
  %363 = vmatprep.mubr.bf16.mxu0 %v162
  %364 = vmatmul.mubr.bf16.gmra.mrb[0].mxu0 %v161
  %v365 = vpop.f32.mrb[0].mxu0
  %v366 = vadd.f32 0.0, %v365
  %v367 = vpop.f32.mrb[0].mxu0
  %v368 = vpop.f32.mrb[0].mxu0
  %v369 = vadd.f32 0.0, %v368
  %v370 = vpop.f32.mrb[0].mxu0
  %371 = vdwg.mxu0
  %v372 = vadd.f32 %v35, %v310
  %v373 = vadd.f32 %v36, %v313
  %v374 = vadd.f32 %v37, %v318
  %v375 = vadd.f32 %v38, %v321
  %v376 = vadd.f32 %v39, %v326
  %v377 = vadd.f32 %v40, %v329
  %v378 = vadd.f32 %v41, %v334
  %v379 = vadd.f32 %v42, %v337
  %v380 = vadd.f32 %v43, %v342
  %v381 = vadd.f32 %v44, %v345
  %v382 = vadd.f32 %v45, %v350
  %v383 = vadd.f32 %v46, %v353
  %v384 = vadd.f32 %v47, %v358
  %v385 = vadd.f32 %v48, %v361
  %v386 = vadd.f32 %v49, %v366
  %v387 = vadd.f32 %v50, %v369
  %388 = vst [vmem:[#allocation2] sm:$0xff] %v372
  %389 = vst [vmem:[#allocation2 + $0x8] sm:$0xff] %v373
  %390 = vst [vmem:[#allocation2 + $0x10] sm:$0xff] %v374
  %391 = vst [vmem:[#allocation2 + $0x18] sm:$0xff] %v375
  %392 = vst [vmem:[#allocation2 + $0x20] sm:$0xff] %v376
  %393 = vst [vmem:[#allocation2 + $0x28] sm:$0xff] %v377
  %394 = vst [vmem:[#allocation2 + $0x30] sm:$0xff] %v378
  %395 = vst [vmem:[#allocation2 + $0x38] sm:$0xff] %v379
  %396 = vst [vmem:[#allocation2 + $0x40] sm:$0xff] %v380
  %397 = vst [vmem:[#allocation2 + $0x48] sm:$0xff] %v381
  %398 = vst [vmem:[#allocation2 + $0x50] sm:$0xff] %v382
  %399 = vst [vmem:[#allocation2 + $0x58] sm:$0xff] %v383
  %400 = vst [vmem:[#allocation2 + $0x60] sm:$0xff] %v384
  %401 = vst [vmem:[#allocation2 + $0x68] sm:$0xff] %v385
  %402 = vst [vmem:[#allocation2 + $0x70] sm:$0xff] %v386
  %403 = vst [vmem:[#allocation2 + $0x78] sm:$0xff] %v387
  // Predicated region
  $region18: #{_lambda_.17} parent=0 // pred_check
    %p404 = pneg %p15
  $region19: #{_lambda_.17} parent=0 // pred_check_branch
    %406 = sbr.rel (%p404) target = $region21
  $region20: #{_lambda_.17} parent=0 // pred_region
    %v407 = vld [vmem:[#allocation2] sm:$0xff]
    %v408 = vld [vmem:[#allocation2 + $0x8] sm:$0xff]
    %v409 = vld [vmem:[#allocation2 + $0x10] sm:$0xff]
    %v410 = vld [vmem:[#allocation2 + $0x18] sm:$0xff]
    %v411 = vld [vmem:[#allocation2 + $0x20] sm:$0xff]
    %v412 = vld [vmem:[#allocation2 + $0x28] sm:$0xff]
    %v413 = vld [vmem:[#allocation2 + $0x30] sm:$0xff]
    %v414 = vld [vmem:[#allocation2 + $0x38] sm:$0xff]
    %v415 = vld [vmem:[#allocation2 + $0x40] sm:$0xff]
    %v416 = vld [vmem:[#allocation2 + $0x48] sm:$0xff]
    %v417 = vld [vmem:[#allocation2 + $0x50] sm:$0xff]
    %v418 = vld [vmem:[#allocation2 + $0x58] sm:$0xff]
    %v419 = vld [vmem:[#allocation2 + $0x60] sm:$0xff]
    %v420 = vld [vmem:[#allocation2 + $0x68] sm:$0xff]
    %v421 = vld [vmem:[#allocation2 + $0x70] sm:$0xff]
    %v422 = vld [vmem:[#allocation2 + $0x78] sm:$0xff]
    %v423 = vld [vmem:[%s2] sm:$0x1]
    %v425 = vlaneseq
    %v426 = vshrl.u32 %v425, 7
    %v427 = vsub.s32 0, %v426
    %v428 = vrot.slane %v423, %v427
    %v430 = vadd.f32 %v407, %v428
    %v431 = vadd.f32 %v408, %v428
    %v432 = vadd.f32 %v409, %v428
    %v433 = vadd.f32 %v410, %v428
    %v434 = vadd.f32 %v411, %v428
    %v435 = vadd.f32 %v412, %v428
    %v436 = vadd.f32 %v413, %v428
    %v437 = vadd.f32 %v414, %v428
    %v438 = vadd.f32 %v415, %v428
    %v439 = vadd.f32 %v416, %v428
    %v440 = vadd.f32 %v417, %v428
    %v441 = vadd.f32 %v418, %v428
    %v442 = vadd.f32 %v419, %v428
    %v443 = vadd.f32 %v420, %v428
    %v444 = vadd.f32 %v421, %v428
    %v445 = vadd.f32 %v422, %v428
    %vm446 = vcmp.gt.f32.partialorder %v430, 0.0
    %vm447 = vcmp.gt.f32.partialorder %v431, 0.0
    %vm448 = vcmp.gt.f32.partialorder %v432, 0.0
    %vm449 = vcmp.gt.f32.partialorder %v433, 0.0
    %vm450 = vcmp.gt.f32.partialorder %v434, 0.0
    %vm451 = vcmp.gt.f32.partialorder %v435, 0.0
    %vm452 = vcmp.gt.f32.partialorder %v436, 0.0
    %vm453 = vcmp.gt.f32.partialorder %v437, 0.0
    %vm454 = vcmp.gt.f32.partialorder %v438, 0.0
    %vm455 = vcmp.gt.f32.partialorder %v439, 0.0
    %vm456 = vcmp.gt.f32.partialorder %v440, 0.0
    %vm457 = vcmp.gt.f32.partialorder %v441, 0.0
    %vm458 = vcmp.gt.f32.partialorder %v442, 0.0
    %vm459 = vcmp.gt.f32.partialorder %v443, 0.0
    %vm460 = vcmp.gt.f32.partialorder %v444, 0.0
    %vm461 = vcmp.gt.f32.partialorder %v445, 0.0
    %v462 = vmul.f32 %v430, 0.1
    %v463 = vmul.f32 %v431, 0.1
    %v464 = vmul.f32 %v432, 0.1
    %v465 = vmul.f32 %v433, 0.1
    %v466 = vmul.f32 %v434, 0.1
    %v467 = vmul.f32 %v435, 0.1
    %v468 = vmul.f32 %v436, 0.1
    %v469 = vmul.f32 %v437, 0.1
    %v470 = vmul.f32 %v438, 0.1
    %v471 = vmul.f32 %v439, 0.1
    %v472 = vmul.f32 %v440, 0.1
    %v473 = vmul.f32 %v441, 0.1
    %v474 = vmul.f32 %v442, 0.1
    %v475 = vmul.f32 %v443, 0.1
    %v476 = vmul.f32 %v444, 0.1
    %v477 = vmul.f32 %v445, 0.1
    %v478 = vsel %vm446, %v430, %v462
    %v479 = vsel %vm447, %v431, %v463
    %v480 = vsel %vm448, %v432, %v464
    %v481 = vsel %vm449, %v433, %v465
    %v482 = vsel %vm450, %v434, %v466
    %v483 = vsel %vm451, %v435, %v467
    %v484 = vsel %vm452, %v436, %v468
    %v485 = vsel %vm453, %v437, %v469
    %v486 = vsel %vm454, %v438, %v470
    %v487 = vsel %vm455, %v439, %v471
    %v488 = vsel %vm456, %v440, %v472
    %v489 = vsel %vm457, %v441, %v473
    %v490 = vsel %vm458, %v442, %v474
    %v491 = vsel %vm459, %v443, %v475
    %v492 = vsel %vm460, %v444, %v476
    %v493 = vsel %vm461, %v445, %v477
    %v494 = vpack.c.bf16 %v479, %v478
    %v495 = vpack.c.bf16 %v481, %v480
    %v496 = vpack.c.bf16 %v483, %v482
    %v497 = vpack.c.bf16 %v485, %v484
    %v498 = vpack.c.bf16 %v487, %v486
    %v499 = vpack.c.bf16 %v489, %v488
    %v500 = vpack.c.bf16 %v491, %v490
    %v501 = vpack.c.bf16 %v493, %v492
    %v510 = vunpack.c.l.b16 %v494
    %v511 = vunpack.c.h.b16 %v494
    %v512 = vunpack.c.l.b16 %v495
    %v513 = vunpack.c.h.b16 %v495
    %v514 = vunpack.c.l.b16 %v496
    %v515 = vunpack.c.h.b16 %v496
    %v516 = vunpack.c.l.b16 %v497
    %v517 = vunpack.c.h.b16 %v497
    %v518 = vunpack.c.l.b16 %v498
    %v519 = vunpack.c.h.b16 %v498
    %v520 = vunpack.c.l.b16 %v499
    %v521 = vunpack.c.h.b16 %v499
    %v522 = vunpack.c.l.b16 %v500
    %v523 = vunpack.c.h.b16 %v500
    %v524 = vunpack.c.l.b16 %v501
    %v525 = vunpack.c.h.b16 %v501
    %v526 = vpack.c.b16 %v510, %v510
    %v527 = vpack.c.b16 %v511, %v511
    %v528 = vpack.c.b16 %v512, %v512
    %v529 = vpack.c.b16 %v513, %v513
    %v530 = vpack.c.b16 %v514, %v514
    %v531 = vpack.c.b16 %v515, %v515
    %v532 = vpack.c.b16 %v516, %v516
    %v533 = vpack.c.b16 %v517, %v517
    %v534 = vpack.c.b16 %v518, %v518
    %v535 = vpack.c.b16 %v519, %v519
    %v536 = vpack.c.b16 %v520, %v520
    %v537 = vpack.c.b16 %v521, %v521
    %v538 = vpack.c.b16 %v522, %v522
    %v539 = vpack.c.b16 %v523, %v523
    %v540 = vpack.c.b16 %v524, %v524
    %v541 = vpack.c.b16 %v525, %v525
    %558 = vst [vmem:[%s3] sm:$0xf] %v526
    %559 = vst [vmem:[%s3 + $0x4] sm:$0xf] %v527
    %560 = vst [vmem:[%s3 + $0x8] sm:$0xf] %v528
    %561 = vst [vmem:[%s3 + $0xc] sm:$0xf] %v529
    %562 = vst [vmem:[%s3 + $0x10] sm:$0xf] %v530
    %563 = vst [vmem:[%s3 + $0x14] sm:$0xf] %v531
    %564 = vst [vmem:[%s3 + $0x18] sm:$0xf] %v532
    %565 = vst [vmem:[%s3 + $0x1c] sm:$0xf] %v533
    %566 = vst [vmem:[%s3 + $0x20] sm:$0xf] %v534
    %567 = vst [vmem:[%s3 + $0x24] sm:$0xf] %v535
    %568 = vst [vmem:[%s3 + $0x28] sm:$0xf] %v536
    %569 = vst [vmem:[%s3 + $0x2c] sm:$0xf] %v537
    %570 = vst [vmem:[%s3 + $0x30] sm:$0xf] %v538
    %571 = vst [vmem:[%s3 + $0x34] sm:$0xf] %v539
    %572 = vst [vmem:[%s3 + $0x38] sm:$0xf] %v540
    %573 = vst [vmem:[%s3 + $0x3c] sm:$0xf] %v541
  $region21: #{_lambda_.17} parent=0 // pred_fallthru
    _
  // Predicated region
  $region22: #{_lambda_.17} parent=0 // pred_check
    _
  $region23: #{_lambda_.17} parent=0 // pred_check_branch
    %575 = sbr.rel (0) target = $region25
  $region24: #{_lambda_.17} parent=0 // pred_region
    _
  $region25: #{_lambda_.17} parent=0 // pred_fallthru
    _
  // Predicated region
  $region26: #{_lambda_.17} parent=0 // pred_check
    _
  $region27: #{_lambda_.17} parent=0 // pred_check_branch
    %577 = sbr.rel (0) target = $region29
  $region28: #{_lambda_.17} parent=0 // pred_region
    _
  $region29: #{_lambda_.17} parent=0 // pred_fallthru
    _

// kernel: _lambda_.18
$region0: #{_lambda_.18}
  #allocation0 [shape = 'u32[]', space=smem, size = 0x4, offset = 0x4, fixed_abs, tag = 'smem constant byte address 0x4 - core index']
  #allocation1 [shape = 'u32[144,128]{1,0:T(1,128)}', space=vmem, size = 0x12000, scoped, tag = 'internal scratch']
  #allocation2 [shape = 'f32[128,128]{1,0:T(8,128)}', space=vmem, size = 0x10000, scoped, tag = 'scratch operand']
  %s0 = inlined_call_operand.vmem [shape: bf16[128,128], index: 0, kind: input, shape index: {}]
  %s1 = inlined_call_operand.vmem [shape: bf16[128,128], index: 1, kind: input, shape index: {}]
  %s2 = inlined_call_operand.vmem [shape: f32[1,128], index: 2, kind: input, shape index: {}]
  %s3 = inlined_call_operand.vmem [shape: bf16[128,128], index: 3, kind: output, shape index: {}]
  %s4 = sld [smem:[#allocation0]]
  $region30: #{_lambda_.18} parent=0
    _
  %s6 = ssub.s32 1, %s4
  %s7 = scalar_select 0, %s6, %s4
  // Predicated region
  $region2: #{_lambda_.18} parent=0 // pred_check
    _
  $region3: #{_lambda_.18} parent=0 // pred_check_branch
    %9 = sbr.rel (0) target = $region5
  $region4: #{_lambda_.18} parent=0 // pred_region
    _
  $region5: #{_lambda_.18} parent=0 // pred_fallthru
    _
  // Predicated region
  $region6: #{_lambda_.18} parent=0 // pred_check
    _
  $region7: #{_lambda_.18} parent=0 // pred_check_branch
    %11 = sbr.rel (0) target = $region9
  $region8: #{_lambda_.18} parent=0 // pred_region
    _
  $region9: #{_lambda_.18} parent=0 // pred_fallthru
    _
  // Predicated region
  $region10: #{_lambda_.18} parent=0 // pred_check
    _
  $region11: #{_lambda_.18} parent=0 // pred_check_branch
    %13 = sbr.rel (0) target = $region13
  $region12: #{_lambda_.18} parent=0 // pred_region
    _
  $region13: #{_lambda_.18} parent=0 // pred_fallthru
    _
  %p15 = scmp.eq.s32.totalorder 0, 0
  // Predicated region
  $region14: #{_lambda_.18} parent=0 // pred_check
    %p16 = pneg %p15
  $region15: #{_lambda_.18} parent=0 // pred_check_branch
    %18 = sbr.rel (%p16) target = $region17
  $region16: #{_lambda_.18} parent=0 // pred_region
    %19 = vst [vmem:[#allocation2] sm:$0xff] 0.0
    %20 = vst [vmem:[#allocation2 + $0x8] sm:$0xff] 0.0
    %21 = vst [vmem:[#allocation2 + $0x10] sm:$0xff] 0.0
    %22 = vst [vmem:[#allocation2 + $0x18] sm:$0xff] 0.0
    %23 = vst [vmem:[#allocation2 + $0x20] sm:$0xff] 0.0
    %24 = vst [vmem:[#allocation2 + $0x28] sm:$0xff] 0.0
    %25 = vst [vmem:[#allocation2 + $0x30] sm:$0xff] 0.0
    %26 = vst [vmem:[#allocation2 + $0x38] sm:$0xff] 0.0
    %27 = vst [vmem:[#allocation2 + $0x40] sm:$0xff] 0.0
    %28 = vst [vmem:[#allocation2 + $0x48] sm:$0xff] 0.0
    %29 = vst [vmem:[#allocation2 + $0x50] sm:$0xff] 0.0
    %30 = vst [vmem:[#allocation2 + $0x58] sm:$0xff] 0.0
    %31 = vst [vmem:[#allocation2 + $0x60] sm:$0xff] 0.0
    %32 = vst [vmem:[#allocation2 + $0x68] sm:$0xff] 0.0
    %33 = vst [vmem:[#allocation2 + $0x70] sm:$0xff] 0.0
    %34 = vst [vmem:[#allocation2 + $0x78] sm:$0xff] 0.0
  $region17: #{_lambda_.18} parent=0 // pred_fallthru
    _
  %v35 = vld [vmem:[#allocation2] sm:$0xff]
  %v36 = vld [vmem:[#allocation2 + $0x8] sm:$0xff]
  %v37 = vld [vmem:[#allocation2 + $0x10] sm:$0xff]
  %v38 = vld [vmem:[#allocation2 + $0x18] sm:$0xff]
  %v39 = vld [vmem:[#allocation2 + $0x20] sm:$0xff]
  %v40 = vld [vmem:[#allocation2 + $0x28] sm:$0xff]
  %v41 = vld [vmem:[#allocation2 + $0x30] sm:$0xff]
  %v42 = vld [vmem:[#allocation2 + $0x38] sm:$0xff]
  %v43 = vld [vmem:[#allocation2 + $0x40] sm:$0xff]
  %v44 = vld [vmem:[#allocation2 + $0x48] sm:$0xff]
  %v45 = vld [vmem:[#allocation2 + $0x50] sm:$0xff]
  %v46 = vld [vmem:[#allocation2 + $0x58] sm:$0xff]
  %v47 = vld [vmem:[#allocation2 + $0x60] sm:$0xff]
  %v48 = vld [vmem:[#allocation2 + $0x68] sm:$0xff]
  %v49 = vld [vmem:[#allocation2 + $0x70] sm:$0xff]
  %v50 = vld [vmem:[#allocation2 + $0x78] sm:$0xff]
  %v51 = vld [vmem:[%s0] sm:$0xf]
  %v52 = vld [vmem:[%s0 + $0x4] sm:$0xf]
  %v53 = vld [vmem:[%s0 + $0x8] sm:$0xf]
  %v54 = vld [vmem:[%s0 + $0xc] sm:$0xf]
  %v55 = vld [vmem:[%s0 + $0x10] sm:$0xf]
  %v56 = vld [vmem:[%s0 + $0x14] sm:$0xf]
  %v57 = vld [vmem:[%s0 + $0x18] sm:$0xf]
  %v58 = vld [vmem:[%s0 + $0x1c] sm:$0xf]
  %v59 = vld [vmem:[%s0 + $0x20] sm:$0xf]
  %v60 = vld [vmem:[%s0 + $0x24] sm:$0xf]
  %v61 = vld [vmem:[%s0 + $0x28] sm:$0xf]
  %v62 = vld [vmem:[%s0 + $0x2c] sm:$0xf]
  %v63 = vld [vmem:[%s0 + $0x30] sm:$0xf]
  %v64 = vld [vmem:[%s0 + $0x34] sm:$0xf]
  %v65 = vld [vmem:[%s0 + $0x38] sm:$0xf]
  %v66 = vld [vmem:[%s0 + $0x3c] sm:$0xf]
  %v67 = vld [vmem:[%s1] sm:$0xf]
  %v68 = vld [vmem:[%s1 + $0x4] sm:$0xf]
  %v69 = vld [vmem:[%s1 + $0x8] sm:$0xf]
  %v70 = vld [vmem:[%s1 + $0xc] sm:$0xf]
  %v71 = vld [vmem:[%s1 + $0x10] sm:$0xf]
  %v72 = vld [vmem:[%s1 + $0x14] sm:$0xf]
  %v73 = vld [vmem:[%s1 + $0x18] sm:$0xf]
  %v74 = vld [vmem:[%s1 + $0x1c] sm:$0xf]
  %v75 = vld [vmem:[%s1 + $0x20] sm:$0xf]
  %v76 = vld [vmem:[%s1 + $0x24] sm:$0xf]
  %v77 = vld [vmem:[%s1 + $0x28] sm:$0xf]
  %v78 = vld [vmem:[%s1 + $0x2c] sm:$0xf]
  %v79 = vld [vmem:[%s1 + $0x30] sm:$0xf]
  %v80 = vld [vmem:[%s1 + $0x34] sm:$0xf]
  %v81 = vld [vmem:[%s1 + $0x38] sm:$0xf]
  %v82 = vld [vmem:[%s1 + $0x3c] sm:$0xf]
  %v99 = vunpack.c.l.b16 %v51
  %v100 = vunpack.c.l.b16 %v52
  %v101 = vunpack.c.l.b16 %v53
  %v102 = vunpack.c.l.b16 %v54
  %v103 = vunpack.c.l.b16 %v55
  %v104 = vunpack.c.l.b16 %v56
  %v105 = vunpack.c.l.b16 %v57
  %v106 = vunpack.c.l.b16 %v58
  %v107 = vunpack.c.l.b16 %v59
  %v108 = vunpack.c.l.b16 %v60
  %v109 = vunpack.c.l.b16 %v61
  %v110 = vunpack.c.l.b16 %v62
  %v111 = vunpack.c.l.b16 %v63
  %v112 = vunpack.c.l.b16 %v64
  %v113 = vunpack.c.l.b16 %v65
  %v114 = vunpack.c.l.b16 %v66
  %v115 = vpack.c.b16 %v100, %v99
  %v116 = vpack.c.b16 %v102, %v101
  %v117 = vpack.c.b16 %v104, %v103
  %v118 = vpack.c.b16 %v106, %v105
  %v119 = vpack.c.b16 %v108, %v107
  %v120 = vpack.c.b16 %v110, %v109
  %v121 = vpack.c.b16 %v112, %v111
  %v122 = vpack.c.b16 %v114, %v113
  %v147 = vunpack.c.l.b16 %v67
  %v148 = vunpack.c.l.b16 %v68
  %v149 = vunpack.c.l.b16 %v69
  %v150 = vunpack.c.l.b16 %v70
  %v151 = vunpack.c.l.b16 %v71
  %v152 = vunpack.c.l.b16 %v72
  %v153 = vunpack.c.l.b16 %v73
  %v154 = vunpack.c.l.b16 %v74
  %v155 = vunpack.c.l.b16 %v75
  %v156 = vunpack.c.l.b16 %v76
  %v157 = vunpack.c.l.b16 %v77
  %v158 = vunpack.c.l.b16 %v78
  %v159 = vunpack.c.l.b16 %v79
  %v160 = vunpack.c.l.b16 %v80
  %v161 = vunpack.c.l.b16 %v81
  %v162 = vunpack.c.l.b16 %v82
  %v163 = vpack.c.b16 %v148, %v147
  %v164 = vpack.c.b16 %v150, %v149
  %v165 = vpack.c.b16 %v152, %v151
  %v166 = vpack.c.b16 %v154, %v153
  %v167 = vpack.c.b16 %v156, %v155
  %v168 = vpack.c.b16 %v158, %v157
  %v169 = vpack.c.b16 %v160, %v159
  %v170 = vpack.c.b16 %v162, %v161
  %179 = vmatprep.subr.bf16.mxu0 0
  %180 = vmatpush1.bf16.msra.mxu0 %v163
  %181 = vmatprep.subr.bf16.mxu0 0
  %182 = vmatpush1.bf16.msra.mxu0 %v164
  %183 = vmatprep.subr.bf16.mxu0 0
  %184 = vmatpush1.bf16.msra.mxu0 %v165
  %185 = vmatprep.subr.bf16.mxu0 0
  %186 = vmatpush1.bf16.msra.mxu0 %v166
  %187 = vmatprep.subr.bf16.mxu0 0
  %188 = vmatpush1.bf16.msra.mxu0 %v167
  %189 = vmatprep.subr.bf16.mxu0 0
  %190 = vmatpush1.bf16.msra.mxu0 %v168
  %191 = vmatprep.subr.bf16.mxu0 0
  %192 = vmatpush1.bf16.msra.mxu0 %v169
  %193 = vmatprep.subr.bf16.mxu0 0
  %194 = vmatpush1.bf16.msra.mxu0 %v170
  %195 = vmatprep.subr.bf16.mxu0 0
  %196 = vmatpush1.bf16.msra.mxu0 0
  %197 = vmatprep.subr.bf16.mxu0 0
  %198 = vmatpush1.bf16.msra.mxu0 0
  %199 = vmatprep.subr.bf16.mxu0 0
  %200 = vmatpush1.bf16.msra.mxu0 0
  %201 = vmatprep.subr.bf16.mxu0 0
  %202 = vmatpush1.bf16.msra.mxu0 0
  %203 = vmatprep.subr.bf16.mxu0 0
  %204 = vmatpush1.bf16.msra.mxu0 0
  %205 = vmatprep.subr.bf16.mxu0 0
  %206 = vmatpush1.bf16.msra.mxu0 0
  %207 = vmatprep.subr.bf16.mxu0 0
  %208 = vmatpush1.bf16.msra.mxu0 0
  %209 = vmatprep.subr.bf16.mxu0 0
  %210 = vmatpush1.bf16.msra.mxu0 0
  %211 = vmatprep.mubr.bf16.mxu0 0
  %212 = vmatmul.mubr.bf16.gmra.mrb[0].mxu0 %v115
  %v213 = vpop.f32.mrb[0].mxu0
  %v214 = vadd.f32 0.0, %v213
  %v215 = vpop.f32.mrb[0].mxu0
  %v216 = vpop.f32.mrb[0].mxu0
  %v217 = vadd.f32 0.0, %v216
  %v218 = vpop.f32.mrb[0].mxu0
  %219 = vmatprep.mubr.bf16.mxu0 0
  %220 = vmatmul.mubr.bf16.gmra.mrb[0].mxu0 %v116
  %v221 = vpop.f32.mrb[0].mxu0
  %v222 = vadd.f32 0.0, %v221
  %v223 = vpop.f32.mrb[0].mxu0
  %v224 = vpop.f32.mrb[0].mxu0
  %v225 = vadd.f32 0.0, %v224
  %v226 = vpop.f32.mrb[0].mxu0
  %227 = vmatprep.mubr.bf16.mxu0 0
  %228 = vmatmul.mubr.bf16.gmra.mrb[0].mxu0 %v117
  %v229 = vpop.f32.mrb[0].mxu0
  %v230 = vadd.f32 0.0, %v229
  %v231 = vpop.f32.mrb[0].mxu0
  %v232 = vpop.f32.mrb[0].mxu0
  %v233 = vadd.f32 0.0, %v232
  %v234 = vpop.f32.mrb[0].mxu0
  %235 = vmatprep.mubr.bf16.mxu0 0
  %236 = vmatmul.mubr.bf16.gmra.mrb[0].mxu0 %v118
  %v237 = vpop.f32.mrb[0].mxu0
  %v238 = vadd.f32 0.0, %v237
  %v239 = vpop.f32.mrb[0].mxu0
  %v240 = vpop.f32.mrb[0].mxu0
  %v241 = vadd.f32 0.0, %v240
  %v242 = vpop.f32.mrb[0].mxu0
  %243 = vmatprep.mubr.bf16.mxu0 0
  %244 = vmatmul.mubr.bf16.gmra.mrb[0].mxu0 %v119
  %v245 = vpop.f32.mrb[0].mxu0
  %v246 = vadd.f32 0.0, %v245
  %v247 = vpop.f32.mrb[0].mxu0
  %v248 = vpop.f32.mrb[0].mxu0
  %v249 = vadd.f32 0.0, %v248
  %v250 = vpop.f32.mrb[0].mxu0
  %251 = vmatprep.mubr.bf16.mxu0 0
  %252 = vmatmul.mubr.bf16.gmra.mrb[0].mxu0 %v120
  %v253 = vpop.f32.mrb[0].mxu0
  %v254 = vadd.f32 0.0, %v253
  %v255 = vpop.f32.mrb[0].mxu0
  %v256 = vpop.f32.mrb[0].mxu0
  %v257 = vadd.f32 0.0, %v256
  %v258 = vpop.f32.mrb[0].mxu0
  %259 = vmatprep.mubr.bf16.mxu0 0
  %260 = vmatmul.mubr.bf16.gmra.mrb[0].mxu0 %v121
  %v261 = vpop.f32.mrb[0].mxu0
  %v262 = vadd.f32 0.0, %v261
  %v263 = vpop.f32.mrb[0].mxu0
  %v264 = vpop.f32.mrb[0].mxu0
  %v265 = vadd.f32 0.0, %v264
  %v266 = vpop.f32.mrb[0].mxu0
  %267 = vmatprep.mubr.bf16.mxu0 0
  %268 = vmatmul.mubr.bf16.gmra.mrb[0].mxu0 %v122
  %v269 = vpop.f32.mrb[0].mxu0
  %v270 = vadd.f32 0.0, %v269
  %v271 = vpop.f32.mrb[0].mxu0
  %v272 = vpop.f32.mrb[0].mxu0
  %v273 = vadd.f32 0.0, %v272
  %v274 = vpop.f32.mrb[0].mxu0
  %275 = vdwg.mxu0
  %v276 = vadd.f32 %v35, %v214
  %v277 = vadd.f32 %v36, %v217
  %v278 = vadd.f32 %v37, %v222
  %v279 = vadd.f32 %v38, %v225
  %v280 = vadd.f32 %v39, %v230
  %v281 = vadd.f32 %v40, %v233
  %v282 = vadd.f32 %v41, %v238
  %v283 = vadd.f32 %v42, %v241
  %v284 = vadd.f32 %v43, %v246
  %v285 = vadd.f32 %v44, %v249
  %v286 = vadd.f32 %v45, %v254
  %v287 = vadd.f32 %v46, %v257
  %v288 = vadd.f32 %v47, %v262
  %v289 = vadd.f32 %v48, %v265
  %v290 = vadd.f32 %v49, %v270
  %v291 = vadd.f32 %v50, %v273
  %292 = vst [vmem:[#allocation2] sm:$0xff] %v276
  %293 = vst [vmem:[#allocation2 + $0x8] sm:$0xff] %v277
  %294 = vst [vmem:[#allocation2 + $0x10] sm:$0xff] %v278
  %295 = vst [vmem:[#allocation2 + $0x18] sm:$0xff] %v279
  %296 = vst [vmem:[#allocation2 + $0x20] sm:$0xff] %v280
  %297 = vst [vmem:[#allocation2 + $0x28] sm:$0xff] %v281
  %298 = vst [vmem:[#allocation2 + $0x30] sm:$0xff] %v282
  %299 = vst [vmem:[#allocation2 + $0x38] sm:$0xff] %v283
  %300 = vst [vmem:[#allocation2 + $0x40] sm:$0xff] %v284
  %301 = vst [vmem:[#allocation2 + $0x48] sm:$0xff] %v285
  %302 = vst [vmem:[#allocation2 + $0x50] sm:$0xff] %v286
  %303 = vst [vmem:[#allocation2 + $0x58] sm:$0xff] %v287
  %304 = vst [vmem:[#allocation2 + $0x60] sm:$0xff] %v288
  %305 = vst [vmem:[#allocation2 + $0x68] sm:$0xff] %v289
  %306 = vst [vmem:[#allocation2 + $0x70] sm:$0xff] %v290
  %307 = vst [vmem:[#allocation2 + $0x78] sm:$0xff] %v291
  // Predicated region
  $region18: #{_lambda_.18} parent=0 // pred_check
    %p308 = pneg %p15
  $region19: #{_lambda_.18} parent=0 // pred_check_branch
    %310 = sbr.rel (%p308) target = $region21
  $region20: #{_lambda_.18} parent=0 // pred_region
    %v311 = vld [vmem:[#allocation2] sm:$0xff]
    %v312 = vld [vmem:[#allocation2 + $0x8] sm:$0xff]
    %v313 = vld [vmem:[#allocation2 + $0x10] sm:$0xff]
    %v314 = vld [vmem:[#allocation2 + $0x18] sm:$0xff]
    %v315 = vld [vmem:[#allocation2 + $0x20] sm:$0xff]
    %v316 = vld [vmem:[#allocation2 + $0x28] sm:$0xff]
    %v317 = vld [vmem:[#allocation2 + $0x30] sm:$0xff]
    %v318 = vld [vmem:[#allocation2 + $0x38] sm:$0xff]
    %v319 = vld [vmem:[#allocation2 + $0x40] sm:$0xff]
    %v320 = vld [vmem:[#allocation2 + $0x48] sm:$0xff]
    %v321 = vld [vmem:[#allocation2 + $0x50] sm:$0xff]
    %v322 = vld [vmem:[#allocation2 + $0x58] sm:$0xff]
    %v323 = vld [vmem:[#allocation2 + $0x60] sm:$0xff]
    %v324 = vld [vmem:[#allocation2 + $0x68] sm:$0xff]
    %v325 = vld [vmem:[#allocation2 + $0x70] sm:$0xff]
    %v326 = vld [vmem:[#allocation2 + $0x78] sm:$0xff]
    %v327 = vld [vmem:[%s2] sm:$0x1]
    %v329 = vlaneseq
    %v330 = vshrl.u32 %v329, 7
    %v331 = vsub.s32 0, %v330
    %v332 = vrot.slane %v327, %v331
    %v334 = vadd.f32 %v311, %v332
    %v335 = vadd.f32 %v312, %v332
    %v336 = vadd.f32 %v313, %v332
    %v337 = vadd.f32 %v314, %v332
    %v338 = vadd.f32 %v315, %v332
    %v339 = vadd.f32 %v316, %v332
    %v340 = vadd.f32 %v317, %v332
    %v341 = vadd.f32 %v318, %v332
    %v342 = vadd.f32 %v319, %v332
    %v343 = vadd.f32 %v320, %v332
    %v344 = vadd.f32 %v321, %v332
    %v345 = vadd.f32 %v322, %v332
    %v346 = vadd.f32 %v323, %v332
    %v347 = vadd.f32 %v324, %v332
    %v348 = vadd.f32 %v325, %v332
    %v349 = vadd.f32 %v326, %v332
    %vm350 = vcmp.gt.f32.partialorder %v334, 0.0
    %vm351 = vcmp.gt.f32.partialorder %v335, 0.0
    %vm352 = vcmp.gt.f32.partialorder %v336, 0.0
    %vm353 = vcmp.gt.f32.partialorder %v337, 0.0
    %vm354 = vcmp.gt.f32.partialorder %v338, 0.0
    %vm355 = vcmp.gt.f32.partialorder %v339, 0.0
    %vm356 = vcmp.gt.f32.partialorder %v340, 0.0
    %vm357 = vcmp.gt.f32.partialorder %v341, 0.0
    %vm358 = vcmp.gt.f32.partialorder %v342, 0.0
    %vm359 = vcmp.gt.f32.partialorder %v343, 0.0
    %vm360 = vcmp.gt.f32.partialorder %v344, 0.0
    %vm361 = vcmp.gt.f32.partialorder %v345, 0.0
    %vm362 = vcmp.gt.f32.partialorder %v346, 0.0
    %vm363 = vcmp.gt.f32.partialorder %v347, 0.0
    %vm364 = vcmp.gt.f32.partialorder %v348, 0.0
    %vm365 = vcmp.gt.f32.partialorder %v349, 0.0
    %v366 = vmul.f32 %v334, 0.1
    %v367 = vmul.f32 %v335, 0.1
    %v368 = vmul.f32 %v336, 0.1
    %v369 = vmul.f32 %v337, 0.1
    %v370 = vmul.f32 %v338, 0.1
    %v371 = vmul.f32 %v339, 0.1
    %v372 = vmul.f32 %v340, 0.1
    %v373 = vmul.f32 %v341, 0.1
    %v374 = vmul.f32 %v342, 0.1
    %v375 = vmul.f32 %v343, 0.1
    %v376 = vmul.f32 %v344, 0.1
    %v377 = vmul.f32 %v345, 0.1
    %v378 = vmul.f32 %v346, 0.1
    %v379 = vmul.f32 %v347, 0.1
    %v380 = vmul.f32 %v348, 0.1
    %v381 = vmul.f32 %v349, 0.1
    %v382 = vsel %vm350, %v334, %v366
    %v383 = vsel %vm351, %v335, %v367
    %v384 = vsel %vm352, %v336, %v368
    %v385 = vsel %vm353, %v337, %v369
    %v386 = vsel %vm354, %v338, %v370
    %v387 = vsel %vm355, %v339, %v371
    %v388 = vsel %vm356, %v340, %v372
    %v389 = vsel %vm357, %v341, %v373
    %v390 = vsel %vm358, %v342, %v374
    %v391 = vsel %vm359, %v343, %v375
    %v392 = vsel %vm360, %v344, %v376
    %v393 = vsel %vm361, %v345, %v377
    %v394 = vsel %vm362, %v346, %v378
    %v395 = vsel %vm363, %v347, %v379
    %v396 = vsel %vm364, %v348, %v380
    %v397 = vsel %vm365, %v349, %v381
    %v398 = vpack.c.bf16 %v383, %v382
    %v399 = vpack.c.bf16 %v385, %v384
    %v400 = vpack.c.bf16 %v387, %v386
    %v401 = vpack.c.bf16 %v389, %v388
    %v402 = vpack.c.bf16 %v391, %v390
    %v403 = vpack.c.bf16 %v393, %v392
    %v404 = vpack.c.bf16 %v395, %v394
    %v405 = vpack.c.bf16 %v397, %v396
    %v414 = vunpack.c.l.b16 %v398
    %v415 = vunpack.c.h.b16 %v398
    %v416 = vunpack.c.l.b16 %v399
    %v417 = vunpack.c.h.b16 %v399
    %v418 = vunpack.c.l.b16 %v400
    %v419 = vunpack.c.h.b16 %v400
    %v420 = vunpack.c.l.b16 %v401
    %v421 = vunpack.c.h.b16 %v401
    %v422 = vunpack.c.l.b16 %v402
    %v423 = vunpack.c.h.b16 %v402
    %v424 = vunpack.c.l.b16 %v403
    %v425 = vunpack.c.h.b16 %v403
    %v426 = vunpack.c.l.b16 %v404
    %v427 = vunpack.c.h.b16 %v404
    %v428 = vunpack.c.l.b16 %v405
    %v429 = vunpack.c.h.b16 %v405
    %v430 = vpack.c.b16 %v414, %v414
    %v431 = vpack.c.b16 %v415, %v415
    %v432 = vpack.c.b16 %v416, %v416
    %v433 = vpack.c.b16 %v417, %v417
    %v434 = vpack.c.b16 %v418, %v418
    %v435 = vpack.c.b16 %v419, %v419
    %v436 = vpack.c.b16 %v420, %v420
    %v437 = vpack.c.b16 %v421, %v421
    %v438 = vpack.c.b16 %v422, %v422
    %v439 = vpack.c.b16 %v423, %v423
    %v440 = vpack.c.b16 %v424, %v424
    %v441 = vpack.c.b16 %v425, %v425
    %v442 = vpack.c.b16 %v426, %v426
    %v443 = vpack.c.b16 %v427, %v427
    %v444 = vpack.c.b16 %v428, %v428
    %v445 = vpack.c.b16 %v429, %v429
    %462 = vst [vmem:[%s3] sm:$0xf] %v430
    %463 = vst [vmem:[%s3 + $0x4] sm:$0xf] %v431
    %464 = vst [vmem:[%s3 + $0x8] sm:$0xf] %v432
    %465 = vst [vmem:[%s3 + $0xc] sm:$0xf] %v433
    %466 = vst [vmem:[%s3 + $0x10] sm:$0xf] %v434
    %467 = vst [vmem:[%s3 + $0x14] sm:$0xf] %v435
    %468 = vst [vmem:[%s3 + $0x18] sm:$0xf] %v436
    %469 = vst [vmem:[%s3 + $0x1c] sm:$0xf] %v437
    %470 = vst [vmem:[%s3 + $0x20] sm:$0xf] %v438
    %471 = vst [vmem:[%s3 + $0x24] sm:$0xf] %v439
    %472 = vst [vmem:[%s3 + $0x28] sm:$0xf] %v440
    %473 = vst [vmem:[%s3 + $0x2c] sm:$0xf] %v441
    %474 = vst [vmem:[%s3 + $0x30] sm:$0xf] %v442
    %475 = vst [vmem:[%s3 + $0x34] sm:$0xf] %v443
    %476 = vst [vmem:[%s3 + $0x38] sm:$0xf] %v444
    %477 = vst [vmem:[%s3 + $0x3c] sm:$0xf] %v445
  $region21: #{_lambda_.18} parent=0 // pred_fallthru
    _
  // Predicated region
  $region22: #{_lambda_.18} parent=0 // pred_check
    _
  $region23: #{_lambda_.18} parent=0 // pred_check_branch
    %479 = sbr.rel (0) target = $region25
  $region24: #{_lambda_.18} parent=0 // pred_region
    _
  $region25: #{_lambda_.18} parent=0 // pred_fallthru
    _
  // Predicated region
  $region26: #{_lambda_.18} parent=0 // pred_check
    _
  $region27: #{_lambda_.18} parent=0 // pred_check_branch
    %481 = sbr.rel (0) target = $region29
  $region28: #{_lambda_.18} parent=0 // pred_region
    _
  $region29: #{_lambda_.18} parent=0 // pred_fallthru
    _

// kernel: _lambda_.21
$region0: #{_lambda_.21}
  #allocation0 [shape = 'u32[]', space=smem, size = 0x4, offset = 0x4, fixed_abs, tag = 'smem constant byte address 0x4 - core index']
  #allocation1 [shape = 'u32[144,128]{1,0:T(1,128)}', space=vmem, size = 0x12000, scoped, tag = 'internal scratch']
  %s0 = inlined_call_operand.vmem [shape: bf16[6,8,8,128], index: 0, kind: input, shape index: {}]
  %s1 = inlined_call_operand.vmem [shape: f32[6,8,8,128], index: 1, kind: output, shape index: {}]
  %s2 = sld [smem:[#allocation0]]
  $region37: #{_lambda_.21} parent=0
    _
  %s4 = ssub.s32 1, %s2
  %s5 = scalar_select 0, %s4, %s2
  loop: start=0, step=1, limit=8
  $region2: #{_lambda_.21} parent=0 // loop_pre_header
    _
  $region3: #{_lambda_.21} parent=0 // loop_header
    %s7 = sphi 0, %s11
    %p8 = scmp.ge.s32.totalorder %s7, 8
    %s17 = sphi 0, %s19
    %s20 = sphi 0, %s17
    %s21 = sphi 0, %s20
    %s37 = sphi 0, %s21
    %s43 = sphi 0, %s45
    %s46 = sphi 0, %s43
    %s47 = sphi 0, %s46
    %s63 = sphi 0, %s47
  $region4: #{_lambda_.21} parent=0 // loop_header_branch
    %10 = sbr.rel (%p8) target = $region8
  $region5: #{_lambda_.21} parent=0 // loop_body
    %s12 = ssub.s32 %s7, 1
    %s13 = ssub.s32 %s7, 2
    %s14 = sadd.s32 %s7, 1
    %s15 = ssub.s32 %s7, %s14
    %p16 = scmp.eq.s32.totalorder %s15, 0
    %s18 = sadd.s32 %s17, 1
    %s19 = scalar_select %p16, %s17, %s18
    %p22 = pneg %p16
    %p23 = scmp.eq.s32.totalorder %s7, 5
    %p24 = por %p22, %p23
    %p25 = scmp.ne.s32.totalorder %s17, %s20
    %p26 = scmp.eq.s32.totalorder %s7, 0
    %p27 = por %p25, %p26
    %p28 = scmp.ne.s32.totalorder %s17, %s20
    %p29 = scmp.eq.s32.totalorder %s12, 5
    %p30 = por %p28, %p29
    %p31 = scmp.ne.s32.totalorder %s20, %s21
    %p32 = scmp.eq.s32.totalorder %s12, 0
    %p33 = por %p31, %p32
    %p34 = scmp.ne.s32.totalorder %s20, %s21
    %p35 = scmp.eq.s32.totalorder %s13, 5
    %p36 = por %p34, %p35
    %p38 = scmp.ne.s32.totalorder %s21, %s37
    %p39 = scmp.eq.s32.totalorder %s13, 0
    %p40 = por %p38, %p39
    %s41 = ssub.s32 %s7, %s14
    %p42 = scmp.eq.s32.totalorder %s41, 0
    %s44 = sadd.s32 %s43, 1
    %s45 = scalar_select %p42, %s43, %s44
    %p48 = pneg %p42
    %p49 = scmp.eq.s32.totalorder %s7, 5
    %p50 = por %p48, %p49
    %p51 = scmp.ne.s32.totalorder %s43, %s46
    %p52 = scmp.eq.s32.totalorder %s7, 0
    %p53 = por %p51, %p52
    %p54 = scmp.ne.s32.totalorder %s43, %s46
    %p55 = scmp.eq.s32.totalorder %s12, 5
    %p56 = por %p54, %p55
    %p57 = scmp.ne.s32.totalorder %s46, %s47
    %p58 = scmp.eq.s32.totalorder %s12, 0
    %p59 = por %p57, %p58
    %p60 = scmp.ne.s32.totalorder %s46, %s47
    %p61 = scmp.eq.s32.totalorder %s13, 5
    %p62 = por %p60, %p61
    %p64 = scmp.ne.s32.totalorder %s47, %s63
    %p65 = scmp.eq.s32.totalorder %s13, 0
    %p66 = por %p64, %p65
    %p67 = scmp.le.s32.totalorder 1, %s7
    %p68 = scmp.lt.s32.totalorder %s7, 7
    %p69 = pnand %p67, %p68
    %p70 = pneg %p69
    // Predicated region
    $region9: #{_lambda_.21} parent=5 // pred_check
      _
    $region10: #{_lambda_.21} parent=5 // pred_check_branch
      %72 = sbr.rel (%p69) target = $region12
    $region11: #{_lambda_.21} parent=5 // pred_region
      %s73 = ssub.s32 %s7, 1
    $region12: #{_lambda_.21} parent=5 // pred_fallthru
      _
    %p74 = scmp.lt.s32.totalorder %s7, 6
    // Predicated region
    $region13: #{_lambda_.21} parent=5 // pred_check
      %p75 = pneg %p74
    $region14: #{_lambda_.21} parent=5 // pred_check_branch
      %77 = sbr.rel (%p75) target = $region16
    $region15: #{_lambda_.21} parent=5 // pred_region
      // Predicated region
      $region17: #{_lambda_.21} parent=15 // pred_check
        %p78 = pneg %p27
      $region18: #{_lambda_.21} parent=15 // pred_check_branch
        %80 = sbr.rel (%p78) target = $region20
      $region19: #{_lambda_.21} parent=15 // pred_region
        %p81 = scmp.lt.s32.totalorder %s7, 5
        %s82 = scalar_select %p81, %s7, 5
        %s83 = smul.addr %s82, 8
        %s84 = smul.addr %s83, 4
        %s85 = scalar_lea.vmem %s0, %s84
      $region20: #{_lambda_.21} parent=15 // pred_fallthru
        _
    $region16: #{_lambda_.21} parent=5 // pred_fallthru
      _
    %p86 = scmp.le.s32.totalorder 1, %s7
    %p87 = scmp.lt.s32.totalorder %s7, 7
    %p88 = pnand %p86, %p87
    %p89 = pneg %p88
    // Predicated region
    $region21: #{_lambda_.21} parent=5 // pred_check
      _
    $region22: #{_lambda_.21} parent=5 // pred_check_branch
      %91 = sbr.rel (%p88) target = $region24
    $region23: #{_lambda_.21} parent=5 // pred_region
      %s92 = ssub.s32 %s7, 1
      %p93 = scmp.lt.s32.totalorder %s12, 5
      %s94 = scalar_select %p93, %s12, 5
      %s95 = smul.addr %s94, 8
      %s96 = smul.addr %s95, 4
      %s97 = scalar_lea.vmem %s0, %s96
      %p98 = pneg %p33
      %p99 = pneg %p30
      %p100 = pneg %p59
      %p101 = pneg %p56
      %p102 = scmp.lt.s32.totalorder %s12, 5
      %s103 = scalar_select %p102, %s12, 5
      %s104 = smul.addr %s103, 8
      %s105 = smul.addr %s104, 8
      %s106 = scalar_lea.vmem %s1, %s105
      %p107 = scmp.lt.s32.totalorder %s12, 5
      %s108 = scalar_select %p107, %s12, 5
      %s109 = smul.addr %s108, 8
      %s110 = smul.addr %s109, 4
      %s111 = scalar_lea.vmem %s0, %s110
      %p112 = scmp.lt.s32.totalorder %s12, 5
      %s113 = scalar_select %p112, %s12, 5
      %s114 = smul.addr %s113, 8
      %s115 = smul.addr %s114, 8
      %s116 = scalar_lea.vmem %s1, %s115
      %p117 = scmp.lt.s32.totalorder %s12, 0
      %s118 = ssub.s32 0, %s12
      %s119 = scalar_select %p117, %s118, %s12
      %s120 = sdiv.u32.pop %s119, 3
      %s121 = srem.u32.pop %s119, 3
      %s122 = ssub.s32 0, %s121
      %s123 = scalar_select %p117, %s122, %s121
      %p124 = scmp.ne.s32.totalorder %s123, 0
      %p125 = scmp.lt.s32.totalorder %s123, 0
      %p126 = pnand %p125, %p124
      %p127 = pneg %p126
      %s128 = sadd.s32 %s123, 3
      %s129 = scalar_select %p127, %s128, %s123
      %v130 = vld [vmem:[%s111] sm:$0xf]
      %v131 = vld [vmem:[%s111 + $0x4] sm:$0xf]
      %v132 = vld [vmem:[%s111 + $0x8] sm:$0xf]
      %v133 = vld [vmem:[%s111 + $0xc] sm:$0xf]
      %v134 = vld [vmem:[%s111 + $0x10] sm:$0xf]
      %v135 = vld [vmem:[%s111 + $0x14] sm:$0xf]
      %v136 = vld [vmem:[%s111 + $0x18] sm:$0xf]
      %v137 = vld [vmem:[%s111 + $0x1c] sm:$0xf]
      %v138 = vunpack.c.l.bf16 %v130
      %v139 = vunpack.c.l.bf16 %v131
      %v140 = vunpack.c.l.bf16 %v132
      %v141 = vunpack.c.l.bf16 %v133
      %v142 = vunpack.c.l.bf16 %v134
      %v143 = vunpack.c.l.bf16 %v135
      %v144 = vunpack.c.l.bf16 %v136
      %v145 = vunpack.c.l.bf16 %v137
      %v146 = vlaneseq
      %v147 = vand.u32 %v146, 127
      %v148 = vcvt.s32.f32 0
      %v149 = vcvt.s32.f32 1
      %v150 = vcvt.s32.f32 2
      %v151 = vcvt.s32.f32 3
      %v152 = vcvt.s32.f32 4
      %v153 = vcvt.s32.f32 5
      %v154 = vcvt.s32.f32 6
      %v155 = vcvt.s32.f32 7
      %v156 = vlaneseq
      %v157 = vshrl.u32 %v156, 7
      %v158 = vcvt.s32.f32 %v157
      %v159 = vmul.f32 %v138, 1.442695
      %v160 = vpow.pop %v159
      %v161 = vmul.f32 %v139, 1.442695
      %v162 = vpow.pop %v161
      %v163 = vmul.f32 %v140, 1.442695
      %v164 = vpow.pop %v163
      %v165 = vmul.f32 %v141, 1.442695
      %v166 = vpow.pop %v165
      %v167 = vmul.f32 %v142, 1.442695
      %v168 = vpow.pop %v167
      %v169 = vmul.f32 %v143, 1.442695
      %v170 = vpow.pop %v169
      %v171 = vmul.f32 %v144, 1.442695
      %v172 = vpow.pop %v171
      %v173 = vmul.f32 %v145, 1.442695
      %v174 = vpow.pop %v173
      %v175 = vadd.f32 %v160, 1.0
      %v176 = vadd.f32 %v162, 1.0
      %v177 = vadd.f32 %v164, 1.0
      %v178 = vadd.f32 %v166, 1.0
      %v179 = vadd.f32 %v168, 1.0
      %v180 = vadd.f32 %v170, 1.0
      %v181 = vadd.f32 %v172, 1.0
      %v182 = vadd.f32 %v174, 1.0
      %v183 = vrcp.pop %v175
      %v184 = vrcp.pop %v176
      %v185 = vrcp.pop %v177
      %v186 = vrcp.pop %v178
      %v187 = vrcp.pop %v179
      %v188 = vrcp.pop %v180
      %v189 = vrcp.pop %v181
      %v190 = vrcp.pop %v182
      %v191 = vmul.f32 %v160, %v183
      %v192 = vmul.f32 %v162, %v184
      %v193 = vmul.f32 %v164, %v185
      %v194 = vmul.f32 %v166, %v186
      %v195 = vmul.f32 %v168, %v187
      %v196 = vmul.f32 %v170, %v188
      %v197 = vmul.f32 %v172, %v189
      %v198 = vmul.f32 %v174, %v190
      %vm199 = vcmp.gt.f32.partialorder %v138, 15.0
      %vm200 = vcmp.gt.f32.partialorder %v139, 15.0
      %vm201 = vcmp.gt.f32.partialorder %v140, 15.0
      %vm202 = vcmp.gt.f32.partialorder %v141, 15.0
      %vm203 = vcmp.gt.f32.partialorder %v142, 15.0
      %vm204 = vcmp.gt.f32.partialorder %v143, 15.0
      %vm205 = vcmp.gt.f32.partialorder %v144, 15.0
      %vm206 = vcmp.gt.f32.partialorder %v145, 15.0
      %v207 = vsel %vm199, 1.0, %v191
      %v208 = vsel %vm200, 1.0, %v192
      %v209 = vsel %vm201, 1.0, %v193
      %v210 = vsel %vm202, 1.0, %v194
      %v211 = vsel %vm203, 1.0, %v195
      %v212 = vsel %vm204, 1.0, %v196
      %v213 = vsel %vm205, 1.0, %v197
      %v214 = vsel %vm206, 1.0, %v198
      %p215 = scmp.eq.s32.totalorder %s129, 0
      %s216 = scalar_select %p215, 2.25, 5.0
      %s217 = scalar_select %p215, 3.0, 6.5
      %p218 = scmp.eq.s32.totalorder %s129, 1
      %s219 = scalar_select %p218, 3.5, %s216
      %s220 = scalar_select %p218, 4.5, %s217
      %vm221 = vcmp.eq.s32.totalorder %v147, 0
      %v222 = vadd.f32 %v207, %v158
      %v223 = vadd.f32 %v208, %v158
      %v224 = vadd.f32 %v209, %v158
      %v225 = vadd.f32 %v210, %v158
      %v226 = vadd.f32 %v211, %v158
      %v227 = vadd.f32 %v212, %v158
      %v228 = vadd.f32 %v213, %v158
      %v229 = vadd.f32 %v214, %v158
      %v230 = vmul.f32 %v222, 4.0
      %v231 = vmul.f32 %v223, 4.0
      %v232 = vmul.f32 %v224, 4.0
      %v233 = vmul.f32 %v225, 4.0
      %v234 = vmul.f32 %v226, 4.0
      %v235 = vmul.f32 %v227, 4.0
      %v236 = vmul.f32 %v228, 4.0
      %v237 = vmul.f32 %v229, 4.0
      %vm238 = vcmp.eq.s32.totalorder %v147, 1
      %v239 = vadd.f32 %v207, %v148
      %v240 = vadd.f32 %v208, %v149
      %v241 = vadd.f32 %v209, %v150
      %v242 = vadd.f32 %v210, %v151
      %v243 = vadd.f32 %v211, %v152
      %v244 = vadd.f32 %v212, %v153
      %v245 = vadd.f32 %v213, %v154
      %v246 = vadd.f32 %v214, %v155
      %v247 = vmul.f32 %v239, 4.0
      %v248 = vmul.f32 %v240, 4.0
      %v249 = vmul.f32 %v241, 4.0
      %v250 = vmul.f32 %v242, 4.0
      %v251 = vmul.f32 %v243, 4.0
      %v252 = vmul.f32 %v244, 4.0
      %v253 = vmul.f32 %v245, 4.0
      %v254 = vmul.f32 %v246, 4.0
      %vm255 = vcmp.eq.s32.totalorder %v147, 2
      %v256 = vstv %s219
      %v257 = vmul.f32 %v160, %v256
      %v258 = vmul.f32 %v162, %v256
      %v259 = vmul.f32 %v164, %v256
      %v260 = vmul.f32 %v166, %v256
      %v261 = vmul.f32 %v168, %v256
      %v262 = vmul.f32 %v170, %v256
      %v263 = vmul.f32 %v172, %v256
      %v264 = vmul.f32 %v174, %v256
      %v265 = vmul.f32 %v257, 4.0
      %v266 = vmul.f32 %v258, 4.0
      %v267 = vmul.f32 %v259, 4.0
      %v268 = vmul.f32 %v260, 4.0
      %v269 = vmul.f32 %v261, 4.0
      %v270 = vmul.f32 %v262, 4.0
      %v271 = vmul.f32 %v263, 4.0
      %v272 = vmul.f32 %v264, 4.0
      %vm273 = vcmp.eq.s32.totalorder %v147, 3
      %v274 = vstv %s220
      %v275 = vmul.f32 %v160, %v274
      %v276 = vmul.f32 %v162, %v274
      %v277 = vmul.f32 %v164, %v274
      %v278 = vmul.f32 %v166, %v274
      %v279 = vmul.f32 %v168, %v274
      %v280 = vmul.f32 %v170, %v274
      %v281 = vmul.f32 %v172, %v274
      %v282 = vmul.f32 %v174, %v274
      %v283 = vmul.f32 %v275, 4.0
      %v284 = vmul.f32 %v276, 4.0
      %v285 = vmul.f32 %v277, 4.0
      %v286 = vmul.f32 %v278, 4.0
      %v287 = vmul.f32 %v279, 4.0
      %v288 = vmul.f32 %v280, 4.0
      %v289 = vmul.f32 %v281, 4.0
      %v290 = vmul.f32 %v282, 4.0
      %vm291 = vcmp.lt.s32.totalorder %v147, 13
      %v292 = vsel %vm291, %v207, 0.0
      %v293 = vsel %vm291, %v208, 0.0
      %v294 = vsel %vm291, %v209, 0.0
      %v295 = vsel %vm291, %v210, 0.0
      %v296 = vsel %vm291, %v211, 0.0
      %v297 = vsel %vm291, %v212, 0.0
      %v298 = vsel %vm291, %v213, 0.0
      %v299 = vsel %vm291, %v214, 0.0
      %v300 = vsel %vm273, %v283, %v292
      %v301 = vsel %vm273, %v284, %v293
      %v302 = vsel %vm273, %v285, %v294
      %v303 = vsel %vm273, %v286, %v295
      %v304 = vsel %vm273, %v287, %v296
      %v305 = vsel %vm273, %v288, %v297
      %v306 = vsel %vm273, %v289, %v298
      %v307 = vsel %vm273, %v290, %v299
      %v308 = vsel %vm255, %v265, %v300
      %v309 = vsel %vm255, %v266, %v301
      %v310 = vsel %vm255, %v267, %v302
      %v311 = vsel %vm255, %v268, %v303
      %v312 = vsel %vm255, %v269, %v304
      %v313 = vsel %vm255, %v270, %v305
      %v314 = vsel %vm255, %v271, %v306
      %v315 = vsel %vm255, %v272, %v307
      %v316 = vsel %vm238, %v247, %v308
      %v317 = vsel %vm238, %v248, %v309
      %v318 = vsel %vm238, %v249, %v310
      %v319 = vsel %vm238, %v250, %v311
      %v320 = vsel %vm238, %v251, %v312
      %v321 = vsel %vm238, %v252, %v313
      %v322 = vsel %vm238, %v253, %v314
      %v323 = vsel %vm238, %v254, %v315
      %v324 = vsel %vm221, %v230, %v316
      %v325 = vsel %vm221, %v231, %v317
      %v326 = vsel %vm221, %v232, %v318
      %v327 = vsel %vm221, %v233, %v319
      %v328 = vsel %vm221, %v234, %v320
      %v329 = vsel %vm221, %v235, %v321
      %v330 = vsel %vm221, %v236, %v322
      %v331 = vsel %vm221, %v237, %v323
      %332 = vst [vmem:[%s116] sm:$0xff] %v324
      %333 = vst [vmem:[%s116 + $0x8] sm:$0xff] %v325
      %334 = vst [vmem:[%s116 + $0x10] sm:$0xff] %v326
      %335 = vst [vmem:[%s116 + $0x18] sm:$0xff] %v327
      %336 = vst [vmem:[%s116 + $0x20] sm:$0xff] %v328
      %337 = vst [vmem:[%s116 + $0x28] sm:$0xff] %v329
      %338 = vst [vmem:[%s116 + $0x30] sm:$0xff] %v330
      %339 = vst [vmem:[%s116 + $0x38] sm:$0xff] %v331
      %p340 = scmp.lt.s32.totalorder %s12, 5
      %s341 = scalar_select %p340, %s12, 5
      %s342 = smul.addr %s341, 8
      %s343 = smul.addr %s342, 8
      %s344 = scalar_lea.vmem %s1, %s343
      // Predicated region
      $region25: #{_lambda_.21} parent=23 // pred_check
        %p345 = pneg %p56
      $region26: #{_lambda_.21} parent=23 // pred_check_branch
        %347 = sbr.rel (%p345) target = $region28
      $region27: #{_lambda_.21} parent=23 // pred_region
        _
      $region28: #{_lambda_.21} parent=23 // pred_fallthru
        _
    $region24: #{_lambda_.21} parent=5 // pred_fallthru
      _
    %p348 = scmp.le.s32.totalorder 2, %s7
    // Predicated region
    $region29: #{_lambda_.21} parent=5 // pred_check
      %p349 = pneg %p348
    $region30: #{_lambda_.21} parent=5 // pred_check_branch
      %351 = sbr.rel (%p349) target = $region32
    $region31: #{_lambda_.21} parent=5 // pred_region
      %s352 = ssub.s32 %s7, 2
      // Predicated region
      $region33: #{_lambda_.21} parent=31 // pred_check
        %p353 = pneg %p62
      $region34: #{_lambda_.21} parent=31 // pred_check_branch
        %355 = sbr.rel (%p353) target = $region36
      $region35: #{_lambda_.21} parent=31 // pred_region
        %p356 = scmp.lt.s32.totalorder %s13, 5
        %s357 = scalar_select %p356, %s13, 5
        %s358 = smul.addr %s357, 8
        %s359 = smul.addr %s358, 8
        %s360 = scalar_lea.vmem %s1, %s359
      $region36: #{_lambda_.21} parent=31 // pred_fallthru
        _
    $region32: #{_lambda_.21} parent=5 // pred_fallthru
      _
  $region6: #{_lambda_.21} parent=0 // loop_footer
    %s11 = sadd.s32 1, %s7
  $region7: #{_lambda_.21} parent=0 // loop_footer_branch
    %6 = sbr.rel target = $region3
  $region8: #{_lambda_.21} parent=0 // loop_exit
    _

// kernel: _lambda_.24
$region0: #{_lambda_.24}
  #allocation0 [shape = 'u32[]', space=smem, size = 0x4, offset = 0x4, fixed_abs, tag = 'smem constant byte address 0x4 - core index']
  #allocation1 [shape = 'u32[144,128]{1,0:T(1,128)}', space=vmem, size = 0x12000, scoped, tag = 'internal scratch']
  #allocation2 [shape = 'f32[512,128]{1,0:T(8,128)}', space=vmem, size = 0x40000, scoped, tag = 'scratch operand']
  %s0 = inlined_call_operand.vmem [shape: bf16[512,128], index: 0, kind: input, shape index: {}]
  %s1 = inlined_call_operand.vmem [shape: bf16[128,128], index: 1, kind: input, shape index: {}]
  %s2 = inlined_call_operand.vmem [shape: f32[1,128], index: 2, kind: input, shape index: {}]
  %s3 = inlined_call_operand.vmem [shape: bf16[512,128], index: 3, kind: output, shape index: {}]
  %s4 = sld [smem:[#allocation0]]
  $region30: #{_lambda_.24} parent=0
    _
  %s6 = ssub.s32 1, %s4
  %s7 = scalar_select 0, %s6, %s4
  // Predicated region
  $region2: #{_lambda_.24} parent=0 // pred_check
    _
  $region3: #{_lambda_.24} parent=0 // pred_check_branch
    %9 = sbr.rel (0) target = $region5
  $region4: #{_lambda_.24} parent=0 // pred_region
    _
  $region5: #{_lambda_.24} parent=0 // pred_fallthru
    _
  // Predicated region
  $region6: #{_lambda_.24} parent=0 // pred_check
    _
  $region7: #{_lambda_.24} parent=0 // pred_check_branch
    %11 = sbr.rel (0) target = $region9
  $region8: #{_lambda_.24} parent=0 // pred_region
    _
  $region9: #{_lambda_.24} parent=0 // pred_fallthru
    _
  // Predicated region
  $region10: #{_lambda_.24} parent=0 // pred_check
    _
  $region11: #{_lambda_.24} parent=0 // pred_check_branch
    %13 = sbr.rel (0) target = $region13
  $region12: #{_lambda_.24} parent=0 // pred_region
    _
  $region13: #{_lambda_.24} parent=0 // pred_fallthru
    _
  %p15 = scmp.eq.s32.totalorder 0, 0
  // Predicated region
  $region14: #{_lambda_.24} parent=0 // pred_check
    %p16 = pneg %p15
  $region15: #{_lambda_.24} parent=0 // pred_check_branch
    %18 = sbr.rel (%p16) target = $region17
  $region16: #{_lambda_.24} parent=0 // pred_region
    %19 = vst [vmem:[#allocation2] sm:$0xff] 0.0
    %20 = vst [vmem:[#allocation2 + $0x8] sm:$0xff] 0.0
    %21 = vst [vmem:[#allocation2 + $0x10] sm:$0xff] 0.0
    %22 = vst [vmem:[#allocation2 + $0x18] sm:$0xff] 0.0
    %23 = vst [vmem:[#allocation2 + $0x20] sm:$0xff] 0.0
    %24 = vst [vmem:[#allocation2 + $0x28] sm:$0xff] 0.0
    %25 = vst [vmem:[#allocation2 + $0x30] sm:$0xff] 0.0
    %26 = vst [vmem:[#allocation2 + $0x38] sm:$0xff] 0.0
    %27 = vst [vmem:[#allocation2 + $0x40] sm:$0xff] 0.0
    %28 = vst [vmem:[#allocation2 + $0x48] sm:$0xff] 0.0
    %29 = vst [vmem:[#allocation2 + $0x50] sm:$0xff] 0.0
    %30 = vst [vmem:[#allocation2 + $0x58] sm:$0xff] 0.0
    %31 = vst [vmem:[#allocation2 + $0x60] sm:$0xff] 0.0
    %32 = vst [vmem:[#allocation2 + $0x68] sm:$0xff] 0.0
    %33 = vst [vmem:[#allocation2 + $0x70] sm:$0xff] 0.0
    %34 = vst [vmem:[#allocation2 + $0x78] sm:$0xff] 0.0
    %35 = vst [vmem:[#allocation2 + $0x80] sm:$0xff] 0.0
    %36 = vst [vmem:[#allocation2 + $0x88] sm:$0xff] 0.0
    %37 = vst [vmem:[#allocation2 + $0x90] sm:$0xff] 0.0
    %38 = vst [vmem:[#allocation2 + $0x98] sm:$0xff] 0.0
    %39 = vst [vmem:[#allocation2 + $0xa0] sm:$0xff] 0.0
    %40 = vst [vmem:[#allocation2 + $0xa8] sm:$0xff] 0.0
    %41 = vst [vmem:[#allocation2 + $0xb0] sm:$0xff] 0.0
    %42 = vst [vmem:[#allocation2 + $0xb8] sm:$0xff] 0.0
    %43 = vst [vmem:[#allocation2 + $0xc0] sm:$0xff] 0.0
    %44 = vst [vmem:[#allocation2 + $0xc8] sm:$0xff] 0.0
    %45 = vst [vmem:[#allocation2 + $0xd0] sm:$0xff] 0.0
    %46 = vst [vmem:[#allocation2 + $0xd8] sm:$0xff] 0.0
    %47 = vst [vmem:[#allocation2 + $0xe0] sm:$0xff] 0.0
    %48 = vst [vmem:[#allocation2 + $0xe8] sm:$0xff] 0.0
    %49 = vst [vmem:[#allocation2 + $0xf0] sm:$0xff] 0.0
    %50 = vst [vmem:[#allocation2 + $0xf8] sm:$0xff] 0.0
    %51 = vst [vmem:[#allocation2 + $0x100] sm:$0xff] 0.0
    %52 = vst [vmem:[#allocation2 + $0x108] sm:$0xff] 0.0
    %53 = vst [vmem:[#allocation2 + $0x110] sm:$0xff] 0.0
    %54 = vst [vmem:[#allocation2 + $0x118] sm:$0xff] 0.0
    %55 = vst [vmem:[#allocation2 + $0x120] sm:$0xff] 0.0
    %56 = vst [vmem:[#allocation2 + $0x128] sm:$0xff] 0.0
    %57 = vst [vmem:[#allocation2 + $0x130] sm:$0xff] 0.0
    %58 = vst [vmem:[#allocation2 + $0x138] sm:$0xff] 0.0
    %59 = vst [vmem:[#allocation2 + $0x140] sm:$0xff] 0.0
    %60 = vst [vmem:[#allocation2 + $0x148] sm:$0xff] 0.0
    %61 = vst [vmem:[#allocation2 + $0x150] sm:$0xff] 0.0
    %62 = vst [vmem:[#allocation2 + $0x158] sm:$0xff] 0.0
    %63 = vst [vmem:[#allocation2 + $0x160] sm:$0xff] 0.0
    %64 = vst [vmem:[#allocation2 + $0x168] sm:$0xff] 0.0
    %65 = vst [vmem:[#allocation2 + $0x170] sm:$0xff] 0.0
    %66 = vst [vmem:[#allocation2 + $0x178] sm:$0xff] 0.0
    %67 = vst [vmem:[#allocation2 + $0x180] sm:$0xff] 0.0
    %68 = vst [vmem:[#allocation2 + $0x188] sm:$0xff] 0.0
    %69 = vst [vmem:[#allocation2 + $0x190] sm:$0xff] 0.0
    %70 = vst [vmem:[#allocation2 + $0x198] sm:$0xff] 0.0
    %71 = vst [vmem:[#allocation2 + $0x1a0] sm:$0xff] 0.0
    %72 = vst [vmem:[#allocation2 + $0x1a8] sm:$0xff] 0.0
    %73 = vst [vmem:[#allocation2 + $0x1b0] sm:$0xff] 0.0
    %74 = vst [vmem:[#allocation2 + $0x1b8] sm:$0xff] 0.0
    %75 = vst [vmem:[#allocation2 + $0x1c0] sm:$0xff] 0.0
    %76 = vst [vmem:[#allocation2 + $0x1c8] sm:$0xff] 0.0
    %77 = vst [vmem:[#allocation2 + $0x1d0] sm:$0xff] 0.0
    %78 = vst [vmem:[#allocation2 + $0x1d8] sm:$0xff] 0.0
    %79 = vst [vmem:[#allocation2 + $0x1e0] sm:$0xff] 0.0
    %80 = vst [vmem:[#allocation2 + $0x1e8] sm:$0xff] 0.0
    %81 = vst [vmem:[#allocation2 + $0x1f0] sm:$0xff] 0.0
    %82 = vst [vmem:[#allocation2 + $0x1f8] sm:$0xff] 0.0
  $region17: #{_lambda_.24} parent=0 // pred_fallthru
    _
  %v83 = vld [vmem:[#allocation2] sm:$0xff]
  %v84 = vld [vmem:[#allocation2 + $0x8] sm:$0xff]
  %v85 = vld [vmem:[#allocation2 + $0x10] sm:$0xff]
  %v86 = vld [vmem:[#allocation2 + $0x18] sm:$0xff]
  %v87 = vld [vmem:[#allocation2 + $0x20] sm:$0xff]
  %v88 = vld [vmem:[#allocation2 + $0x28] sm:$0xff]
  %v89 = vld [vmem:[#allocation2 + $0x30] sm:$0xff]
  %v90 = vld [vmem:[#allocation2 + $0x38] sm:$0xff]
  %v91 = vld [vmem:[#allocation2 + $0x40] sm:$0xff]
  %v92 = vld [vmem:[#allocation2 + $0x48] sm:$0xff]
  %v93 = vld [vmem:[#allocation2 + $0x50] sm:$0xff]
  %v94 = vld [vmem:[#allocation2 + $0x58] sm:$0xff]
  %v95 = vld [vmem:[#allocation2 + $0x60] sm:$0xff]
  %v96 = vld [vmem:[#allocation2 + $0x68] sm:$0xff]
  %v97 = vld [vmem:[#allocation2 + $0x70] sm:$0xff]
  %v98 = vld [vmem:[#allocation2 + $0x78] sm:$0xff]
  %v99 = vld [vmem:[#allocation2 + $0x80] sm:$0xff]
  %v100 = vld [vmem:[#allocation2 + $0x88] sm:$0xff]
  %v101 = vld [vmem:[#allocation2 + $0x90] sm:$0xff]
  %v102 = vld [vmem:[#allocation2 + $0x98] sm:$0xff]
  %v103 = vld [vmem:[#allocation2 + $0xa0] sm:$0xff]
  %v104 = vld [vmem:[#allocation2 + $0xa8] sm:$0xff]
  %v105 = vld [vmem:[#allocation2 + $0xb0] sm:$0xff]
  %v106 = vld [vmem:[#allocation2 + $0xb8] sm:$0xff]
  %v107 = vld [vmem:[#allocation2 + $0xc0] sm:$0xff]
  %v108 = vld [vmem:[#allocation2 + $0xc8] sm:$0xff]
  %v109 = vld [vmem:[#allocation2 + $0xd0] sm:$0xff]
  %v110 = vld [vmem:[#allocation2 + $0xd8] sm:$0xff]
  %v111 = vld [vmem:[#allocation2 + $0xe0] sm:$0xff]
  %v112 = vld [vmem:[#allocation2 + $0xe8] sm:$0xff]
  %v113 = vld [vmem:[#allocation2 + $0xf0] sm:$0xff]
  %v114 = vld [vmem:[#allocation2 + $0xf8] sm:$0xff]
  %v115 = vld [vmem:[#allocation2 + $0x100] sm:$0xff]
  %v116 = vld [vmem:[#allocation2 + $0x108] sm:$0xff]
  %v117 = vld [vmem:[#allocation2 + $0x110] sm:$0xff]
  %v118 = vld [vmem:[#allocation2 + $0x118] sm:$0xff]
  %v119 = vld [vmem:[#allocation2 + $0x120] sm:$0xff]
  %v120 = vld [vmem:[#allocation2 + $0x128] sm:$0xff]
  %v121 = vld [vmem:[#allocation2 + $0x130] sm:$0xff]
  %v122 = vld [vmem:[#allocation2 + $0x138] sm:$0xff]
  %v123 = vld [vmem:[#allocation2 + $0x140] sm:$0xff]
  %v124 = vld [vmem:[#allocation2 + $0x148] sm:$0xff]
  %v125 = vld [vmem:[#allocation2 + $0x150] sm:$0xff]
  %v126 = vld [vmem:[#allocation2 + $0x158] sm:$0xff]
  %v127 = vld [vmem:[#allocation2 + $0x160] sm:$0xff]
  %v128 = vld [vmem:[#allocation2 + $0x168] sm:$0xff]
  %v129 = vld [vmem:[#allocation2 + $0x170] sm:$0xff]
  %v130 = vld [vmem:[#allocation2 + $0x178] sm:$0xff]
  %v131 = vld [vmem:[#allocation2 + $0x180] sm:$0xff]
  %v132 = vld [vmem:[#allocation2 + $0x188] sm:$0xff]
  %v133 = vld [vmem:[#allocation2 + $0x190] sm:$0xff]
  %v134 = vld [vmem:[#allocation2 + $0x198] sm:$0xff]
  %v135 = vld [vmem:[#allocation2 + $0x1a0] sm:$0xff]
  %v136 = vld [vmem:[#allocation2 + $0x1a8] sm:$0xff]
  %v137 = vld [vmem:[#allocation2 + $0x1b0] sm:$0xff]
  %v138 = vld [vmem:[#allocation2 + $0x1b8] sm:$0xff]
  %v139 = vld [vmem:[#allocation2 + $0x1c0] sm:$0xff]
  %v140 = vld [vmem:[#allocation2 + $0x1c8] sm:$0xff]
  %v141 = vld [vmem:[#allocation2 + $0x1d0] sm:$0xff]
  %v142 = vld [vmem:[#allocation2 + $0x1d8] sm:$0xff]
  %v143 = vld [vmem:[#allocation2 + $0x1e0] sm:$0xff]
  %v144 = vld [vmem:[#allocation2 + $0x1e8] sm:$0xff]
  %v145 = vld [vmem:[#allocation2 + $0x1f0] sm:$0xff]
  %v146 = vld [vmem:[#allocation2 + $0x1f8] sm:$0xff]
  %v147 = vld [vmem:[%s0] sm:$0xf]
  %v148 = vld [vmem:[%s0 + $0x4] sm:$0xf]
  %v149 = vld [vmem:[%s0 + $0x8] sm:$0xf]
  %v150 = vld [vmem:[%s0 + $0xc] sm:$0xf]
  %v151 = vld [vmem:[%s0 + $0x10] sm:$0xf]
  %v152 = vld [vmem:[%s0 + $0x14] sm:$0xf]
  %v153 = vld [vmem:[%s0 + $0x18] sm:$0xf]
  %v154 = vld [vmem:[%s0 + $0x1c] sm:$0xf]
  %v155 = vld [vmem:[%s0 + $0x20] sm:$0xf]
  %v156 = vld [vmem:[%s0 + $0x24] sm:$0xf]
  %v157 = vld [vmem:[%s0 + $0x28] sm:$0xf]
  %v158 = vld [vmem:[%s0 + $0x2c] sm:$0xf]
  %v159 = vld [vmem:[%s0 + $0x30] sm:$0xf]
  %v160 = vld [vmem:[%s0 + $0x34] sm:$0xf]
  %v161 = vld [vmem:[%s0 + $0x38] sm:$0xf]
  %v162 = vld [vmem:[%s0 + $0x3c] sm:$0xf]
  %v163 = vld [vmem:[%s0 + $0x40] sm:$0xf]
  %v164 = vld [vmem:[%s0 + $0x44] sm:$0xf]
  %v165 = vld [vmem:[%s0 + $0x48] sm:$0xf]
  %v166 = vld [vmem:[%s0 + $0x4c] sm:$0xf]
  %v167 = vld [vmem:[%s0 + $0x50] sm:$0xf]
  %v168 = vld [vmem:[%s0 + $0x54] sm:$0xf]
  %v169 = vld [vmem:[%s0 + $0x58] sm:$0xf]
  %v170 = vld [vmem:[%s0 + $0x5c] sm:$0xf]
  %v171 = vld [vmem:[%s0 + $0x60] sm:$0xf]
  %v172 = vld [vmem:[%s0 + $0x64] sm:$0xf]
  %v173 = vld [vmem:[%s0 + $0x68] sm:$0xf]
  %v174 = vld [vmem:[%s0 + $0x6c] sm:$0xf]
  %v175 = vld [vmem:[%s0 + $0x70] sm:$0xf]
  %v176 = vld [vmem:[%s0 + $0x74] sm:$0xf]
  %v177 = vld [vmem:[%s0 + $0x78] sm:$0xf]
  %v178 = vld [vmem:[%s0 + $0x7c] sm:$0xf]
  %v179 = vld [vmem:[%s0 + $0x80] sm:$0xf]
  %v180 = vld [vmem:[%s0 + $0x84] sm:$0xf]
  %v181 = vld [vmem:[%s0 + $0x88] sm:$0xf]
  %v182 = vld [vmem:[%s0 + $0x8c] sm:$0xf]
  %v183 = vld [vmem:[%s0 + $0x90] sm:$0xf]
  %v184 = vld [vmem:[%s0 + $0x94] sm:$0xf]
  %v185 = vld [vmem:[%s0 + $0x98] sm:$0xf]
  %v186 = vld [vmem:[%s0 + $0x9c] sm:$0xf]
  %v187 = vld [vmem:[%s0 + $0xa0] sm:$0xf]
  %v188 = vld [vmem:[%s0 + $0xa4] sm:$0xf]
  %v189 = vld [vmem:[%s0 + $0xa8] sm:$0xf]
  %v190 = vld [vmem:[%s0 + $0xac] sm:$0xf]
  %v191 = vld [vmem:[%s0 + $0xb0] sm:$0xf]
  %v192 = vld [vmem:[%s0 + $0xb4] sm:$0xf]
  %v193 = vld [vmem:[%s0 + $0xb8] sm:$0xf]
  %v194 = vld [vmem:[%s0 + $0xbc] sm:$0xf]
  %v195 = vld [vmem:[%s0 + $0xc0] sm:$0xf]
  %v196 = vld [vmem:[%s0 + $0xc4] sm:$0xf]
  %v197 = vld [vmem:[%s0 + $0xc8] sm:$0xf]
  %v198 = vld [vmem:[%s0 + $0xcc] sm:$0xf]
  %v199 = vld [vmem:[%s0 + $0xd0] sm:$0xf]
  %v200 = vld [vmem:[%s0 + $0xd4] sm:$0xf]
  %v201 = vld [vmem:[%s0 + $0xd8] sm:$0xf]
  %v202 = vld [vmem:[%s0 + $0xdc] sm:$0xf]
  %v203 = vld [vmem:[%s0 + $0xe0] sm:$0xf]
  %v204 = vld [vmem:[%s0 + $0xe4] sm:$0xf]
  %v205 = vld [vmem:[%s0 + $0xe8] sm:$0xf]
  %v206 = vld [vmem:[%s0 + $0xec] sm:$0xf]
  %v207 = vld [vmem:[%s0 + $0xf0] sm:$0xf]
  %v208 = vld [vmem:[%s0 + $0xf4] sm:$0xf]
  %v209 = vld [vmem:[%s0 + $0xf8] sm:$0xf]
  %v210 = vld [vmem:[%s0 + $0xfc] sm:$0xf]
  %v211 = vld [vmem:[%s1] sm:$0xf]
  %v212 = vld [vmem:[%s1 + $0x4] sm:$0xf]
  %v213 = vld [vmem:[%s1 + $0x8] sm:$0xf]
  %v214 = vld [vmem:[%s1 + $0xc] sm:$0xf]
  %v215 = vld [vmem:[%s1 + $0x10] sm:$0xf]
  %v216 = vld [vmem:[%s1 + $0x14] sm:$0xf]
  %v217 = vld [vmem:[%s1 + $0x18] sm:$0xf]
  %v218 = vld [vmem:[%s1 + $0x1c] sm:$0xf]
  %v219 = vld [vmem:[%s1 + $0x20] sm:$0xf]
  %v220 = vld [vmem:[%s1 + $0x24] sm:$0xf]
  %v221 = vld [vmem:[%s1 + $0x28] sm:$0xf]
  %v222 = vld [vmem:[%s1 + $0x2c] sm:$0xf]
  %v223 = vld [vmem:[%s1 + $0x30] sm:$0xf]
  %v224 = vld [vmem:[%s1 + $0x34] sm:$0xf]
  %v225 = vld [vmem:[%s1 + $0x38] sm:$0xf]
  %v226 = vld [vmem:[%s1 + $0x3c] sm:$0xf]
  %v291 = vunpack.c.l.b16 %v147
  %v292 = vunpack.c.l.b16 %v148
  %v293 = vunpack.c.l.b16 %v149
  %v294 = vunpack.c.l.b16 %v150
  %v295 = vunpack.c.l.b16 %v151
  %v296 = vunpack.c.l.b16 %v152
  %v297 = vunpack.c.l.b16 %v153
  %v298 = vunpack.c.l.b16 %v154
  %v299 = vunpack.c.l.b16 %v155
  %v300 = vunpack.c.l.b16 %v156
  %v301 = vunpack.c.l.b16 %v157
  %v302 = vunpack.c.l.b16 %v158
  %v303 = vunpack.c.l.b16 %v159
  %v304 = vunpack.c.l.b16 %v160
  %v305 = vunpack.c.l.b16 %v161
  %v306 = vunpack.c.l.b16 %v162
  %v307 = vunpack.c.l.b16 %v163
  %v308 = vunpack.c.l.b16 %v164
  %v309 = vunpack.c.l.b16 %v165
  %v310 = vunpack.c.l.b16 %v166
  %v311 = vunpack.c.l.b16 %v167
  %v312 = vunpack.c.l.b16 %v168
  %v313 = vunpack.c.l.b16 %v169
  %v314 = vunpack.c.l.b16 %v170
  %v315 = vunpack.c.l.b16 %v171
  %v316 = vunpack.c.l.b16 %v172
  %v317 = vunpack.c.l.b16 %v173
  %v318 = vunpack.c.l.b16 %v174
  %v319 = vunpack.c.l.b16 %v175
  %v320 = vunpack.c.l.b16 %v176
  %v321 = vunpack.c.l.b16 %v177
  %v322 = vunpack.c.l.b16 %v178
  %v323 = vunpack.c.l.b16 %v179
  %v324 = vunpack.c.l.b16 %v180
  %v325 = vunpack.c.l.b16 %v181
  %v326 = vunpack.c.l.b16 %v182
  %v327 = vunpack.c.l.b16 %v183
  %v328 = vunpack.c.l.b16 %v184
  %v329 = vunpack.c.l.b16 %v185
  %v330 = vunpack.c.l.b16 %v186
  %v331 = vunpack.c.l.b16 %v187
  %v332 = vunpack.c.l.b16 %v188
  %v333 = vunpack.c.l.b16 %v189
  %v334 = vunpack.c.l.b16 %v190
  %v335 = vunpack.c.l.b16 %v191
  %v336 = vunpack.c.l.b16 %v192
  %v337 = vunpack.c.l.b16 %v193
  %v338 = vunpack.c.l.b16 %v194
  %v339 = vunpack.c.l.b16 %v195
  %v340 = vunpack.c.l.b16 %v196
  %v341 = vunpack.c.l.b16 %v197
  %v342 = vunpack.c.l.b16 %v198
  %v343 = vunpack.c.l.b16 %v199
  %v344 = vunpack.c.l.b16 %v200
  %v345 = vunpack.c.l.b16 %v201
  %v346 = vunpack.c.l.b16 %v202
  %v347 = vunpack.c.l.b16 %v203
  %v348 = vunpack.c.l.b16 %v204
  %v349 = vunpack.c.l.b16 %v205
  %v350 = vunpack.c.l.b16 %v206
  %v351 = vunpack.c.l.b16 %v207
  %v352 = vunpack.c.l.b16 %v208
  %v353 = vunpack.c.l.b16 %v209
  %v354 = vunpack.c.l.b16 %v210
  %v355 = vpack.c.b16 %v292, %v291
  %v356 = vpack.c.b16 %v294, %v293
  %v357 = vpack.c.b16 %v296, %v295
  %v358 = vpack.c.b16 %v298, %v297
  %v359 = vpack.c.b16 %v300, %v299
  %v360 = vpack.c.b16 %v302, %v301
  %v361 = vpack.c.b16 %v304, %v303
  %v362 = vpack.c.b16 %v306, %v305
  %v363 = vpack.c.b16 %v308, %v307
  %v364 = vpack.c.b16 %v310, %v309
  %v365 = vpack.c.b16 %v312, %v311
  %v366 = vpack.c.b16 %v314, %v313
  %v367 = vpack.c.b16 %v316, %v315
  %v368 = vpack.c.b16 %v318, %v317
  %v369 = vpack.c.b16 %v320, %v319
  %v370 = vpack.c.b16 %v322, %v321
  %v371 = vpack.c.b16 %v324, %v323
  %v372 = vpack.c.b16 %v326, %v325
  %v373 = vpack.c.b16 %v328, %v327
  %v374 = vpack.c.b16 %v330, %v329
  %v375 = vpack.c.b16 %v332, %v331
  %v376 = vpack.c.b16 %v334, %v333
  %v377 = vpack.c.b16 %v336, %v335
  %v378 = vpack.c.b16 %v338, %v337
  %v379 = vpack.c.b16 %v340, %v339
  %v380 = vpack.c.b16 %v342, %v341
  %v381 = vpack.c.b16 %v344, %v343
  %v382 = vpack.c.b16 %v346, %v345
  %v383 = vpack.c.b16 %v348, %v347
  %v384 = vpack.c.b16 %v350, %v349
  %v385 = vpack.c.b16 %v352, %v351
  %v386 = vpack.c.b16 %v354, %v353
  %v435 = vunpack.c.l.b16 %v211
  %v436 = vunpack.c.l.b16 %v212
  %v437 = vunpack.c.l.b16 %v213
  %v438 = vunpack.c.l.b16 %v214
  %v439 = vunpack.c.l.b16 %v215
  %v440 = vunpack.c.l.b16 %v216
  %v441 = vunpack.c.l.b16 %v217
  %v442 = vunpack.c.l.b16 %v218
  %v443 = vunpack.c.l.b16 %v219
  %v444 = vunpack.c.l.b16 %v220
  %v445 = vunpack.c.l.b16 %v221
  %v446 = vunpack.c.l.b16 %v222
  %v447 = vunpack.c.l.b16 %v223
  %v448 = vunpack.c.l.b16 %v224
  %v449 = vunpack.c.l.b16 %v225
  %v450 = vunpack.c.l.b16 %v226
  %v451 = vpack.c.b16 %v436, %v435
  %v452 = vpack.c.b16 %v438, %v437
  %v453 = vpack.c.b16 %v440, %v439
  %v454 = vpack.c.b16 %v442, %v441
  %v455 = vpack.c.b16 %v444, %v443
  %v456 = vpack.c.b16 %v446, %v445
  %v457 = vpack.c.b16 %v448, %v447
  %v458 = vpack.c.b16 %v450, %v449
  %467 = vmatprep.subr.bf16.mxu0 0
  %468 = vmatpush1.bf16.msra.mxu0 %v451
  %469 = vmatprep.subr.bf16.mxu0 0
  %470 = vmatpush1.bf16.msra.mxu0 %v452
  %471 = vmatprep.subr.bf16.mxu0 0
  %472 = vmatpush1.bf16.msra.mxu0 %v453
  %473 = vmatprep.subr.bf16.mxu0 0
  %474 = vmatpush1.bf16.msra.mxu0 %v454
  %475 = vmatprep.subr.bf16.mxu0 0
  %476 = vmatpush1.bf16.msra.mxu0 %v455
  %477 = vmatprep.subr.bf16.mxu0 0
  %478 = vmatpush1.bf16.msra.mxu0 %v456
  %479 = vmatprep.subr.bf16.mxu0 0
  %480 = vmatpush1.bf16.msra.mxu0 %v457
  %481 = vmatprep.subr.bf16.mxu0 0
  %482 = vmatpush1.bf16.msra.mxu0 %v458
  %483 = vmatprep.subr.bf16.mxu0 0
  %484 = vmatpush1.bf16.msra.mxu0 0
  %485 = vmatprep.subr.bf16.mxu0 0
  %486 = vmatpush1.bf16.msra.mxu0 0
  %487 = vmatprep.subr.bf16.mxu0 0
  %488 = vmatpush1.bf16.msra.mxu0 0
  %489 = vmatprep.subr.bf16.mxu0 0
  %490 = vmatpush1.bf16.msra.mxu0 0
  %491 = vmatprep.subr.bf16.mxu0 0
  %492 = vmatpush1.bf16.msra.mxu0 0
  %493 = vmatprep.subr.bf16.mxu0 0
  %494 = vmatpush1.bf16.msra.mxu0 0
  %495 = vmatprep.subr.bf16.mxu0 0
  %496 = vmatpush1.bf16.msra.mxu0 0
  %497 = vmatprep.subr.bf16.mxu0 0
  %498 = vmatpush1.bf16.msra.mxu0 0
  %499 = vmatprep.mubr.bf16.mxu0 0
  %500 = vmatmul.mubr.bf16.gmra.mrb[0].mxu0 %v355
  %v501 = vpop.f32.mrb[0].mxu0
  %v502 = vadd.f32 0.0, %v501
  %v503 = vpop.f32.mrb[0].mxu0
  %v504 = vpop.f32.mrb[0].mxu0
  %v505 = vadd.f32 0.0, %v504
  %v506 = vpop.f32.mrb[0].mxu0
  %507 = vmatprep.mubr.bf16.mxu0 0
  %508 = vmatmul.mubr.bf16.gmra.mrb[0].mxu0 %v356
  %v509 = vpop.f32.mrb[0].mxu0
  %v510 = vadd.f32 0.0, %v509
  %v511 = vpop.f32.mrb[0].mxu0
  %v512 = vpop.f32.mrb[0].mxu0
  %v513 = vadd.f32 0.0, %v512
  %v514 = vpop.f32.mrb[0].mxu0
  %515 = vmatprep.mubr.bf16.mxu0 0
  %516 = vmatmul.mubr.bf16.gmra.mrb[0].mxu0 %v357
  %v517 = vpop.f32.mrb[0].mxu0
  %v518 = vadd.f32 0.0, %v517
  %v519 = vpop.f32.mrb[0].mxu0
  %v520 = vpop.f32.mrb[0].mxu0
  %v521 = vadd.f32 0.0, %v520
  %v522 = vpop.f32.mrb[0].mxu0
  %523 = vmatprep.mubr.bf16.mxu0 0
  %524 = vmatmul.mubr.bf16.gmra.mrb[0].mxu0 %v358
  %v525 = vpop.f32.mrb[0].mxu0
  %v526 = vadd.f32 0.0, %v525
  %v527 = vpop.f32.mrb[0].mxu0
  %v528 = vpop.f32.mrb[0].mxu0
  %v529 = vadd.f32 0.0, %v528
  %v530 = vpop.f32.mrb[0].mxu0
  %531 = vmatprep.mubr.bf16.mxu0 0
  %532 = vmatmul.mubr.bf16.gmra.mrb[0].mxu0 %v359
  %v533 = vpop.f32.mrb[0].mxu0
  %v534 = vadd.f32 0.0, %v533
  %v535 = vpop.f32.mrb[0].mxu0
  %v536 = vpop.f32.mrb[0].mxu0
  %v537 = vadd.f32 0.0, %v536
  %v538 = vpop.f32.mrb[0].mxu0
  %539 = vmatprep.mubr.bf16.mxu0 0
  %540 = vmatmul.mubr.bf16.gmra.mrb[0].mxu0 %v360
  %v541 = vpop.f32.mrb[0].mxu0
  %v542 = vadd.f32 0.0, %v541
  %v543 = vpop.f32.mrb[0].mxu0
  %v544 = vpop.f32.mrb[0].mxu0
  %v545 = vadd.f32 0.0, %v544
  %v546 = vpop.f32.mrb[0].mxu0
  %547 = vmatprep.mubr.bf16.mxu0 0
  %548 = vmatmul.mubr.bf16.gmra.mrb[0].mxu0 %v361
  %v549 = vpop.f32.mrb[0].mxu0
  %v550 = vadd.f32 0.0, %v549
  %v551 = vpop.f32.mrb[0].mxu0
  %v552 = vpop.f32.mrb[0].mxu0
  %v553 = vadd.f32 0.0, %v552
  %v554 = vpop.f32.mrb[0].mxu0
  %555 = vmatprep.mubr.bf16.mxu0 0
  %556 = vmatmul.mubr.bf16.gmra.mrb[0].mxu0 %v362
  %v557 = vpop.f32.mrb[0].mxu0
  %v558 = vadd.f32 0.0, %v557
  %v559 = vpop.f32.mrb[0].mxu0
  %v560 = vpop.f32.mrb[0].mxu0
  %v561 = vadd.f32 0.0, %v560
  %v562 = vpop.f32.mrb[0].mxu0
  %563 = vmatprep.mubr.bf16.mxu0 0
  %564 = vmatmul.mubr.bf16.gmra.mrb[0].mxu0 %v363
  %v565 = vpop.f32.mrb[0].mxu0
  %v566 = vadd.f32 0.0, %v565
  %v567 = vpop.f32.mrb[0].mxu0
  %v568 = vpop.f32.mrb[0].mxu0
  %v569 = vadd.f32 0.0, %v568
  %v570 = vpop.f32.mrb[0].mxu0
  %571 = vmatprep.mubr.bf16.mxu0 0
  %572 = vmatmul.mubr.bf16.gmra.mrb[0].mxu0 %v364
  %v573 = vpop.f32.mrb[0].mxu0
  %v574 = vadd.f32 0.0, %v573
  %v575 = vpop.f32.mrb[0].mxu0
  %v576 = vpop.f32.mrb[0].mxu0
  %v577 = vadd.f32 0.0, %v576
  %v578 = vpop.f32.mrb[0].mxu0
  %579 = vmatprep.mubr.bf16.mxu0 0
  %580 = vmatmul.mubr.bf16.gmra.mrb[0].mxu0 %v365
  %v581 = vpop.f32.mrb[0].mxu0
  %v582 = vadd.f32 0.0, %v581
  %v583 = vpop.f32.mrb[0].mxu0
  %v584 = vpop.f32.mrb[0].mxu0
  %v585 = vadd.f32 0.0, %v584
  %v586 = vpop.f32.mrb[0].mxu0
  %587 = vmatprep.mubr.bf16.mxu0 0
  %588 = vmatmul.mubr.bf16.gmra.mrb[0].mxu0 %v366
  %v589 = vpop.f32.mrb[0].mxu0
  %v590 = vadd.f32 0.0, %v589
  %v591 = vpop.f32.mrb[0].mxu0
  %v592 = vpop.f32.mrb[0].mxu0
  %v593 = vadd.f32 0.0, %v592
  %v594 = vpop.f32.mrb[0].mxu0
  %595 = vmatprep.mubr.bf16.mxu0 0
  %596 = vmatmul.mubr.bf16.gmra.mrb[0].mxu0 %v367
  %v597 = vpop.f32.mrb[0].mxu0
  %v598 = vadd.f32 0.0, %v597
  %v599 = vpop.f32.mrb[0].mxu0
  %v600 = vpop.f32.mrb[0].mxu0
  %v601 = vadd.f32 0.0, %v600
  %v602 = vpop.f32.mrb[0].mxu0
  %603 = vmatprep.mubr.bf16.mxu0 0
  %604 = vmatmul.mubr.bf16.gmra.mrb[0].mxu0 %v368
  %v605 = vpop.f32.mrb[0].mxu0
  %v606 = vadd.f32 0.0, %v605
  %v607 = vpop.f32.mrb[0].mxu0
  %v608 = vpop.f32.mrb[0].mxu0
  %v609 = vadd.f32 0.0, %v608
  %v610 = vpop.f32.mrb[0].mxu0
  %611 = vmatprep.mubr.bf16.mxu0 0
  %612 = vmatmul.mubr.bf16.gmra.mrb[0].mxu0 %v369
  %v613 = vpop.f32.mrb[0].mxu0
  %v614 = vadd.f32 0.0, %v613
  %v615 = vpop.f32.mrb[0].mxu0
  %v616 = vpop.f32.mrb[0].mxu0
  %v617 = vadd.f32 0.0, %v616
  %v618 = vpop.f32.mrb[0].mxu0
  %619 = vmatprep.mubr.bf16.mxu0 0
  %620 = vmatmul.mubr.bf16.gmra.mrb[0].mxu0 %v370
  %v621 = vpop.f32.mrb[0].mxu0
  %v622 = vadd.f32 0.0, %v621
  %v623 = vpop.f32.mrb[0].mxu0
  %v624 = vpop.f32.mrb[0].mxu0
  %v625 = vadd.f32 0.0, %v624
  %v626 = vpop.f32.mrb[0].mxu0
  %627 = vmatprep.mubr.bf16.mxu0 0
  %628 = vmatmul.mubr.bf16.gmra.mrb[0].mxu0 %v371
  %v629 = vpop.f32.mrb[0].mxu0
  %v630 = vadd.f32 0.0, %v629
  %v631 = vpop.f32.mrb[0].mxu0
  %v632 = vpop.f32.mrb[0].mxu0
  %v633 = vadd.f32 0.0, %v632
  %v634 = vpop.f32.mrb[0].mxu0
  %635 = vmatprep.mubr.bf16.mxu0 0
  %636 = vmatmul.mubr.bf16.gmra.mrb[0].mxu0 %v372
  %v637 = vpop.f32.mrb[0].mxu0
  %v638 = vadd.f32 0.0, %v637
  %v639 = vpop.f32.mrb[0].mxu0
  %v640 = vpop.f32.mrb[0].mxu0
  %v641 = vadd.f32 0.0, %v640
  %v642 = vpop.f32.mrb[0].mxu0
  %643 = vmatprep.mubr.bf16.mxu0 0
  %644 = vmatmul.mubr.bf16.gmra.mrb[0].mxu0 %v373
  %v645 = vpop.f32.mrb[0].mxu0
  %v646 = vadd.f32 0.0, %v645
  %v647 = vpop.f32.mrb[0].mxu0
  %v648 = vpop.f32.mrb[0].mxu0
  %v649 = vadd.f32 0.0, %v648
  %v650 = vpop.f32.mrb[0].mxu0
  %651 = vmatprep.mubr.bf16.mxu0 0
  %652 = vmatmul.mubr.bf16.gmra.mrb[0].mxu0 %v374
  %v653 = vpop.f32.mrb[0].mxu0
  %v654 = vadd.f32 0.0, %v653
  %v655 = vpop.f32.mrb[0].mxu0
  %v656 = vpop.f32.mrb[0].mxu0
  %v657 = vadd.f32 0.0, %v656
  %v658 = vpop.f32.mrb[0].mxu0
  %659 = vmatprep.mubr.bf16.mxu0 0
  %660 = vmatmul.mubr.bf16.gmra.mrb[0].mxu0 %v375
  %v661 = vpop.f32.mrb[0].mxu0
  %v662 = vadd.f32 0.0, %v661
  %v663 = vpop.f32.mrb[0].mxu0
  %v664 = vpop.f32.mrb[0].mxu0
  %v665 = vadd.f32 0.0, %v664
  %v666 = vpop.f32.mrb[0].mxu0
  %667 = vmatprep.mubr.bf16.mxu0 0
  %668 = vmatmul.mubr.bf16.gmra.mrb[0].mxu0 %v376
  %v669 = vpop.f32.mrb[0].mxu0
  %v670 = vadd.f32 0.0, %v669
  %v671 = vpop.f32.mrb[0].mxu0
  %v672 = vpop.f32.mrb[0].mxu0
  %v673 = vadd.f32 0.0, %v672
  %v674 = vpop.f32.mrb[0].mxu0
  %675 = vmatprep.mubr.bf16.mxu0 0
  %676 = vmatmul.mubr.bf16.gmra.mrb[0].mxu0 %v377
  %v677 = vpop.f32.mrb[0].mxu0
  %v678 = vadd.f32 0.0, %v677
  %v679 = vpop.f32.mrb[0].mxu0
  %v680 = vpop.f32.mrb[0].mxu0
  %v681 = vadd.f32 0.0, %v680
  %v682 = vpop.f32.mrb[0].mxu0
  %683 = vmatprep.mubr.bf16.mxu0 0
  %684 = vmatmul.mubr.bf16.gmra.mrb[0].mxu0 %v378
  %v685 = vpop.f32.mrb[0].mxu0
  %v686 = vadd.f32 0.0, %v685
  %v687 = vpop.f32.mrb[0].mxu0
  %v688 = vpop.f32.mrb[0].mxu0
  %v689 = vadd.f32 0.0, %v688
  %v690 = vpop.f32.mrb[0].mxu0
  %691 = vmatprep.mubr.bf16.mxu0 0
  %692 = vmatmul.mubr.bf16.gmra.mrb[0].mxu0 %v379
  %v693 = vpop.f32.mrb[0].mxu0
  %v694 = vadd.f32 0.0, %v693
  %v695 = vpop.f32.mrb[0].mxu0
  %v696 = vpop.f32.mrb[0].mxu0
  %v697 = vadd.f32 0.0, %v696
  %v698 = vpop.f32.mrb[0].mxu0
  %699 = vmatprep.mubr.bf16.mxu0 0
  %700 = vmatmul.mubr.bf16.gmra.mrb[0].mxu0 %v380
  %v701 = vpop.f32.mrb[0].mxu0
  %v702 = vadd.f32 0.0, %v701
  %v703 = vpop.f32.mrb[0].mxu0
  %v704 = vpop.f32.mrb[0].mxu0
  %v705 = vadd.f32 0.0, %v704
  %v706 = vpop.f32.mrb[0].mxu0
  %707 = vmatprep.mubr.bf16.mxu0 0
  %708 = vmatmul.mubr.bf16.gmra.mrb[0].mxu0 %v381
  %v709 = vpop.f32.mrb[0].mxu0
  %v710 = vadd.f32 0.0, %v709
  %v711 = vpop.f32.mrb[0].mxu0
  %v712 = vpop.f32.mrb[0].mxu0
  %v713 = vadd.f32 0.0, %v712
  %v714 = vpop.f32.mrb[0].mxu0
  %715 = vmatprep.mubr.bf16.mxu0 0
  %716 = vmatmul.mubr.bf16.gmra.mrb[0].mxu0 %v382
  %v717 = vpop.f32.mrb[0].mxu0
  %v718 = vadd.f32 0.0, %v717
  %v719 = vpop.f32.mrb[0].mxu0
  %v720 = vpop.f32.mrb[0].mxu0
  %v721 = vadd.f32 0.0, %v720
  %v722 = vpop.f32.mrb[0].mxu0
  %723 = vmatprep.mubr.bf16.mxu0 0
  %724 = vmatmul.mubr.bf16.gmra.mrb[0].mxu0 %v383
  %v725 = vpop.f32.mrb[0].mxu0
  %v726 = vadd.f32 0.0, %v725
  %v727 = vpop.f32.mrb[0].mxu0
  %v728 = vpop.f32.mrb[0].mxu0
  %v729 = vadd.f32 0.0, %v728
  %v730 = vpop.f32.mrb[0].mxu0
  %731 = vmatprep.mubr.bf16.mxu0 0
  %732 = vmatmul.mubr.bf16.gmra.mrb[0].mxu0 %v384
  %v733 = vpop.f32.mrb[0].mxu0
  %v734 = vadd.f32 0.0, %v733
  %v735 = vpop.f32.mrb[0].mxu0
  %v736 = vpop.f32.mrb[0].mxu0
  %v737 = vadd.f32 0.0, %v736
  %v738 = vpop.f32.mrb[0].mxu0
  %739 = vmatprep.mubr.bf16.mxu0 0
  %740 = vmatmul.mubr.bf16.gmra.mrb[0].mxu0 %v385
  %v741 = vpop.f32.mrb[0].mxu0
  %v742 = vadd.f32 0.0, %v741
  %v743 = vpop.f32.mrb[0].mxu0
  %v744 = vpop.f32.mrb[0].mxu0
  %v745 = vadd.f32 0.0, %v744
  %v746 = vpop.f32.mrb[0].mxu0
  %747 = vmatprep.mubr.bf16.mxu0 0
  %748 = vmatmul.mubr.bf16.gmra.mrb[0].mxu0 %v386
  %v749 = vpop.f32.mrb[0].mxu0
  %v750 = vadd.f32 0.0, %v749
  %v751 = vpop.f32.mrb[0].mxu0
  %v752 = vpop.f32.mrb[0].mxu0
  %v753 = vadd.f32 0.0, %v752
  %v754 = vpop.f32.mrb[0].mxu0
  %755 = vdwg.mxu0
  %v756 = vadd.f32 %v83, %v502
  %v757 = vadd.f32 %v84, %v505
  %v758 = vadd.f32 %v85, %v510
  %v759 = vadd.f32 %v86, %v513
  %v760 = vadd.f32 %v87, %v518
  %v761 = vadd.f32 %v88, %v521
  %v762 = vadd.f32 %v89, %v526
  %v763 = vadd.f32 %v90, %v529
  %v764 = vadd.f32 %v91, %v534
  %v765 = vadd.f32 %v92, %v537
  %v766 = vadd.f32 %v93, %v542
  %v767 = vadd.f32 %v94, %v545
  %v768 = vadd.f32 %v95, %v550
  %v769 = vadd.f32 %v96, %v553
  %v770 = vadd.f32 %v97, %v558
  %v771 = vadd.f32 %v98, %v561
  %v772 = vadd.f32 %v99, %v566
  %v773 = vadd.f32 %v100, %v569
  %v774 = vadd.f32 %v101, %v574
  %v775 = vadd.f32 %v102, %v577
  %v776 = vadd.f32 %v103, %v582
  %v777 = vadd.f32 %v104, %v585
  %v778 = vadd.f32 %v105, %v590
  %v779 = vadd.f32 %v106, %v593
  %v780 = vadd.f32 %v107, %v598
  %v781 = vadd.f32 %v108, %v601
  %v782 = vadd.f32 %v109, %v606
  %v783 = vadd.f32 %v110, %v609
  %v784 = vadd.f32 %v111, %v614
  %v785 = vadd.f32 %v112, %v617
  %v786 = vadd.f32 %v113, %v622
  %v787 = vadd.f32 %v114, %v625
  %v788 = vadd.f32 %v115, %v630
  %v789 = vadd.f32 %v116, %v633
  %v790 = vadd.f32 %v117, %v638
  %v791 = vadd.f32 %v118, %v641
  %v792 = vadd.f32 %v119, %v646
  %v793 = vadd.f32 %v120, %v649
  %v794 = vadd.f32 %v121, %v654
  %v795 = vadd.f32 %v122, %v657
  %v796 = vadd.f32 %v123, %v662
  %v797 = vadd.f32 %v124, %v665
  %v798 = vadd.f32 %v125, %v670
  %v799 = vadd.f32 %v126, %v673
  %v800 = vadd.f32 %v127, %v678
  %v801 = vadd.f32 %v128, %v681
  %v802 = vadd.f32 %v129, %v686
  %v803 = vadd.f32 %v130, %v689
  %v804 = vadd.f32 %v131, %v694
  %v805 = vadd.f32 %v132, %v697
  %v806 = vadd.f32 %v133, %v702
  %v807 = vadd.f32 %v134, %v705
  %v808 = vadd.f32 %v135, %v710
  %v809 = vadd.f32 %v136, %v713
  %v810 = vadd.f32 %v137, %v718
  %v811 = vadd.f32 %v138, %v721
  %v812 = vadd.f32 %v139, %v726
  %v813 = vadd.f32 %v140, %v729
  %v814 = vadd.f32 %v141, %v734
  %v815 = vadd.f32 %v142, %v737
  %v816 = vadd.f32 %v143, %v742
  %v817 = vadd.f32 %v144, %v745
  %v818 = vadd.f32 %v145, %v750
  %v819 = vadd.f32 %v146, %v753
  %820 = vst [vmem:[#allocation2] sm:$0xff] %v756
  %821 = vst [vmem:[#allocation2 + $0x8] sm:$0xff] %v757
  %822 = vst [vmem:[#allocation2 + $0x10] sm:$0xff] %v758
  %823 = vst [vmem:[#allocation2 + $0x18] sm:$0xff] %v759
  %824 = vst [vmem:[#allocation2 + $0x20] sm:$0xff] %v760
  %825 = vst [vmem:[#allocation2 + $0x28] sm:$0xff] %v761
  %826 = vst [vmem:[#allocation2 + $0x30] sm:$0xff] %v762
  %827 = vst [vmem:[#allocation2 + $0x38] sm:$0xff] %v763
  %828 = vst [vmem:[#allocation2 + $0x40] sm:$0xff] %v764
  %829 = vst [vmem:[#allocation2 + $0x48] sm:$0xff] %v765
  %830 = vst [vmem:[#allocation2 + $0x50] sm:$0xff] %v766
  %831 = vst [vmem:[#allocation2 + $0x58] sm:$0xff] %v767
  %832 = vst [vmem:[#allocation2 + $0x60] sm:$0xff] %v768
  %833 = vst [vmem:[#allocation2 + $0x68] sm:$0xff] %v769
  %834 = vst [vmem:[#allocation2 + $0x70] sm:$0xff] %v770
  %835 = vst [vmem:[#allocation2 + $0x78] sm:$0xff] %v771
  %836 = vst [vmem:[#allocation2 + $0x80] sm:$0xff] %v772
  %837 = vst [vmem:[#allocation2 + $0x88] sm:$0xff] %v773
  %838 = vst [vmem:[#allocation2 + $0x90] sm:$0xff] %v774
  %839 = vst [vmem:[#allocation2 + $0x98] sm:$0xff] %v775
  %840 = vst [vmem:[#allocation2 + $0xa0] sm:$0xff] %v776
  %841 = vst [vmem:[#allocation2 + $0xa8] sm:$0xff] %v777
  %842 = vst [vmem:[#allocation2 + $0xb0] sm:$0xff] %v778
  %843 = vst [vmem:[#allocation2 + $0xb8] sm:$0xff] %v779
  %844 = vst [vmem:[#allocation2 + $0xc0] sm:$0xff] %v780
  %845 = vst [vmem:[#allocation2 + $0xc8] sm:$0xff] %v781
  %846 = vst [vmem:[#allocation2 + $0xd0] sm:$0xff] %v782
  %847 = vst [vmem:[#allocation2 + $0xd8] sm:$0xff] %v783
  %848 = vst [vmem:[#allocation2 + $0xe0] sm:$0xff] %v784
  %849 = vst [vmem:[#allocation2 + $0xe8] sm:$0xff] %v785
  %850 = vst [vmem:[#allocation2 + $0xf0] sm:$0xff] %v786
  %851 = vst [vmem:[#allocation2 + $0xf8] sm:$0xff] %v787
  %852 = vst [vmem:[#allocation2 + $0x100] sm:$0xff] %v788
  %853 = vst [vmem:[#allocation2 + $0x108] sm:$0xff] %v789
  %854 = vst [vmem:[#allocation2 + $0x110] sm:$0xff] %v790
  %855 = vst [vmem:[#allocation2 + $0x118] sm:$0xff] %v791
  %856 = vst [vmem:[#allocation2 + $0x120] sm:$0xff] %v792
  %857 = vst [vmem:[#allocation2 + $0x128] sm:$0xff] %v793
  %858 = vst [vmem:[#allocation2 + $0x130] sm:$0xff] %v794
  %859 = vst [vmem:[#allocation2 + $0x138] sm:$0xff] %v795
  %860 = vst [vmem:[#allocation2 + $0x140] sm:$0xff] %v796
  %861 = vst [vmem:[#allocation2 + $0x148] sm:$0xff] %v797
  %862 = vst [vmem:[#allocation2 + $0x150] sm:$0xff] %v798
  %863 = vst [vmem:[#allocation2 + $0x158] sm:$0xff] %v799
  %864 = vst [vmem:[#allocation2 + $0x160] sm:$0xff] %v800
  %865 = vst [vmem:[#allocation2 + $0x168] sm:$0xff] %v801
  %866 = vst [vmem:[#allocation2 + $0x170] sm:$0xff] %v802
  %867 = vst [vmem:[#allocation2 + $0x178] sm:$0xff] %v803
  %868 = vst [vmem:[#allocation2 + $0x180] sm:$0xff] %v804
  %869 = vst [vmem:[#allocation2 + $0x188] sm:$0xff] %v805
  %870 = vst [vmem:[#allocation2 + $0x190] sm:$0xff] %v806
  %871 = vst [vmem:[#allocation2 + $0x198] sm:$0xff] %v807
  %872 = vst [vmem:[#allocation2 + $0x1a0] sm:$0xff] %v808
  %873 = vst [vmem:[#allocation2 + $0x1a8] sm:$0xff] %v809
  %874 = vst [vmem:[#allocation2 + $0x1b0] sm:$0xff] %v810
  %875 = vst [vmem:[#allocation2 + $0x1b8] sm:$0xff] %v811
  %876 = vst [vmem:[#allocation2 + $0x1c0] sm:$0xff] %v812
  %877 = vst [vmem:[#allocation2 + $0x1c8] sm:$0xff] %v813
  %878 = vst [vmem:[#allocation2 + $0x1d0] sm:$0xff] %v814
  %879 = vst [vmem:[#allocation2 + $0x1d8] sm:$0xff] %v815
  %880 = vst [vmem:[#allocation2 + $0x1e0] sm:$0xff] %v816
  %881 = vst [vmem:[#allocation2 + $0x1e8] sm:$0xff] %v817
  %882 = vst [vmem:[#allocation2 + $0x1f0] sm:$0xff] %v818
  %883 = vst [vmem:[#allocation2 + $0x1f8] sm:$0xff] %v819
  // Predicated region
  $region18: #{_lambda_.24} parent=0 // pred_check
    %p884 = pneg %p15
  $region19: #{_lambda_.24} parent=0 // pred_check_branch
    %886 = sbr.rel (%p884) target = $region21
  $region20: #{_lambda_.24} parent=0 // pred_region
    %v887 = vld [vmem:[#allocation2] sm:$0xff]
    %v888 = vld [vmem:[#allocation2 + $0x8] sm:$0xff]
    %v889 = vld [vmem:[#allocation2 + $0x10] sm:$0xff]
    %v890 = vld [vmem:[#allocation2 + $0x18] sm:$0xff]
    %v891 = vld [vmem:[#allocation2 + $0x20] sm:$0xff]
    %v892 = vld [vmem:[#allocation2 + $0x28] sm:$0xff]
    %v893 = vld [vmem:[#allocation2 + $0x30] sm:$0xff]
    %v894 = vld [vmem:[#allocation2 + $0x38] sm:$0xff]
    %v895 = vld [vmem:[#allocation2 + $0x40] sm:$0xff]
    %v896 = vld [vmem:[#allocation2 + $0x48] sm:$0xff]
    %v897 = vld [vmem:[#allocation2 + $0x50] sm:$0xff]
    %v898 = vld [vmem:[#allocation2 + $0x58] sm:$0xff]
    %v899 = vld [vmem:[#allocation2 + $0x60] sm:$0xff]
    %v900 = vld [vmem:[#allocation2 + $0x68] sm:$0xff]
    %v901 = vld [vmem:[#allocation2 + $0x70] sm:$0xff]
    %v902 = vld [vmem:[#allocation2 + $0x78] sm:$0xff]
    %v903 = vld [vmem:[#allocation2 + $0x80] sm:$0xff]
    %v904 = vld [vmem:[#allocation2 + $0x88] sm:$0xff]
    %v905 = vld [vmem:[#allocation2 + $0x90] sm:$0xff]
    %v906 = vld [vmem:[#allocation2 + $0x98] sm:$0xff]
    %v907 = vld [vmem:[#allocation2 + $0xa0] sm:$0xff]
    %v908 = vld [vmem:[#allocation2 + $0xa8] sm:$0xff]
    %v909 = vld [vmem:[#allocation2 + $0xb0] sm:$0xff]
    %v910 = vld [vmem:[#allocation2 + $0xb8] sm:$0xff]
    %v911 = vld [vmem:[#allocation2 + $0xc0] sm:$0xff]
    %v912 = vld [vmem:[#allocation2 + $0xc8] sm:$0xff]
    %v913 = vld [vmem:[#allocation2 + $0xd0] sm:$0xff]
    %v914 = vld [vmem:[#allocation2 + $0xd8] sm:$0xff]
    %v915 = vld [vmem:[#allocation2 + $0xe0] sm:$0xff]
    %v916 = vld [vmem:[#allocation2 + $0xe8] sm:$0xff]
    %v917 = vld [vmem:[#allocation2 + $0xf0] sm:$0xff]
    %v918 = vld [vmem:[#allocation2 + $0xf8] sm:$0xff]
    %v919 = vld [vmem:[#allocation2 + $0x100] sm:$0xff]
    %v920 = vld [vmem:[#allocation2 + $0x108] sm:$0xff]
    %v921 = vld [vmem:[#allocation2 + $0x110] sm:$0xff]
    %v922 = vld [vmem:[#allocation2 + $0x118] sm:$0xff]
    %v923 = vld [vmem:[#allocation2 + $0x120] sm:$0xff]
    %v924 = vld [vmem:[#allocation2 + $0x128] sm:$0xff]
    %v925 = vld [vmem:[#allocation2 + $0x130] sm:$0xff]
    %v926 = vld [vmem:[#allocation2 + $0x138] sm:$0xff]
    %v927 = vld [vmem:[#allocation2 + $0x140] sm:$0xff]
    %v928 = vld [vmem:[#allocation2 + $0x148] sm:$0xff]
    %v929 = vld [vmem:[#allocation2 + $0x150] sm:$0xff]
    %v930 = vld [vmem:[#allocation2 + $0x158] sm:$0xff]
    %v931 = vld [vmem:[#allocation2 + $0x160] sm:$0xff]
    %v932 = vld [vmem:[#allocation2 + $0x168] sm:$0xff]
    %v933 = vld [vmem:[#allocation2 + $0x170] sm:$0xff]
    %v934 = vld [vmem:[#allocation2 + $0x178] sm:$0xff]
    %v935 = vld [vmem:[#allocation2 + $0x180] sm:$0xff]
    %v936 = vld [vmem:[#allocation2 + $0x188] sm:$0xff]
    %v937 = vld [vmem:[#allocation2 + $0x190] sm:$0xff]
    %v938 = vld [vmem:[#allocation2 + $0x198] sm:$0xff]
    %v939 = vld [vmem:[#allocation2 + $0x1a0] sm:$0xff]
    %v940 = vld [vmem:[#allocation2 + $0x1a8] sm:$0xff]
    %v941 = vld [vmem:[#allocation2 + $0x1b0] sm:$0xff]
    %v942 = vld [vmem:[#allocation2 + $0x1b8] sm:$0xff]
    %v943 = vld [vmem:[#allocation2 + $0x1c0] sm:$0xff]
    %v944 = vld [vmem:[#allocation2 + $0x1c8] sm:$0xff]
    %v945 = vld [vmem:[#allocation2 + $0x1d0] sm:$0xff]
    %v946 = vld [vmem:[#allocation2 + $0x1d8] sm:$0xff]
    %v947 = vld [vmem:[#allocation2 + $0x1e0] sm:$0xff]
    %v948 = vld [vmem:[#allocation2 + $0x1e8] sm:$0xff]
    %v949 = vld [vmem:[#allocation2 + $0x1f0] sm:$0xff]
    %v950 = vld [vmem:[#allocation2 + $0x1f8] sm:$0xff]
    %v951 = vld [vmem:[%s2] sm:$0x1]
    %v953 = vlaneseq
    %v954 = vshrl.u32 %v953, 7
    %v955 = vsub.s32 0, %v954
    %v956 = vrot.slane %v951, %v955
    %v958 = vadd.f32 %v887, %v956
    %v959 = vadd.f32 %v888, %v956
    %v960 = vadd.f32 %v889, %v956
    %v961 = vadd.f32 %v890, %v956
    %v962 = vadd.f32 %v891, %v956
    %v963 = vadd.f32 %v892, %v956
    %v964 = vadd.f32 %v893, %v956
    %v965 = vadd.f32 %v894, %v956
    %v966 = vadd.f32 %v895, %v956
    %v967 = vadd.f32 %v896, %v956
    %v968 = vadd.f32 %v897, %v956
    %v969 = vadd.f32 %v898, %v956
    %v970 = vadd.f32 %v899, %v956
    %v971 = vadd.f32 %v900, %v956
    %v972 = vadd.f32 %v901, %v956
    %v973 = vadd.f32 %v902, %v956
    %v974 = vadd.f32 %v903, %v956
    %v975 = vadd.f32 %v904, %v956
    %v976 = vadd.f32 %v905, %v956
    %v977 = vadd.f32 %v906, %v956
    %v978 = vadd.f32 %v907, %v956
    %v979 = vadd.f32 %v908, %v956
    %v980 = vadd.f32 %v909, %v956
    %v981 = vadd.f32 %v910, %v956
    %v982 = vadd.f32 %v911, %v956
    %v983 = vadd.f32 %v912, %v956
    %v984 = vadd.f32 %v913, %v956
    %v985 = vadd.f32 %v914, %v956
    %v986 = vadd.f32 %v915, %v956
    %v987 = vadd.f32 %v916, %v956
    %v988 = vadd.f32 %v917, %v956
    %v989 = vadd.f32 %v918, %v956
    %v990 = vadd.f32 %v919, %v956
    %v991 = vadd.f32 %v920, %v956
    %v992 = vadd.f32 %v921, %v956
    %v993 = vadd.f32 %v922, %v956
    %v994 = vadd.f32 %v923, %v956
    %v995 = vadd.f32 %v924, %v956
    %v996 = vadd.f32 %v925, %v956
    %v997 = vadd.f32 %v926, %v956
    %v998 = vadd.f32 %v927, %v956
    %v999 = vadd.f32 %v928, %v956
    %v1000 = vadd.f32 %v929, %v956
    %v1001 = vadd.f32 %v930, %v956
    %v1002 = vadd.f32 %v931, %v956
    %v1003 = vadd.f32 %v932, %v956
    %v1004 = vadd.f32 %v933, %v956
    %v1005 = vadd.f32 %v934, %v956
    %v1006 = vadd.f32 %v935, %v956
    %v1007 = vadd.f32 %v936, %v956
    %v1008 = vadd.f32 %v937, %v956
    %v1009 = vadd.f32 %v938, %v956
    %v1010 = vadd.f32 %v939, %v956
    %v1011 = vadd.f32 %v940, %v956
    %v1012 = vadd.f32 %v941, %v956
    %v1013 = vadd.f32 %v942, %v956
    %v1014 = vadd.f32 %v943, %v956
    %v1015 = vadd.f32 %v944, %v956
    %v1016 = vadd.f32 %v945, %v956
    %v1017 = vadd.f32 %v946, %v956
    %v1018 = vadd.f32 %v947, %v956
    %v1019 = vadd.f32 %v948, %v956
    %v1020 = vadd.f32 %v949, %v956
    %v1021 = vadd.f32 %v950, %v956
    %v1022 = vpack.c.bf16 %v959, %v958
    %v1023 = vpack.c.bf16 %v961, %v960
    %v1024 = vpack.c.bf16 %v963, %v962
    %v1025 = vpack.c.bf16 %v965, %v964
    %v1026 = vpack.c.bf16 %v967, %v966
    %v1027 = vpack.c.bf16 %v969, %v968
    %v1028 = vpack.c.bf16 %v971, %v970
    %v1029 = vpack.c.bf16 %v973, %v972
    %v1030 = vpack.c.bf16 %v975, %v974
    %v1031 = vpack.c.bf16 %v977, %v976
    %v1032 = vpack.c.bf16 %v979, %v978
    %v1033 = vpack.c.bf16 %v981, %v980
    %v1034 = vpack.c.bf16 %v983, %v982
    %v1035 = vpack.c.bf16 %v985, %v984
    %v1036 = vpack.c.bf16 %v987, %v986
    %v1037 = vpack.c.bf16 %v989, %v988
    %v1038 = vpack.c.bf16 %v991, %v990
    %v1039 = vpack.c.bf16 %v993, %v992
    %v1040 = vpack.c.bf16 %v995, %v994
    %v1041 = vpack.c.bf16 %v997, %v996
    %v1042 = vpack.c.bf16 %v999, %v998
    %v1043 = vpack.c.bf16 %v1001, %v1000
    %v1044 = vpack.c.bf16 %v1003, %v1002
    %v1045 = vpack.c.bf16 %v1005, %v1004
    %v1046 = vpack.c.bf16 %v1007, %v1006
    %v1047 = vpack.c.bf16 %v1009, %v1008
    %v1048 = vpack.c.bf16 %v1011, %v1010
    %v1049 = vpack.c.bf16 %v1013, %v1012
    %v1050 = vpack.c.bf16 %v1015, %v1014
    %v1051 = vpack.c.bf16 %v1017, %v1016
    %v1052 = vpack.c.bf16 %v1019, %v1018
    %v1053 = vpack.c.bf16 %v1021, %v1020
    %v1086 = vunpack.c.l.b16 %v1022
    %v1087 = vunpack.c.h.b16 %v1022
    %v1088 = vunpack.c.l.b16 %v1023
    %v1089 = vunpack.c.h.b16 %v1023
    %v1090 = vunpack.c.l.b16 %v1024
    %v1091 = vunpack.c.h.b16 %v1024
    %v1092 = vunpack.c.l.b16 %v1025
    %v1093 = vunpack.c.h.b16 %v1025
    %v1094 = vunpack.c.l.b16 %v1026
    %v1095 = vunpack.c.h.b16 %v1026
    %v1096 = vunpack.c.l.b16 %v1027
    %v1097 = vunpack.c.h.b16 %v1027
    %v1098 = vunpack.c.l.b16 %v1028
    %v1099 = vunpack.c.h.b16 %v1028
    %v1100 = vunpack.c.l.b16 %v1029
    %v1101 = vunpack.c.h.b16 %v1029
    %v1102 = vunpack.c.l.b16 %v1030
    %v1103 = vunpack.c.h.b16 %v1030
    %v1104 = vunpack.c.l.b16 %v1031
    %v1105 = vunpack.c.h.b16 %v1031
    %v1106 = vunpack.c.l.b16 %v1032
    %v1107 = vunpack.c.h.b16 %v1032
    %v1108 = vunpack.c.l.b16 %v1033
    %v1109 = vunpack.c.h.b16 %v1033
    %v1110 = vunpack.c.l.b16 %v1034
    %v1111 = vunpack.c.h.b16 %v1034
    %v1112 = vunpack.c.l.b16 %v1035
    %v1113 = vunpack.c.h.b16 %v1035
    %v1114 = vunpack.c.l.b16 %v1036
    %v1115 = vunpack.c.h.b16 %v1036
    %v1116 = vunpack.c.l.b16 %v1037
    %v1117 = vunpack.c.h.b16 %v1037
    %v1118 = vunpack.c.l.b16 %v1038
    %v1119 = vunpack.c.h.b16 %v1038
    %v1120 = vunpack.c.l.b16 %v1039
    %v1121 = vunpack.c.h.b16 %v1039
    %v1122 = vunpack.c.l.b16 %v1040
    %v1123 = vunpack.c.h.b16 %v1040
    %v1124 = vunpack.c.l.b16 %v1041
    %v1125 = vunpack.c.h.b16 %v1041
    %v1126 = vunpack.c.l.b16 %v1042
    %v1127 = vunpack.c.h.b16 %v1042
    %v1128 = vunpack.c.l.b16 %v1043
    %v1129 = vunpack.c.h.b16 %v1043
    %v1130 = vunpack.c.l.b16 %v1044
    %v1131 = vunpack.c.h.b16 %v1044
    %v1132 = vunpack.c.l.b16 %v1045
    %v1133 = vunpack.c.h.b16 %v1045
    %v1134 = vunpack.c.l.b16 %v1046
    %v1135 = vunpack.c.h.b16 %v1046
    %v1136 = vunpack.c.l.b16 %v1047
    %v1137 = vunpack.c.h.b16 %v1047
    %v1138 = vunpack.c.l.b16 %v1048
    %v1139 = vunpack.c.h.b16 %v1048
    %v1140 = vunpack.c.l.b16 %v1049
    %v1141 = vunpack.c.h.b16 %v1049
    %v1142 = vunpack.c.l.b16 %v1050
    %v1143 = vunpack.c.h.b16 %v1050
    %v1144 = vunpack.c.l.b16 %v1051
    %v1145 = vunpack.c.h.b16 %v1051
    %v1146 = vunpack.c.l.b16 %v1052
    %v1147 = vunpack.c.h.b16 %v1052
    %v1148 = vunpack.c.l.b16 %v1053
    %v1149 = vunpack.c.h.b16 %v1053
    %v1150 = vpack.c.b16 %v1086, %v1086
    %v1151 = vpack.c.b16 %v1087, %v1087
    %v1152 = vpack.c.b16 %v1088, %v1088
    %v1153 = vpack.c.b16 %v1089, %v1089
    %v1154 = vpack.c.b16 %v1090, %v1090
    %v1155 = vpack.c.b16 %v1091, %v1091
    %v1156 = vpack.c.b16 %v1092, %v1092
    %v1157 = vpack.c.b16 %v1093, %v1093
    %v1158 = vpack.c.b16 %v1094, %v1094
    %v1159 = vpack.c.b16 %v1095, %v1095
    %v1160 = vpack.c.b16 %v1096, %v1096
    %v1161 = vpack.c.b16 %v1097, %v1097
    %v1162 = vpack.c.b16 %v1098, %v1098
    %v1163 = vpack.c.b16 %v1099, %v1099
    %v1164 = vpack.c.b16 %v1100, %v1100
    %v1165 = vpack.c.b16 %v1101, %v1101
    %v1166 = vpack.c.b16 %v1102, %v1102
    %v1167 = vpack.c.b16 %v1103, %v1103
    %v1168 = vpack.c.b16 %v1104, %v1104
    %v1169 = vpack.c.b16 %v1105, %v1105
    %v1170 = vpack.c.b16 %v1106, %v1106
    %v1171 = vpack.c.b16 %v1107, %v1107
    %v1172 = vpack.c.b16 %v1108, %v1108
    %v1173 = vpack.c.b16 %v1109, %v1109
    %v1174 = vpack.c.b16 %v1110, %v1110
    %v1175 = vpack.c.b16 %v1111, %v1111
    %v1176 = vpack.c.b16 %v1112, %v1112
    %v1177 = vpack.c.b16 %v1113, %v1113
    %v1178 = vpack.c.b16 %v1114, %v1114
    %v1179 = vpack.c.b16 %v1115, %v1115
    %v1180 = vpack.c.b16 %v1116, %v1116
    %v1181 = vpack.c.b16 %v1117, %v1117
    %v1182 = vpack.c.b16 %v1118, %v1118
    %v1183 = vpack.c.b16 %v1119, %v1119
    %v1184 = vpack.c.b16 %v1120, %v1120
    %v1185 = vpack.c.b16 %v1121, %v1121
    %v1186 = vpack.c.b16 %v1122, %v1122
    %v1187 = vpack.c.b16 %v1123, %v1123
    %v1188 = vpack.c.b16 %v1124, %v1124
    %v1189 = vpack.c.b16 %v1125, %v1125
    %v1190 = vpack.c.b16 %v1126, %v1126
    %v1191 = vpack.c.b16 %v1127, %v1127
    %v1192 = vpack.c.b16 %v1128, %v1128
    %v1193 = vpack.c.b16 %v1129, %v1129
    %v1194 = vpack.c.b16 %v1130, %v1130
    %v1195 = vpack.c.b16 %v1131, %v1131
    %v1196 = vpack.c.b16 %v1132, %v1132
    %v1197 = vpack.c.b16 %v1133, %v1133
    %v1198 = vpack.c.b16 %v1134, %v1134
    %v1199 = vpack.c.b16 %v1135, %v1135
    %v1200 = vpack.c.b16 %v1136, %v1136
    %v1201 = vpack.c.b16 %v1137, %v1137
    %v1202 = vpack.c.b16 %v1138, %v1138
    %v1203 = vpack.c.b16 %v1139, %v1139
    %v1204 = vpack.c.b16 %v1140, %v1140
    %v1205 = vpack.c.b16 %v1141, %v1141
    %v1206 = vpack.c.b16 %v1142, %v1142
    %v1207 = vpack.c.b16 %v1143, %v1143
    %v1208 = vpack.c.b16 %v1144, %v1144
    %v1209 = vpack.c.b16 %v1145, %v1145
    %v1210 = vpack.c.b16 %v1146, %v1146
    %v1211 = vpack.c.b16 %v1147, %v1147
    %v1212 = vpack.c.b16 %v1148, %v1148
    %v1213 = vpack.c.b16 %v1149, %v1149
    %1278 = vst [vmem:[%s3] sm:$0xf] %v1150
    %1279 = vst [vmem:[%s3 + $0x4] sm:$0xf] %v1151
    %1280 = vst [vmem:[%s3 + $0x8] sm:$0xf] %v1152
    %1281 = vst [vmem:[%s3 + $0xc] sm:$0xf] %v1153
    %1282 = vst [vmem:[%s3 + $0x10] sm:$0xf] %v1154
    %1283 = vst [vmem:[%s3 + $0x14] sm:$0xf] %v1155
    %1284 = vst [vmem:[%s3 + $0x18] sm:$0xf] %v1156
    %1285 = vst [vmem:[%s3 + $0x1c] sm:$0xf] %v1157
    %1286 = vst [vmem:[%s3 + $0x20] sm:$0xf] %v1158
    %1287 = vst [vmem:[%s3 + $0x24] sm:$0xf] %v1159
    %1288 = vst [vmem:[%s3 + $0x28] sm:$0xf] %v1160
    %1289 = vst [vmem:[%s3 + $0x2c] sm:$0xf] %v1161
    %1290 = vst [vmem:[%s3 + $0x30] sm:$0xf] %v1162
    %1291 = vst [vmem:[%s3 + $0x34] sm:$0xf] %v1163
    %1292 = vst [vmem:[%s3 + $0x38] sm:$0xf] %v1164
    %1293 = vst [vmem:[%s3 + $0x3c] sm:$0xf] %v1165
    %1294 = vst [vmem:[%s3 + $0x40] sm:$0xf] %v1166
    %1295 = vst [vmem:[%s3 + $0x44] sm:$0xf] %v1167
    %1296 = vst [vmem:[%s3 + $0x48] sm:$0xf] %v1168
    %1297 = vst [vmem:[%s3 + $0x4c] sm:$0xf] %v1169
    %1298 = vst [vmem:[%s3 + $0x50] sm:$0xf] %v1170
    %1299 = vst [vmem:[%s3 + $0x54] sm:$0xf] %v1171
    %1300 = vst [vmem:[%s3 + $0x58] sm:$0xf] %v1172
    %1301 = vst [vmem:[%s3 + $0x5c] sm:$0xf] %v1173
    %1302 = vst [vmem:[%s3 + $0x60] sm:$0xf] %v1174
    %1303 = vst [vmem:[%s3 + $0x64] sm:$0xf] %v1175
    %1304 = vst [vmem:[%s3 + $0x68] sm:$0xf] %v1176
    %1305 = vst [vmem:[%s3 + $0x6c] sm:$0xf] %v1177
    %1306 = vst [vmem:[%s3 + $0x70] sm:$0xf] %v1178
    %1307 = vst [vmem:[%s3 + $0x74] sm:$0xf] %v1179
    %1308 = vst [vmem:[%s3 + $0x78] sm:$0xf] %v1180
    %1309 = vst [vmem:[%s3 + $0x7c] sm:$0xf] %v1181
    %1310 = vst [vmem:[%s3 + $0x80] sm:$0xf] %v1182
    %1311 = vst [vmem:[%s3 + $0x84] sm:$0xf] %v1183
    %1312 = vst [vmem:[%s3 + $0x88] sm:$0xf] %v1184
    %1313 = vst [vmem:[%s3 + $0x8c] sm:$0xf] %v1185
    %1314 = vst [vmem:[%s3 + $0x90] sm:$0xf] %v1186
    %1315 = vst [vmem:[%s3 + $0x94] sm:$0xf] %v1187
    %1316 = vst [vmem:[%s3 + $0x98] sm:$0xf] %v1188
    %1317 = vst [vmem:[%s3 + $0x9c] sm:$0xf] %v1189
    %1318 = vst [vmem:[%s3 + $0xa0] sm:$0xf] %v1190
    %1319 = vst [vmem:[%s3 + $0xa4] sm:$0xf] %v1191
    %1320 = vst [vmem:[%s3 + $0xa8] sm:$0xf] %v1192
    %1321 = vst [vmem:[%s3 + $0xac] sm:$0xf] %v1193
    %1322 = vst [vmem:[%s3 + $0xb0] sm:$0xf] %v1194
    %1323 = vst [vmem:[%s3 + $0xb4] sm:$0xf] %v1195
    %1324 = vst [vmem:[%s3 + $0xb8] sm:$0xf] %v1196
    %1325 = vst [vmem:[%s3 + $0xbc] sm:$0xf] %v1197
    %1326 = vst [vmem:[%s3 + $0xc0] sm:$0xf] %v1198
    %1327 = vst [vmem:[%s3 + $0xc4] sm:$0xf] %v1199
    %1328 = vst [vmem:[%s3 + $0xc8] sm:$0xf] %v1200
    %1329 = vst [vmem:[%s3 + $0xcc] sm:$0xf] %v1201
    %1330 = vst [vmem:[%s3 + $0xd0] sm:$0xf] %v1202
    %1331 = vst [vmem:[%s3 + $0xd4] sm:$0xf] %v1203
    %1332 = vst [vmem:[%s3 + $0xd8] sm:$0xf] %v1204
    %1333 = vst [vmem:[%s3 + $0xdc] sm:$0xf] %v1205
    %1334 = vst [vmem:[%s3 + $0xe0] sm:$0xf] %v1206
    %1335 = vst [vmem:[%s3 + $0xe4] sm:$0xf] %v1207
    %1336 = vst [vmem:[%s3 + $0xe8] sm:$0xf] %v1208
    %1337 = vst [vmem:[%s3 + $0xec] sm:$0xf] %v1209
    %1338 = vst [vmem:[%s3 + $0xf0] sm:$0xf] %v1210
    %1339 = vst [vmem:[%s3 + $0xf4] sm:$0xf] %v1211
    %1340 = vst [vmem:[%s3 + $0xf8] sm:$0xf] %v1212
    %1341 = vst [vmem:[%s3 + $0xfc] sm:$0xf] %v1213
  $region21: #{_lambda_.24} parent=0 // pred_fallthru
    _
  // Predicated region
  $region22: #{_lambda_.24} parent=0 // pred_check
    _
  $region23: #{_lambda_.24} parent=0 // pred_check_branch
    %1343 = sbr.rel (0) target = $region25
  $region24: #{_lambda_.24} parent=0 // pred_region
    _
  $region25: #{_lambda_.24} parent=0 // pred_fallthru
    _
  // Predicated region
  $region26: #{_lambda_.24} parent=0 // pred_check
    _
  $region27: #{_lambda_.24} parent=0 // pred_check_branch
    %1345 = sbr.rel (0) target = $region29
  $region28: #{_lambda_.24} parent=0 // pred_region
    _
  $region29: #{_lambda_.24} parent=0 // pred_fallthru
    _

// kernel: _lambda_.23
$region0: #{_lambda_.23}
  #allocation0 [shape = 'u32[]', space=smem, size = 0x4, offset = 0x4, fixed_abs, tag = 'smem constant byte address 0x4 - core index']
  #allocation1 [shape = 'u32[144,128]{1,0:T(1,128)}', space=vmem, size = 0x12000, scoped, tag = 'internal scratch']
  #allocation2 [shape = 'f32[512,128]{1,0:T(8,128)}', space=vmem, size = 0x40000, scoped, tag = 'scratch operand']
  %s0 = inlined_call_operand.vmem [shape: bf16[512,384], index: 0, kind: input, shape index: {}]
  %s1 = inlined_call_operand.vmem [shape: bf16[384,128], index: 1, kind: input, shape index: {}]
  %s2 = inlined_call_operand.vmem [shape: f32[1,128], index: 2, kind: input, shape index: {}]
  %s3 = inlined_call_operand.vmem [shape: bf16[512,128], index: 3, kind: output, shape index: {}]
  %s4 = sld [smem:[#allocation0]]
  $region94: #{_lambda_.23} parent=0
    _
  %s6 = ssub.s32 1, %s4
  %s7 = scalar_select 0, %s6, %s4
  $region1: #{_lambda_.23} parent=0
    #allocation3 [shape = 'u8[262144]{0}', space=vmem, size = 0x40000, scoped, tag = 'input window, operand 0']
    loop: start=0, step=1, limit=5
    $region2: #{_lambda_.23} parent=1 // loop_pre_header
      _
    $region3: #{_lambda_.23} parent=1 // loop_header
      %s9 = sphi 0, %s13
      %p10 = scmp.ge.s32.totalorder %s9, 5
      %s16 = sphi 0, %s35
      %s17 = sphi 0, %s31
      %s18 = sphi 0, %s27
      %s19 = sphi 0, %s16
      %s20 = sphi 0, %s17
      %s21 = sphi 0, %s18
      %s22 = sphi 0, %s19
      %s23 = sphi 0, %s20
      %s24 = sphi 0, %s21
      %s40 = sphi 0, %s42
      %s43 = sphi 0, %s40
      %s44 = sphi 0, %s43
      %s60 = sphi 0, %s44
      %s68 = sphi 0, %s70
      %s71 = sphi 0, %s68
      %s72 = sphi 0, %s71
      %s88 = sphi 0, %s72
      %s94 = sphi 0, %s96
      %s97 = sphi 0, %s94
      %s98 = sphi 0, %s97
      %s114 = sphi 0, %s98
      %s122 = sphi 0, %s124
      %s125 = sphi 0, %s122
      %s126 = sphi 0, %s125
      %s142 = sphi 0, %s126
    $region4: #{_lambda_.23} parent=1 // loop_header_branch
      %12 = sbr.rel (%p10) target = $region8
    $region5: #{_lambda_.23} parent=1 // loop_body
      %s14 = ssub.s32 %s9, 1
      %s15 = ssub.s32 %s9, 2
      %s25 = sadd.s32 1, %s18
      %p26 = scmp.ge.s32.totalorder %s25, 3
      %s27 = scalar_select %p26, 0, %s25
      %s28 = sadd.s32 1, %s17
      %s29 = scalar_select %p26, %s28, %s17
      %p30 = scmp.ge.s32.totalorder %s29, 1
      %s31 = scalar_select %p30, 0, %s29
      %s32 = sadd.s32 1, %s16
      %s33 = scalar_select %p30, %s32, %s16
      %p34 = scmp.ge.s32.totalorder %s33, 1
      %s35 = scalar_select %p34, 0, %s33
      %s36 = ssub.s32 %s16, %s35
      %s37 = ssub.s32 %s18, %s27
      %s38 = sor.u32 %s36, %s37
      %p39 = scmp.eq.s32.totalorder %s38, 0
      %s41 = sadd.s32 %s40, 1
      %s42 = scalar_select %p39, %s40, %s41
      %p45 = pneg %p39
      %p46 = scmp.eq.s32.totalorder %s9, 2
      %p47 = por %p45, %p46
      %p48 = scmp.ne.s32.totalorder %s40, %s43
      %p49 = scmp.eq.s32.totalorder %s9, 0
      %p50 = por %p48, %p49
      %p51 = scmp.ne.s32.totalorder %s40, %s43
      %p52 = scmp.eq.s32.totalorder %s14, 2
      %p53 = por %p51, %p52
      %p54 = scmp.ne.s32.totalorder %s43, %s44
      %p55 = scmp.eq.s32.totalorder %s14, 0
      %p56 = por %p54, %p55
      %p57 = scmp.ne.s32.totalorder %s43, %s44
      %p58 = scmp.eq.s32.totalorder %s15, 2
      %p59 = por %p57, %p58
      %p61 = scmp.ne.s32.totalorder %s44, %s60
      %p62 = scmp.eq.s32.totalorder %s15, 0
      %p63 = por %p61, %p62
      %s64 = ssub.s32 %s18, %s27
      %s65 = ssub.s32 %s17, %s31
      %s66 = sor.u32 %s64, %s65
      %p67 = scmp.eq.s32.totalorder %s66, 0
      %s69 = sadd.s32 %s68, 1
      %s70 = scalar_select %p67, %s68, %s69
      %p73 = pneg %p67
      %p74 = scmp.eq.s32.totalorder %s9, 2
      %p75 = por %p73, %p74
      %p76 = scmp.ne.s32.totalorder %s68, %s71
      %p77 = scmp.eq.s32.totalorder %s9, 0
      %p78 = por %p76, %p77
      %p79 = scmp.ne.s32.totalorder %s68, %s71
      %p80 = scmp.eq.s32.totalorder %s14, 2
      %p81 = por %p79, %p80
      %p82 = scmp.ne.s32.totalorder %s71, %s72
      %p83 = scmp.eq.s32.totalorder %s14, 0
      %p84 = por %p82, %p83
      %p85 = scmp.ne.s32.totalorder %s71, %s72
      %p86 = scmp.eq.s32.totalorder %s15, 2
      %p87 = por %p85, %p86
      %p89 = scmp.ne.s32.totalorder %s72, %s88
      %p90 = scmp.eq.s32.totalorder %s15, 0
      %p91 = por %p89, %p90
      %s92 = ssub.s32 %s17, %s31
      %p93 = scmp.eq.s32.totalorder %s92, 0
      %s95 = sadd.s32 %s94, 1
      %s96 = scalar_select %p93, %s94, %s95
      %p99 = pneg %p93
      %p100 = scmp.eq.s32.totalorder %s9, 2
      %p101 = por %p99, %p100
      %p102 = scmp.ne.s32.totalorder %s94, %s97
      %p103 = scmp.eq.s32.totalorder %s9, 0
      %p104 = por %p102, %p103
      %p105 = scmp.ne.s32.totalorder %s94, %s97
      %p106 = scmp.eq.s32.totalorder %s14, 2
      %p107 = por %p105, %p106
      %p108 = scmp.ne.s32.totalorder %s97, %s98
      %p109 = scmp.eq.s32.totalorder %s14, 0
      %p110 = por %p108, %p109
      %p111 = scmp.ne.s32.totalorder %s97, %s98
      %p112 = scmp.eq.s32.totalorder %s15, 2
      %p113 = por %p111, %p112
      %p115 = scmp.ne.s32.totalorder %s98, %s114
      %p116 = scmp.eq.s32.totalorder %s15, 0
      %p117 = por %p115, %p116
      %s118 = ssub.s32 %s16, %s35
      %s119 = ssub.s32 %s17, %s31
      %s120 = sor.u32 %s118, %s119
      %p121 = scmp.eq.s32.totalorder %s120, 0
      %s123 = sadd.s32 %s122, 1
      %s124 = scalar_select %p121, %s122, %s123
      %p127 = pneg %p121
      %p128 = scmp.eq.s32.totalorder %s9, 2
      %p129 = por %p127, %p128
      %p130 = scmp.ne.s32.totalorder %s122, %s125
      %p131 = scmp.eq.s32.totalorder %s9, 0
      %p132 = por %p130, %p131
      %p133 = scmp.ne.s32.totalorder %s122, %s125
      %p134 = scmp.eq.s32.totalorder %s14, 2
      %p135 = por %p133, %p134
      %p136 = scmp.ne.s32.totalorder %s125, %s126
      %p137 = scmp.eq.s32.totalorder %s14, 0
      %p138 = por %p136, %p137
      %p139 = scmp.ne.s32.totalorder %s125, %s126
      %p140 = scmp.eq.s32.totalorder %s15, 2
      %p141 = por %p139, %p140
      %p143 = scmp.ne.s32.totalorder %s126, %s142
      %p144 = scmp.eq.s32.totalorder %s15, 0
      %p145 = por %p143, %p144
      %p146 = scmp.le.s32.totalorder 1, %s9
      %p147 = scmp.lt.s32.totalorder %s9, 4
      %p148 = pnand %p146, %p147
      %p149 = pneg %p148
      // Predicated region
      $region9: #{_lambda_.23} parent=5 // pred_check
        _
      $region10: #{_lambda_.23} parent=5 // pred_check_branch
        %151 = sbr.rel (%p148) target = $region12
      $region11: #{_lambda_.23} parent=5 // pred_region
        %s152 = ssub.s32 %s9, 1
        // Predicated region
        $region13: #{_lambda_.23} parent=11 // pred_check
          %p153 = pneg %p110
        $region14: #{_lambda_.23} parent=11 // pred_check_branch
          %155 = sbr.rel (%p153) target = $region16
        $region15: #{_lambda_.23} parent=11 // pred_region
          %p156 = scmp.lt.s32.totalorder %s20, 0
          %s157 = scalar_select %p156, %s20, 0
          %s158 = scalar_lea.vmem %s2, %s157
        $region16: #{_lambda_.23} parent=11 // pred_fallthru
          _
      $region12: #{_lambda_.23} parent=5 // pred_fallthru
        _
      %p159 = scmp.lt.s32.totalorder %s9, 3
      // Predicated region
      $region17: #{_lambda_.23} parent=5 // pred_check
        %p160 = pneg %p159
      $region18: #{_lambda_.23} parent=5 // pred_check_branch
        %162 = sbr.rel (%p160) target = $region20
      $region19: #{_lambda_.23} parent=5 // pred_region
        // Predicated region
        $region21: #{_lambda_.23} parent=19 // pred_check
          %p163 = pneg %p50
        $region22: #{_lambda_.23} parent=19 // pred_check_branch
          %165 = sbr.rel (%p163) target = $region24
        $region23: #{_lambda_.23} parent=19 // pred_region
          %s166 = sand.u32 %s40, 1
          %s167 = sand.u32 %s40, 1
          %s168 = smul.addr %s167, 256
          %s169 = scalar_lea.vmem [#allocation3], %s168
          %s170 = smul.u32 64, %s16
          %s171 = smul.addr %s170, 3
          %s172 = sadd.s32 %s18, %s171
          %s173 = smul.addr %s172, 4
          %s174 = scalar_lea.vmem %s0, %s173
          // Predicated region
          $region25: #{_lambda_.23} parent=23 // pred_check
            _
          $region26: #{_lambda_.23} parent=23 // pred_check_branch
            %176 = sbr.rel (0) target = $region28
          $region27: #{_lambda_.23} parent=23 // pred_region
            // Predicated region
            $region29: #{_lambda_.23} parent=27 // pred_check
              _
            $region30: #{_lambda_.23} parent=27 // pred_check_branch
              %178 = sbr.rel target = $region32
            $region31: #{_lambda_.23} parent=27 // pred_region
              // Predicated region
              $region44: #{_lambda_.23} parent=31 // pred_check
                _
              $region45: #{_lambda_.23} parent=31 // pred_check_branch
                %319 = sbr.rel (0) target = $region47
              $region46: #{_lambda_.23} parent=31 // pred_region
                loop: start=0, step=1, limit=1
                $region48: #{_lambda_.23} parent=46 // loop_pre_header
                  _
                $region49: #{_lambda_.23} parent=46 // loop_header
                  %s321 = sphi 0, %s325
                  %p322 = scmp.ge.s32.totalorder %s321, 1
                  %s326 = sphi %s174, %s174
                  %s327 = sphi %s169, %s169
                $region50: #{_lambda_.23} parent=46 // loop_header_branch
                  %324 = sbr.rel (%p322) target = $region54
                $region51: #{_lambda_.23} parent=46 // loop_body
                  _
                $region52: #{_lambda_.23} parent=46 // loop_footer
                  %s325 = sadd.s32 1, %s321
                $region53: #{_lambda_.23} parent=46 // loop_footer_branch
                  %320 = sbr.rel target = $region49
                $region54: #{_lambda_.23} parent=46 // loop_exit
                  _
                loop: start=0, step=1, limit=1
                $region55: #{_lambda_.23} parent=46 // loop_pre_header
                  _
                $region56: #{_lambda_.23} parent=46 // loop_header
                  %s330 = sphi 0, %s334
                  %p331 = scmp.ge.s32.totalorder %s330, 1
                  %s335 = sphi %s174, %s174
                  %s336 = sphi %s169, %s169
                $region57: #{_lambda_.23} parent=46 // loop_header_branch
                  %333 = sbr.rel (%p331) target = $region61
                $region58: #{_lambda_.23} parent=46 // loop_body
                  %v337 = vld [vmem:[%s335] sm:$0xf]
                  %338 = vst [vmem:[%s336] sm:$0xf] %v337
                  %v339 = vld [vmem:[%s335 + $0xc] sm:$0xf]
                  %340 = vst [vmem:[%s336 + $0x4] sm:$0xf] %v339
                  %v341 = vld [vmem:[%s335 + $0x18] sm:$0xf]
                  %342 = vst [vmem:[%s336 + $0x8] sm:$0xf] %v341
                  %v343 = vld [vmem:[%s335 + $0x24] sm:$0xf]
                  %344 = vst [vmem:[%s336 + $0xc] sm:$0xf] %v343
                  %v345 = vld [vmem:[%s335 + $0x30] sm:$0xf]
                  %346 = vst [vmem:[%s336 + $0x10] sm:$0xf] %v345
                  %v347 = vld [vmem:[%s335 + $0x3c] sm:$0xf]
                  %348 = vst [vmem:[%s336 + $0x14] sm:$0xf] %v347
                  %v349 = vld [vmem:[%s335 + $0x48] sm:$0xf]
                  %350 = vst [vmem:[%s336 + $0x18] sm:$0xf] %v349
                  %v351 = vld [vmem:[%s335 + $0x54] sm:$0xf]
                  %352 = vst [vmem:[%s336 + $0x1c] sm:$0xf] %v351
                  %v353 = vld [vmem:[%s335 + $0x60] sm:$0xf]
                  %354 = vst [vmem:[%s336 + $0x20] sm:$0xf] %v353
                  %v355 = vld [vmem:[%s335 + $0x6c] sm:$0xf]
                  %356 = vst [vmem:[%s336 + $0x24] sm:$0xf] %v355
                  %v357 = vld [vmem:[%s335 + $0x78] sm:$0xf]
                  %358 = vst [vmem:[%s336 + $0x28] sm:$0xf] %v357
                  %v359 = vld [vmem:[%s335 + $0x84] sm:$0xf]
                  %360 = vst [vmem:[%s336 + $0x2c] sm:$0xf] %v359
                  %v361 = vld [vmem:[%s335 + $0x90] sm:$0xf]
                  %362 = vst [vmem:[%s336 + $0x30] sm:$0xf] %v361
                  %v363 = vld [vmem:[%s335 + $0x9c] sm:$0xf]
                  %364 = vst [vmem:[%s336 + $0x34] sm:$0xf] %v363
                  %v365 = vld [vmem:[%s335 + $0xa8] sm:$0xf]
                  %366 = vst [vmem:[%s336 + $0x38] sm:$0xf] %v365
                  %v367 = vld [vmem:[%s335 + $0xb4] sm:$0xf]
                  %368 = vst [vmem:[%s336 + $0x3c] sm:$0xf] %v367
                  %v369 = vld [vmem:[%s335 + $0xc0] sm:$0xf]
                  %370 = vst [vmem:[%s336 + $0x40] sm:$0xf] %v369
                  %v371 = vld [vmem:[%s335 + $0xcc] sm:$0xf]
                  %372 = vst [vmem:[%s336 + $0x44] sm:$0xf] %v371
                  %v373 = vld [vmem:[%s335 + $0xd8] sm:$0xf]
                  %374 = vst [vmem:[%s336 + $0x48] sm:$0xf] %v373
                  %v375 = vld [vmem:[%s335 + $0xe4] sm:$0xf]
                  %376 = vst [vmem:[%s336 + $0x4c] sm:$0xf] %v375
                  %v377 = vld [vmem:[%s335 + $0xf0] sm:$0xf]
                  %378 = vst [vmem:[%s336 + $0x50] sm:$0xf] %v377
                  %v379 = vld [vmem:[%s335 + $0xfc] sm:$0xf]
                  %380 = vst [vmem:[%s336 + $0x54] sm:$0xf] %v379
                  %v381 = vld [vmem:[%s335 + $0x108] sm:$0xf]
                  %382 = vst [vmem:[%s336 + $0x58] sm:$0xf] %v381
                  %v383 = vld [vmem:[%s335 + $0x114] sm:$0xf]
                  %384 = vst [vmem:[%s336 + $0x5c] sm:$0xf] %v383
                  %v385 = vld [vmem:[%s335 + $0x120] sm:$0xf]
                  %386 = vst [vmem:[%s336 + $0x60] sm:$0xf] %v385
                  %v387 = vld [vmem:[%s335 + $0x12c] sm:$0xf]
                  %388 = vst [vmem:[%s336 + $0x64] sm:$0xf] %v387
                  %v389 = vld [vmem:[%s335 + $0x138] sm:$0xf]
                  %390 = vst [vmem:[%s336 + $0x68] sm:$0xf] %v389
                  %v391 = vld [vmem:[%s335 + $0x144] sm:$0xf]
                  %392 = vst [vmem:[%s336 + $0x6c] sm:$0xf] %v391
                  %v393 = vld [vmem:[%s335 + $0x150] sm:$0xf]
                  %394 = vst [vmem:[%s336 + $0x70] sm:$0xf] %v393
                  %v395 = vld [vmem:[%s335 + $0x15c] sm:$0xf]
                  %396 = vst [vmem:[%s336 + $0x74] sm:$0xf] %v395
                  %v397 = vld [vmem:[%s335 + $0x168] sm:$0xf]
                  %398 = vst [vmem:[%s336 + $0x78] sm:$0xf] %v397
                  %v399 = vld [vmem:[%s335 + $0x174] sm:$0xf]
                  %400 = vst [vmem:[%s336 + $0x7c] sm:$0xf] %v399
                  %v401 = vld [vmem:[%s335 + $0x180] sm:$0xf]
                  %402 = vst [vmem:[%s336 + $0x80] sm:$0xf] %v401
                  %v403 = vld [vmem:[%s335 + $0x18c] sm:$0xf]
                  %404 = vst [vmem:[%s336 + $0x84] sm:$0xf] %v403
                  %v405 = vld [vmem:[%s335 + $0x198] sm:$0xf]
                  %406 = vst [vmem:[%s336 + $0x88] sm:$0xf] %v405
                  %v407 = vld [vmem:[%s335 + $0x1a4] sm:$0xf]
                  %408 = vst [vmem:[%s336 + $0x8c] sm:$0xf] %v407
                  %v409 = vld [vmem:[%s335 + $0x1b0] sm:$0xf]
                  %410 = vst [vmem:[%s336 + $0x90] sm:$0xf] %v409
                  %v411 = vld [vmem:[%s335 + $0x1bc] sm:$0xf]
                  %412 = vst [vmem:[%s336 + $0x94] sm:$0xf] %v411
                  %v413 = vld [vmem:[%s335 + $0x1c8] sm:$0xf]
                  %414 = vst [vmem:[%s336 + $0x98] sm:$0xf] %v413
                  %v415 = vld [vmem:[%s335 + $0x1d4] sm:$0xf]
                  %416 = vst [vmem:[%s336 + $0x9c] sm:$0xf] %v415
                  %v417 = vld [vmem:[%s335 + $0x1e0] sm:$0xf]
                  %418 = vst [vmem:[%s336 + $0xa0] sm:$0xf] %v417
                  %v419 = vld [vmem:[%s335 + $0x1ec] sm:$0xf]
                  %420 = vst [vmem:[%s336 + $0xa4] sm:$0xf] %v419
                  %v421 = vld [vmem:[%s335 + $0x1f8] sm:$0xf]
                  %422 = vst [vmem:[%s336 + $0xa8] sm:$0xf] %v421
                  %v423 = vld [vmem:[%s335 + $0x204] sm:$0xf]
                  %424 = vst [vmem:[%s336 + $0xac] sm:$0xf] %v423
                  %v425 = vld [vmem:[%s335 + $0x210] sm:$0xf]
                  %426 = vst [vmem:[%s336 + $0xb0] sm:$0xf] %v425
                  %v427 = vld [vmem:[%s335 + $0x21c] sm:$0xf]
                  %428 = vst [vmem:[%s336 + $0xb4] sm:$0xf] %v427
                  %v429 = vld [vmem:[%s335 + $0x228] sm:$0xf]
                  %430 = vst [vmem:[%s336 + $0xb8] sm:$0xf] %v429
                  %v431 = vld [vmem:[%s335 + $0x234] sm:$0xf]
                  %432 = vst [vmem:[%s336 + $0xbc] sm:$0xf] %v431
                  %v433 = vld [vmem:[%s335 + $0x240] sm:$0xf]
                  %434 = vst [vmem:[%s336 + $0xc0] sm:$0xf] %v433
                  %v435 = vld [vmem:[%s335 + $0x24c] sm:$0xf]
                  %436 = vst [vmem:[%s336 + $0xc4] sm:$0xf] %v435
                  %v437 = vld [vmem:[%s335 + $0x258] sm:$0xf]
                  %438 = vst [vmem:[%s336 + $0xc8] sm:$0xf] %v437
                  %v439 = vld [vmem:[%s335 + $0x264] sm:$0xf]
                  %440 = vst [vmem:[%s336 + $0xcc] sm:$0xf] %v439
                  %v441 = vld [vmem:[%s335 + $0x270] sm:$0xf]
                  %442 = vst [vmem:[%s336 + $0xd0] sm:$0xf] %v441
                  %v443 = vld [vmem:[%s335 + $0x27c] sm:$0xf]
                  %444 = vst [vmem:[%s336 + $0xd4] sm:$0xf] %v443
                  %v445 = vld [vmem:[%s335 + $0x288] sm:$0xf]
                  %446 = vst [vmem:[%s336 + $0xd8] sm:$0xf] %v445
                  %v447 = vld [vmem:[%s335 + $0x294] sm:$0xf]
                  %448 = vst [vmem:[%s336 + $0xdc] sm:$0xf] %v447
                  %v449 = vld [vmem:[%s335 + $0x2a0] sm:$0xf]
                  %450 = vst [vmem:[%s336 + $0xe0] sm:$0xf] %v449
                  %v451 = vld [vmem:[%s335 + $0x2ac] sm:$0xf]
                  %452 = vst [vmem:[%s336 + $0xe4] sm:$0xf] %v451
                  %v453 = vld [vmem:[%s335 + $0x2b8] sm:$0xf]
                  %454 = vst [vmem:[%s336 + $0xe8] sm:$0xf] %v453
                  %v455 = vld [vmem:[%s335 + $0x2c4] sm:$0xf]
                  %456 = vst [vmem:[%s336 + $0xec] sm:$0xf] %v455
                  %v457 = vld [vmem:[%s335 + $0x2d0] sm:$0xf]
                  %458 = vst [vmem:[%s336 + $0xf0] sm:$0xf] %v457
                  %v459 = vld [vmem:[%s335 + $0x2dc] sm:$0xf]
                  %460 = vst [vmem:[%s336 + $0xf4] sm:$0xf] %v459
                  %v461 = vld [vmem:[%s335 + $0x2e8] sm:$0xf]
                  %462 = vst [vmem:[%s336 + $0xf8] sm:$0xf] %v461
                  %v463 = vld [vmem:[%s335 + $0x2f4] sm:$0xf]
                  %464 = vst [vmem:[%s336 + $0xfc] sm:$0xf] %v463
                $region59: #{_lambda_.23} parent=46 // loop_footer
                  %s334 = sadd.s32 1, %s330
                $region60: #{_lambda_.23} parent=46 // loop_footer_branch
                  %329 = sbr.rel target = $region56
                $region61: #{_lambda_.23} parent=46 // loop_exit
                  _
              $region47: #{_lambda_.23} parent=31 // pred_fallthru
                _
            $region32: #{_lambda_.23} parent=27 // pred_fallthru
              _
            // Predicated region
            $region33: #{_lambda_.23} parent=27 // pred_check
              _
            $region34: #{_lambda_.23} parent=27 // pred_check_branch
              %180 = sbr.rel (0) target = $region36
            $region35: #{_lambda_.23} parent=27 // pred_region
              loop: start=0, step=1, limit=1
              $region37: #{_lambda_.23} parent=35 // loop_pre_header
                _
              $region38: #{_lambda_.23} parent=35 // loop_header
                %s183 = sphi 0, %s187
                %p184 = scmp.ge.s32.totalorder %s183, 1
                %s188 = sphi %s174, %s174
                %s189 = sphi %s169, %s169
              $region39: #{_lambda_.23} parent=35 // loop_header_branch
                %186 = sbr.rel (%p184) target = $region43
              $region40: #{_lambda_.23} parent=35 // loop_body
                %v190 = vld [vmem:[%s188] sm:$0xf]
                %191 = vst [vmem:[%s189] sm:$0xf] %v190
                %v192 = vld [vmem:[%s188 + $0xc] sm:$0xf]
                %193 = vst [vmem:[%s189 + $0x4] sm:$0xf] %v192
                %v194 = vld [vmem:[%s188 + $0x18] sm:$0xf]
                %195 = vst [vmem:[%s189 + $0x8] sm:$0xf] %v194
                %v196 = vld [vmem:[%s188 + $0x24] sm:$0xf]
                %197 = vst [vmem:[%s189 + $0xc] sm:$0xf] %v196
                %v198 = vld [vmem:[%s188 + $0x30] sm:$0xf]
                %199 = vst [vmem:[%s189 + $0x10] sm:$0xf] %v198
                %v200 = vld [vmem:[%s188 + $0x3c] sm:$0xf]
                %201 = vst [vmem:[%s189 + $0x14] sm:$0xf] %v200
                %v202 = vld [vmem:[%s188 + $0x48] sm:$0xf]
                %203 = vst [vmem:[%s189 + $0x18] sm:$0xf] %v202
                %v204 = vld [vmem:[%s188 + $0x54] sm:$0xf]
                %205 = vst [vmem:[%s189 + $0x1c] sm:$0xf] %v204
                %v206 = vld [vmem:[%s188 + $0x60] sm:$0xf]
                %207 = vst [vmem:[%s189 + $0x20] sm:$0xf] %v206
                %v208 = vld [vmem:[%s188 + $0x6c] sm:$0xf]
                %209 = vst [vmem:[%s189 + $0x24] sm:$0xf] %v208
                %v210 = vld [vmem:[%s188 + $0x78] sm:$0xf]
                %211 = vst [vmem:[%s189 + $0x28] sm:$0xf] %v210
                %v212 = vld [vmem:[%s188 + $0x84] sm:$0xf]
                %213 = vst [vmem:[%s189 + $0x2c] sm:$0xf] %v212
                %v214 = vld [vmem:[%s188 + $0x90] sm:$0xf]
                %215 = vst [vmem:[%s189 + $0x30] sm:$0xf] %v214
                %v216 = vld [vmem:[%s188 + $0x9c] sm:$0xf]
                %217 = vst [vmem:[%s189 + $0x34] sm:$0xf] %v216
                %v218 = vld [vmem:[%s188 + $0xa8] sm:$0xf]
                %219 = vst [vmem:[%s189 + $0x38] sm:$0xf] %v218
                %v220 = vld [vmem:[%s188 + $0xb4] sm:$0xf]
                %221 = vst [vmem:[%s189 + $0x3c] sm:$0xf] %v220
                %v222 = vld [vmem:[%s188 + $0xc0] sm:$0xf]
                %223 = vst [vmem:[%s189 + $0x40] sm:$0xf] %v222
                %v224 = vld [vmem:[%s188 + $0xcc] sm:$0xf]
                %225 = vst [vmem:[%s189 + $0x44] sm:$0xf] %v224
                %v226 = vld [vmem:[%s188 + $0xd8] sm:$0xf]
                %227 = vst [vmem:[%s189 + $0x48] sm:$0xf] %v226
                %v228 = vld [vmem:[%s188 + $0xe4] sm:$0xf]
                %229 = vst [vmem:[%s189 + $0x4c] sm:$0xf] %v228
                %v230 = vld [vmem:[%s188 + $0xf0] sm:$0xf]
                %231 = vst [vmem:[%s189 + $0x50] sm:$0xf] %v230
                %v232 = vld [vmem:[%s188 + $0xfc] sm:$0xf]
                %233 = vst [vmem:[%s189 + $0x54] sm:$0xf] %v232
                %v234 = vld [vmem:[%s188 + $0x108] sm:$0xf]
                %235 = vst [vmem:[%s189 + $0x58] sm:$0xf] %v234
                %v236 = vld [vmem:[%s188 + $0x114] sm:$0xf]
                %237 = vst [vmem:[%s189 + $0x5c] sm:$0xf] %v236
                %v238 = vld [vmem:[%s188 + $0x120] sm:$0xf]
                %239 = vst [vmem:[%s189 + $0x60] sm:$0xf] %v238
                %v240 = vld [vmem:[%s188 + $0x12c] sm:$0xf]
                %241 = vst [vmem:[%s189 + $0x64] sm:$0xf] %v240
                %v242 = vld [vmem:[%s188 + $0x138] sm:$0xf]
                %243 = vst [vmem:[%s189 + $0x68] sm:$0xf] %v242
                %v244 = vld [vmem:[%s188 + $0x144] sm:$0xf]
                %245 = vst [vmem:[%s189 + $0x6c] sm:$0xf] %v244
                %v246 = vld [vmem:[%s188 + $0x150] sm:$0xf]
                %247 = vst [vmem:[%s189 + $0x70] sm:$0xf] %v246
                %v248 = vld [vmem:[%s188 + $0x15c] sm:$0xf]
                %249 = vst [vmem:[%s189 + $0x74] sm:$0xf] %v248
                %v250 = vld [vmem:[%s188 + $0x168] sm:$0xf]
                %251 = vst [vmem:[%s189 + $0x78] sm:$0xf] %v250
                %v252 = vld [vmem:[%s188 + $0x174] sm:$0xf]
                %253 = vst [vmem:[%s189 + $0x7c] sm:$0xf] %v252
                %v254 = vld [vmem:[%s188 + $0x180] sm:$0xf]
                %255 = vst [vmem:[%s189 + $0x80] sm:$0xf] %v254
                %v256 = vld [vmem:[%s188 + $0x18c] sm:$0xf]
                %257 = vst [vmem:[%s189 + $0x84] sm:$0xf] %v256
                %v258 = vld [vmem:[%s188 + $0x198] sm:$0xf]
                %259 = vst [vmem:[%s189 + $0x88] sm:$0xf] %v258
                %v260 = vld [vmem:[%s188 + $0x1a4] sm:$0xf]
                %261 = vst [vmem:[%s189 + $0x8c] sm:$0xf] %v260
                %v262 = vld [vmem:[%s188 + $0x1b0] sm:$0xf]
                %263 = vst [vmem:[%s189 + $0x90] sm:$0xf] %v262
                %v264 = vld [vmem:[%s188 + $0x1bc] sm:$0xf]
                %265 = vst [vmem:[%s189 + $0x94] sm:$0xf] %v264
                %v266 = vld [vmem:[%s188 + $0x1c8] sm:$0xf]
                %267 = vst [vmem:[%s189 + $0x98] sm:$0xf] %v266
                %v268 = vld [vmem:[%s188 + $0x1d4] sm:$0xf]
                %269 = vst [vmem:[%s189 + $0x9c] sm:$0xf] %v268
                %v270 = vld [vmem:[%s188 + $0x1e0] sm:$0xf]
                %271 = vst [vmem:[%s189 + $0xa0] sm:$0xf] %v270
                %v272 = vld [vmem:[%s188 + $0x1ec] sm:$0xf]
                %273 = vst [vmem:[%s189 + $0xa4] sm:$0xf] %v272
                %v274 = vld [vmem:[%s188 + $0x1f8] sm:$0xf]
                %275 = vst [vmem:[%s189 + $0xa8] sm:$0xf] %v274
                %v276 = vld [vmem:[%s188 + $0x204] sm:$0xf]
                %277 = vst [vmem:[%s189 + $0xac] sm:$0xf] %v276
                %v278 = vld [vmem:[%s188 + $0x210] sm:$0xf]
                %279 = vst [vmem:[%s189 + $0xb0] sm:$0xf] %v278
                %v280 = vld [vmem:[%s188 + $0x21c] sm:$0xf]
                %281 = vst [vmem:[%s189 + $0xb4] sm:$0xf] %v280
                %v282 = vld [vmem:[%s188 + $0x228] sm:$0xf]
                %283 = vst [vmem:[%s189 + $0xb8] sm:$0xf] %v282
                %v284 = vld [vmem:[%s188 + $0x234] sm:$0xf]
                %285 = vst [vmem:[%s189 + $0xbc] sm:$0xf] %v284
                %v286 = vld [vmem:[%s188 + $0x240] sm:$0xf]
                %287 = vst [vmem:[%s189 + $0xc0] sm:$0xf] %v286
                %v288 = vld [vmem:[%s188 + $0x24c] sm:$0xf]
                %289 = vst [vmem:[%s189 + $0xc4] sm:$0xf] %v288
                %v290 = vld [vmem:[%s188 + $0x258] sm:$0xf]
                %291 = vst [vmem:[%s189 + $0xc8] sm:$0xf] %v290
                %v292 = vld [vmem:[%s188 + $0x264] sm:$0xf]
                %293 = vst [vmem:[%s189 + $0xcc] sm:$0xf] %v292
                %v294 = vld [vmem:[%s188 + $0x270] sm:$0xf]
                %295 = vst [vmem:[%s189 + $0xd0] sm:$0xf] %v294
                %v296 = vld [vmem:[%s188 + $0x27c] sm:$0xf]
                %297 = vst [vmem:[%s189 + $0xd4] sm:$0xf] %v296
                %v298 = vld [vmem:[%s188 + $0x288] sm:$0xf]
                %299 = vst [vmem:[%s189 + $0xd8] sm:$0xf] %v298
                %v300 = vld [vmem:[%s188 + $0x294] sm:$0xf]
                %301 = vst [vmem:[%s189 + $0xdc] sm:$0xf] %v300
                %v302 = vld [vmem:[%s188 + $0x2a0] sm:$0xf]
                %303 = vst [vmem:[%s189 + $0xe0] sm:$0xf] %v302
                %v304 = vld [vmem:[%s188 + $0x2ac] sm:$0xf]
                %305 = vst [vmem:[%s189 + $0xe4] sm:$0xf] %v304
                %v306 = vld [vmem:[%s188 + $0x2b8] sm:$0xf]
                %307 = vst [vmem:[%s189 + $0xe8] sm:$0xf] %v306
                %v308 = vld [vmem:[%s188 + $0x2c4] sm:$0xf]
                %309 = vst [vmem:[%s189 + $0xec] sm:$0xf] %v308
                %v310 = vld [vmem:[%s188 + $0x2d0] sm:$0xf]
                %311 = vst [vmem:[%s189 + $0xf0] sm:$0xf] %v310
                %v312 = vld [vmem:[%s188 + $0x2dc] sm:$0xf]
                %313 = vst [vmem:[%s189 + $0xf4] sm:$0xf] %v312
                %v314 = vld [vmem:[%s188 + $0x2e8] sm:$0xf]
                %315 = vst [vmem:[%s189 + $0xf8] sm:$0xf] %v314
                %v316 = vld [vmem:[%s188 + $0x2f4] sm:$0xf]
                %317 = vst [vmem:[%s189 + $0xfc] sm:$0xf] %v316
              $region41: #{_lambda_.23} parent=35 // loop_footer
                %s187 = sadd.s32 1, %s183
              $region42: #{_lambda_.23} parent=35 // loop_footer_branch
                %182 = sbr.rel target = $region38
              $region43: #{_lambda_.23} parent=35 // loop_exit
                _
            $region36: #{_lambda_.23} parent=27 // pred_fallthru
              _
          $region28: #{_lambda_.23} parent=23 // pred_fallthru
            _
          %465 = vnop
        $region24: #{_lambda_.23} parent=19 // pred_fallthru
          _
        // Predicated region
        $region62: #{_lambda_.23} parent=19 // pred_check
          %p466 = pneg %p78
        $region63: #{_lambda_.23} parent=19 // pred_check_branch
          %468 = sbr.rel (%p466) target = $region65
        $region64: #{_lambda_.23} parent=19 // pred_region
          %s469 = smul.u32 16, %s18
          %p470 = scmp.lt.s32.totalorder %s469, 47
          %s471 = scalar_select %p470, %s469, 47
          %p472 = scmp.lt.s32.totalorder %s17, 0
          %s473 = scalar_select %p472, %s17, 0
          %s474 = sadd.s32 %s473, %s471
          %s475 = smul.addr %s474, 4
          %s476 = scalar_lea.vmem %s1, %s475
          %s477 = smul.u32 16, %s18
        $region65: #{_lambda_.23} parent=19 // pred_fallthru
          _
      $region20: #{_lambda_.23} parent=5 // pred_fallthru
        _
      %p478 = scmp.le.s32.totalorder 1, %s9
      %p479 = scmp.lt.s32.totalorder %s9, 4
      %p480 = pnand %p478, %p479
      %p481 = pneg %p480
      // Predicated region
      $region66: #{_lambda_.23} parent=5 // pred_check
        _
      $region67: #{_lambda_.23} parent=5 // pred_check_branch
        %483 = sbr.rel (%p480) target = $region69
      $region68: #{_lambda_.23} parent=5 // pred_region
        %s484 = ssub.s32 %s9, 1
        %s485 = sand.u32 %s43, 1
        %s486 = sand.u32 %s43, 1
        %s487 = smul.addr %s486, 256
        %s488 = scalar_lea.vmem [#allocation3], %s487
        // Predicated region
        $region70: #{_lambda_.23} parent=68 // pred_check
          %p489 = pneg %p56
        $region71: #{_lambda_.23} parent=68 // pred_check_branch
          %491 = sbr.rel (%p489) target = $region73
        $region72: #{_lambda_.23} parent=68 // pred_region
          _
        $region73: #{_lambda_.23} parent=68 // pred_fallthru
          _
        %s492 = sand.u32 %s43, 1
        %s493 = sand.u32 %s43, 1
        %s494 = smul.addr %s493, 256
        %s495 = scalar_lea.vmem [#allocation3], %s494
        %p496 = pneg %p56
        %p497 = pneg %p53
        %s498 = smul.u32 16, %s21
        %p499 = scmp.lt.s32.totalorder %s498, 47
        %s500 = scalar_select %p499, %s498, 47
        %p501 = scmp.lt.s32.totalorder %s20, 0
        %s502 = scalar_select %p501, %s20, 0
        %s503 = sadd.s32 %s502, %s500
        %s504 = smul.addr %s503, 4
        %s505 = scalar_lea.vmem %s1, %s504
        %p506 = pneg %p84
        %p507 = pneg %p81
        %p508 = scmp.lt.s32.totalorder %s20, 0
        %s509 = scalar_select %p508, %s20, 0
        %s510 = scalar_lea.vmem %s2, %s509
        %p511 = pneg %p110
        %p512 = pneg %p107
        %p513 = pneg %p138
        %p514 = pneg %p135
        %s515 = smul.u32 64, %s19
        %p516 = scmp.lt.s32.totalorder %s515, 63
        %s517 = scalar_select %p516, %s515, 63
        %p518 = scmp.lt.s32.totalorder %s20, 0
        %s519 = scalar_select %p518, %s20, 0
        %s520 = sadd.s32 %s519, %s517
        %s521 = smul.addr %s520, 4
        %s522 = scalar_lea.vmem %s3, %s521
        %s523 = smul.u32 64, %s19
        %s524 = smul.u32 16, %s21
        %p525 = scmp.lt.s32.totalorder %s524, 47
        %s526 = scalar_select %p525, %s524, 47
        %p527 = scmp.lt.s32.totalorder %s20, 0
        %s528 = scalar_select %p527, %s20, 0
        %s529 = sadd.s32 %s528, %s526
        %s530 = smul.addr %s529, 4
        %s531 = scalar_lea.vmem %s1, %s530
        %s532 = smul.u32 16, %s21
        %p533 = scmp.lt.s32.totalorder %s20, 0
        %s534 = scalar_select %p533, %s20, 0
        %s535 = scalar_lea.vmem %s2, %s534
        %s536 = smul.u32 64, %s19
        %p537 = scmp.lt.s32.totalorder %s536, 63
        %s538 = scalar_select %p537, %s536, 63
        %p539 = scmp.lt.s32.totalorder %s20, 0
        %s540 = scalar_select %p539, %s20, 0
        %s541 = sadd.s32 %s540, %s538
        %s542 = smul.addr %s541, 4
        %s543 = scalar_lea.vmem %s3, %s542
        %s544 = smul.u32 64, %s19
        %p546 = scmp.eq.s32.totalorder %s21, 0
        // Predicated region
        $region74: #{_lambda_.23} parent=68 // pred_check
          %p547 = pneg %p546
        $region75: #{_lambda_.23} parent=68 // pred_check_branch
          %549 = sbr.rel (%p547) target = $region77
        $region76: #{_lambda_.23} parent=68 // pred_region
          %550 = vst [vmem:[#allocation2] sm:$0xff] 0.0
          %551 = vst [vmem:[#allocation2 + $0x8] sm:$0xff] 0.0
          %552 = vst [vmem:[#allocation2 + $0x10] sm:$0xff] 0.0
          %553 = vst [vmem:[#allocation2 + $0x18] sm:$0xff] 0.0
          %554 = vst [vmem:[#allocation2 + $0x20] sm:$0xff] 0.0
          %555 = vst [vmem:[#allocation2 + $0x28] sm:$0xff] 0.0
          %556 = vst [vmem:[#allocation2 + $0x30] sm:$0xff] 0.0
          %557 = vst [vmem:[#allocation2 + $0x38] sm:$0xff] 0.0
          %558 = vst [vmem:[#allocation2 + $0x40] sm:$0xff] 0.0
          %559 = vst [vmem:[#allocation2 + $0x48] sm:$0xff] 0.0
          %560 = vst [vmem:[#allocation2 + $0x50] sm:$0xff] 0.0
          %561 = vst [vmem:[#allocation2 + $0x58] sm:$0xff] 0.0
          %562 = vst [vmem:[#allocation2 + $0x60] sm:$0xff] 0.0
          %563 = vst [vmem:[#allocation2 + $0x68] sm:$0xff] 0.0
          %564 = vst [vmem:[#allocation2 + $0x70] sm:$0xff] 0.0
          %565 = vst [vmem:[#allocation2 + $0x78] sm:$0xff] 0.0
          %566 = vst [vmem:[#allocation2 + $0x80] sm:$0xff] 0.0
          %567 = vst [vmem:[#allocation2 + $0x88] sm:$0xff] 0.0
          %568 = vst [vmem:[#allocation2 + $0x90] sm:$0xff] 0.0
          %569 = vst [vmem:[#allocation2 + $0x98] sm:$0xff] 0.0
          %570 = vst [vmem:[#allocation2 + $0xa0] sm:$0xff] 0.0
          %571 = vst [vmem:[#allocation2 + $0xa8] sm:$0xff] 0.0
          %572 = vst [vmem:[#allocation2 + $0xb0] sm:$0xff] 0.0
          %573 = vst [vmem:[#allocation2 + $0xb8] sm:$0xff] 0.0
          %574 = vst [vmem:[#allocation2 + $0xc0] sm:$0xff] 0.0
          %575 = vst [vmem:[#allocation2 + $0xc8] sm:$0xff] 0.0
          %576 = vst [vmem:[#allocation2 + $0xd0] sm:$0xff] 0.0
          %577 = vst [vmem:[#allocation2 + $0xd8] sm:$0xff] 0.0
          %578 = vst [vmem:[#allocation2 + $0xe0] sm:$0xff] 0.0
          %579 = vst [vmem:[#allocation2 + $0xe8] sm:$0xff] 0.0
          %580 = vst [vmem:[#allocation2 + $0xf0] sm:$0xff] 0.0
          %581 = vst [vmem:[#allocation2 + $0xf8] sm:$0xff] 0.0
          %582 = vst [vmem:[#allocation2 + $0x100] sm:$0xff] 0.0
          %583 = vst [vmem:[#allocation2 + $0x108] sm:$0xff] 0.0
          %584 = vst [vmem:[#allocation2 + $0x110] sm:$0xff] 0.0
          %585 = vst [vmem:[#allocation2 + $0x118] sm:$0xff] 0.0
          %586 = vst [vmem:[#allocation2 + $0x120] sm:$0xff] 0.0
          %587 = vst [vmem:[#allocation2 + $0x128] sm:$0xff] 0.0
          %588 = vst [vmem:[#allocation2 + $0x130] sm:$0xff] 0.0
          %589 = vst [vmem:[#allocation2 + $0x138] sm:$0xff] 0.0
          %590 = vst [vmem:[#allocation2 + $0x140] sm:$0xff] 0.0
          %591 = vst [vmem:[#allocation2 + $0x148] sm:$0xff] 0.0
          %592 = vst [vmem:[#allocation2 + $0x150] sm:$0xff] 0.0
          %593 = vst [vmem:[#allocation2 + $0x158] sm:$0xff] 0.0
          %594 = vst [vmem:[#allocation2 + $0x160] sm:$0xff] 0.0
          %595 = vst [vmem:[#allocation2 + $0x168] sm:$0xff] 0.0
          %596 = vst [vmem:[#allocation2 + $0x170] sm:$0xff] 0.0
          %597 = vst [vmem:[#allocation2 + $0x178] sm:$0xff] 0.0
          %598 = vst [vmem:[#allocation2 + $0x180] sm:$0xff] 0.0
          %599 = vst [vmem:[#allocation2 + $0x188] sm:$0xff] 0.0
          %600 = vst [vmem:[#allocation2 + $0x190] sm:$0xff] 0.0
          %601 = vst [vmem:[#allocation2 + $0x198] sm:$0xff] 0.0
          %602 = vst [vmem:[#allocation2 + $0x1a0] sm:$0xff] 0.0
          %603 = vst [vmem:[#allocation2 + $0x1a8] sm:$0xff] 0.0
          %604 = vst [vmem:[#allocation2 + $0x1b0] sm:$0xff] 0.0
          %605 = vst [vmem:[#allocation2 + $0x1b8] sm:$0xff] 0.0
          %606 = vst [vmem:[#allocation2 + $0x1c0] sm:$0xff] 0.0
          %607 = vst [vmem:[#allocation2 + $0x1c8] sm:$0xff] 0.0
          %608 = vst [vmem:[#allocation2 + $0x1d0] sm:$0xff] 0.0
          %609 = vst [vmem:[#allocation2 + $0x1d8] sm:$0xff] 0.0
          %610 = vst [vmem:[#allocation2 + $0x1e0] sm:$0xff] 0.0
          %611 = vst [vmem:[#allocation2 + $0x1e8] sm:$0xff] 0.0
          %612 = vst [vmem:[#allocation2 + $0x1f0] sm:$0xff] 0.0
          %613 = vst [vmem:[#allocation2 + $0x1f8] sm:$0xff] 0.0
        $region77: #{_lambda_.23} parent=68 // pred_fallthru
          _
        %v614 = vld [vmem:[#allocation2] sm:$0xff]
        %v615 = vld [vmem:[#allocation2 + $0x8] sm:$0xff]
        %v616 = vld [vmem:[#allocation2 + $0x10] sm:$0xff]
        %v617 = vld [vmem:[#allocation2 + $0x18] sm:$0xff]
        %v618 = vld [vmem:[#allocation2 + $0x20] sm:$0xff]
        %v619 = vld [vmem:[#allocation2 + $0x28] sm:$0xff]
        %v620 = vld [vmem:[#allocation2 + $0x30] sm:$0xff]
        %v621 = vld [vmem:[#allocation2 + $0x38] sm:$0xff]
        %v622 = vld [vmem:[#allocation2 + $0x40] sm:$0xff]
        %v623 = vld [vmem:[#allocation2 + $0x48] sm:$0xff]
        %v624 = vld [vmem:[#allocation2 + $0x50] sm:$0xff]
        %v625 = vld [vmem:[#allocation2 + $0x58] sm:$0xff]
        %v626 = vld [vmem:[#allocation2 + $0x60] sm:$0xff]
        %v627 = vld [vmem:[#allocation2 + $0x68] sm:$0xff]
        %v628 = vld [vmem:[#allocation2 + $0x70] sm:$0xff]
        %v629 = vld [vmem:[#allocation2 + $0x78] sm:$0xff]
        %v630 = vld [vmem:[#allocation2 + $0x80] sm:$0xff]
        %v631 = vld [vmem:[#allocation2 + $0x88] sm:$0xff]
        %v632 = vld [vmem:[#allocation2 + $0x90] sm:$0xff]
        %v633 = vld [vmem:[#allocation2 + $0x98] sm:$0xff]
        %v634 = vld [vmem:[#allocation2 + $0xa0] sm:$0xff]
        %v635 = vld [vmem:[#allocation2 + $0xa8] sm:$0xff]
        %v636 = vld [vmem:[#allocation2 + $0xb0] sm:$0xff]
        %v637 = vld [vmem:[#allocation2 + $0xb8] sm:$0xff]
        %v638 = vld [vmem:[#allocation2 + $0xc0] sm:$0xff]
        %v639 = vld [vmem:[#allocation2 + $0xc8] sm:$0xff]
        %v640 = vld [vmem:[#allocation2 + $0xd0] sm:$0xff]
        %v641 = vld [vmem:[#allocation2 + $0xd8] sm:$0xff]
        %v642 = vld [vmem:[#allocation2 + $0xe0] sm:$0xff]
        %v643 = vld [vmem:[#allocation2 + $0xe8] sm:$0xff]
        %v644 = vld [vmem:[#allocation2 + $0xf0] sm:$0xff]
        %v645 = vld [vmem:[#allocation2 + $0xf8] sm:$0xff]
        %v646 = vld [vmem:[#allocation2 + $0x100] sm:$0xff]
        %v647 = vld [vmem:[#allocation2 + $0x108] sm:$0xff]
        %v648 = vld [vmem:[#allocation2 + $0x110] sm:$0xff]
        %v649 = vld [vmem:[#allocation2 + $0x118] sm:$0xff]
        %v650 = vld [vmem:[#allocation2 + $0x120] sm:$0xff]
        %v651 = vld [vmem:[#allocation2 + $0x128] sm:$0xff]
        %v652 = vld [vmem:[#allocation2 + $0x130] sm:$0xff]
        %v653 = vld [vmem:[#allocation2 + $0x138] sm:$0xff]
        %v654 = vld [vmem:[#allocation2 + $0x140] sm:$0xff]
        %v655 = vld [vmem:[#allocation2 + $0x148] sm:$0xff]
        %v656 = vld [vmem:[#allocation2 + $0x150] sm:$0xff]
        %v657 = vld [vmem:[#allocation2 + $0x158] sm:$0xff]
        %v658 = vld [vmem:[#allocation2 + $0x160] sm:$0xff]
        %v659 = vld [vmem:[#allocation2 + $0x168] sm:$0xff]
        %v660 = vld [vmem:[#allocation2 + $0x170] sm:$0xff]
        %v661 = vld [vmem:[#allocation2 + $0x178] sm:$0xff]
        %v662 = vld [vmem:[#allocation2 + $0x180] sm:$0xff]
        %v663 = vld [vmem:[#allocation2 + $0x188] sm:$0xff]
        %v664 = vld [vmem:[#allocation2 + $0x190] sm:$0xff]
        %v665 = vld [vmem:[#allocation2 + $0x198] sm:$0xff]
        %v666 = vld [vmem:[#allocation2 + $0x1a0] sm:$0xff]
        %v667 = vld [vmem:[#allocation2 + $0x1a8] sm:$0xff]
        %v668 = vld [vmem:[#allocation2 + $0x1b0] sm:$0xff]
        %v669 = vld [vmem:[#allocation2 + $0x1b8] sm:$0xff]
        %v670 = vld [vmem:[#allocation2 + $0x1c0] sm:$0xff]
        %v671 = vld [vmem:[#allocation2 + $0x1c8] sm:$0xff]
        %v672 = vld [vmem:[#allocation2 + $0x1d0] sm:$0xff]
        %v673 = vld [vmem:[#allocation2 + $0x1d8] sm:$0xff]
        %v674 = vld [vmem:[#allocation2 + $0x1e0] sm:$0xff]
        %v675 = vld [vmem:[#allocation2 + $0x1e8] sm:$0xff]
        %v676 = vld [vmem:[#allocation2 + $0x1f0] sm:$0xff]
        %v677 = vld [vmem:[#allocation2 + $0x1f8] sm:$0xff]
        %v678 = vld [vmem:[%s488] sm:$0xf]
        %v679 = vld [vmem:[%s488 + $0x4] sm:$0xf]
        %v680 = vld [vmem:[%s488 + $0x8] sm:$0xf]
        %v681 = vld [vmem:[%s488 + $0xc] sm:$0xf]
        %v682 = vld [vmem:[%s488 + $0x10] sm:$0xf]
        %v683 = vld [vmem:[%s488 + $0x14] sm:$0xf]
        %v684 = vld [vmem:[%s488 + $0x18] sm:$0xf]
        %v685 = vld [vmem:[%s488 + $0x1c] sm:$0xf]
        %v686 = vld [vmem:[%s488 + $0x20] sm:$0xf]
        %v687 = vld [vmem:[%s488 + $0x24] sm:$0xf]
        %v688 = vld [vmem:[%s488 + $0x28] sm:$0xf]
        %v689 = vld [vmem:[%s488 + $0x2c] sm:$0xf]
        %v690 = vld [vmem:[%s488 + $0x30] sm:$0xf]
        %v691 = vld [vmem:[%s488 + $0x34] sm:$0xf]
        %v692 = vld [vmem:[%s488 + $0x38] sm:$0xf]
        %v693 = vld [vmem:[%s488 + $0x3c] sm:$0xf]
        %v694 = vld [vmem:[%s488 + $0x40] sm:$0xf]
        %v695 = vld [vmem:[%s488 + $0x44] sm:$0xf]
        %v696 = vld [vmem:[%s488 + $0x48] sm:$0xf]
        %v697 = vld [vmem:[%s488 + $0x4c] sm:$0xf]
        %v698 = vld [vmem:[%s488 + $0x50] sm:$0xf]
        %v699 = vld [vmem:[%s488 + $0x54] sm:$0xf]
        %v700 = vld [vmem:[%s488 + $0x58] sm:$0xf]
        %v701 = vld [vmem:[%s488 + $0x5c] sm:$0xf]
        %v702 = vld [vmem:[%s488 + $0x60] sm:$0xf]
        %v703 = vld [vmem:[%s488 + $0x64] sm:$0xf]
        %v704 = vld [vmem:[%s488 + $0x68] sm:$0xf]
        %v705 = vld [vmem:[%s488 + $0x6c] sm:$0xf]
        %v706 = vld [vmem:[%s488 + $0x70] sm:$0xf]
        %v707 = vld [vmem:[%s488 + $0x74] sm:$0xf]
        %v708 = vld [vmem:[%s488 + $0x78] sm:$0xf]
        %v709 = vld [vmem:[%s488 + $0x7c] sm:$0xf]
        %v710 = vld [vmem:[%s488 + $0x80] sm:$0xf]
        %v711 = vld [vmem:[%s488 + $0x84] sm:$0xf]
        %v712 = vld [vmem:[%s488 + $0x88] sm:$0xf]
        %v713 = vld [vmem:[%s488 + $0x8c] sm:$0xf]
        %v714 = vld [vmem:[%s488 + $0x90] sm:$0xf]
        %v715 = vld [vmem:[%s488 + $0x94] sm:$0xf]
        %v716 = vld [vmem:[%s488 + $0x98] sm:$0xf]
        %v717 = vld [vmem:[%s488 + $0x9c] sm:$0xf]
        %v718 = vld [vmem:[%s488 + $0xa0] sm:$0xf]
        %v719 = vld [vmem:[%s488 + $0xa4] sm:$0xf]
        %v720 = vld [vmem:[%s488 + $0xa8] sm:$0xf]
        %v721 = vld [vmem:[%s488 + $0xac] sm:$0xf]
        %v722 = vld [vmem:[%s488 + $0xb0] sm:$0xf]
        %v723 = vld [vmem:[%s488 + $0xb4] sm:$0xf]
        %v724 = vld [vmem:[%s488 + $0xb8] sm:$0xf]
        %v725 = vld [vmem:[%s488 + $0xbc] sm:$0xf]
        %v726 = vld [vmem:[%s488 + $0xc0] sm:$0xf]
        %v727 = vld [vmem:[%s488 + $0xc4] sm:$0xf]
        %v728 = vld [vmem:[%s488 + $0xc8] sm:$0xf]
        %v729 = vld [vmem:[%s488 + $0xcc] sm:$0xf]
        %v730 = vld [vmem:[%s488 + $0xd0] sm:$0xf]
        %v731 = vld [vmem:[%s488 + $0xd4] sm:$0xf]
        %v732 = vld [vmem:[%s488 + $0xd8] sm:$0xf]
        %v733 = vld [vmem:[%s488 + $0xdc] sm:$0xf]
        %v734 = vld [vmem:[%s488 + $0xe0] sm:$0xf]
        %v735 = vld [vmem:[%s488 + $0xe4] sm:$0xf]
        %v736 = vld [vmem:[%s488 + $0xe8] sm:$0xf]
        %v737 = vld [vmem:[%s488 + $0xec] sm:$0xf]
        %v738 = vld [vmem:[%s488 + $0xf0] sm:$0xf]
        %v739 = vld [vmem:[%s488 + $0xf4] sm:$0xf]
        %v740 = vld [vmem:[%s488 + $0xf8] sm:$0xf]
        %v741 = vld [vmem:[%s488 + $0xfc] sm:$0xf]
        %v742 = vld [vmem:[%s531] sm:$0xf]
        %v743 = vld [vmem:[%s531 + $0x4] sm:$0xf]
        %v744 = vld [vmem:[%s531 + $0x8] sm:$0xf]
        %v745 = vld [vmem:[%s531 + $0xc] sm:$0xf]
        %v746 = vld [vmem:[%s531 + $0x10] sm:$0xf]
        %v747 = vld [vmem:[%s531 + $0x14] sm:$0xf]
        %v748 = vld [vmem:[%s531 + $0x18] sm:$0xf]
        %v749 = vld [vmem:[%s531 + $0x1c] sm:$0xf]
        %v750 = vld [vmem:[%s531 + $0x20] sm:$0xf]
        %v751 = vld [vmem:[%s531 + $0x24] sm:$0xf]
        %v752 = vld [vmem:[%s531 + $0x28] sm:$0xf]
        %v753 = vld [vmem:[%s531 + $0x2c] sm:$0xf]
        %v754 = vld [vmem:[%s531 + $0x30] sm:$0xf]
        %v755 = vld [vmem:[%s531 + $0x34] sm:$0xf]
        %v756 = vld [vmem:[%s531 + $0x38] sm:$0xf]
        %v757 = vld [vmem:[%s531 + $0x3c] sm:$0xf]
        %v822 = vunpack.c.l.b16 %v678
        %v823 = vunpack.c.l.b16 %v679
        %v824 = vunpack.c.l.b16 %v680
        %v825 = vunpack.c.l.b16 %v681
        %v826 = vunpack.c.l.b16 %v682
        %v827 = vunpack.c.l.b16 %v683
        %v828 = vunpack.c.l.b16 %v684
        %v829 = vunpack.c.l.b16 %v685
        %v830 = vunpack.c.l.b16 %v686
        %v831 = vunpack.c.l.b16 %v687
        %v832 = vunpack.c.l.b16 %v688
        %v833 = vunpack.c.l.b16 %v689
        %v834 = vunpack.c.l.b16 %v690
        %v835 = vunpack.c.l.b16 %v691
        %v836 = vunpack.c.l.b16 %v692
        %v837 = vunpack.c.l.b16 %v693
        %v838 = vunpack.c.l.b16 %v694
        %v839 = vunpack.c.l.b16 %v695
        %v840 = vunpack.c.l.b16 %v696
        %v841 = vunpack.c.l.b16 %v697
        %v842 = vunpack.c.l.b16 %v698
        %v843 = vunpack.c.l.b16 %v699
        %v844 = vunpack.c.l.b16 %v700
        %v845 = vunpack.c.l.b16 %v701
        %v846 = vunpack.c.l.b16 %v702
        %v847 = vunpack.c.l.b16 %v703
        %v848 = vunpack.c.l.b16 %v704
        %v849 = vunpack.c.l.b16 %v705
        %v850 = vunpack.c.l.b16 %v706
        %v851 = vunpack.c.l.b16 %v707
        %v852 = vunpack.c.l.b16 %v708
        %v853 = vunpack.c.l.b16 %v709
        %v854 = vunpack.c.l.b16 %v710
        %v855 = vunpack.c.l.b16 %v711
        %v856 = vunpack.c.l.b16 %v712
        %v857 = vunpack.c.l.b16 %v713
        %v858 = vunpack.c.l.b16 %v714
        %v859 = vunpack.c.l.b16 %v715
        %v860 = vunpack.c.l.b16 %v716
        %v861 = vunpack.c.l.b16 %v717
        %v862 = vunpack.c.l.b16 %v718
        %v863 = vunpack.c.l.b16 %v719
        %v864 = vunpack.c.l.b16 %v720
        %v865 = vunpack.c.l.b16 %v721
        %v866 = vunpack.c.l.b16 %v722
        %v867 = vunpack.c.l.b16 %v723
        %v868 = vunpack.c.l.b16 %v724
        %v869 = vunpack.c.l.b16 %v725
        %v870 = vunpack.c.l.b16 %v726
        %v871 = vunpack.c.l.b16 %v727
        %v872 = vunpack.c.l.b16 %v728
        %v873 = vunpack.c.l.b16 %v729
        %v874 = vunpack.c.l.b16 %v730
        %v875 = vunpack.c.l.b16 %v731
        %v876 = vunpack.c.l.b16 %v732
        %v877 = vunpack.c.l.b16 %v733
        %v878 = vunpack.c.l.b16 %v734
        %v879 = vunpack.c.l.b16 %v735
        %v880 = vunpack.c.l.b16 %v736
        %v881 = vunpack.c.l.b16 %v737
        %v882 = vunpack.c.l.b16 %v738
        %v883 = vunpack.c.l.b16 %v739
        %v884 = vunpack.c.l.b16 %v740
        %v885 = vunpack.c.l.b16 %v741
        %v886 = vpack.c.b16 %v823, %v822
        %v887 = vpack.c.b16 %v825, %v824
        %v888 = vpack.c.b16 %v827, %v826
        %v889 = vpack.c.b16 %v829, %v828
        %v890 = vpack.c.b16 %v831, %v830
        %v891 = vpack.c.b16 %v833, %v832
        %v892 = vpack.c.b16 %v835, %v834
        %v893 = vpack.c.b16 %v837, %v836
        %v894 = vpack.c.b16 %v839, %v838
        %v895 = vpack.c.b16 %v841, %v840
        %v896 = vpack.c.b16 %v843, %v842
        %v897 = vpack.c.b16 %v845, %v844
        %v898 = vpack.c.b16 %v847, %v846
        %v899 = vpack.c.b16 %v849, %v848
        %v900 = vpack.c.b16 %v851, %v850
        %v901 = vpack.c.b16 %v853, %v852
        %v902 = vpack.c.b16 %v855, %v854
        %v903 = vpack.c.b16 %v857, %v856
        %v904 = vpack.c.b16 %v859, %v858
        %v905 = vpack.c.b16 %v861, %v860
        %v906 = vpack.c.b16 %v863, %v862
        %v907 = vpack.c.b16 %v865, %v864
        %v908 = vpack.c.b16 %v867, %v866
        %v909 = vpack.c.b16 %v869, %v868
        %v910 = vpack.c.b16 %v871, %v870
        %v911 = vpack.c.b16 %v873, %v872
        %v912 = vpack.c.b16 %v875, %v874
        %v913 = vpack.c.b16 %v877, %v876
        %v914 = vpack.c.b16 %v879, %v878
        %v915 = vpack.c.b16 %v881, %v880
        %v916 = vpack.c.b16 %v883, %v882
        %v917 = vpack.c.b16 %v885, %v884
        %v966 = vunpack.c.l.b16 %v742
        %v967 = vunpack.c.l.b16 %v743
        %v968 = vunpack.c.l.b16 %v744
        %v969 = vunpack.c.l.b16 %v745
        %v970 = vunpack.c.l.b16 %v746
        %v971 = vunpack.c.l.b16 %v747
        %v972 = vunpack.c.l.b16 %v748
        %v973 = vunpack.c.l.b16 %v749
        %v974 = vunpack.c.l.b16 %v750
        %v975 = vunpack.c.l.b16 %v751
        %v976 = vunpack.c.l.b16 %v752
        %v977 = vunpack.c.l.b16 %v753
        %v978 = vunpack.c.l.b16 %v754
        %v979 = vunpack.c.l.b16 %v755
        %v980 = vunpack.c.l.b16 %v756
        %v981 = vunpack.c.l.b16 %v757
        %v982 = vpack.c.b16 %v967, %v966
        %v983 = vpack.c.b16 %v969, %v968
        %v984 = vpack.c.b16 %v971, %v970
        %v985 = vpack.c.b16 %v973, %v972
        %v986 = vpack.c.b16 %v975, %v974
        %v987 = vpack.c.b16 %v977, %v976
        %v988 = vpack.c.b16 %v979, %v978
        %v989 = vpack.c.b16 %v981, %v980
        %998 = vmatprep.subr.bf16.mxu0 0
        %999 = vmatpush1.bf16.msra.mxu0 %v982
        %1000 = vmatprep.subr.bf16.mxu0 0
        %1001 = vmatpush1.bf16.msra.mxu0 %v983
        %1002 = vmatprep.subr.bf16.mxu0 0
        %1003 = vmatpush1.bf16.msra.mxu0 %v984
        %1004 = vmatprep.subr.bf16.mxu0 0
        %1005 = vmatpush1.bf16.msra.mxu0 %v985
        %1006 = vmatprep.subr.bf16.mxu0 0
        %1007 = vmatpush1.bf16.msra.mxu0 %v986
        %1008 = vmatprep.subr.bf16.mxu0 0
        %1009 = vmatpush1.bf16.msra.mxu0 %v987
        %1010 = vmatprep.subr.bf16.mxu0 0
        %1011 = vmatpush1.bf16.msra.mxu0 %v988
        %1012 = vmatprep.subr.bf16.mxu0 0
        %1013 = vmatpush1.bf16.msra.mxu0 %v989
        %1014 = vmatprep.subr.bf16.mxu0 0
        %1015 = vmatpush1.bf16.msra.mxu0 0
        %1016 = vmatprep.subr.bf16.mxu0 0
        %1017 = vmatpush1.bf16.msra.mxu0 0
        %1018 = vmatprep.subr.bf16.mxu0 0
        %1019 = vmatpush1.bf16.msra.mxu0 0
        %1020 = vmatprep.subr.bf16.mxu0 0
        %1021 = vmatpush1.bf16.msra.mxu0 0
        %1022 = vmatprep.subr.bf16.mxu0 0
        %1023 = vmatpush1.bf16.msra.mxu0 0
        %1024 = vmatprep.subr.bf16.mxu0 0
        %1025 = vmatpush1.bf16.msra.mxu0 0
        %1026 = vmatprep.subr.bf16.mxu0 0
        %1027 = vmatpush1.bf16.msra.mxu0 0
        %1028 = vmatprep.subr.bf16.mxu0 0
        %1029 = vmatpush1.bf16.msra.mxu0 0
        %1030 = vmatprep.mubr.bf16.mxu0 0
        %1031 = vmatmul.mubr.bf16.gmra.mrb[0].mxu0 %v886
        %v1032 = vpop.f32.mrb[0].mxu0
        %v1033 = vadd.f32 0.0, %v1032
        %v1034 = vpop.f32.mrb[0].mxu0
        %v1035 = vpop.f32.mrb[0].mxu0
        %v1036 = vadd.f32 0.0, %v1035
        %v1037 = vpop.f32.mrb[0].mxu0
        %1038 = vmatprep.mubr.bf16.mxu0 0
        %1039 = vmatmul.mubr.bf16.gmra.mrb[0].mxu0 %v887
        %v1040 = vpop.f32.mrb[0].mxu0
        %v1041 = vadd.f32 0.0, %v1040
        %v1042 = vpop.f32.mrb[0].mxu0
        %v1043 = vpop.f32.mrb[0].mxu0
        %v1044 = vadd.f32 0.0, %v1043
        %v1045 = vpop.f32.mrb[0].mxu0
        %1046 = vmatprep.mubr.bf16.mxu0 0
        %1047 = vmatmul.mubr.bf16.gmra.mrb[0].mxu0 %v888
        %v1048 = vpop.f32.mrb[0].mxu0
        %v1049 = vadd.f32 0.0, %v1048
        %v1050 = vpop.f32.mrb[0].mxu0
        %v1051 = vpop.f32.mrb[0].mxu0
        %v1052 = vadd.f32 0.0, %v1051
        %v1053 = vpop.f32.mrb[0].mxu0
        %1054 = vmatprep.mubr.bf16.mxu0 0
        %1055 = vmatmul.mubr.bf16.gmra.mrb[0].mxu0 %v889
        %v1056 = vpop.f32.mrb[0].mxu0
        %v1057 = vadd.f32 0.0, %v1056
        %v1058 = vpop.f32.mrb[0].mxu0
        %v1059 = vpop.f32.mrb[0].mxu0
        %v1060 = vadd.f32 0.0, %v1059
        %v1061 = vpop.f32.mrb[0].mxu0
        %1062 = vmatprep.mubr.bf16.mxu0 0
        %1063 = vmatmul.mubr.bf16.gmra.mrb[0].mxu0 %v890
        %v1064 = vpop.f32.mrb[0].mxu0
        %v1065 = vadd.f32 0.0, %v1064
        %v1066 = vpop.f32.mrb[0].mxu0
        %v1067 = vpop.f32.mrb[0].mxu0
        %v1068 = vadd.f32 0.0, %v1067
        %v1069 = vpop.f32.mrb[0].mxu0
        %1070 = vmatprep.mubr.bf16.mxu0 0
        %1071 = vmatmul.mubr.bf16.gmra.mrb[0].mxu0 %v891
        %v1072 = vpop.f32.mrb[0].mxu0
        %v1073 = vadd.f32 0.0, %v1072
        %v1074 = vpop.f32.mrb[0].mxu0
        %v1075 = vpop.f32.mrb[0].mxu0
        %v1076 = vadd.f32 0.0, %v1075
        %v1077 = vpop.f32.mrb[0].mxu0
        %1078 = vmatprep.mubr.bf16.mxu0 0
        %1079 = vmatmul.mubr.bf16.gmra.mrb[0].mxu0 %v892
        %v1080 = vpop.f32.mrb[0].mxu0
        %v1081 = vadd.f32 0.0, %v1080
        %v1082 = vpop.f32.mrb[0].mxu0
        %v1083 = vpop.f32.mrb[0].mxu0
        %v1084 = vadd.f32 0.0, %v1083
        %v1085 = vpop.f32.mrb[0].mxu0
        %1086 = vmatprep.mubr.bf16.mxu0 0
        %1087 = vmatmul.mubr.bf16.gmra.mrb[0].mxu0 %v893
        %v1088 = vpop.f32.mrb[0].mxu0
        %v1089 = vadd.f32 0.0, %v1088
        %v1090 = vpop.f32.mrb[0].mxu0
        %v1091 = vpop.f32.mrb[0].mxu0
        %v1092 = vadd.f32 0.0, %v1091
        %v1093 = vpop.f32.mrb[0].mxu0
        %1094 = vmatprep.mubr.bf16.mxu0 0
        %1095 = vmatmul.mubr.bf16.gmra.mrb[0].mxu0 %v894
        %v1096 = vpop.f32.mrb[0].mxu0
        %v1097 = vadd.f32 0.0, %v1096
        %v1098 = vpop.f32.mrb[0].mxu0
        %v1099 = vpop.f32.mrb[0].mxu0
        %v1100 = vadd.f32 0.0, %v1099
        %v1101 = vpop.f32.mrb[0].mxu0
        %1102 = vmatprep.mubr.bf16.mxu0 0
        %1103 = vmatmul.mubr.bf16.gmra.mrb[0].mxu0 %v895
        %v1104 = vpop.f32.mrb[0].mxu0
        %v1105 = vadd.f32 0.0, %v1104
        %v1106 = vpop.f32.mrb[0].mxu0
        %v1107 = vpop.f32.mrb[0].mxu0
        %v1108 = vadd.f32 0.0, %v1107
        %v1109 = vpop.f32.mrb[0].mxu0
        %1110 = vmatprep.mubr.bf16.mxu0 0
        %1111 = vmatmul.mubr.bf16.gmra.mrb[0].mxu0 %v896
        %v1112 = vpop.f32.mrb[0].mxu0
        %v1113 = vadd.f32 0.0, %v1112
        %v1114 = vpop.f32.mrb[0].mxu0
        %v1115 = vpop.f32.mrb[0].mxu0
        %v1116 = vadd.f32 0.0, %v1115
        %v1117 = vpop.f32.mrb[0].mxu0
        %1118 = vmatprep.mubr.bf16.mxu0 0
        %1119 = vmatmul.mubr.bf16.gmra.mrb[0].mxu0 %v897
        %v1120 = vpop.f32.mrb[0].mxu0
        %v1121 = vadd.f32 0.0, %v1120
        %v1122 = vpop.f32.mrb[0].mxu0
        %v1123 = vpop.f32.mrb[0].mxu0
        %v1124 = vadd.f32 0.0, %v1123
        %v1125 = vpop.f32.mrb[0].mxu0
        %1126 = vmatprep.mubr.bf16.mxu0 0
        %1127 = vmatmul.mubr.bf16.gmra.mrb[0].mxu0 %v898
        %v1128 = vpop.f32.mrb[0].mxu0
        %v1129 = vadd.f32 0.0, %v1128
        %v1130 = vpop.f32.mrb[0].mxu0
        %v1131 = vpop.f32.mrb[0].mxu0
        %v1132 = vadd.f32 0.0, %v1131
        %v1133 = vpop.f32.mrb[0].mxu0
        %1134 = vmatprep.mubr.bf16.mxu0 0
        %1135 = vmatmul.mubr.bf16.gmra.mrb[0].mxu0 %v899
        %v1136 = vpop.f32.mrb[0].mxu0
        %v1137 = vadd.f32 0.0, %v1136
        %v1138 = vpop.f32.mrb[0].mxu0
        %v1139 = vpop.f32.mrb[0].mxu0
        %v1140 = vadd.f32 0.0, %v1139
        %v1141 = vpop.f32.mrb[0].mxu0
        %1142 = vmatprep.mubr.bf16.mxu0 0
        %1143 = vmatmul.mubr.bf16.gmra.mrb[0].mxu0 %v900
        %v1144 = vpop.f32.mrb[0].mxu0
        %v1145 = vadd.f32 0.0, %v1144
        %v1146 = vpop.f32.mrb[0].mxu0
        %v1147 = vpop.f32.mrb[0].mxu0
        %v1148 = vadd.f32 0.0, %v1147
        %v1149 = vpop.f32.mrb[0].mxu0
        %1150 = vmatprep.mubr.bf16.mxu0 0
        %1151 = vmatmul.mubr.bf16.gmra.mrb[0].mxu0 %v901
        %v1152 = vpop.f32.mrb[0].mxu0
        %v1153 = vadd.f32 0.0, %v1152
        %v1154 = vpop.f32.mrb[0].mxu0
        %v1155 = vpop.f32.mrb[0].mxu0
        %v1156 = vadd.f32 0.0, %v1155
        %v1157 = vpop.f32.mrb[0].mxu0
        %1158 = vmatprep.mubr.bf16.mxu0 0
        %1159 = vmatmul.mubr.bf16.gmra.mrb[0].mxu0 %v902
        %v1160 = vpop.f32.mrb[0].mxu0
        %v1161 = vadd.f32 0.0, %v1160
        %v1162 = vpop.f32.mrb[0].mxu0
        %v1163 = vpop.f32.mrb[0].mxu0
        %v1164 = vadd.f32 0.0, %v1163
        %v1165 = vpop.f32.mrb[0].mxu0
        %1166 = vmatprep.mubr.bf16.mxu0 0
        %1167 = vmatmul.mubr.bf16.gmra.mrb[0].mxu0 %v903
        %v1168 = vpop.f32.mrb[0].mxu0
        %v1169 = vadd.f32 0.0, %v1168
        %v1170 = vpop.f32.mrb[0].mxu0
        %v1171 = vpop.f32.mrb[0].mxu0
        %v1172 = vadd.f32 0.0, %v1171
        %v1173 = vpop.f32.mrb[0].mxu0
        %1174 = vmatprep.mubr.bf16.mxu0 0
        %1175 = vmatmul.mubr.bf16.gmra.mrb[0].mxu0 %v904
        %v1176 = vpop.f32.mrb[0].mxu0
        %v1177 = vadd.f32 0.0, %v1176
        %v1178 = vpop.f32.mrb[0].mxu0
        %v1179 = vpop.f32.mrb[0].mxu0
        %v1180 = vadd.f32 0.0, %v1179
        %v1181 = vpop.f32.mrb[0].mxu0
        %1182 = vmatprep.mubr.bf16.mxu0 0
        %1183 = vmatmul.mubr.bf16.gmra.mrb[0].mxu0 %v905
        %v1184 = vpop.f32.mrb[0].mxu0
        %v1185 = vadd.f32 0.0, %v1184
        %v1186 = vpop.f32.mrb[0].mxu0
        %v1187 = vpop.f32.mrb[0].mxu0
        %v1188 = vadd.f32 0.0, %v1187
        %v1189 = vpop.f32.mrb[0].mxu0
        %1190 = vmatprep.mubr.bf16.mxu0 0
        %1191 = vmatmul.mubr.bf16.gmra.mrb[0].mxu0 %v906
        %v1192 = vpop.f32.mrb[0].mxu0
        %v1193 = vadd.f32 0.0, %v1192
        %v1194 = vpop.f32.mrb[0].mxu0
        %v1195 = vpop.f32.mrb[0].mxu0
        %v1196 = vadd.f32 0.0, %v1195
        %v1197 = vpop.f32.mrb[0].mxu0
        %1198 = vmatprep.mubr.bf16.mxu0 0
        %1199 = vmatmul.mubr.bf16.gmra.mrb[0].mxu0 %v907
        %v1200 = vpop.f32.mrb[0].mxu0
        %v1201 = vadd.f32 0.0, %v1200
        %v1202 = vpop.f32.mrb[0].mxu0
        %v1203 = vpop.f32.mrb[0].mxu0
        %v1204 = vadd.f32 0.0, %v1203
        %v1205 = vpop.f32.mrb[0].mxu0
        %1206 = vmatprep.mubr.bf16.mxu0 0
        %1207 = vmatmul.mubr.bf16.gmra.mrb[0].mxu0 %v908
        %v1208 = vpop.f32.mrb[0].mxu0
        %v1209 = vadd.f32 0.0, %v1208
        %v1210 = vpop.f32.mrb[0].mxu0
        %v1211 = vpop.f32.mrb[0].mxu0
        %v1212 = vadd.f32 0.0, %v1211
        %v1213 = vpop.f32.mrb[0].mxu0
        %1214 = vmatprep.mubr.bf16.mxu0 0
        %1215 = vmatmul.mubr.bf16.gmra.mrb[0].mxu0 %v909
        %v1216 = vpop.f32.mrb[0].mxu0
        %v1217 = vadd.f32 0.0, %v1216
        %v1218 = vpop.f32.mrb[0].mxu0
        %v1219 = vpop.f32.mrb[0].mxu0
        %v1220 = vadd.f32 0.0, %v1219
        %v1221 = vpop.f32.mrb[0].mxu0
        %1222 = vmatprep.mubr.bf16.mxu0 0
        %1223 = vmatmul.mubr.bf16.gmra.mrb[0].mxu0 %v910
        %v1224 = vpop.f32.mrb[0].mxu0
        %v1225 = vadd.f32 0.0, %v1224
        %v1226 = vpop.f32.mrb[0].mxu0
        %v1227 = vpop.f32.mrb[0].mxu0
        %v1228 = vadd.f32 0.0, %v1227
        %v1229 = vpop.f32.mrb[0].mxu0
        %1230 = vmatprep.mubr.bf16.mxu0 0
        %1231 = vmatmul.mubr.bf16.gmra.mrb[0].mxu0 %v911
        %v1232 = vpop.f32.mrb[0].mxu0
        %v1233 = vadd.f32 0.0, %v1232
        %v1234 = vpop.f32.mrb[0].mxu0
        %v1235 = vpop.f32.mrb[0].mxu0
        %v1236 = vadd.f32 0.0, %v1235
        %v1237 = vpop.f32.mrb[0].mxu0
        %1238 = vmatprep.mubr.bf16.mxu0 0
        %1239 = vmatmul.mubr.bf16.gmra.mrb[0].mxu0 %v912
        %v1240 = vpop.f32.mrb[0].mxu0
        %v1241 = vadd.f32 0.0, %v1240
        %v1242 = vpop.f32.mrb[0].mxu0
        %v1243 = vpop.f32.mrb[0].mxu0
        %v1244 = vadd.f32 0.0, %v1243
        %v1245 = vpop.f32.mrb[0].mxu0
        %1246 = vmatprep.mubr.bf16.mxu0 0
        %1247 = vmatmul.mubr.bf16.gmra.mrb[0].mxu0 %v913
        %v1248 = vpop.f32.mrb[0].mxu0
        %v1249 = vadd.f32 0.0, %v1248
        %v1250 = vpop.f32.mrb[0].mxu0
        %v1251 = vpop.f32.mrb[0].mxu0
        %v1252 = vadd.f32 0.0, %v1251
        %v1253 = vpop.f32.mrb[0].mxu0
        %1254 = vmatprep.mubr.bf16.mxu0 0
        %1255 = vmatmul.mubr.bf16.gmra.mrb[0].mxu0 %v914
        %v1256 = vpop.f32.mrb[0].mxu0
        %v1257 = vadd.f32 0.0, %v1256
        %v1258 = vpop.f32.mrb[0].mxu0
        %v1259 = vpop.f32.mrb[0].mxu0
        %v1260 = vadd.f32 0.0, %v1259
        %v1261 = vpop.f32.mrb[0].mxu0
        %1262 = vmatprep.mubr.bf16.mxu0 0
        %1263 = vmatmul.mubr.bf16.gmra.mrb[0].mxu0 %v915
        %v1264 = vpop.f32.mrb[0].mxu0
        %v1265 = vadd.f32 0.0, %v1264
        %v1266 = vpop.f32.mrb[0].mxu0
        %v1267 = vpop.f32.mrb[0].mxu0
        %v1268 = vadd.f32 0.0, %v1267
        %v1269 = vpop.f32.mrb[0].mxu0
        %1270 = vmatprep.mubr.bf16.mxu0 0
        %1271 = vmatmul.mubr.bf16.gmra.mrb[0].mxu0 %v916
        %v1272 = vpop.f32.mrb[0].mxu0
        %v1273 = vadd.f32 0.0, %v1272
        %v1274 = vpop.f32.mrb[0].mxu0
        %v1275 = vpop.f32.mrb[0].mxu0
        %v1276 = vadd.f32 0.0, %v1275
        %v1277 = vpop.f32.mrb[0].mxu0
        %1278 = vmatprep.mubr.bf16.mxu0 0
        %1279 = vmatmul.mubr.bf16.gmra.mrb[0].mxu0 %v917
        %v1280 = vpop.f32.mrb[0].mxu0
        %v1281 = vadd.f32 0.0, %v1280
        %v1282 = vpop.f32.mrb[0].mxu0
        %v1283 = vpop.f32.mrb[0].mxu0
        %v1284 = vadd.f32 0.0, %v1283
        %v1285 = vpop.f32.mrb[0].mxu0
        %1286 = vdwg.mxu0
        %v1287 = vadd.f32 %v614, %v1033
        %v1288 = vadd.f32 %v615, %v1036
        %v1289 = vadd.f32 %v616, %v1041
        %v1290 = vadd.f32 %v617, %v1044
        %v1291 = vadd.f32 %v618, %v1049
        %v1292 = vadd.f32 %v619, %v1052
        %v1293 = vadd.f32 %v620, %v1057
        %v1294 = vadd.f32 %v621, %v1060
        %v1295 = vadd.f32 %v622, %v1065
        %v1296 = vadd.f32 %v623, %v1068
        %v1297 = vadd.f32 %v624, %v1073
        %v1298 = vadd.f32 %v625, %v1076
        %v1299 = vadd.f32 %v626, %v1081
        %v1300 = vadd.f32 %v627, %v1084
        %v1301 = vadd.f32 %v628, %v1089
        %v1302 = vadd.f32 %v629, %v1092
        %v1303 = vadd.f32 %v630, %v1097
        %v1304 = vadd.f32 %v631, %v1100
        %v1305 = vadd.f32 %v632, %v1105
        %v1306 = vadd.f32 %v633, %v1108
        %v1307 = vadd.f32 %v634, %v1113
        %v1308 = vadd.f32 %v635, %v1116
        %v1309 = vadd.f32 %v636, %v1121
        %v1310 = vadd.f32 %v637, %v1124
        %v1311 = vadd.f32 %v638, %v1129
        %v1312 = vadd.f32 %v639, %v1132
        %v1313 = vadd.f32 %v640, %v1137
        %v1314 = vadd.f32 %v641, %v1140
        %v1315 = vadd.f32 %v642, %v1145
        %v1316 = vadd.f32 %v643, %v1148
        %v1317 = vadd.f32 %v644, %v1153
        %v1318 = vadd.f32 %v645, %v1156
        %v1319 = vadd.f32 %v646, %v1161
        %v1320 = vadd.f32 %v647, %v1164
        %v1321 = vadd.f32 %v648, %v1169
        %v1322 = vadd.f32 %v649, %v1172
        %v1323 = vadd.f32 %v650, %v1177
        %v1324 = vadd.f32 %v651, %v1180
        %v1325 = vadd.f32 %v652, %v1185
        %v1326 = vadd.f32 %v653, %v1188
        %v1327 = vadd.f32 %v654, %v1193
        %v1328 = vadd.f32 %v655, %v1196
        %v1329 = vadd.f32 %v656, %v1201
        %v1330 = vadd.f32 %v657, %v1204
        %v1331 = vadd.f32 %v658, %v1209
        %v1332 = vadd.f32 %v659, %v1212
        %v1333 = vadd.f32 %v660, %v1217
        %v1334 = vadd.f32 %v661, %v1220
        %v1335 = vadd.f32 %v662, %v1225
        %v1336 = vadd.f32 %v663, %v1228
        %v1337 = vadd.f32 %v664, %v1233
        %v1338 = vadd.f32 %v665, %v1236
        %v1339 = vadd.f32 %v666, %v1241
        %v1340 = vadd.f32 %v667, %v1244
        %v1341 = vadd.f32 %v668, %v1249
        %v1342 = vadd.f32 %v669, %v1252
        %v1343 = vadd.f32 %v670, %v1257
        %v1344 = vadd.f32 %v671, %v1260
        %v1345 = vadd.f32 %v672, %v1265
        %v1346 = vadd.f32 %v673, %v1268
        %v1347 = vadd.f32 %v674, %v1273
        %v1348 = vadd.f32 %v675, %v1276
        %v1349 = vadd.f32 %v676, %v1281
        %v1350 = vadd.f32 %v677, %v1284
        %1351 = vst [vmem:[#allocation2] sm:$0xff] %v1287
        %1352 = vst [vmem:[#allocation2 + $0x8] sm:$0xff] %v1288
        %1353 = vst [vmem:[#allocation2 + $0x10] sm:$0xff] %v1289
        %1354 = vst [vmem:[#allocation2 + $0x18] sm:$0xff] %v1290
        %1355 = vst [vmem:[#allocation2 + $0x20] sm:$0xff] %v1291
        %1356 = vst [vmem:[#allocation2 + $0x28] sm:$0xff] %v1292
        %1357 = vst [vmem:[#allocation2 + $0x30] sm:$0xff] %v1293
        %1358 = vst [vmem:[#allocation2 + $0x38] sm:$0xff] %v1294
        %1359 = vst [vmem:[#allocation2 + $0x40] sm:$0xff] %v1295
        %1360 = vst [vmem:[#allocation2 + $0x48] sm:$0xff] %v1296
        %1361 = vst [vmem:[#allocation2 + $0x50] sm:$0xff] %v1297
        %1362 = vst [vmem:[#allocation2 + $0x58] sm:$0xff] %v1298
        %1363 = vst [vmem:[#allocation2 + $0x60] sm:$0xff] %v1299
        %1364 = vst [vmem:[#allocation2 + $0x68] sm:$0xff] %v1300
        %1365 = vst [vmem:[#allocation2 + $0x70] sm:$0xff] %v1301
        %1366 = vst [vmem:[#allocation2 + $0x78] sm:$0xff] %v1302
        %1367 = vst [vmem:[#allocation2 + $0x80] sm:$0xff] %v1303
        %1368 = vst [vmem:[#allocation2 + $0x88] sm:$0xff] %v1304
        %1369 = vst [vmem:[#allocation2 + $0x90] sm:$0xff] %v1305
        %1370 = vst [vmem:[#allocation2 + $0x98] sm:$0xff] %v1306
        %1371 = vst [vmem:[#allocation2 + $0xa0] sm:$0xff] %v1307
        %1372 = vst [vmem:[#allocation2 + $0xa8] sm:$0xff] %v1308
        %1373 = vst [vmem:[#allocation2 + $0xb0] sm:$0xff] %v1309
        %1374 = vst [vmem:[#allocation2 + $0xb8] sm:$0xff] %v1310
        %1375 = vst [vmem:[#allocation2 + $0xc0] sm:$0xff] %v1311
        %1376 = vst [vmem:[#allocation2 + $0xc8] sm:$0xff] %v1312
        %1377 = vst [vmem:[#allocation2 + $0xd0] sm:$0xff] %v1313
        %1378 = vst [vmem:[#allocation2 + $0xd8] sm:$0xff] %v1314
        %1379 = vst [vmem:[#allocation2 + $0xe0] sm:$0xff] %v1315
        %1380 = vst [vmem:[#allocation2 + $0xe8] sm:$0xff] %v1316
        %1381 = vst [vmem:[#allocation2 + $0xf0] sm:$0xff] %v1317
        %1382 = vst [vmem:[#allocation2 + $0xf8] sm:$0xff] %v1318
        %1383 = vst [vmem:[#allocation2 + $0x100] sm:$0xff] %v1319
        %1384 = vst [vmem:[#allocation2 + $0x108] sm:$0xff] %v1320
        %1385 = vst [vmem:[#allocation2 + $0x110] sm:$0xff] %v1321
        %1386 = vst [vmem:[#allocation2 + $0x118] sm:$0xff] %v1322
        %1387 = vst [vmem:[#allocation2 + $0x120] sm:$0xff] %v1323
        %1388 = vst [vmem:[#allocation2 + $0x128] sm:$0xff] %v1324
        %1389 = vst [vmem:[#allocation2 + $0x130] sm:$0xff] %v1325
        %1390 = vst [vmem:[#allocation2 + $0x138] sm:$0xff] %v1326
        %1391 = vst [vmem:[#allocation2 + $0x140] sm:$0xff] %v1327
        %1392 = vst [vmem:[#allocation2 + $0x148] sm:$0xff] %v1328
        %1393 = vst [vmem:[#allocation2 + $0x150] sm:$0xff] %v1329
        %1394 = vst [vmem:[#allocation2 + $0x158] sm:$0xff] %v1330
        %1395 = vst [vmem:[#allocation2 + $0x160] sm:$0xff] %v1331
        %1396 = vst [vmem:[#allocation2 + $0x168] sm:$0xff] %v1332
        %1397 = vst [vmem:[#allocation2 + $0x170] sm:$0xff] %v1333
        %1398 = vst [vmem:[#allocation2 + $0x178] sm:$0xff] %v1334
        %1399 = vst [vmem:[#allocation2 + $0x180] sm:$0xff] %v1335
        %1400 = vst [vmem:[#allocation2 + $0x188] sm:$0xff] %v1336
        %1401 = vst [vmem:[#allocation2 + $0x190] sm:$0xff] %v1337
        %1402 = vst [vmem:[#allocation2 + $0x198] sm:$0xff] %v1338
        %1403 = vst [vmem:[#allocation2 + $0x1a0] sm:$0xff] %v1339
        %1404 = vst [vmem:[#allocation2 + $0x1a8] sm:$0xff] %v1340
        %1405 = vst [vmem:[#allocation2 + $0x1b0] sm:$0xff] %v1341
        %1406 = vst [vmem:[#allocation2 + $0x1b8] sm:$0xff] %v1342
        %1407 = vst [vmem:[#allocation2 + $0x1c0] sm:$0xff] %v1343
        %1408 = vst [vmem:[#allocation2 + $0x1c8] sm:$0xff] %v1344
        %1409 = vst [vmem:[#allocation2 + $0x1d0] sm:$0xff] %v1345
        %1410 = vst [vmem:[#allocation2 + $0x1d8] sm:$0xff] %v1346
        %1411 = vst [vmem:[#allocation2 + $0x1e0] sm:$0xff] %v1347
        %1412 = vst [vmem:[#allocation2 + $0x1e8] sm:$0xff] %v1348
        %1413 = vst [vmem:[#allocation2 + $0x1f0] sm:$0xff] %v1349
        %1414 = vst [vmem:[#allocation2 + $0x1f8] sm:$0xff] %v1350
        %p1415 = scmp.eq.s32.totalorder %s21, 2
        // Predicated region
        $region78: #{_lambda_.23} parent=68 // pred_check
          %p1416 = pneg %p1415
        $region79: #{_lambda_.23} parent=68 // pred_check_branch
          %1418 = sbr.rel (%p1416) target = $region81
        $region80: #{_lambda_.23} parent=68 // pred_region
          %v1419 = vld [vmem:[#allocation2] sm:$0xff]
          %v1420 = vld [vmem:[#allocation2 + $0x8] sm:$0xff]
          %v1421 = vld [vmem:[#allocation2 + $0x10] sm:$0xff]
          %v1422 = vld [vmem:[#allocation2 + $0x18] sm:$0xff]
          %v1423 = vld [vmem:[#allocation2 + $0x20] sm:$0xff]
          %v1424 = vld [vmem:[#allocation2 + $0x28] sm:$0xff]
          %v1425 = vld [vmem:[#allocation2 + $0x30] sm:$0xff]
          %v1426 = vld [vmem:[#allocation2 + $0x38] sm:$0xff]
          %v1427 = vld [vmem:[#allocation2 + $0x40] sm:$0xff]
          %v1428 = vld [vmem:[#allocation2 + $0x48] sm:$0xff]
          %v1429 = vld [vmem:[#allocation2 + $0x50] sm:$0xff]
          %v1430 = vld [vmem:[#allocation2 + $0x58] sm:$0xff]
          %v1431 = vld [vmem:[#allocation2 + $0x60] sm:$0xff]
          %v1432 = vld [vmem:[#allocation2 + $0x68] sm:$0xff]
          %v1433 = vld [vmem:[#allocation2 + $0x70] sm:$0xff]
          %v1434 = vld [vmem:[#allocation2 + $0x78] sm:$0xff]
          %v1435 = vld [vmem:[#allocation2 + $0x80] sm:$0xff]
          %v1436 = vld [vmem:[#allocation2 + $0x88] sm:$0xff]
          %v1437 = vld [vmem:[#allocation2 + $0x90] sm:$0xff]
          %v1438 = vld [vmem:[#allocation2 + $0x98] sm:$0xff]
          %v1439 = vld [vmem:[#allocation2 + $0xa0] sm:$0xff]
          %v1440 = vld [vmem:[#allocation2 + $0xa8] sm:$0xff]
          %v1441 = vld [vmem:[#allocation2 + $0xb0] sm:$0xff]
          %v1442 = vld [vmem:[#allocation2 + $0xb8] sm:$0xff]
          %v1443 = vld [vmem:[#allocation2 + $0xc0] sm:$0xff]
          %v1444 = vld [vmem:[#allocation2 + $0xc8] sm:$0xff]
          %v1445 = vld [vmem:[#allocation2 + $0xd0] sm:$0xff]
          %v1446 = vld [vmem:[#allocation2 + $0xd8] sm:$0xff]
          %v1447 = vld [vmem:[#allocation2 + $0xe0] sm:$0xff]
          %v1448 = vld [vmem:[#allocation2 + $0xe8] sm:$0xff]
          %v1449 = vld [vmem:[#allocation2 + $0xf0] sm:$0xff]
          %v1450 = vld [vmem:[#allocation2 + $0xf8] sm:$0xff]
          %v1451 = vld [vmem:[#allocation2 + $0x100] sm:$0xff]
          %v1452 = vld [vmem:[#allocation2 + $0x108] sm:$0xff]
          %v1453 = vld [vmem:[#allocation2 + $0x110] sm:$0xff]
          %v1454 = vld [vmem:[#allocation2 + $0x118] sm:$0xff]
          %v1455 = vld [vmem:[#allocation2 + $0x120] sm:$0xff]
          %v1456 = vld [vmem:[#allocation2 + $0x128] sm:$0xff]
          %v1457 = vld [vmem:[#allocation2 + $0x130] sm:$0xff]
          %v1458 = vld [vmem:[#allocation2 + $0x138] sm:$0xff]
          %v1459 = vld [vmem:[#allocation2 + $0x140] sm:$0xff]
          %v1460 = vld [vmem:[#allocation2 + $0x148] sm:$0xff]
          %v1461 = vld [vmem:[#allocation2 + $0x150] sm:$0xff]
          %v1462 = vld [vmem:[#allocation2 + $0x158] sm:$0xff]
          %v1463 = vld [vmem:[#allocation2 + $0x160] sm:$0xff]
          %v1464 = vld [vmem:[#allocation2 + $0x168] sm:$0xff]
          %v1465 = vld [vmem:[#allocation2 + $0x170] sm:$0xff]
          %v1466 = vld [vmem:[#allocation2 + $0x178] sm:$0xff]
          %v1467 = vld [vmem:[#allocation2 + $0x180] sm:$0xff]
          %v1468 = vld [vmem:[#allocation2 + $0x188] sm:$0xff]
          %v1469 = vld [vmem:[#allocation2 + $0x190] sm:$0xff]
          %v1470 = vld [vmem:[#allocation2 + $0x198] sm:$0xff]
          %v1471 = vld [vmem:[#allocation2 + $0x1a0] sm:$0xff]
          %v1472 = vld [vmem:[#allocation2 + $0x1a8] sm:$0xff]
          %v1473 = vld [vmem:[#allocation2 + $0x1b0] sm:$0xff]
          %v1474 = vld [vmem:[#allocation2 + $0x1b8] sm:$0xff]
          %v1475 = vld [vmem:[#allocation2 + $0x1c0] sm:$0xff]
          %v1476 = vld [vmem:[#allocation2 + $0x1c8] sm:$0xff]
          %v1477 = vld [vmem:[#allocation2 + $0x1d0] sm:$0xff]
          %v1478 = vld [vmem:[#allocation2 + $0x1d8] sm:$0xff]
          %v1479 = vld [vmem:[#allocation2 + $0x1e0] sm:$0xff]
          %v1480 = vld [vmem:[#allocation2 + $0x1e8] sm:$0xff]
          %v1481 = vld [vmem:[#allocation2 + $0x1f0] sm:$0xff]
          %v1482 = vld [vmem:[#allocation2 + $0x1f8] sm:$0xff]
          %v1483 = vld [vmem:[%s535] sm:$0x1]
          %v1485 = vlaneseq
          %v1486 = vshrl.u32 %v1485, 7
          %v1487 = vsub.s32 0, %v1486
          %v1488 = vrot.slane %v1483, %v1487
          %v1490 = vadd.f32 %v1419, %v1488
          %v1491 = vadd.f32 %v1420, %v1488
          %v1492 = vadd.f32 %v1421, %v1488
          %v1493 = vadd.f32 %v1422, %v1488
          %v1494 = vadd.f32 %v1423, %v1488
          %v1495 = vadd.f32 %v1424, %v1488
          %v1496 = vadd.f32 %v1425, %v1488
          %v1497 = vadd.f32 %v1426, %v1488
          %v1498 = vadd.f32 %v1427, %v1488
          %v1499 = vadd.f32 %v1428, %v1488
          %v1500 = vadd.f32 %v1429, %v1488
          %v1501 = vadd.f32 %v1430, %v1488
          %v1502 = vadd.f32 %v1431, %v1488
          %v1503 = vadd.f32 %v1432, %v1488
          %v1504 = vadd.f32 %v1433, %v1488
          %v1505 = vadd.f32 %v1434, %v1488
          %v1506 = vadd.f32 %v1435, %v1488
          %v1507 = vadd.f32 %v1436, %v1488
          %v1508 = vadd.f32 %v1437, %v1488
          %v1509 = vadd.f32 %v1438, %v1488
          %v1510 = vadd.f32 %v1439, %v1488
          %v1511 = vadd.f32 %v1440, %v1488
          %v1512 = vadd.f32 %v1441, %v1488
          %v1513 = vadd.f32 %v1442, %v1488
          %v1514 = vadd.f32 %v1443, %v1488
          %v1515 = vadd.f32 %v1444, %v1488
          %v1516 = vadd.f32 %v1445, %v1488
          %v1517 = vadd.f32 %v1446, %v1488
          %v1518 = vadd.f32 %v1447, %v1488
          %v1519 = vadd.f32 %v1448, %v1488
          %v1520 = vadd.f32 %v1449, %v1488
          %v1521 = vadd.f32 %v1450, %v1488
          %v1522 = vadd.f32 %v1451, %v1488
          %v1523 = vadd.f32 %v1452, %v1488
          %v1524 = vadd.f32 %v1453, %v1488
          %v1525 = vadd.f32 %v1454, %v1488
          %v1526 = vadd.f32 %v1455, %v1488
          %v1527 = vadd.f32 %v1456, %v1488
          %v1528 = vadd.f32 %v1457, %v1488
          %v1529 = vadd.f32 %v1458, %v1488
          %v1530 = vadd.f32 %v1459, %v1488
          %v1531 = vadd.f32 %v1460, %v1488
          %v1532 = vadd.f32 %v1461, %v1488
          %v1533 = vadd.f32 %v1462, %v1488
          %v1534 = vadd.f32 %v1463, %v1488
          %v1535 = vadd.f32 %v1464, %v1488
          %v1536 = vadd.f32 %v1465, %v1488
          %v1537 = vadd.f32 %v1466, %v1488
          %v1538 = vadd.f32 %v1467, %v1488
          %v1539 = vadd.f32 %v1468, %v1488
          %v1540 = vadd.f32 %v1469, %v1488
          %v1541 = vadd.f32 %v1470, %v1488
          %v1542 = vadd.f32 %v1471, %v1488
          %v1543 = vadd.f32 %v1472, %v1488
          %v1544 = vadd.f32 %v1473, %v1488
          %v1545 = vadd.f32 %v1474, %v1488
          %v1546 = vadd.f32 %v1475, %v1488
          %v1547 = vadd.f32 %v1476, %v1488
          %v1548 = vadd.f32 %v1477, %v1488
          %v1549 = vadd.f32 %v1478, %v1488
          %v1550 = vadd.f32 %v1479, %v1488
          %v1551 = vadd.f32 %v1480, %v1488
          %v1552 = vadd.f32 %v1481, %v1488
          %v1553 = vadd.f32 %v1482, %v1488
          %vm1554 = vcmp.gt.f32.partialorder %v1490, 0.0
          %vm1555 = vcmp.gt.f32.partialorder %v1491, 0.0
          %vm1556 = vcmp.gt.f32.partialorder %v1492, 0.0
          %vm1557 = vcmp.gt.f32.partialorder %v1493, 0.0
          %vm1558 = vcmp.gt.f32.partialorder %v1494, 0.0
          %vm1559 = vcmp.gt.f32.partialorder %v1495, 0.0
          %vm1560 = vcmp.gt.f32.partialorder %v1496, 0.0
          %vm1561 = vcmp.gt.f32.partialorder %v1497, 0.0
          %vm1562 = vcmp.gt.f32.partialorder %v1498, 0.0
          %vm1563 = vcmp.gt.f32.partialorder %v1499, 0.0
          %vm1564 = vcmp.gt.f32.partialorder %v1500, 0.0
          %vm1565 = vcmp.gt.f32.partialorder %v1501, 0.0
          %vm1566 = vcmp.gt.f32.partialorder %v1502, 0.0
          %vm1567 = vcmp.gt.f32.partialorder %v1503, 0.0
          %vm1568 = vcmp.gt.f32.partialorder %v1504, 0.0
          %vm1569 = vcmp.gt.f32.partialorder %v1505, 0.0
          %vm1570 = vcmp.gt.f32.partialorder %v1506, 0.0
          %vm1571 = vcmp.gt.f32.partialorder %v1507, 0.0
          %vm1572 = vcmp.gt.f32.partialorder %v1508, 0.0
          %vm1573 = vcmp.gt.f32.partialorder %v1509, 0.0
          %vm1574 = vcmp.gt.f32.partialorder %v1510, 0.0
          %vm1575 = vcmp.gt.f32.partialorder %v1511, 0.0
          %vm1576 = vcmp.gt.f32.partialorder %v1512, 0.0
          %vm1577 = vcmp.gt.f32.partialorder %v1513, 0.0
          %vm1578 = vcmp.gt.f32.partialorder %v1514, 0.0
          %vm1579 = vcmp.gt.f32.partialorder %v1515, 0.0
          %vm1580 = vcmp.gt.f32.partialorder %v1516, 0.0
          %vm1581 = vcmp.gt.f32.partialorder %v1517, 0.0
          %vm1582 = vcmp.gt.f32.partialorder %v1518, 0.0
          %vm1583 = vcmp.gt.f32.partialorder %v1519, 0.0
          %vm1584 = vcmp.gt.f32.partialorder %v1520, 0.0
          %vm1585 = vcmp.gt.f32.partialorder %v1521, 0.0
          %vm1586 = vcmp.gt.f32.partialorder %v1522, 0.0
          %vm1587 = vcmp.gt.f32.partialorder %v1523, 0.0
          %vm1588 = vcmp.gt.f32.partialorder %v1524, 0.0
          %vm1589 = vcmp.gt.f32.partialorder %v1525, 0.0
          %vm1590 = vcmp.gt.f32.partialorder %v1526, 0.0
          %vm1591 = vcmp.gt.f32.partialorder %v1527, 0.0
          %vm1592 = vcmp.gt.f32.partialorder %v1528, 0.0
          %vm1593 = vcmp.gt.f32.partialorder %v1529, 0.0
          %vm1594 = vcmp.gt.f32.partialorder %v1530, 0.0
          %vm1595 = vcmp.gt.f32.partialorder %v1531, 0.0
          %vm1596 = vcmp.gt.f32.partialorder %v1532, 0.0
          %vm1597 = vcmp.gt.f32.partialorder %v1533, 0.0
          %vm1598 = vcmp.gt.f32.partialorder %v1534, 0.0
          %vm1599 = vcmp.gt.f32.partialorder %v1535, 0.0
          %vm1600 = vcmp.gt.f32.partialorder %v1536, 0.0
          %vm1601 = vcmp.gt.f32.partialorder %v1537, 0.0
          %vm1602 = vcmp.gt.f32.partialorder %v1538, 0.0
          %vm1603 = vcmp.gt.f32.partialorder %v1539, 0.0
          %vm1604 = vcmp.gt.f32.partialorder %v1540, 0.0
          %vm1605 = vcmp.gt.f32.partialorder %v1541, 0.0
          %vm1606 = vcmp.gt.f32.partialorder %v1542, 0.0
          %vm1607 = vcmp.gt.f32.partialorder %v1543, 0.0
          %vm1608 = vcmp.gt.f32.partialorder %v1544, 0.0
          %vm1609 = vcmp.gt.f32.partialorder %v1545, 0.0
          %vm1610 = vcmp.gt.f32.partialorder %v1546, 0.0
          %vm1611 = vcmp.gt.f32.partialorder %v1547, 0.0
          %vm1612 = vcmp.gt.f32.partialorder %v1548, 0.0
          %vm1613 = vcmp.gt.f32.partialorder %v1549, 0.0
          %vm1614 = vcmp.gt.f32.partialorder %v1550, 0.0
          %vm1615 = vcmp.gt.f32.partialorder %v1551, 0.0
          %vm1616 = vcmp.gt.f32.partialorder %v1552, 0.0
          %vm1617 = vcmp.gt.f32.partialorder %v1553, 0.0
          %v1618 = vmul.f32 %v1490, 0.1
          %v1619 = vmul.f32 %v1491, 0.1
          %v1620 = vmul.f32 %v1492, 0.1
          %v1621 = vmul.f32 %v1493, 0.1
          %v1622 = vmul.f32 %v1494, 0.1
          %v1623 = vmul.f32 %v1495, 0.1
          %v1624 = vmul.f32 %v1496, 0.1
          %v1625 = vmul.f32 %v1497, 0.1
          %v1626 = vmul.f32 %v1498, 0.1
          %v1627 = vmul.f32 %v1499, 0.1
          %v1628 = vmul.f32 %v1500, 0.1
          %v1629 = vmul.f32 %v1501, 0.1
          %v1630 = vmul.f32 %v1502, 0.1
          %v1631 = vmul.f32 %v1503, 0.1
          %v1632 = vmul.f32 %v1504, 0.1
          %v1633 = vmul.f32 %v1505, 0.1
          %v1634 = vmul.f32 %v1506, 0.1
          %v1635 = vmul.f32 %v1507, 0.1
          %v1636 = vmul.f32 %v1508, 0.1
          %v1637 = vmul.f32 %v1509, 0.1
          %v1638 = vmul.f32 %v1510, 0.1
          %v1639 = vmul.f32 %v1511, 0.1
          %v1640 = vmul.f32 %v1512, 0.1
          %v1641 = vmul.f32 %v1513, 0.1
          %v1642 = vmul.f32 %v1514, 0.1
          %v1643 = vmul.f32 %v1515, 0.1
          %v1644 = vmul.f32 %v1516, 0.1
          %v1645 = vmul.f32 %v1517, 0.1
          %v1646 = vmul.f32 %v1518, 0.1
          %v1647 = vmul.f32 %v1519, 0.1
          %v1648 = vmul.f32 %v1520, 0.1
          %v1649 = vmul.f32 %v1521, 0.1
          %v1650 = vmul.f32 %v1522, 0.1
          %v1651 = vmul.f32 %v1523, 0.1
          %v1652 = vmul.f32 %v1524, 0.1
          %v1653 = vmul.f32 %v1525, 0.1
          %v1654 = vmul.f32 %v1526, 0.1
          %v1655 = vmul.f32 %v1527, 0.1
          %v1656 = vmul.f32 %v1528, 0.1
          %v1657 = vmul.f32 %v1529, 0.1
          %v1658 = vmul.f32 %v1530, 0.1
          %v1659 = vmul.f32 %v1531, 0.1
          %v1660 = vmul.f32 %v1532, 0.1
          %v1661 = vmul.f32 %v1533, 0.1
          %v1662 = vmul.f32 %v1534, 0.1
          %v1663 = vmul.f32 %v1535, 0.1
          %v1664 = vmul.f32 %v1536, 0.1
          %v1665 = vmul.f32 %v1537, 0.1
          %v1666 = vmul.f32 %v1538, 0.1
          %v1667 = vmul.f32 %v1539, 0.1
          %v1668 = vmul.f32 %v1540, 0.1
          %v1669 = vmul.f32 %v1541, 0.1
          %v1670 = vmul.f32 %v1542, 0.1
          %v1671 = vmul.f32 %v1543, 0.1
          %v1672 = vmul.f32 %v1544, 0.1
          %v1673 = vmul.f32 %v1545, 0.1
          %v1674 = vmul.f32 %v1546, 0.1
          %v1675 = vmul.f32 %v1547, 0.1
          %v1676 = vmul.f32 %v1548, 0.1
          %v1677 = vmul.f32 %v1549, 0.1
          %v1678 = vmul.f32 %v1550, 0.1
          %v1679 = vmul.f32 %v1551, 0.1
          %v1680 = vmul.f32 %v1552, 0.1
          %v1681 = vmul.f32 %v1553, 0.1
          %v1682 = vsel %vm1554, %v1490, %v1618
          %v1683 = vsel %vm1555, %v1491, %v1619
          %v1684 = vsel %vm1556, %v1492, %v1620
          %v1685 = vsel %vm1557, %v1493, %v1621
          %v1686 = vsel %vm1558, %v1494, %v1622
          %v1687 = vsel %vm1559, %v1495, %v1623
          %v1688 = vsel %vm1560, %v1496, %v1624
          %v1689 = vsel %vm1561, %v1497, %v1625
          %v1690 = vsel %vm1562, %v1498, %v1626
          %v1691 = vsel %vm1563, %v1499, %v1627
          %v1692 = vsel %vm1564, %v1500, %v1628
          %v1693 = vsel %vm1565, %v1501, %v1629
          %v1694 = vsel %vm1566, %v1502, %v1630
          %v1695 = vsel %vm1567, %v1503, %v1631
          %v1696 = vsel %vm1568, %v1504, %v1632
          %v1697 = vsel %vm1569, %v1505, %v1633
          %v1698 = vsel %vm1570, %v1506, %v1634
          %v1699 = vsel %vm1571, %v1507, %v1635
          %v1700 = vsel %vm1572, %v1508, %v1636
          %v1701 = vsel %vm1573, %v1509, %v1637
          %v1702 = vsel %vm1574, %v1510, %v1638
          %v1703 = vsel %vm1575, %v1511, %v1639
          %v1704 = vsel %vm1576, %v1512, %v1640
          %v1705 = vsel %vm1577, %v1513, %v1641
          %v1706 = vsel %vm1578, %v1514, %v1642
          %v1707 = vsel %vm1579, %v1515, %v1643
          %v1708 = vsel %vm1580, %v1516, %v1644
          %v1709 = vsel %vm1581, %v1517, %v1645
          %v1710 = vsel %vm1582, %v1518, %v1646
          %v1711 = vsel %vm1583, %v1519, %v1647
          %v1712 = vsel %vm1584, %v1520, %v1648
          %v1713 = vsel %vm1585, %v1521, %v1649
          %v1714 = vsel %vm1586, %v1522, %v1650
          %v1715 = vsel %vm1587, %v1523, %v1651
          %v1716 = vsel %vm1588, %v1524, %v1652
          %v1717 = vsel %vm1589, %v1525, %v1653
          %v1718 = vsel %vm1590, %v1526, %v1654
          %v1719 = vsel %vm1591, %v1527, %v1655
          %v1720 = vsel %vm1592, %v1528, %v1656
          %v1721 = vsel %vm1593, %v1529, %v1657
          %v1722 = vsel %vm1594, %v1530, %v1658
          %v1723 = vsel %vm1595, %v1531, %v1659
          %v1724 = vsel %vm1596, %v1532, %v1660
          %v1725 = vsel %vm1597, %v1533, %v1661
          %v1726 = vsel %vm1598, %v1534, %v1662
          %v1727 = vsel %vm1599, %v1535, %v1663
          %v1728 = vsel %vm1600, %v1536, %v1664
          %v1729 = vsel %vm1601, %v1537, %v1665
          %v1730 = vsel %vm1602, %v1538, %v1666
          %v1731 = vsel %vm1603, %v1539, %v1667
          %v1732 = vsel %vm1604, %v1540, %v1668
          %v1733 = vsel %vm1605, %v1541, %v1669
          %v1734 = vsel %vm1606, %v1542, %v1670
          %v1735 = vsel %vm1607, %v1543, %v1671
          %v1736 = vsel %vm1608, %v1544, %v1672
          %v1737 = vsel %vm1609, %v1545, %v1673
          %v1738 = vsel %vm1610, %v1546, %v1674
          %v1739 = vsel %vm1611, %v1547, %v1675
          %v1740 = vsel %vm1612, %v1548, %v1676
          %v1741 = vsel %vm1613, %v1549, %v1677
          %v1742 = vsel %vm1614, %v1550, %v1678
          %v1743 = vsel %vm1615, %v1551, %v1679
          %v1744 = vsel %vm1616, %v1552, %v1680
          %v1745 = vsel %vm1617, %v1553, %v1681
          %v1746 = vpack.c.bf16 %v1683, %v1682
          %v1747 = vpack.c.bf16 %v1685, %v1684
          %v1748 = vpack.c.bf16 %v1687, %v1686
          %v1749 = vpack.c.bf16 %v1689, %v1688
          %v1750 = vpack.c.bf16 %v1691, %v1690
          %v1751 = vpack.c.bf16 %v1693, %v1692
          %v1752 = vpack.c.bf16 %v1695, %v1694
          %v1753 = vpack.c.bf16 %v1697, %v1696
          %v1754 = vpack.c.bf16 %v1699, %v1698
          %v1755 = vpack.c.bf16 %v1701, %v1700
          %v1756 = vpack.c.bf16 %v1703, %v1702
          %v1757 = vpack.c.bf16 %v1705, %v1704
          %v1758 = vpack.c.bf16 %v1707, %v1706
          %v1759 = vpack.c.bf16 %v1709, %v1708
          %v1760 = vpack.c.bf16 %v1711, %v1710
          %v1761 = vpack.c.bf16 %v1713, %v1712
          %v1762 = vpack.c.bf16 %v1715, %v1714
          %v1763 = vpack.c.bf16 %v1717, %v1716
          %v1764 = vpack.c.bf16 %v1719, %v1718
          %v1765 = vpack.c.bf16 %v1721, %v1720
          %v1766 = vpack.c.bf16 %v1723, %v1722
          %v1767 = vpack.c.bf16 %v1725, %v1724
          %v1768 = vpack.c.bf16 %v1727, %v1726
          %v1769 = vpack.c.bf16 %v1729, %v1728
          %v1770 = vpack.c.bf16 %v1731, %v1730
          %v1771 = vpack.c.bf16 %v1733, %v1732
          %v1772 = vpack.c.bf16 %v1735, %v1734
          %v1773 = vpack.c.bf16 %v1737, %v1736
          %v1774 = vpack.c.bf16 %v1739, %v1738
          %v1775 = vpack.c.bf16 %v1741, %v1740
          %v1776 = vpack.c.bf16 %v1743, %v1742
          %v1777 = vpack.c.bf16 %v1745, %v1744
          %v1810 = vunpack.c.l.b16 %v1746
          %v1811 = vunpack.c.h.b16 %v1746
          %v1812 = vunpack.c.l.b16 %v1747
          %v1813 = vunpack.c.h.b16 %v1747
          %v1814 = vunpack.c.l.b16 %v1748
          %v1815 = vunpack.c.h.b16 %v1748
          %v1816 = vunpack.c.l.b16 %v1749
          %v1817 = vunpack.c.h.b16 %v1749
          %v1818 = vunpack.c.l.b16 %v1750
          %v1819 = vunpack.c.h.b16 %v1750
          %v1820 = vunpack.c.l.b16 %v1751
          %v1821 = vunpack.c.h.b16 %v1751
          %v1822 = vunpack.c.l.b16 %v1752
          %v1823 = vunpack.c.h.b16 %v1752
          %v1824 = vunpack.c.l.b16 %v1753
          %v1825 = vunpack.c.h.b16 %v1753
          %v1826 = vunpack.c.l.b16 %v1754
          %v1827 = vunpack.c.h.b16 %v1754
          %v1828 = vunpack.c.l.b16 %v1755
          %v1829 = vunpack.c.h.b16 %v1755
          %v1830 = vunpack.c.l.b16 %v1756
          %v1831 = vunpack.c.h.b16 %v1756
          %v1832 = vunpack.c.l.b16 %v1757
          %v1833 = vunpack.c.h.b16 %v1757
          %v1834 = vunpack.c.l.b16 %v1758
          %v1835 = vunpack.c.h.b16 %v1758
          %v1836 = vunpack.c.l.b16 %v1759
          %v1837 = vunpack.c.h.b16 %v1759
          %v1838 = vunpack.c.l.b16 %v1760
          %v1839 = vunpack.c.h.b16 %v1760
          %v1840 = vunpack.c.l.b16 %v1761
          %v1841 = vunpack.c.h.b16 %v1761
          %v1842 = vunpack.c.l.b16 %v1762
          %v1843 = vunpack.c.h.b16 %v1762
          %v1844 = vunpack.c.l.b16 %v1763
          %v1845 = vunpack.c.h.b16 %v1763
          %v1846 = vunpack.c.l.b16 %v1764
          %v1847 = vunpack.c.h.b16 %v1764
          %v1848 = vunpack.c.l.b16 %v1765
          %v1849 = vunpack.c.h.b16 %v1765
          %v1850 = vunpack.c.l.b16 %v1766
          %v1851 = vunpack.c.h.b16 %v1766
          %v1852 = vunpack.c.l.b16 %v1767
          %v1853 = vunpack.c.h.b16 %v1767
          %v1854 = vunpack.c.l.b16 %v1768
          %v1855 = vunpack.c.h.b16 %v1768
          %v1856 = vunpack.c.l.b16 %v1769
          %v1857 = vunpack.c.h.b16 %v1769
          %v1858 = vunpack.c.l.b16 %v1770
          %v1859 = vunpack.c.h.b16 %v1770
          %v1860 = vunpack.c.l.b16 %v1771
          %v1861 = vunpack.c.h.b16 %v1771
          %v1862 = vunpack.c.l.b16 %v1772
          %v1863 = vunpack.c.h.b16 %v1772
          %v1864 = vunpack.c.l.b16 %v1773
          %v1865 = vunpack.c.h.b16 %v1773
          %v1866 = vunpack.c.l.b16 %v1774
          %v1867 = vunpack.c.h.b16 %v1774
          %v1868 = vunpack.c.l.b16 %v1775
          %v1869 = vunpack.c.h.b16 %v1775
          %v1870 = vunpack.c.l.b16 %v1776
          %v1871 = vunpack.c.h.b16 %v1776
          %v1872 = vunpack.c.l.b16 %v1777
          %v1873 = vunpack.c.h.b16 %v1777
          %v1874 = vpack.c.b16 %v1810, %v1810
          %v1875 = vpack.c.b16 %v1811, %v1811
          %v1876 = vpack.c.b16 %v1812, %v1812
          %v1877 = vpack.c.b16 %v1813, %v1813
          %v1878 = vpack.c.b16 %v1814, %v1814
          %v1879 = vpack.c.b16 %v1815, %v1815
          %v1880 = vpack.c.b16 %v1816, %v1816
          %v1881 = vpack.c.b16 %v1817, %v1817
          %v1882 = vpack.c.b16 %v1818, %v1818
          %v1883 = vpack.c.b16 %v1819, %v1819
          %v1884 = vpack.c.b16 %v1820, %v1820
          %v1885 = vpack.c.b16 %v1821, %v1821
          %v1886 = vpack.c.b16 %v1822, %v1822
          %v1887 = vpack.c.b16 %v1823, %v1823
          %v1888 = vpack.c.b16 %v1824, %v1824
          %v1889 = vpack.c.b16 %v1825, %v1825
          %v1890 = vpack.c.b16 %v1826, %v1826
          %v1891 = vpack.c.b16 %v1827, %v1827
          %v1892 = vpack.c.b16 %v1828, %v1828
          %v1893 = vpack.c.b16 %v1829, %v1829
          %v1894 = vpack.c.b16 %v1830, %v1830
          %v1895 = vpack.c.b16 %v1831, %v1831
          %v1896 = vpack.c.b16 %v1832, %v1832
          %v1897 = vpack.c.b16 %v1833, %v1833
          %v1898 = vpack.c.b16 %v1834, %v1834
          %v1899 = vpack.c.b16 %v1835, %v1835
          %v1900 = vpack.c.b16 %v1836, %v1836
          %v1901 = vpack.c.b16 %v1837, %v1837
          %v1902 = vpack.c.b16 %v1838, %v1838
          %v1903 = vpack.c.b16 %v1839, %v1839
          %v1904 = vpack.c.b16 %v1840, %v1840
          %v1905 = vpack.c.b16 %v1841, %v1841
          %v1906 = vpack.c.b16 %v1842, %v1842
          %v1907 = vpack.c.b16 %v1843, %v1843
          %v1908 = vpack.c.b16 %v1844, %v1844
          %v1909 = vpack.c.b16 %v1845, %v1845
          %v1910 = vpack.c.b16 %v1846, %v1846
          %v1911 = vpack.c.b16 %v1847, %v1847
          %v1912 = vpack.c.b16 %v1848, %v1848
          %v1913 = vpack.c.b16 %v1849, %v1849
          %v1914 = vpack.c.b16 %v1850, %v1850
          %v1915 = vpack.c.b16 %v1851, %v1851
          %v1916 = vpack.c.b16 %v1852, %v1852
          %v1917 = vpack.c.b16 %v1853, %v1853
          %v1918 = vpack.c.b16 %v1854, %v1854
          %v1919 = vpack.c.b16 %v1855, %v1855
          %v1920 = vpack.c.b16 %v1856, %v1856
          %v1921 = vpack.c.b16 %v1857, %v1857
          %v1922 = vpack.c.b16 %v1858, %v1858
          %v1923 = vpack.c.b16 %v1859, %v1859
          %v1924 = vpack.c.b16 %v1860, %v1860
          %v1925 = vpack.c.b16 %v1861, %v1861
          %v1926 = vpack.c.b16 %v1862, %v1862
          %v1927 = vpack.c.b16 %v1863, %v1863
          %v1928 = vpack.c.b16 %v1864, %v1864
          %v1929 = vpack.c.b16 %v1865, %v1865
          %v1930 = vpack.c.b16 %v1866, %v1866
          %v1931 = vpack.c.b16 %v1867, %v1867
          %v1932 = vpack.c.b16 %v1868, %v1868
          %v1933 = vpack.c.b16 %v1869, %v1869
          %v1934 = vpack.c.b16 %v1870, %v1870
          %v1935 = vpack.c.b16 %v1871, %v1871
          %v1936 = vpack.c.b16 %v1872, %v1872
          %v1937 = vpack.c.b16 %v1873, %v1873
          %2002 = vst [vmem:[%s543] sm:$0xf] %v1874
          %2003 = vst [vmem:[%s543 + $0x4] sm:$0xf] %v1875
          %2004 = vst [vmem:[%s543 + $0x8] sm:$0xf] %v1876
          %2005 = vst [vmem:[%s543 + $0xc] sm:$0xf] %v1877
          %2006 = vst [vmem:[%s543 + $0x10] sm:$0xf] %v1878
          %2007 = vst [vmem:[%s543 + $0x14] sm:$0xf] %v1879
          %2008 = vst [vmem:[%s543 + $0x18] sm:$0xf] %v1880
          %2009 = vst [vmem:[%s543 + $0x1c] sm:$0xf] %v1881
          %2010 = vst [vmem:[%s543 + $0x20] sm:$0xf] %v1882
          %2011 = vst [vmem:[%s543 + $0x24] sm:$0xf] %v1883
          %2012 = vst [vmem:[%s543 + $0x28] sm:$0xf] %v1884
          %2013 = vst [vmem:[%s543 + $0x2c] sm:$0xf] %v1885
          %2014 = vst [vmem:[%s543 + $0x30] sm:$0xf] %v1886
          %2015 = vst [vmem:[%s543 + $0x34] sm:$0xf] %v1887
          %2016 = vst [vmem:[%s543 + $0x38] sm:$0xf] %v1888
          %2017 = vst [vmem:[%s543 + $0x3c] sm:$0xf] %v1889
          %2018 = vst [vmem:[%s543 + $0x40] sm:$0xf] %v1890
          %2019 = vst [vmem:[%s543 + $0x44] sm:$0xf] %v1891
          %2020 = vst [vmem:[%s543 + $0x48] sm:$0xf] %v1892
          %2021 = vst [vmem:[%s543 + $0x4c] sm:$0xf] %v1893
          %2022 = vst [vmem:[%s543 + $0x50] sm:$0xf] %v1894
          %2023 = vst [vmem:[%s543 + $0x54] sm:$0xf] %v1895
          %2024 = vst [vmem:[%s543 + $0x58] sm:$0xf] %v1896
          %2025 = vst [vmem:[%s543 + $0x5c] sm:$0xf] %v1897
          %2026 = vst [vmem:[%s543 + $0x60] sm:$0xf] %v1898
          %2027 = vst [vmem:[%s543 + $0x64] sm:$0xf] %v1899
          %2028 = vst [vmem:[%s543 + $0x68] sm:$0xf] %v1900
          %2029 = vst [vmem:[%s543 + $0x6c] sm:$0xf] %v1901
          %2030 = vst [vmem:[%s543 + $0x70] sm:$0xf] %v1902
          %2031 = vst [vmem:[%s543 + $0x74] sm:$0xf] %v1903
          %2032 = vst [vmem:[%s543 + $0x78] sm:$0xf] %v1904
          %2033 = vst [vmem:[%s543 + $0x7c] sm:$0xf] %v1905
          %2034 = vst [vmem:[%s543 + $0x80] sm:$0xf] %v1906
          %2035 = vst [vmem:[%s543 + $0x84] sm:$0xf] %v1907
          %2036 = vst [vmem:[%s543 + $0x88] sm:$0xf] %v1908
          %2037 = vst [vmem:[%s543 + $0x8c] sm:$0xf] %v1909
          %2038 = vst [vmem:[%s543 + $0x90] sm:$0xf] %v1910
          %2039 = vst [vmem:[%s543 + $0x94] sm:$0xf] %v1911
          %2040 = vst [vmem:[%s543 + $0x98] sm:$0xf] %v1912
          %2041 = vst [vmem:[%s543 + $0x9c] sm:$0xf] %v1913
          %2042 = vst [vmem:[%s543 + $0xa0] sm:$0xf] %v1914
          %2043 = vst [vmem:[%s543 + $0xa4] sm:$0xf] %v1915
          %2044 = vst [vmem:[%s543 + $0xa8] sm:$0xf] %v1916
          %2045 = vst [vmem:[%s543 + $0xac] sm:$0xf] %v1917
          %2046 = vst [vmem:[%s543 + $0xb0] sm:$0xf] %v1918
          %2047 = vst [vmem:[%s543 + $0xb4] sm:$0xf] %v1919
          %2048 = vst [vmem:[%s543 + $0xb8] sm:$0xf] %v1920
          %2049 = vst [vmem:[%s543 + $0xbc] sm:$0xf] %v1921
          %2050 = vst [vmem:[%s543 + $0xc0] sm:$0xf] %v1922
          %2051 = vst [vmem:[%s543 + $0xc4] sm:$0xf] %v1923
          %2052 = vst [vmem:[%s543 + $0xc8] sm:$0xf] %v1924
          %2053 = vst [vmem:[%s543 + $0xcc] sm:$0xf] %v1925
          %2054 = vst [vmem:[%s543 + $0xd0] sm:$0xf] %v1926
          %2055 = vst [vmem:[%s543 + $0xd4] sm:$0xf] %v1927
          %2056 = vst [vmem:[%s543 + $0xd8] sm:$0xf] %v1928
          %2057 = vst [vmem:[%s543 + $0xdc] sm:$0xf] %v1929
          %2058 = vst [vmem:[%s543 + $0xe0] sm:$0xf] %v1930
          %2059 = vst [vmem:[%s543 + $0xe4] sm:$0xf] %v1931
          %2060 = vst [vmem:[%s543 + $0xe8] sm:$0xf] %v1932
          %2061 = vst [vmem:[%s543 + $0xec] sm:$0xf] %v1933
          %2062 = vst [vmem:[%s543 + $0xf0] sm:$0xf] %v1934
          %2063 = vst [vmem:[%s543 + $0xf4] sm:$0xf] %v1935
          %2064 = vst [vmem:[%s543 + $0xf8] sm:$0xf] %v1936
          %2065 = vst [vmem:[%s543 + $0xfc] sm:$0xf] %v1937
        $region81: #{_lambda_.23} parent=68 // pred_fallthru
          _
        %s2066 = smul.u32 64, %s19
        %p2067 = scmp.lt.s32.totalorder %s2066, 63
        %s2068 = scalar_select %p2067, %s2066, 63
        %p2069 = scmp.lt.s32.totalorder %s20, 0
        %s2070 = scalar_select %p2069, %s20, 0
        %s2071 = sadd.s32 %s2070, %s2068
        %s2072 = smul.addr %s2071, 4
        %s2073 = scalar_lea.vmem %s3, %s2072
        // Predicated region
        $region82: #{_lambda_.23} parent=68 // pred_check
          %p2074 = pneg %p135
        $region83: #{_lambda_.23} parent=68 // pred_check_branch
          %2076 = sbr.rel (%p2074) target = $region85
        $region84: #{_lambda_.23} parent=68 // pred_region
          %s2077 = smul.u32 64, %s19
        $region85: #{_lambda_.23} parent=68 // pred_fallthru
          _
        // Predicated region
        $region86: #{_lambda_.23} parent=68 // pred_check
          %p2078 = pneg %p135
        $region87: #{_lambda_.23} parent=68 // pred_check_branch
          %2080 = sbr.rel (%p2078) target = $region89
        $region88: #{_lambda_.23} parent=68 // pred_region
          %s2081 = smul.u32 64, %s19
          %p2082 = scmp.lt.s32.totalorder %s2081, 63
          %s2083 = scalar_select %p2082, %s2081, 63
          %p2084 = scmp.lt.s32.totalorder %s20, 0
          %s2085 = scalar_select %p2084, %s20, 0
          %s2086 = sadd.s32 %s2085, %s2083
          %s2087 = smul.addr %s2086, 4
          %s2088 = scalar_lea.vmem %s3, %s2087
        $region89: #{_lambda_.23} parent=68 // pred_fallthru
          _
      $region69: #{_lambda_.23} parent=5 // pred_fallthru
        _
      %p2089 = scmp.le.s32.totalorder 2, %s9
      // Predicated region
      $region90: #{_lambda_.23} parent=5 // pred_check
        %p2090 = pneg %p2089
      $region91: #{_lambda_.23} parent=5 // pred_check_branch
        %2092 = sbr.rel (%p2090) target = $region93
      $region92: #{_lambda_.23} parent=5 // pred_region
        %s2093 = ssub.s32 %s9, 2
      $region93: #{_lambda_.23} parent=5 // pred_fallthru
        _
    $region6: #{_lambda_.23} parent=1 // loop_footer
      %s13 = sadd.s32 1, %s9
    $region7: #{_lambda_.23} parent=1 // loop_footer_branch
      %8 = sbr.rel target = $region3
    $region8: #{_lambda_.23} parent=1 // loop_exit
      _

// kernel: _lambda_.25
$region0: #{_lambda_.25}
  #allocation0 [shape = 'u32[]', space=smem, size = 0x4, offset = 0x4, fixed_abs, tag = 'smem constant byte address 0x4 - core index']
  #allocation1 [shape = 'u32[144,128]{1,0:T(1,128)}', space=vmem, size = 0x12000, scoped, tag = 'internal scratch']
  %s0 = inlined_call_operand.vmem [shape: bf16[6,16,16,128], index: 0, kind: input, shape index: {}]
  %s1 = inlined_call_operand.vmem [shape: f32[6,16,16,128], index: 1, kind: output, shape index: {}]
  %s2 = sld [smem:[#allocation0]]
  $region37: #{_lambda_.25} parent=0
    _
  %s4 = ssub.s32 1, %s2
  %s5 = scalar_select 0, %s4, %s2
  loop: start=0, step=1, limit=8
  $region2: #{_lambda_.25} parent=0 // loop_pre_header
    _
  $region3: #{_lambda_.25} parent=0 // loop_header
    %s7 = sphi 0, %s11
    %p8 = scmp.ge.s32.totalorder %s7, 8
    %s17 = sphi 0, %s19
    %s20 = sphi 0, %s17
    %s21 = sphi 0, %s20
    %s37 = sphi 0, %s21
    %s43 = sphi 0, %s45
    %s46 = sphi 0, %s43
    %s47 = sphi 0, %s46
    %s63 = sphi 0, %s47
  $region4: #{_lambda_.25} parent=0 // loop_header_branch
    %10 = sbr.rel (%p8) target = $region8
  $region5: #{_lambda_.25} parent=0 // loop_body
    %s12 = ssub.s32 %s7, 1
    %s13 = ssub.s32 %s7, 2
    %s14 = sadd.s32 %s7, 1
    %s15 = ssub.s32 %s7, %s14
    %p16 = scmp.eq.s32.totalorder %s15, 0
    %s18 = sadd.s32 %s17, 1
    %s19 = scalar_select %p16, %s17, %s18
    %p22 = pneg %p16
    %p23 = scmp.eq.s32.totalorder %s7, 5
    %p24 = por %p22, %p23
    %p25 = scmp.ne.s32.totalorder %s17, %s20
    %p26 = scmp.eq.s32.totalorder %s7, 0
    %p27 = por %p25, %p26
    %p28 = scmp.ne.s32.totalorder %s17, %s20
    %p29 = scmp.eq.s32.totalorder %s12, 5
    %p30 = por %p28, %p29
    %p31 = scmp.ne.s32.totalorder %s20, %s21
    %p32 = scmp.eq.s32.totalorder %s12, 0
    %p33 = por %p31, %p32
    %p34 = scmp.ne.s32.totalorder %s20, %s21
    %p35 = scmp.eq.s32.totalorder %s13, 5
    %p36 = por %p34, %p35
    %p38 = scmp.ne.s32.totalorder %s21, %s37
    %p39 = scmp.eq.s32.totalorder %s13, 0
    %p40 = por %p38, %p39
    %s41 = ssub.s32 %s7, %s14
    %p42 = scmp.eq.s32.totalorder %s41, 0
    %s44 = sadd.s32 %s43, 1
    %s45 = scalar_select %p42, %s43, %s44
    %p48 = pneg %p42
    %p49 = scmp.eq.s32.totalorder %s7, 5
    %p50 = por %p48, %p49
    %p51 = scmp.ne.s32.totalorder %s43, %s46
    %p52 = scmp.eq.s32.totalorder %s7, 0
    %p53 = por %p51, %p52
    %p54 = scmp.ne.s32.totalorder %s43, %s46
    %p55 = scmp.eq.s32.totalorder %s12, 5
    %p56 = por %p54, %p55
    %p57 = scmp.ne.s32.totalorder %s46, %s47
    %p58 = scmp.eq.s32.totalorder %s12, 0
    %p59 = por %p57, %p58
    %p60 = scmp.ne.s32.totalorder %s46, %s47
    %p61 = scmp.eq.s32.totalorder %s13, 5
    %p62 = por %p60, %p61
    %p64 = scmp.ne.s32.totalorder %s47, %s63
    %p65 = scmp.eq.s32.totalorder %s13, 0
    %p66 = por %p64, %p65
    %p67 = scmp.le.s32.totalorder 1, %s7
    %p68 = scmp.lt.s32.totalorder %s7, 7
    %p69 = pnand %p67, %p68
    %p70 = pneg %p69
    // Predicated region
    $region9: #{_lambda_.25} parent=5 // pred_check
      _
    $region10: #{_lambda_.25} parent=5 // pred_check_branch
      %72 = sbr.rel (%p69) target = $region12
    $region11: #{_lambda_.25} parent=5 // pred_region
      %s73 = ssub.s32 %s7, 1
    $region12: #{_lambda_.25} parent=5 // pred_fallthru
      _
    %p74 = scmp.lt.s32.totalorder %s7, 6
    // Predicated region
    $region13: #{_lambda_.25} parent=5 // pred_check
      %p75 = pneg %p74
    $region14: #{_lambda_.25} parent=5 // pred_check_branch
      %77 = sbr.rel (%p75) target = $region16
    $region15: #{_lambda_.25} parent=5 // pred_region
      // Predicated region
      $region17: #{_lambda_.25} parent=15 // pred_check
        %p78 = pneg %p27
      $region18: #{_lambda_.25} parent=15 // pred_check_branch
        %80 = sbr.rel (%p78) target = $region20
      $region19: #{_lambda_.25} parent=15 // pred_region
        %p81 = scmp.lt.s32.totalorder %s7, 5
        %s82 = scalar_select %p81, %s7, 5
        %s83 = smul.addr %s82, 32
        %s84 = smul.addr %s83, 4
        %s85 = scalar_lea.vmem %s0, %s84
      $region20: #{_lambda_.25} parent=15 // pred_fallthru
        _
    $region16: #{_lambda_.25} parent=5 // pred_fallthru
      _
    %p86 = scmp.le.s32.totalorder 1, %s7
    %p87 = scmp.lt.s32.totalorder %s7, 7
    %p88 = pnand %p86, %p87
    %p89 = pneg %p88
    // Predicated region
    $region21: #{_lambda_.25} parent=5 // pred_check
      _
    $region22: #{_lambda_.25} parent=5 // pred_check_branch
      %91 = sbr.rel (%p88) target = $region24
    $region23: #{_lambda_.25} parent=5 // pred_region
      %s92 = ssub.s32 %s7, 1
      %p93 = scmp.lt.s32.totalorder %s12, 5
      %s94 = scalar_select %p93, %s12, 5
      %s95 = smul.addr %s94, 32
      %s96 = smul.addr %s95, 4
      %s97 = scalar_lea.vmem %s0, %s96
      %p98 = pneg %p33
      %p99 = pneg %p30
      %p100 = pneg %p59
      %p101 = pneg %p56
      %p102 = scmp.lt.s32.totalorder %s12, 5
      %s103 = scalar_select %p102, %s12, 5
      %s104 = smul.addr %s103, 32
      %s105 = smul.addr %s104, 8
      %s106 = scalar_lea.vmem %s1, %s105
      %p107 = scmp.lt.s32.totalorder %s12, 5
      %s108 = scalar_select %p107, %s12, 5
      %s109 = smul.addr %s108, 32
      %s110 = smul.addr %s109, 4
      %s111 = scalar_lea.vmem %s0, %s110
      %p112 = scmp.lt.s32.totalorder %s12, 5
      %s113 = scalar_select %p112, %s12, 5
      %s114 = smul.addr %s113, 32
      %s115 = smul.addr %s114, 8
      %s116 = scalar_lea.vmem %s1, %s115
      %p117 = scmp.lt.s32.totalorder %s12, 0
      %s118 = ssub.s32 0, %s12
      %s119 = scalar_select %p117, %s118, %s12
      %s120 = sdiv.u32.pop %s119, 3
      %s121 = srem.u32.pop %s119, 3
      %s122 = ssub.s32 0, %s121
      %s123 = scalar_select %p117, %s122, %s121
      %p124 = scmp.ne.s32.totalorder %s123, 0
      %p125 = scmp.lt.s32.totalorder %s123, 0
      %p126 = pnand %p125, %p124
      %p127 = pneg %p126
      %s128 = sadd.s32 %s123, 3
      %s129 = scalar_select %p127, %s128, %s123
      %v130 = vld [vmem:[%s111] sm:$0xf]
      %v131 = vld [vmem:[%s111 + $0x4] sm:$0xf]
      %v132 = vld [vmem:[%s111 + $0x8] sm:$0xf]
      %v133 = vld [vmem:[%s111 + $0xc] sm:$0xf]
      %v134 = vld [vmem:[%s111 + $0x10] sm:$0xf]
      %v135 = vld [vmem:[%s111 + $0x14] sm:$0xf]
      %v136 = vld [vmem:[%s111 + $0x18] sm:$0xf]
      %v137 = vld [vmem:[%s111 + $0x1c] sm:$0xf]
      %v138 = vld [vmem:[%s111 + $0x20] sm:$0xf]
      %v139 = vld [vmem:[%s111 + $0x24] sm:$0xf]
      %v140 = vld [vmem:[%s111 + $0x28] sm:$0xf]
      %v141 = vld [vmem:[%s111 + $0x2c] sm:$0xf]
      %v142 = vld [vmem:[%s111 + $0x30] sm:$0xf]
      %v143 = vld [vmem:[%s111 + $0x34] sm:$0xf]
      %v144 = vld [vmem:[%s111 + $0x38] sm:$0xf]
      %v145 = vld [vmem:[%s111 + $0x3c] sm:$0xf]
      %v146 = vld [vmem:[%s111 + $0x40] sm:$0xf]
      %v147 = vld [vmem:[%s111 + $0x44] sm:$0xf]
      %v148 = vld [vmem:[%s111 + $0x48] sm:$0xf]
      %v149 = vld [vmem:[%s111 + $0x4c] sm:$0xf]
      %v150 = vld [vmem:[%s111 + $0x50] sm:$0xf]
      %v151 = vld [vmem:[%s111 + $0x54] sm:$0xf]
      %v152 = vld [vmem:[%s111 + $0x58] sm:$0xf]
      %v153 = vld [vmem:[%s111 + $0x5c] sm:$0xf]
      %v154 = vld [vmem:[%s111 + $0x60] sm:$0xf]
      %v155 = vld [vmem:[%s111 + $0x64] sm:$0xf]
      %v156 = vld [vmem:[%s111 + $0x68] sm:$0xf]
      %v157 = vld [vmem:[%s111 + $0x6c] sm:$0xf]
      %v158 = vld [vmem:[%s111 + $0x70] sm:$0xf]
      %v159 = vld [vmem:[%s111 + $0x74] sm:$0xf]
      %v160 = vld [vmem:[%s111 + $0x78] sm:$0xf]
      %v161 = vld [vmem:[%s111 + $0x7c] sm:$0xf]
      %v162 = vunpack.c.l.bf16 %v130
      %v163 = vunpack.c.l.bf16 %v131
      %v164 = vunpack.c.l.bf16 %v132
      %v165 = vunpack.c.l.bf16 %v133
      %v166 = vunpack.c.l.bf16 %v134
      %v167 = vunpack.c.l.bf16 %v135
      %v168 = vunpack.c.l.bf16 %v136
      %v169 = vunpack.c.l.bf16 %v137
      %v170 = vunpack.c.l.bf16 %v138
      %v171 = vunpack.c.l.bf16 %v139
      %v172 = vunpack.c.l.bf16 %v140
      %v173 = vunpack.c.l.bf16 %v141
      %v174 = vunpack.c.l.bf16 %v142
      %v175 = vunpack.c.l.bf16 %v143
      %v176 = vunpack.c.l.bf16 %v144
      %v177 = vunpack.c.l.bf16 %v145
      %v178 = vunpack.c.l.bf16 %v146
      %v179 = vunpack.c.l.bf16 %v147
      %v180 = vunpack.c.l.bf16 %v148
      %v181 = vunpack.c.l.bf16 %v149
      %v182 = vunpack.c.l.bf16 %v150
      %v183 = vunpack.c.l.bf16 %v151
      %v184 = vunpack.c.l.bf16 %v152
      %v185 = vunpack.c.l.bf16 %v153
      %v186 = vunpack.c.l.bf16 %v154
      %v187 = vunpack.c.l.bf16 %v155
      %v188 = vunpack.c.l.bf16 %v156
      %v189 = vunpack.c.l.bf16 %v157
      %v190 = vunpack.c.l.bf16 %v158
      %v191 = vunpack.c.l.bf16 %v159
      %v192 = vunpack.c.l.bf16 %v160
      %v193 = vunpack.c.l.bf16 %v161
      %v194 = vlaneseq
      %v195 = vand.u32 %v194, 127
      %v196 = vcvt.s32.f32 0
      %v197 = vcvt.s32.f32 1
      %v198 = vcvt.s32.f32 2
      %v199 = vcvt.s32.f32 3
      %v200 = vcvt.s32.f32 4
      %v201 = vcvt.s32.f32 5
      %v202 = vcvt.s32.f32 6
      %v203 = vcvt.s32.f32 7
      %v204 = vcvt.s32.f32 8
      %v205 = vcvt.s32.f32 9
      %v206 = vcvt.s32.f32 10
      %v207 = vcvt.s32.f32 11
      %v208 = vcvt.s32.f32 12
      %v209 = vcvt.s32.f32 13
      %v210 = vcvt.s32.f32 14
      %v211 = vcvt.s32.f32 15
      %v212 = vlaneseq
      %v213 = vshrl.u32 %v212, 7
      %v214 = vadd.s32 %v213, 8
      %v215 = vcvt.s32.f32 %v213
      %v216 = vcvt.s32.f32 %v214
      %v217 = vmul.f32 %v162, 1.442695
      %v218 = vpow.pop %v217
      %v219 = vmul.f32 %v163, 1.442695
      %v220 = vpow.pop %v219
      %v221 = vmul.f32 %v164, 1.442695
      %v222 = vpow.pop %v221
      %v223 = vmul.f32 %v165, 1.442695
      %v224 = vpow.pop %v223
      %v225 = vmul.f32 %v166, 1.442695
      %v226 = vpow.pop %v225
      %v227 = vmul.f32 %v167, 1.442695
      %v228 = vpow.pop %v227
      %v229 = vmul.f32 %v168, 1.442695
      %v230 = vpow.pop %v229
      %v231 = vmul.f32 %v169, 1.442695
      %v232 = vpow.pop %v231
      %v233 = vmul.f32 %v170, 1.442695
      %v234 = vpow.pop %v233
      %v235 = vmul.f32 %v171, 1.442695
      %v236 = vpow.pop %v235
      %v237 = vmul.f32 %v172, 1.442695
      %v238 = vpow.pop %v237
      %v239 = vmul.f32 %v173, 1.442695
      %v240 = vpow.pop %v239
      %v241 = vmul.f32 %v174, 1.442695
      %v242 = vpow.pop %v241
      %v243 = vmul.f32 %v175, 1.442695
      %v244 = vpow.pop %v243
      %v245 = vmul.f32 %v176, 1.442695
      %v246 = vpow.pop %v245
      %v247 = vmul.f32 %v177, 1.442695
      %v248 = vpow.pop %v247
      %v249 = vmul.f32 %v178, 1.442695
      %v250 = vpow.pop %v249
      %v251 = vmul.f32 %v179, 1.442695
      %v252 = vpow.pop %v251
      %v253 = vmul.f32 %v180, 1.442695
      %v254 = vpow.pop %v253
      %v255 = vmul.f32 %v181, 1.442695
      %v256 = vpow.pop %v255
      %v257 = vmul.f32 %v182, 1.442695
      %v258 = vpow.pop %v257
      %v259 = vmul.f32 %v183, 1.442695
      %v260 = vpow.pop %v259
      %v261 = vmul.f32 %v184, 1.442695
      %v262 = vpow.pop %v261
      %v263 = vmul.f32 %v185, 1.442695
      %v264 = vpow.pop %v263
      %v265 = vmul.f32 %v186, 1.442695
      %v266 = vpow.pop %v265
      %v267 = vmul.f32 %v187, 1.442695
      %v268 = vpow.pop %v267
      %v269 = vmul.f32 %v188, 1.442695
      %v270 = vpow.pop %v269
      %v271 = vmul.f32 %v189, 1.442695
      %v272 = vpow.pop %v271
      %v273 = vmul.f32 %v190, 1.442695
      %v274 = vpow.pop %v273
      %v275 = vmul.f32 %v191, 1.442695
      %v276 = vpow.pop %v275
      %v277 = vmul.f32 %v192, 1.442695
      %v278 = vpow.pop %v277
      %v279 = vmul.f32 %v193, 1.442695
      %v280 = vpow.pop %v279
      %v281 = vadd.f32 %v218, 1.0
      %v282 = vadd.f32 %v220, 1.0
      %v283 = vadd.f32 %v222, 1.0
      %v284 = vadd.f32 %v224, 1.0
      %v285 = vadd.f32 %v226, 1.0
      %v286 = vadd.f32 %v228, 1.0
      %v287 = vadd.f32 %v230, 1.0
      %v288 = vadd.f32 %v232, 1.0
      %v289 = vadd.f32 %v234, 1.0
      %v290 = vadd.f32 %v236, 1.0
      %v291 = vadd.f32 %v238, 1.0
      %v292 = vadd.f32 %v240, 1.0
      %v293 = vadd.f32 %v242, 1.0
      %v294 = vadd.f32 %v244, 1.0
      %v295 = vadd.f32 %v246, 1.0
      %v296 = vadd.f32 %v248, 1.0
      %v297 = vadd.f32 %v250, 1.0
      %v298 = vadd.f32 %v252, 1.0
      %v299 = vadd.f32 %v254, 1.0
      %v300 = vadd.f32 %v256, 1.0
      %v301 = vadd.f32 %v258, 1.0
      %v302 = vadd.f32 %v260, 1.0
      %v303 = vadd.f32 %v262, 1.0
      %v304 = vadd.f32 %v264, 1.0
      %v305 = vadd.f32 %v266, 1.0
      %v306 = vadd.f32 %v268, 1.0
      %v307 = vadd.f32 %v270, 1.0
      %v308 = vadd.f32 %v272, 1.0
      %v309 = vadd.f32 %v274, 1.0
      %v310 = vadd.f32 %v276, 1.0
      %v311 = vadd.f32 %v278, 1.0
      %v312 = vadd.f32 %v280, 1.0
      %v313 = vrcp.pop %v281
      %v314 = vrcp.pop %v282
      %v315 = vrcp.pop %v283
      %v316 = vrcp.pop %v284
      %v317 = vrcp.pop %v285
      %v318 = vrcp.pop %v286
      %v319 = vrcp.pop %v287
      %v320 = vrcp.pop %v288
      %v321 = vrcp.pop %v289
      %v322 = vrcp.pop %v290
      %v323 = vrcp.pop %v291
      %v324 = vrcp.pop %v292
      %v325 = vrcp.pop %v293
      %v326 = vrcp.pop %v294
      %v327 = vrcp.pop %v295
      %v328 = vrcp.pop %v296
      %v329 = vrcp.pop %v297
      %v330 = vrcp.pop %v298
      %v331 = vrcp.pop %v299
      %v332 = vrcp.pop %v300
      %v333 = vrcp.pop %v301
      %v334 = vrcp.pop %v302
      %v335 = vrcp.pop %v303
      %v336 = vrcp.pop %v304
      %v337 = vrcp.pop %v305
      %v338 = vrcp.pop %v306
      %v339 = vrcp.pop %v307
      %v340 = vrcp.pop %v308
      %v341 = vrcp.pop %v309
      %v342 = vrcp.pop %v310
      %v343 = vrcp.pop %v311
      %v344 = vrcp.pop %v312
      %v345 = vmul.f32 %v218, %v313
      %v346 = vmul.f32 %v220, %v314
      %v347 = vmul.f32 %v222, %v315
      %v348 = vmul.f32 %v224, %v316
      %v349 = vmul.f32 %v226, %v317
      %v350 = vmul.f32 %v228, %v318
      %v351 = vmul.f32 %v230, %v319
      %v352 = vmul.f32 %v232, %v320
      %v353 = vmul.f32 %v234, %v321
      %v354 = vmul.f32 %v236, %v322
      %v355 = vmul.f32 %v238, %v323
      %v356 = vmul.f32 %v240, %v324
      %v357 = vmul.f32 %v242, %v325
      %v358 = vmul.f32 %v244, %v326
      %v359 = vmul.f32 %v246, %v327
      %v360 = vmul.f32 %v248, %v328
      %v361 = vmul.f32 %v250, %v329
      %v362 = vmul.f32 %v252, %v330
      %v363 = vmul.f32 %v254, %v331
      %v364 = vmul.f32 %v256, %v332
      %v365 = vmul.f32 %v258, %v333
      %v366 = vmul.f32 %v260, %v334
      %v367 = vmul.f32 %v262, %v335
      %v368 = vmul.f32 %v264, %v336
      %v369 = vmul.f32 %v266, %v337
      %v370 = vmul.f32 %v268, %v338
      %v371 = vmul.f32 %v270, %v339
      %v372 = vmul.f32 %v272, %v340
      %v373 = vmul.f32 %v274, %v341
      %v374 = vmul.f32 %v276, %v342
      %v375 = vmul.f32 %v278, %v343
      %v376 = vmul.f32 %v280, %v344
      %vm377 = vcmp.gt.f32.partialorder %v162, 15.0
      %vm378 = vcmp.gt.f32.partialorder %v163, 15.0
      %vm379 = vcmp.gt.f32.partialorder %v164, 15.0
      %vm380 = vcmp.gt.f32.partialorder %v165, 15.0
      %vm381 = vcmp.gt.f32.partialorder %v166, 15.0
      %vm382 = vcmp.gt.f32.partialorder %v167, 15.0
      %vm383 = vcmp.gt.f32.partialorder %v168, 15.0
      %vm384 = vcmp.gt.f32.partialorder %v169, 15.0
      %vm385 = vcmp.gt.f32.partialorder %v170, 15.0
      %vm386 = vcmp.gt.f32.partialorder %v171, 15.0
      %vm387 = vcmp.gt.f32.partialorder %v172, 15.0
      %vm388 = vcmp.gt.f32.partialorder %v173, 15.0
      %vm389 = vcmp.gt.f32.partialorder %v174, 15.0
      %vm390 = vcmp.gt.f32.partialorder %v175, 15.0
      %vm391 = vcmp.gt.f32.partialorder %v176, 15.0
      %vm392 = vcmp.gt.f32.partialorder %v177, 15.0
      %vm393 = vcmp.gt.f32.partialorder %v178, 15.0
      %vm394 = vcmp.gt.f32.partialorder %v179, 15.0
      %vm395 = vcmp.gt.f32.partialorder %v180, 15.0
      %vm396 = vcmp.gt.f32.partialorder %v181, 15.0
      %vm397 = vcmp.gt.f32.partialorder %v182, 15.0
      %vm398 = vcmp.gt.f32.partialorder %v183, 15.0
      %vm399 = vcmp.gt.f32.partialorder %v184, 15.0
      %vm400 = vcmp.gt.f32.partialorder %v185, 15.0
      %vm401 = vcmp.gt.f32.partialorder %v186, 15.0
      %vm402 = vcmp.gt.f32.partialorder %v187, 15.0
      %vm403 = vcmp.gt.f32.partialorder %v188, 15.0
      %vm404 = vcmp.gt.f32.partialorder %v189, 15.0
      %vm405 = vcmp.gt.f32.partialorder %v190, 15.0
      %vm406 = vcmp.gt.f32.partialorder %v191, 15.0
      %vm407 = vcmp.gt.f32.partialorder %v192, 15.0
      %vm408 = vcmp.gt.f32.partialorder %v193, 15.0
      %v409 = vsel %vm377, 1.0, %v345
      %v410 = vsel %vm378, 1.0, %v346
      %v411 = vsel %vm379, 1.0, %v347
      %v412 = vsel %vm380, 1.0, %v348
      %v413 = vsel %vm381, 1.0, %v349
      %v414 = vsel %vm382, 1.0, %v350
      %v415 = vsel %vm383, 1.0, %v351
      %v416 = vsel %vm384, 1.0, %v352
      %v417 = vsel %vm385, 1.0, %v353
      %v418 = vsel %vm386, 1.0, %v354
      %v419 = vsel %vm387, 1.0, %v355
      %v420 = vsel %vm388, 1.0, %v356
      %v421 = vsel %vm389, 1.0, %v357
      %v422 = vsel %vm390, 1.0, %v358
      %v423 = vsel %vm391, 1.0, %v359
      %v424 = vsel %vm392, 1.0, %v360
      %v425 = vsel %vm393, 1.0, %v361
      %v426 = vsel %vm394, 1.0, %v362
      %v427 = vsel %vm395, 1.0, %v363
      %v428 = vsel %vm396, 1.0, %v364
      %v429 = vsel %vm397, 1.0, %v365
      %v430 = vsel %vm398, 1.0, %v366
      %v431 = vsel %vm399, 1.0, %v367
      %v432 = vsel %vm400, 1.0, %v368
      %v433 = vsel %vm401, 1.0, %v369
      %v434 = vsel %vm402, 1.0, %v370
      %v435 = vsel %vm403, 1.0, %v371
      %v436 = vsel %vm404, 1.0, %v372
      %v437 = vsel %vm405, 1.0, %v373
      %v438 = vsel %vm406, 1.0, %v374
      %v439 = vsel %vm407, 1.0, %v375
      %v440 = vsel %vm408, 1.0, %v376
      %p441 = scmp.eq.s32.totalorder %s129, 0
      %s442 = scalar_select %p441, 1.0, 3.0
      %s443 = scalar_select %p441, 1.5, 4.0
      %p444 = scmp.eq.s32.totalorder %s129, 1
      %s445 = scalar_select %p444, 2.0, %s442
      %s446 = scalar_select %p444, 2.5, %s443
      %vm447 = vcmp.eq.s32.totalorder %v195, 0
      %v448 = vadd.f32 %v409, %v215
      %v449 = vadd.f32 %v410, %v216
      %v450 = vadd.f32 %v411, %v215
      %v451 = vadd.f32 %v412, %v216
      %v452 = vadd.f32 %v413, %v215
      %v453 = vadd.f32 %v414, %v216
      %v454 = vadd.f32 %v415, %v215
      %v455 = vadd.f32 %v416, %v216
      %v456 = vadd.f32 %v417, %v215
      %v457 = vadd.f32 %v418, %v216
      %v458 = vadd.f32 %v419, %v215
      %v459 = vadd.f32 %v420, %v216
      %v460 = vadd.f32 %v421, %v215
      %v461 = vadd.f32 %v422, %v216
      %v462 = vadd.f32 %v423, %v215
      %v463 = vadd.f32 %v424, %v216
      %v464 = vadd.f32 %v425, %v215
      %v465 = vadd.f32 %v426, %v216
      %v466 = vadd.f32 %v427, %v215
      %v467 = vadd.f32 %v428, %v216
      %v468 = vadd.f32 %v429, %v215
      %v469 = vadd.f32 %v430, %v216
      %v470 = vadd.f32 %v431, %v215
      %v471 = vadd.f32 %v432, %v216
      %v472 = vadd.f32 %v433, %v215
      %v473 = vadd.f32 %v434, %v216
      %v474 = vadd.f32 %v435, %v215
      %v475 = vadd.f32 %v436, %v216
      %v476 = vadd.f32 %v437, %v215
      %v477 = vadd.f32 %v438, %v216
      %v478 = vadd.f32 %v439, %v215
      %v479 = vadd.f32 %v440, %v216
      %v480 = vmul.f32 %v448, 2.0
      %v481 = vmul.f32 %v449, 2.0
      %v482 = vmul.f32 %v450, 2.0
      %v483 = vmul.f32 %v451, 2.0
      %v484 = vmul.f32 %v452, 2.0
      %v485 = vmul.f32 %v453, 2.0
      %v486 = vmul.f32 %v454, 2.0
      %v487 = vmul.f32 %v455, 2.0
      %v488 = vmul.f32 %v456, 2.0
      %v489 = vmul.f32 %v457, 2.0
      %v490 = vmul.f32 %v458, 2.0
      %v491 = vmul.f32 %v459, 2.0
      %v492 = vmul.f32 %v460, 2.0
      %v493 = vmul.f32 %v461, 2.0
      %v494 = vmul.f32 %v462, 2.0
      %v495 = vmul.f32 %v463, 2.0
      %v496 = vmul.f32 %v464, 2.0
      %v497 = vmul.f32 %v465, 2.0
      %v498 = vmul.f32 %v466, 2.0
      %v499 = vmul.f32 %v467, 2.0
      %v500 = vmul.f32 %v468, 2.0
      %v501 = vmul.f32 %v469, 2.0
      %v502 = vmul.f32 %v470, 2.0
      %v503 = vmul.f32 %v471, 2.0
      %v504 = vmul.f32 %v472, 2.0
      %v505 = vmul.f32 %v473, 2.0
      %v506 = vmul.f32 %v474, 2.0
      %v507 = vmul.f32 %v475, 2.0
      %v508 = vmul.f32 %v476, 2.0
      %v509 = vmul.f32 %v477, 2.0
      %v510 = vmul.f32 %v478, 2.0
      %v511 = vmul.f32 %v479, 2.0
      %vm512 = vcmp.eq.s32.totalorder %v195, 1
      %v513 = vadd.f32 %v409, %v196
      %v514 = vadd.f32 %v410, %v196
      %v515 = vadd.f32 %v411, %v197
      %v516 = vadd.f32 %v412, %v197
      %v517 = vadd.f32 %v413, %v198
      %v518 = vadd.f32 %v414, %v198
      %v519 = vadd.f32 %v415, %v199
      %v520 = vadd.f32 %v416, %v199
      %v521 = vadd.f32 %v417, %v200
      %v522 = vadd.f32 %v418, %v200
      %v523 = vadd.f32 %v419, %v201
      %v524 = vadd.f32 %v420, %v201
      %v525 = vadd.f32 %v421, %v202
      %v526 = vadd.f32 %v422, %v202
      %v527 = vadd.f32 %v423, %v203
      %v528 = vadd.f32 %v424, %v203
      %v529 = vadd.f32 %v425, %v204
      %v530 = vadd.f32 %v426, %v204
      %v531 = vadd.f32 %v427, %v205
      %v532 = vadd.f32 %v428, %v205
      %v533 = vadd.f32 %v429, %v206
      %v534 = vadd.f32 %v430, %v206
      %v535 = vadd.f32 %v431, %v207
      %v536 = vadd.f32 %v432, %v207
      %v537 = vadd.f32 %v433, %v208
      %v538 = vadd.f32 %v434, %v208
      %v539 = vadd.f32 %v435, %v209
      %v540 = vadd.f32 %v436, %v209
      %v541 = vadd.f32 %v437, %v210
      %v542 = vadd.f32 %v438, %v210
      %v543 = vadd.f32 %v439, %v211
      %v544 = vadd.f32 %v440, %v211
      %v545 = vmul.f32 %v513, 2.0
      %v546 = vmul.f32 %v514, 2.0
      %v547 = vmul.f32 %v515, 2.0
      %v548 = vmul.f32 %v516, 2.0
      %v549 = vmul.f32 %v517, 2.0
      %v550 = vmul.f32 %v518, 2.0
      %v551 = vmul.f32 %v519, 2.0
      %v552 = vmul.f32 %v520, 2.0
      %v553 = vmul.f32 %v521, 2.0
      %v554 = vmul.f32 %v522, 2.0
      %v555 = vmul.f32 %v523, 2.0
      %v556 = vmul.f32 %v524, 2.0
      %v557 = vmul.f32 %v525, 2.0
      %v558 = vmul.f32 %v526, 2.0
      %v559 = vmul.f32 %v527, 2.0
      %v560 = vmul.f32 %v528, 2.0
      %v561 = vmul.f32 %v529, 2.0
      %v562 = vmul.f32 %v530, 2.0
      %v563 = vmul.f32 %v531, 2.0
      %v564 = vmul.f32 %v532, 2.0
      %v565 = vmul.f32 %v533, 2.0
      %v566 = vmul.f32 %v534, 2.0
      %v567 = vmul.f32 %v535, 2.0
      %v568 = vmul.f32 %v536, 2.0
      %v569 = vmul.f32 %v537, 2.0
      %v570 = vmul.f32 %v538, 2.0
      %v571 = vmul.f32 %v539, 2.0
      %v572 = vmul.f32 %v540, 2.0
      %v573 = vmul.f32 %v541, 2.0
      %v574 = vmul.f32 %v542, 2.0
      %v575 = vmul.f32 %v543, 2.0
      %v576 = vmul.f32 %v544, 2.0
      %vm577 = vcmp.eq.s32.totalorder %v195, 2
      %v578 = vstv %s445
      %v579 = vmul.f32 %v218, %v578
      %v580 = vmul.f32 %v220, %v578
      %v581 = vmul.f32 %v222, %v578
      %v582 = vmul.f32 %v224, %v578
      %v583 = vmul.f32 %v226, %v578
      %v584 = vmul.f32 %v228, %v578
      %v585 = vmul.f32 %v230, %v578
      %v586 = vmul.f32 %v232, %v578
      %v587 = vmul.f32 %v234, %v578
      %v588 = vmul.f32 %v236, %v578
      %v589 = vmul.f32 %v238, %v578
      %v590 = vmul.f32 %v240, %v578
      %v591 = vmul.f32 %v242, %v578
      %v592 = vmul.f32 %v244, %v578
      %v593 = vmul.f32 %v246, %v578
      %v594 = vmul.f32 %v248, %v578
      %v595 = vmul.f32 %v250, %v578
      %v596 = vmul.f32 %v252, %v578
      %v597 = vmul.f32 %v254, %v578
      %v598 = vmul.f32 %v256, %v578
      %v599 = vmul.f32 %v258, %v578
      %v600 = vmul.f32 %v260, %v578
      %v601 = vmul.f32 %v262, %v578
      %v602 = vmul.f32 %v264, %v578
      %v603 = vmul.f32 %v266, %v578
      %v604 = vmul.f32 %v268, %v578
      %v605 = vmul.f32 %v270, %v578
      %v606 = vmul.f32 %v272, %v578
      %v607 = vmul.f32 %v274, %v578
      %v608 = vmul.f32 %v276, %v578
      %v609 = vmul.f32 %v278, %v578
      %v610 = vmul.f32 %v280, %v578
      %v611 = vmul.f32 %v579, 2.0
      %v612 = vmul.f32 %v580, 2.0
      %v613 = vmul.f32 %v581, 2.0
      %v614 = vmul.f32 %v582, 2.0
      %v615 = vmul.f32 %v583, 2.0
      %v616 = vmul.f32 %v584, 2.0
      %v617 = vmul.f32 %v585, 2.0
      %v618 = vmul.f32 %v586, 2.0
      %v619 = vmul.f32 %v587, 2.0
      %v620 = vmul.f32 %v588, 2.0
      %v621 = vmul.f32 %v589, 2.0
      %v622 = vmul.f32 %v590, 2.0
      %v623 = vmul.f32 %v591, 2.0
      %v624 = vmul.f32 %v592, 2.0
      %v625 = vmul.f32 %v593, 2.0
      %v626 = vmul.f32 %v594, 2.0
      %v627 = vmul.f32 %v595, 2.0
      %v628 = vmul.f32 %v596, 2.0
      %v629 = vmul.f32 %v597, 2.0
      %v630 = vmul.f32 %v598, 2.0
      %v631 = vmul.f32 %v599, 2.0
      %v632 = vmul.f32 %v600, 2.0
      %v633 = vmul.f32 %v601, 2.0
      %v634 = vmul.f32 %v602, 2.0
      %v635 = vmul.f32 %v603, 2.0
      %v636 = vmul.f32 %v604, 2.0
      %v637 = vmul.f32 %v605, 2.0
      %v638 = vmul.f32 %v606, 2.0
      %v639 = vmul.f32 %v607, 2.0
      %v640 = vmul.f32 %v608, 2.0
      %v641 = vmul.f32 %v609, 2.0
      %v642 = vmul.f32 %v610, 2.0
      %vm643 = vcmp.eq.s32.totalorder %v195, 3
      %v644 = vstv %s446
      %v645 = vmul.f32 %v218, %v644
      %v646 = vmul.f32 %v220, %v644
      %v647 = vmul.f32 %v222, %v644
      %v648 = vmul.f32 %v224, %v644
      %v649 = vmul.f32 %v226, %v644
      %v650 = vmul.f32 %v228, %v644
      %v651 = vmul.f32 %v230, %v644
      %v652 = vmul.f32 %v232, %v644
      %v653 = vmul.f32 %v234, %v644
      %v654 = vmul.f32 %v236, %v644
      %v655 = vmul.f32 %v238, %v644
      %v656 = vmul.f32 %v240, %v644
      %v657 = vmul.f32 %v242, %v644
      %v658 = vmul.f32 %v244, %v644
      %v659 = vmul.f32 %v246, %v644
      %v660 = vmul.f32 %v248, %v644
      %v661 = vmul.f32 %v250, %v644
      %v662 = vmul.f32 %v252, %v644
      %v663 = vmul.f32 %v254, %v644
      %v664 = vmul.f32 %v256, %v644
      %v665 = vmul.f32 %v258, %v644
      %v666 = vmul.f32 %v260, %v644
      %v667 = vmul.f32 %v262, %v644
      %v668 = vmul.f32 %v264, %v644
      %v669 = vmul.f32 %v266, %v644
      %v670 = vmul.f32 %v268, %v644
      %v671 = vmul.f32 %v270, %v644
      %v672 = vmul.f32 %v272, %v644
      %v673 = vmul.f32 %v274, %v644
      %v674 = vmul.f32 %v276, %v644
      %v675 = vmul.f32 %v278, %v644
      %v676 = vmul.f32 %v280, %v644
      %v677 = vmul.f32 %v645, 2.0
      %v678 = vmul.f32 %v646, 2.0
      %v679 = vmul.f32 %v647, 2.0
      %v680 = vmul.f32 %v648, 2.0
      %v681 = vmul.f32 %v649, 2.0
      %v682 = vmul.f32 %v650, 2.0
      %v683 = vmul.f32 %v651, 2.0
      %v684 = vmul.f32 %v652, 2.0
      %v685 = vmul.f32 %v653, 2.0
      %v686 = vmul.f32 %v654, 2.0
      %v687 = vmul.f32 %v655, 2.0
      %v688 = vmul.f32 %v656, 2.0
      %v689 = vmul.f32 %v657, 2.0
      %v690 = vmul.f32 %v658, 2.0
      %v691 = vmul.f32 %v659, 2.0
      %v692 = vmul.f32 %v660, 2.0
      %v693 = vmul.f32 %v661, 2.0
      %v694 = vmul.f32 %v662, 2.0
      %v695 = vmul.f32 %v663, 2.0
      %v696 = vmul.f32 %v664, 2.0
      %v697 = vmul.f32 %v665, 2.0
      %v698 = vmul.f32 %v666, 2.0
      %v699 = vmul.f32 %v667, 2.0
      %v700 = vmul.f32 %v668, 2.0
      %v701 = vmul.f32 %v669, 2.0
      %v702 = vmul.f32 %v670, 2.0
      %v703 = vmul.f32 %v671, 2.0
      %v704 = vmul.f32 %v672, 2.0
      %v705 = vmul.f32 %v673, 2.0
      %v706 = vmul.f32 %v674, 2.0
      %v707 = vmul.f32 %v675, 2.0
      %v708 = vmul.f32 %v676, 2.0
      %vm709 = vcmp.lt.s32.totalorder %v195, 13
      %v710 = vsel %vm709, %v409, 0.0
      %v711 = vsel %vm709, %v410, 0.0
      %v712 = vsel %vm709, %v411, 0.0
      %v713 = vsel %vm709, %v412, 0.0
      %v714 = vsel %vm709, %v413, 0.0
      %v715 = vsel %vm709, %v414, 0.0
      %v716 = vsel %vm709, %v415, 0.0
      %v717 = vsel %vm709, %v416, 0.0
      %v718 = vsel %vm709, %v417, 0.0
      %v719 = vsel %vm709, %v418, 0.0
      %v720 = vsel %vm709, %v419, 0.0
      %v721 = vsel %vm709, %v420, 0.0
      %v722 = vsel %vm709, %v421, 0.0
      %v723 = vsel %vm709, %v422, 0.0
      %v724 = vsel %vm709, %v423, 0.0
      %v725 = vsel %vm709, %v424, 0.0
      %v726 = vsel %vm709, %v425, 0.0
      %v727 = vsel %vm709, %v426, 0.0
      %v728 = vsel %vm709, %v427, 0.0
      %v729 = vsel %vm709, %v428, 0.0
      %v730 = vsel %vm709, %v429, 0.0
      %v731 = vsel %vm709, %v430, 0.0
      %v732 = vsel %vm709, %v431, 0.0
      %v733 = vsel %vm709, %v432, 0.0
      %v734 = vsel %vm709, %v433, 0.0
      %v735 = vsel %vm709, %v434, 0.0
      %v736 = vsel %vm709, %v435, 0.0
      %v737 = vsel %vm709, %v436, 0.0
      %v738 = vsel %vm709, %v437, 0.0
      %v739 = vsel %vm709, %v438, 0.0
      %v740 = vsel %vm709, %v439, 0.0
      %v741 = vsel %vm709, %v440, 0.0
      %v742 = vsel %vm643, %v677, %v710
      %v743 = vsel %vm643, %v678, %v711
      %v744 = vsel %vm643, %v679, %v712
      %v745 = vsel %vm643, %v680, %v713
      %v746 = vsel %vm643, %v681, %v714
      %v747 = vsel %vm643, %v682, %v715
      %v748 = vsel %vm643, %v683, %v716
      %v749 = vsel %vm643, %v684, %v717
      %v750 = vsel %vm643, %v685, %v718
      %v751 = vsel %vm643, %v686, %v719
      %v752 = vsel %vm643, %v687, %v720
      %v753 = vsel %vm643, %v688, %v721
      %v754 = vsel %vm643, %v689, %v722
      %v755 = vsel %vm643, %v690, %v723
      %v756 = vsel %vm643, %v691, %v724
      %v757 = vsel %vm643, %v692, %v725
      %v758 = vsel %vm643, %v693, %v726
      %v759 = vsel %vm643, %v694, %v727
      %v760 = vsel %vm643, %v695, %v728
      %v761 = vsel %vm643, %v696, %v729
      %v762 = vsel %vm643, %v697, %v730
      %v763 = vsel %vm643, %v698, %v731
      %v764 = vsel %vm643, %v699, %v732
      %v765 = vsel %vm643, %v700, %v733
      %v766 = vsel %vm643, %v701, %v734
      %v767 = vsel %vm643, %v702, %v735
      %v768 = vsel %vm643, %v703, %v736
      %v769 = vsel %vm643, %v704, %v737
      %v770 = vsel %vm643, %v705, %v738
      %v771 = vsel %vm643, %v706, %v739
      %v772 = vsel %vm643, %v707, %v740
      %v773 = vsel %vm643, %v708, %v741
      %v774 = vsel %vm577, %v611, %v742
      %v775 = vsel %vm577, %v612, %v743
      %v776 = vsel %vm577, %v613, %v744
      %v777 = vsel %vm577, %v614, %v745
      %v778 = vsel %vm577, %v615, %v746
      %v779 = vsel %vm577, %v616, %v747
      %v780 = vsel %vm577, %v617, %v748
      %v781 = vsel %vm577, %v618, %v749
      %v782 = vsel %vm577, %v619, %v750
      %v783 = vsel %vm577, %v620, %v751
      %v784 = vsel %vm577, %v621, %v752
      %v785 = vsel %vm577, %v622, %v753
      %v786 = vsel %vm577, %v623, %v754
      %v787 = vsel %vm577, %v624, %v755
      %v788 = vsel %vm577, %v625, %v756
      %v789 = vsel %vm577, %v626, %v757
      %v790 = vsel %vm577, %v627, %v758
      %v791 = vsel %vm577, %v628, %v759
      %v792 = vsel %vm577, %v629, %v760
      %v793 = vsel %vm577, %v630, %v761
      %v794 = vsel %vm577, %v631, %v762
      %v795 = vsel %vm577, %v632, %v763
      %v796 = vsel %vm577, %v633, %v764
      %v797 = vsel %vm577, %v634, %v765
      %v798 = vsel %vm577, %v635, %v766
      %v799 = vsel %vm577, %v636, %v767
      %v800 = vsel %vm577, %v637, %v768
      %v801 = vsel %vm577, %v638, %v769
      %v802 = vsel %vm577, %v639, %v770
      %v803 = vsel %vm577, %v640, %v771
      %v804 = vsel %vm577, %v641, %v772
      %v805 = vsel %vm577, %v642, %v773
      %v806 = vsel %vm512, %v545, %v774
      %v807 = vsel %vm512, %v546, %v775
      %v808 = vsel %vm512, %v547, %v776
      %v809 = vsel %vm512, %v548, %v777
      %v810 = vsel %vm512, %v549, %v778
      %v811 = vsel %vm512, %v550, %v779
      %v812 = vsel %vm512, %v551, %v780
      %v813 = vsel %vm512, %v552, %v781
      %v814 = vsel %vm512, %v553, %v782
      %v815 = vsel %vm512, %v554, %v783
      %v816 = vsel %vm512, %v555, %v784
      %v817 = vsel %vm512, %v556, %v785
      %v818 = vsel %vm512, %v557, %v786
      %v819 = vsel %vm512, %v558, %v787
      %v820 = vsel %vm512, %v559, %v788
      %v821 = vsel %vm512, %v560, %v789
      %v822 = vsel %vm512, %v561, %v790
      %v823 = vsel %vm512, %v562, %v791
      %v824 = vsel %vm512, %v563, %v792
      %v825 = vsel %vm512, %v564, %v793
      %v826 = vsel %vm512, %v565, %v794
      %v827 = vsel %vm512, %v566, %v795
      %v828 = vsel %vm512, %v567, %v796
      %v829 = vsel %vm512, %v568, %v797
      %v830 = vsel %vm512, %v569, %v798
      %v831 = vsel %vm512, %v570, %v799
      %v832 = vsel %vm512, %v571, %v800
      %v833 = vsel %vm512, %v572, %v801
      %v834 = vsel %vm512, %v573, %v802
      %v835 = vsel %vm512, %v574, %v803
      %v836 = vsel %vm512, %v575, %v804
      %v837 = vsel %vm512, %v576, %v805
      %v838 = vsel %vm447, %v480, %v806
      %v839 = vsel %vm447, %v481, %v807
      %v840 = vsel %vm447, %v482, %v808
      %v841 = vsel %vm447, %v483, %v809
      %v842 = vsel %vm447, %v484, %v810
      %v843 = vsel %vm447, %v485, %v811
      %v844 = vsel %vm447, %v486, %v812
      %v845 = vsel %vm447, %v487, %v813
      %v846 = vsel %vm447, %v488, %v814
      %v847 = vsel %vm447, %v489, %v815
      %v848 = vsel %vm447, %v490, %v816
      %v849 = vsel %vm447, %v491, %v817
      %v850 = vsel %vm447, %v492, %v818
      %v851 = vsel %vm447, %v493, %v819
      %v852 = vsel %vm447, %v494, %v820
      %v853 = vsel %vm447, %v495, %v821
      %v854 = vsel %vm447, %v496, %v822
      %v855 = vsel %vm447, %v497, %v823
      %v856 = vsel %vm447, %v498, %v824
      %v857 = vsel %vm447, %v499, %v825
      %v858 = vsel %vm447, %v500, %v826
      %v859 = vsel %vm447, %v501, %v827
      %v860 = vsel %vm447, %v502, %v828
      %v861 = vsel %vm447, %v503, %v829
      %v862 = vsel %vm447, %v504, %v830
      %v863 = vsel %vm447, %v505, %v831
      %v864 = vsel %vm447, %v506, %v832
      %v865 = vsel %vm447, %v507, %v833
      %v866 = vsel %vm447, %v508, %v834
      %v867 = vsel %vm447, %v509, %v835
      %v868 = vsel %vm447, %v510, %v836
      %v869 = vsel %vm447, %v511, %v837
      %870 = vst [vmem:[%s116] sm:$0xff] %v838
      %871 = vst [vmem:[%s116 + $0x8] sm:$0xff] %v839
      %872 = vst [vmem:[%s116 + $0x10] sm:$0xff] %v840
      %873 = vst [vmem:[%s116 + $0x18] sm:$0xff] %v841
      %874 = vst [vmem:[%s116 + $0x20] sm:$0xff] %v842
      %875 = vst [vmem:[%s116 + $0x28] sm:$0xff] %v843
      %876 = vst [vmem:[%s116 + $0x30] sm:$0xff] %v844
      %877 = vst [vmem:[%s116 + $0x38] sm:$0xff] %v845
      %878 = vst [vmem:[%s116 + $0x40] sm:$0xff] %v846
      %879 = vst [vmem:[%s116 + $0x48] sm:$0xff] %v847
      %880 = vst [vmem:[%s116 + $0x50] sm:$0xff] %v848
      %881 = vst [vmem:[%s116 + $0x58] sm:$0xff] %v849
      %882 = vst [vmem:[%s116 + $0x60] sm:$0xff] %v850
      %883 = vst [vmem:[%s116 + $0x68] sm:$0xff] %v851
      %884 = vst [vmem:[%s116 + $0x70] sm:$0xff] %v852
      %885 = vst [vmem:[%s116 + $0x78] sm:$0xff] %v853
      %886 = vst [vmem:[%s116 + $0x80] sm:$0xff] %v854
      %887 = vst [vmem:[%s116 + $0x88] sm:$0xff] %v855
      %888 = vst [vmem:[%s116 + $0x90] sm:$0xff] %v856
      %889 = vst [vmem:[%s116 + $0x98] sm:$0xff] %v857
      %890 = vst [vmem:[%s116 + $0xa0] sm:$0xff] %v858
      %891 = vst [vmem:[%s116 + $0xa8] sm:$0xff] %v859
      %892 = vst [vmem:[%s116 + $0xb0] sm:$0xff] %v860
      %893 = vst [vmem:[%s116 + $0xb8] sm:$0xff] %v861
      %894 = vst [vmem:[%s116 + $0xc0] sm:$0xff] %v862
      %895 = vst [vmem:[%s116 + $0xc8] sm:$0xff] %v863
      %896 = vst [vmem:[%s116 + $0xd0] sm:$0xff] %v864
      %897 = vst [vmem:[%s116 + $0xd8] sm:$0xff] %v865
      %898 = vst [vmem:[%s116 + $0xe0] sm:$0xff] %v866
      %899 = vst [vmem:[%s116 + $0xe8] sm:$0xff] %v867
      %900 = vst [vmem:[%s116 + $0xf0] sm:$0xff] %v868
      %901 = vst [vmem:[%s116 + $0xf8] sm:$0xff] %v869
      %p902 = scmp.lt.s32.totalorder %s12, 5
      %s903 = scalar_select %p902, %s12, 5
      %s904 = smul.addr %s903, 32
      %s905 = smul.addr %s904, 8
      %s906 = scalar_lea.vmem %s1, %s905
      // Predicated region
      $region25: #{_lambda_.25} parent=23 // pred_check
        %p907 = pneg %p56
      $region26: #{_lambda_.25} parent=23 // pred_check_branch
        %909 = sbr.rel (%p907) target = $region28
      $region27: #{_lambda_.25} parent=23 // pred_region
        _
      $region28: #{_lambda_.25} parent=23 // pred_fallthru
        _
    $region24: #{_lambda_.25} parent=5 // pred_fallthru
      _
    %p910 = scmp.le.s32.totalorder 2, %s7
    // Predicated region
    $region29: #{_lambda_.25} parent=5 // pred_check
      %p911 = pneg %p910
    $region30: #{_lambda_.25} parent=5 // pred_check_branch
      %913 = sbr.rel (%p911) target = $region32
    $region31: #{_lambda_.25} parent=5 // pred_region
      %s914 = ssub.s32 %s7, 2
      // Predicated region
      $region33: #{_lambda_.25} parent=31 // pred_check
        %p915 = pneg %p62
      $region34: #{_lambda_.25} parent=31 // pred_check_branch
        %917 = sbr.rel (%p915) target = $region36
      $region35: #{_lambda_.25} parent=31 // pred_region
        %p918 = scmp.lt.s32.totalorder %s13, 5
        %s919 = scalar_select %p918, %s13, 5
        %s920 = smul.addr %s919, 32
        %s921 = smul.addr %s920, 8
        %s922 = scalar_lea.vmem %s1, %s921
      $region36: #{_lambda_.25} parent=31 // pred_fallthru
        _
    $region32: #{_lambda_.25} parent=5 // pred_fallthru
      _
  $region6: #{_lambda_.25} parent=0 // loop_footer
    %s11 = sadd.s32 1, %s7
  $region7: #{_lambda_.25} parent=0 // loop_footer_branch
    %6 = sbr.rel target = $region3
  $region8: #{_lambda_.25} parent=0 // loop_exit
    _

</llo_original>
